<compile_context>
chip_gen: v6e
topology: v6e:2x2x1
jax: 0.10.0
libtpu: 0.0.40
codegen_flags: <defaults>
</compile_context>

<pallas_src>
import functools

import jax
import jax.numpy as jnp
from jax.experimental import pallas as pl
from jax.experimental.pallas import tpu as pltpu

_K = 7            # 7-tap separable convs
_P = _K // 2      # 'same' padding = 3


# ----------------------------------------------------------------------------
# Fused kernel: one grid step == one image.
#   x_ref : [1, H, W, 768]   (NHWC, the four 192-channel branch inputs)
#   o_ref : [1, H, W, Cout]
#   pad_ref: VMEM scratch [H+6, W+6, max(192, c7)] used as the zero-padded
#            staging buffer for the 1D convs.
# ----------------------------------------------------------------------------
def _inception_c_kernel(x_ref, w1_ref, wp_ref,
                        w73_ref, w72_ref, w71_ref,
                        wd5_ref, wd4_ref, wd3_ref, wd2_ref, wd1_ref,
                        o_ref, pad_ref, *, compute_dtype):
    _, H, W, cout = o_ref.shape
    HW = H * W

    def relu(v):
        return jnp.maximum(v, 0.0)

    def mm(a, b):  # MXU matmul with fp32 accumulation
        return jnp.dot(a.astype(compute_dtype), b.astype(compute_dtype),
                       preferred_element_type=jnp.float32)

    def conv1d_same(v, w_ref_, axis):
        """7-tap 'same' conv of v:(H, W, Cin) along H (axis=0) or W (axis=1).

        v must already be relu'd (relu(0) == 0, so zero padding stays exact).
        """
        cin = v.shape[-1]
        cout_ = w_ref_.shape[-1]
        # Zero only the 3-wide margins the taps will read, then store the
        # activation into the interior of the VMEM pad buffer.
        if axis == 0:
            pad_ref[0:_P, 0:W, 0:cin] = jnp.zeros((_P, W, cin), jnp.float32)
            pad_ref[_P + H:H + 2 * _P, 0:W, 0:cin] = jnp.zeros(
                (_P, W, cin), jnp.float32)
            pad_ref[_P:_P + H, 0:W, 0:cin] = v
        else:
            pad_ref[0:H, 0:_P, 0:cin] = jnp.zeros((H, _P, cin), jnp.float32)
            pad_ref[0:H, _P + W:W + 2 * _P, 0:cin] = jnp.zeros(
                (H, _P, cin), jnp.float32)
            pad_ref[0:H, _P:_P + W, 0:cin] = v

        acc = jnp.zeros((HW, cout_), jnp.float32)
        for k in range(_K):      # unrolled taps; each tap = one channel matmul
            if axis == 0:
                tap = pad_ref[k:k + H, 0:W, 0:cin]
            else:
                tap = pad_ref[0:H, k:k + W, 0:cin]
            acc = acc + mm(tap.reshape(HW, cin), w_ref_[k])
        return acc.reshape(H, W, cout_)

    # ---- branch1x1 (ch 0:192) and branch_pool (ch 576:768): relu + 1x1 -----
    b1 = relu(x_ref[0, :, :, 0:192]).reshape(HW, 192)
    bp = relu(x_ref[0, :, :, 576:768]).reshape(HW, 192)
    acc = mm(b1, w1_ref[...]) + mm(bp, wp_ref[...])

    # ---- branch7x7 (ch 192:384): (7x1 along H) -> (1x7 along W) -> 1x1 -----
    t = conv1d_same(relu(x_ref[0, :, :, 192:384]), w73_ref, axis=0)
    t = conv1d_same(relu(t), w72_ref, axis=1)
    acc = acc + mm(relu(t).reshape(HW, t.shape[-1]), w71_ref[...])

    # ---- branch7x7dbl (ch 384:576): (1x7)->(7x1)->(1x7)->(7x1)->1x1 --------
    t = conv1d_same(relu(x_ref[0, :, :, 384:576]), wd5_ref, axis=1)
    t = conv1d_same(relu(t), wd4_ref, axis=0)
    t = conv1d_same(relu(t), wd3_ref, axis=1)
    t = conv1d_same(relu(t), wd2_ref, axis=0)
    acc = acc + mm(relu(t).reshape(HW, t.shape[-1]), wd1_ref[...])

    o_ref[0] = acc.reshape(H, W, cout).astype(o_ref.dtype)


# ----------------------------------------------------------------------------
# Weight layout converters (from PyTorch OIHW).
# ----------------------------------------------------------------------------
def _w1x1(w):   # [Cout,Cin,1,1] -> [Cin,Cout]
    return jnp.transpose(w[:, :, 0, 0], (1, 0))


def _w7h(w):    # [Cout,Cin,7,1] -> [7,Cin,Cout]   (kernel (7,1): conv along H)
    return jnp.transpose(w[:, :, :, 0], (2, 1, 0))


def _w7w(w):    # [Cout,Cin,1,7] -> [7,Cin,Cout]   (kernel (1,7): conv along W)
    return jnp.transpose(w[:, :, 0, :], (2, 1, 0))


# ----------------------------------------------------------------------------
# Module wrapper: parameters + forward.
# ----------------------------------------------------------------------------
def init_params(key, in_channels, c7):
    # PyTorch Conv2d weight layout: [Cout, Cin, kh, kw]
    shapes = {
        "branch1x1": (in_channels, 192, 1, 1),
        "branch7x7_3": (c7, 192, 7, 1),
        "branch7x7_2": (c7, c7, 1, 7),
        "branch7x7_1": (in_channels, c7, 1, 1),
        "branch7x7dbl_5": (c7, 192, 1, 7),
        "branch7x7dbl_4": (c7, c7, 7, 1),
        "branch7x7dbl_3": (c7, c7, 1, 7),
        "branch7x7dbl_2": (c7, c7, 7, 1),
        "branch7x7dbl_1": (in_channels, c7, 1, 1),
        "branch_pool": (in_channels, 192, 1, 1),
    }
    keys = jax.random.split(key, len(shapes))
    params = {}
    for k, (name, shp) in zip(keys, sorted(shapes.items())):
        params[name] = jax.random.normal(k, shp, jnp.float32) * 0.05
    return params


def inception_c_dec_forward(x_nchw, params, *, compute_dtype=jnp.float32):
    """Forward pass of InceptionC_dec.  x_nchw: [N, 4*192, H, W] float32."""
    N, C, H, W = x_nchw.shape
    assert C == 4 * 192, C   # the module hard-codes 192 input ch per branch
    x = jnp.transpose(x_nchw, (0, 2, 3, 1))            # NCHW -> NHWC

    c7 = params["branch7x7_2"].shape[0]
    cout = params["branch1x1"].shape[0]

    weights = (
        _w1x1(params["branch1x1"]),        # (192, cout)
        _w1x1(params["branch_pool"]),      # (192, cout)
        _w7h(params["branch7x7_3"]),       # (7, 192, c7)   conv along H
        _w7w(params["branch7x7_2"]),       # (7, c7, c7)    conv along W
        _w1x1(params["branch7x7_1"]),      # (c7, cout)
        _w7w(params["branch7x7dbl_5"]),    # (7, 192, c7)   conv along W
        _w7h(params["branch7x7dbl_4"]),    # (7, c7, c7)    conv along H
        _w7w(params["branch7x7dbl_3"]),    # (7, c7, c7)    conv along W
        _w7h(params["branch7x7dbl_2"]),    # (7, c7, c7)    conv along H
        _w1x1(params["branch7x7dbl_1"]),   # (c7, cout)
    )

    def _w_spec(shape):
        zeros = (0,) * len(shape)
        return pl.BlockSpec(shape, lambda n, _z=zeros: _z)

    cpad = max(192, c7)
    # VMEM budget: double-buffered input/output blocks + weights + pad scratch.
    itemsz = 4
    need = (2 * H * W * C * itemsz
            + 2 * H * W * cout * itemsz
            + 2 * sum(int(w.size) * itemsz for w in weights)
            + (H + 2 * _P) * (W + 2 * _P) * cpad * itemsz
            + (4 << 20))
    vmem_limit = min(max(need, 32 << 20), 64 << 20)

    kern = functools.partial(_inception_c_kernel, compute_dtype=compute_dtype)

    out = pl.pallas_call(
        kern,
        out_shape=jax.ShapeDtypeStruct((N, H, W, cout), jnp.float32),
        grid=(N,),
        in_specs=([pl.BlockSpec((1, H, W, C), lambda n: (n, 0, 0, 0))]
                  + [_w_spec(w.shape) for w in weights]),
        out_specs=pl.BlockSpec((1, H, W, cout), lambda n: (n, 0, 0, 0)),
        scratch_shapes=[pltpu.VMEM((H + 2 * _P, W + 2 * _P, cpad), jnp.float32)],
        compiler_params=pltpu.CompilerParams(
            dimension_semantics=("parallel",),
            vmem_limit_bytes=vmem_limit),
    )(x, *weights)

    return jnp.transpose(out, (0, 3, 1, 2))            # NHWC -> NCHW


# ----------------------------------------------------------------------------
# Pure-JAX reference (mirrors PyTorch exactly) for a correctness check.
# ----------------------------------------------------------------------------
def _conv_ref(x, w, pad):
    return jax.lax.conv_general_dilated(
        jax.nn.relu(x), w, window_strides=(1, 1),
        padding=((pad[0], pad[0]), (pad[1], pad[1])),
        dimension_numbers=("NCHW", "OIHW", "NCHW"))


def inception_c_dec_ref(x, p):
    b1, b7, b7d, bp = jnp.split(x, 4, axis=1)
    branch1x1 = _conv_ref(b1, p["branch1x1"], (0, 0))
    t = _conv_ref(b7, p["branch7x7_3"], (3, 0))
    t = _conv_ref(t, p["branch7x7_2"], (0, 3))
    branch7x7 = _conv_ref(t, p["branch7x7_1"], (0, 0))
    t = _conv_ref(b7d, p["branch7x7dbl_5"], (0, 3))
    t = _conv_ref(t, p["branch7x7dbl_4"], (3, 0))
    t = _conv_ref(t, p["branch7x7dbl_3"], (0, 3))
    t = _conv_ref(t, p["branch7x7dbl_2"], (3, 0))
    branch7x7dbl = _conv_ref(t, p["branch7x7dbl_1"], (0, 0))
    branch_pool = _conv_ref(bp, p["branch_pool"], (0, 0))
    return branch1x1 + branch7x7 + branch7x7dbl + branch_pool


if __name__ == "__main__":
    key = jax.random.PRNGKey(0)
    kx, kp = jax.random.split(key)

    # The module hard-codes 192 input channels per branch -> 4*192 = 768 total.
    N, H, W = 2, 8, 8
    in_channels, c7 = 8, 8

    x = jax.random.normal(kx, (N, 4 * 192, H, W), jnp.float32)
    params = init_params(kp, in_channels, c7)

    fwd = jax.jit(inception_c_dec_forward)
    out = jax.block_until_ready(fwd(x, params))

    ref = inception_c_dec_ref(x, params)
    assert out.shape == (N, in_channels, H, W), out.shape
    if not jnp.allclose(out, ref, rtol=2e-3, atol=2e-3):
        raise AssertionError("Pallas output does not match JAX reference")

    print("KERNEL_OK")
</pallas_src>

<mosaic_0001>
module attributes {stable_mosaic.version = 11 : i64} {
  func.func @_inception_c_kernel(%arg0: i32, %arg1: memref<1x8x8x768xf32, #tpu.memory_space<vmem>>, %arg2: memref<192x8xf32, #tpu.memory_space<vmem>>, %arg3: memref<192x8xf32, #tpu.memory_space<vmem>>, %arg4: memref<7x192x8xf32, #tpu.memory_space<vmem>>, %arg5: memref<7x8x8xf32, #tpu.memory_space<vmem>>, %arg6: memref<8x8xf32, #tpu.memory_space<vmem>>, %arg7: memref<7x192x8xf32, #tpu.memory_space<vmem>>, %arg8: memref<7x8x8xf32, #tpu.memory_space<vmem>>, %arg9: memref<7x8x8xf32, #tpu.memory_space<vmem>>, %arg10: memref<7x8x8xf32, #tpu.memory_space<vmem>>, %arg11: memref<8x8xf32, #tpu.memory_space<vmem>>, %arg12: memref<1x8x8x8xf32, #tpu.memory_space<vmem>>, %arg13: memref<14x14x192xf32, #tpu.memory_space<vmem>>) attributes {dimension_semantics = [#tpu.dimension_semantics<parallel>], iteration_bounds = array<i64: 2>, scalar_prefetch = 0 : i64, scratch_operands = 1 : i64, tpu.core_type = #tpu.core_type<tc>, window_params = [{transform_indices = @transform_0, window_bounds = array<i64: 1, 8, 8, 768>}, {pipeline_mode = #tpu.pipeline_mode<synchronous>, transform_indices = @transform_1, window_bounds = array<i64: 192, 8>}, {pipeline_mode = #tpu.pipeline_mode<synchronous>, transform_indices = @transform_2, window_bounds = array<i64: 192, 8>}, {pipeline_mode = #tpu.pipeline_mode<synchronous>, transform_indices = @transform_3, window_bounds = array<i64: 7, 192, 8>}, {pipeline_mode = #tpu.pipeline_mode<synchronous>, transform_indices = @transform_4, window_bounds = array<i64: 7, 8, 8>}, {pipeline_mode = #tpu.pipeline_mode<synchronous>, transform_indices = @transform_5, window_bounds = array<i64: 8, 8>}, {pipeline_mode = #tpu.pipeline_mode<synchronous>, transform_indices = @transform_6, window_bounds = array<i64: 7, 192, 8>}, {pipeline_mode = #tpu.pipeline_mode<synchronous>, transform_indices = @transform_7, window_bounds = array<i64: 7, 8, 8>}, {pipeline_mode = #tpu.pipeline_mode<synchronous>, transform_indices = @transform_8, window_bounds = array<i64: 7, 8, 8>}, {pipeline_mode = #tpu.pipeline_mode<synchronous>, transform_indices = @transform_9, window_bounds = array<i64: 7, 8, 8>}, {pipeline_mode = #tpu.pipeline_mode<synchronous>, transform_indices = @transform_10, window_bounds = array<i64: 8, 8>}, {transform_indices = @transform_11, window_bounds = array<i64: 1, 8, 8, 8>}]} {
    %c0 = arith.constant 0 : index
    %c0_0 = arith.constant 0 : index
    %c0_1 = arith.constant 0 : index
    %c0_2 = arith.constant 0 : index
    %0 = vector.load %arg1[%c0, %c0_0, %c0_1, %c0_2] : memref<1x8x8x768xf32, #tpu.memory_space<vmem>>, vector<1x8x8x192xf32>
    %1 = vector.shape_cast %0 : vector<1x8x8x192xf32> to vector<8x8x192xf32>
    %cst = arith.constant 0.000000e+00 : f32
    %2 = vector.broadcast %cst : f32 to vector<8x8x192xf32>
    %3 = arith.maximumf %1, %2 : vector<8x8x192xf32>
    %4 = vector.shape_cast %3 : vector<8x8x192xf32> to vector<64x192xf32>
    %c0_3 = arith.constant 0 : index
    %c0_4 = arith.constant 0 : index
    %c0_5 = arith.constant 0 : index
    %c576 = arith.constant 576 : index
    %5 = vector.load %arg1[%c0_3, %c0_4, %c0_5, %c576] : memref<1x8x8x768xf32, #tpu.memory_space<vmem>>, vector<1x8x8x192xf32>
    %6 = vector.shape_cast %5 : vector<1x8x8x192xf32> to vector<8x8x192xf32>
    %cst_6 = arith.constant 0.000000e+00 : f32
    %7 = vector.broadcast %cst_6 : f32 to vector<8x8x192xf32>
    %8 = arith.maximumf %6, %7 : vector<8x8x192xf32>
    %9 = vector.shape_cast %8 : vector<8x8x192xf32> to vector<64x192xf32>
    %c0_7 = arith.constant 0 : index
    %c0_8 = arith.constant 0 : index
    %10 = vector.load %arg2[%c0_7, %c0_8] : memref<192x8xf32, #tpu.memory_space<vmem>>, vector<192x8xf32>
    %cst_9 = arith.constant dense<0.000000e+00> : vector<64x8xf32>
    %11 = tpu.matmul %4, %10, %cst_9 {dimension_numbers = #tpu.dot_dimension_numbers<[1], [0], [0], [1], [0, 0, 1, 1], [], []>} : vector<64x192xf32>, vector<192x8xf32>, vector<64x8xf32> -> vector<64x8xf32>
    %c0_10 = arith.constant 0 : index
    %c0_11 = arith.constant 0 : index
    %12 = vector.load %arg3[%c0_10, %c0_11] : memref<192x8xf32, #tpu.memory_space<vmem>>, vector<192x8xf32>
    %cst_12 = arith.constant dense<0.000000e+00> : vector<64x8xf32>
    %13 = tpu.matmul %9, %12, %cst_12 {dimension_numbers = #tpu.dot_dimension_numbers<[1], [0], [0], [1], [0, 0, 1, 1], [], []>} : vector<64x192xf32>, vector<192x8xf32>, vector<64x8xf32> -> vector<64x8xf32>
    %14 = arith.addf %11, %13 : vector<64x8xf32>
    %c0_13 = arith.constant 0 : index
    %c0_14 = arith.constant 0 : index
    %c0_15 = arith.constant 0 : index
    %c192 = arith.constant 192 : index
    %15 = vector.load %arg1[%c0_13, %c0_14, %c0_15, %c192] : memref<1x8x8x768xf32, #tpu.memory_space<vmem>>, vector<1x8x8x192xf32>
    %16 = vector.shape_cast %15 : vector<1x8x8x192xf32> to vector<8x8x192xf32>
    %cst_16 = arith.constant 0.000000e+00 : f32
    %17 = vector.broadcast %cst_16 : f32 to vector<8x8x192xf32>
    %18 = arith.maximumf %16, %17 : vector<8x8x192xf32>
    %cst_17 = arith.constant 0.000000e+00 : f32
    %19 = vector.broadcast %cst_17 : f32 to vector<3x8x192xf32>
    %c0_18 = arith.constant 0 : index
    %c0_19 = arith.constant 0 : index
    %c0_20 = arith.constant 0 : index
    %20 = vector.load %arg13[%c0_18, %c0_19, %c0_20] : memref<14x14x192xf32, #tpu.memory_space<vmem>>, vector<3x8x192xf32>
    tpu.vector_store %arg13[%c0_18, %c0_19, %c0_20], %19 {strides = array<i32>} : memref<14x14x192xf32, #tpu.memory_space<vmem>>, vector<3x8x192xf32>,
    %cst_21 = arith.constant 0.000000e+00 : f32
    %21 = vector.broadcast %cst_21 : f32 to vector<3x8x192xf32>
    %c11 = arith.constant 11 : index
    %c0_22 = arith.constant 0 : index
    %c0_23 = arith.constant 0 : index
    %22 = vector.load %arg13[%c11, %c0_22, %c0_23] : memref<14x14x192xf32, #tpu.memory_space<vmem>>, vector<3x8x192xf32>
    tpu.vector_store %arg13[%c11, %c0_22, %c0_23], %21 {strides = array<i32>} : memref<14x14x192xf32, #tpu.memory_space<vmem>>, vector<3x8x192xf32>,
    %c3 = arith.constant 3 : index
    %c0_24 = arith.constant 0 : index
    %c0_25 = arith.constant 0 : index
    %23 = vector.load %arg13[%c3, %c0_24, %c0_25] : memref<14x14x192xf32, #tpu.memory_space<vmem>>, vector<8x8x192xf32>
    tpu.vector_store %arg13[%c3, %c0_24, %c0_25], %18 {strides = array<i32>} : memref<14x14x192xf32, #tpu.memory_space<vmem>>, vector<8x8x192xf32>,
    %cst_26 = arith.constant 0.000000e+00 : f32
    %24 = vector.broadcast %cst_26 : f32 to vector<64x8xf32>
    %c0_27 = arith.constant 0 : index
    %c0_28 = arith.constant 0 : index
    %c0_29 = arith.constant 0 : index
    %25 = vector.load %arg13[%c0_27, %c0_28, %c0_29] : memref<14x14x192xf32, #tpu.memory_space<vmem>>, vector<8x8x192xf32>
    %26 = vector.shape_cast %25 : vector<8x8x192xf32> to vector<64x192xf32>
    %c0_30 = arith.constant 0 : index
    %c0_31 = arith.constant 0 : index
    %c0_32 = arith.constant 0 : index
    %27 = vector.load %arg4[%c0_30, %c0_31, %c0_32] : memref<7x192x8xf32, #tpu.memory_space<vmem>>, vector<1x192x8xf32>
    %28 = vector.shape_cast %27 : vector<1x192x8xf32> to vector<192x8xf32>
    %cst_33 = arith.constant dense<0.000000e+00> : vector<64x8xf32>
    %29 = tpu.matmul %26, %28, %cst_33 {dimension_numbers = #tpu.dot_dimension_numbers<[1], [0], [0], [1], [0, 0, 1, 1], [], []>} : vector<64x192xf32>, vector<192x8xf32>, vector<64x8xf32> -> vector<64x8xf32>
    %30 = arith.addf %24, %29 : vector<64x8xf32>
    %c1 = arith.constant 1 : index
    %c0_34 = arith.constant 0 : index
    %c0_35 = arith.constant 0 : index
    %31 = vector.load %arg13[%c1, %c0_34, %c0_35] : memref<14x14x192xf32, #tpu.memory_space<vmem>>, vector<8x8x192xf32>
    %32 = vector.shape_cast %31 : vector<8x8x192xf32> to vector<64x192xf32>
    %c1_36 = arith.constant 1 : index
    %c0_37 = arith.constant 0 : index
    %c0_38 = arith.constant 0 : index
    %33 = vector.load %arg4[%c1_36, %c0_37, %c0_38] : memref<7x192x8xf32, #tpu.memory_space<vmem>>, vector<1x192x8xf32>
    %34 = vector.shape_cast %33 : vector<1x192x8xf32> to vector<192x8xf32>
    %cst_39 = arith.constant dense<0.000000e+00> : vector<64x8xf32>
    %35 = tpu.matmul %32, %34, %cst_39 {dimension_numbers = #tpu.dot_dimension_numbers<[1], [0], [0], [1], [0, 0, 1, 1], [], []>} : vector<64x192xf32>, vector<192x8xf32>, vector<64x8xf32> -> vector<64x8xf32>
    %36 = arith.addf %30, %35 : vector<64x8xf32>
    %c2 = arith.constant 2 : index
    %c0_40 = arith.constant 0 : index
    %c0_41 = arith.constant 0 : index
    %37 = vector.load %arg13[%c2, %c0_40, %c0_41] : memref<14x14x192xf32, #tpu.memory_space<vmem>>, vector<8x8x192xf32>
    %38 = vector.shape_cast %37 : vector<8x8x192xf32> to vector<64x192xf32>
    %c2_42 = arith.constant 2 : index
    %c0_43 = arith.constant 0 : index
    %c0_44 = arith.constant 0 : index
    %39 = vector.load %arg4[%c2_42, %c0_43, %c0_44] : memref<7x192x8xf32, #tpu.memory_space<vmem>>, vector<1x192x8xf32>
    %40 = vector.shape_cast %39 : vector<1x192x8xf32> to vector<192x8xf32>
    %cst_45 = arith.constant dense<0.000000e+00> : vector<64x8xf32>
    %41 = tpu.matmul %38, %40, %cst_45 {dimension_numbers = #tpu.dot_dimension_numbers<[1], [0], [0], [1], [0, 0, 1, 1], [], []>} : vector<64x192xf32>, vector<192x8xf32>, vector<64x8xf32> -> vector<64x8xf32>
    %42 = arith.addf %36, %41 : vector<64x8xf32>
    %c3_46 = arith.constant 3 : index
    %c0_47 = arith.constant 0 : index
    %c0_48 = arith.constant 0 : index
    %43 = vector.load %arg13[%c3_46, %c0_47, %c0_48] : memref<14x14x192xf32, #tpu.memory_space<vmem>>, vector<8x8x192xf32>
    %44 = vector.shape_cast %43 : vector<8x8x192xf32> to vector<64x192xf32>
    %c3_49 = arith.constant 3 : index
    %c0_50 = arith.constant 0 : index
    %c0_51 = arith.constant 0 : index
    %45 = vector.load %arg4[%c3_49, %c0_50, %c0_51] : memref<7x192x8xf32, #tpu.memory_space<vmem>>, vector<1x192x8xf32>
    %46 = vector.shape_cast %45 : vector<1x192x8xf32> to vector<192x8xf32>
    %cst_52 = arith.constant dense<0.000000e+00> : vector<64x8xf32>
    %47 = tpu.matmul %44, %46, %cst_52 {dimension_numbers = #tpu.dot_dimension_numbers<[1], [0], [0], [1], [0, 0, 1, 1], [], []>} : vector<64x192xf32>, vector<192x8xf32>, vector<64x8xf32> -> vector<64x8xf32>
    %48 = arith.addf %42, %47 : vector<64x8xf32>
    %c4 = arith.constant 4 : index
    %c0_53 = arith.constant 0 : index
    %c0_54 = arith.constant 0 : index
    %49 = vector.load %arg13[%c4, %c0_53, %c0_54] : memref<14x14x192xf32, #tpu.memory_space<vmem>>, vector<8x8x192xf32>
    %50 = vector.shape_cast %49 : vector<8x8x192xf32> to vector<64x192xf32>
    %c4_55 = arith.constant 4 : index
    %c0_56 = arith.constant 0 : index
    %c0_57 = arith.constant 0 : index
    %51 = vector.load %arg4[%c4_55, %c0_56, %c0_57] : memref<7x192x8xf32, #tpu.memory_space<vmem>>, vector<1x192x8xf32>
    %52 = vector.shape_cast %51 : vector<1x192x8xf32> to vector<192x8xf32>
    %cst_58 = arith.constant dense<0.000000e+00> : vector<64x8xf32>
    %53 = tpu.matmul %50, %52, %cst_58 {dimension_numbers = #tpu.dot_dimension_numbers<[1], [0], [0], [1], [0, 0, 1, 1], [], []>} : vector<64x192xf32>, vector<192x8xf32>, vector<64x8xf32> -> vector<64x8xf32>
    %54 = arith.addf %48, %53 : vector<64x8xf32>
    %c5 = arith.constant 5 : index
    %c0_59 = arith.constant 0 : index
    %c0_60 = arith.constant 0 : index
    %55 = vector.load %arg13[%c5, %c0_59, %c0_60] : memref<14x14x192xf32, #tpu.memory_space<vmem>>, vector<8x8x192xf32>
    %56 = vector.shape_cast %55 : vector<8x8x192xf32> to vector<64x192xf32>
    %c5_61 = arith.constant 5 : index
    %c0_62 = arith.constant 0 : index
    %c0_63 = arith.constant 0 : index
    %57 = vector.load %arg4[%c5_61, %c0_62, %c0_63] : memref<7x192x8xf32, #tpu.memory_space<vmem>>, vector<1x192x8xf32>
    %58 = vector.shape_cast %57 : vector<1x192x8xf32> to vector<192x8xf32>
    %cst_64 = arith.constant dense<0.000000e+00> : vector<64x8xf32>
    %59 = tpu.matmul %56, %58, %cst_64 {dimension_numbers = #tpu.dot_dimension_numbers<[1], [0], [0], [1], [0, 0, 1, 1], [], []>} : vector<64x192xf32>, vector<192x8xf32>, vector<64x8xf32> -> vector<64x8xf32>
    %60 = arith.addf %54, %59 : vector<64x8xf32>
    %c6 = arith.constant 6 : index
    %c0_65 = arith.constant 0 : index
    %c0_66 = arith.constant 0 : index
    %61 = vector.load %arg13[%c6, %c0_65, %c0_66] : memref<14x14x192xf32, #tpu.memory_space<vmem>>, vector<8x8x192xf32>
    %62 = vector.shape_cast %61 : vector<8x8x192xf32> to vector<64x192xf32>
    %c6_67 = arith.constant 6 : index
    %c0_68 = arith.constant 0 : index
    %c0_69 = arith.constant 0 : index
    %63 = vector.load %arg4[%c6_67, %c0_68, %c0_69] : memref<7x192x8xf32, #tpu.memory_space<vmem>>, vector<1x192x8xf32>
    %64 = vector.shape_cast %63 : vector<1x192x8xf32> to vector<192x8xf32>
    %cst_70 = arith.constant dense<0.000000e+00> : vector<64x8xf32>
    %65 = tpu.matmul %62, %64, %cst_70 {dimension_numbers = #tpu.dot_dimension_numbers<[1], [0], [0], [1], [0, 0, 1, 1], [], []>} : vector<64x192xf32>, vector<192x8xf32>, vector<64x8xf32> -> vector<64x8xf32>
    %66 = arith.addf %60, %65 : vector<64x8xf32>
    %67 = vector.shape_cast %66 : vector<64x8xf32> to vector<8x8x8xf32>
    %cst_71 = arith.constant 0.000000e+00 : f32
    %68 = vector.broadcast %cst_71 : f32 to vector<8x8x8xf32>
    %69 = arith.maximumf %67, %68 : vector<8x8x8xf32>
    %cst_72 = arith.constant 0.000000e+00 : f32
    %70 = vector.broadcast %cst_72 : f32 to vector<8x3x8xf32>
    %c0_73 = arith.constant 0 : index
    %c0_74 = arith.constant 0 : index
    %c0_75 = arith.constant 0 : index
    %71 = vector.load %arg13[%c0_73, %c0_74, %c0_75] : memref<14x14x192xf32, #tpu.memory_space<vmem>>, vector<8x3x8xf32>
    tpu.vector_store %arg13[%c0_73, %c0_74, %c0_75], %70 {strides = array<i32>} : memref<14x14x192xf32, #tpu.memory_space<vmem>>, vector<8x3x8xf32>,
    %cst_76 = arith.constant 0.000000e+00 : f32
    %72 = vector.broadcast %cst_76 : f32 to vector<8x3x8xf32>
    %c0_77 = arith.constant 0 : index
    %c11_78 = arith.constant 11 : index
    %c0_79 = arith.constant 0 : index
    %73 = vector.load %arg13[%c0_77, %c11_78, %c0_79] : memref<14x14x192xf32, #tpu.memory_space<vmem>>, vector<8x3x8xf32>
    tpu.vector_store %arg13[%c0_77, %c11_78, %c0_79], %72 {strides = array<i32>} : memref<14x14x192xf32, #tpu.memory_space<vmem>>, vector<8x3x8xf32>,
    %c0_80 = arith.constant 0 : index
    %c3_81 = arith.constant 3 : index
    %c0_82 = arith.constant 0 : index
    %74 = vector.load %arg13[%c0_80, %c3_81, %c0_82] : memref<14x14x192xf32, #tpu.memory_space<vmem>>, vector<8x8x8xf32>
    tpu.vector_store %arg13[%c0_80, %c3_81, %c0_82], %69 {strides = array<i32>} : memref<14x14x192xf32, #tpu.memory_space<vmem>>, vector<8x8x8xf32>,
    %cst_83 = arith.constant 0.000000e+00 : f32
    %75 = vector.broadcast %cst_83 : f32 to vector<64x8xf32>
    %c0_84 = arith.constant 0 : index
    %c0_85 = arith.constant 0 : index
    %c0_86 = arith.constant 0 : index
    %76 = vector.load %arg13[%c0_84, %c0_85, %c0_86] : memref<14x14x192xf32, #tpu.memory_space<vmem>>, vector<8x8x8xf32>
    %77 = vector.shape_cast %76 : vector<8x8x8xf32> to vector<64x8xf32>
    %c0_87 = arith.constant 0 : index
    %c0_88 = arith.constant 0 : index
    %c0_89 = arith.constant 0 : index
    %78 = vector.load %arg5[%c0_87, %c0_88, %c0_89] : memref<7x8x8xf32, #tpu.memory_space<vmem>>, vector<1x8x8xf32>
    %79 = vector.shape_cast %78 : vector<1x8x8xf32> to vector<8x8xf32>
    %cst_90 = arith.constant dense<0.000000e+00> : vector<64x8xf32>
    %80 = tpu.matmul %77, %79, %cst_90 {dimension_numbers = #tpu.dot_dimension_numbers<[1], [0], [0], [1], [0, 0, 1, 1], [], []>} : vector<64x8xf32>, vector<8x8xf32>, vector<64x8xf32> -> vector<64x8xf32>
    %81 = arith.addf %75, %80 : vector<64x8xf32>
    %c0_91 = arith.constant 0 : index
    %c1_92 = arith.constant 1 : index
    %c0_93 = arith.constant 0 : index
    %82 = vector.load %arg13[%c0_91, %c1_92, %c0_93] : memref<14x14x192xf32, #tpu.memory_space<vmem>>, vector<8x8x8xf32>
    %83 = vector.shape_cast %82 : vector<8x8x8xf32> to vector<64x8xf32>
    %c1_94 = arith.constant 1 : index
    %c0_95 = arith.constant 0 : index
    %c0_96 = arith.constant 0 : index
    %84 = vector.load %arg5[%c1_94, %c0_95, %c0_96] : memref<7x8x8xf32, #tpu.memory_space<vmem>>, vector<1x8x8xf32>
    %85 = vector.shape_cast %84 : vector<1x8x8xf32> to vector<8x8xf32>
    %cst_97 = arith.constant dense<0.000000e+00> : vector<64x8xf32>
    %86 = tpu.matmul %83, %85, %cst_97 {dimension_numbers = #tpu.dot_dimension_numbers<[1], [0], [0], [1], [0, 0, 1, 1], [], []>} : vector<64x8xf32>, vector<8x8xf32>, vector<64x8xf32> -> vector<64x8xf32>
    %87 = arith.addf %81, %86 : vector<64x8xf32>
    %c0_98 = arith.constant 0 : index
    %c2_99 = arith.constant 2 : index
    %c0_100 = arith.constant 0 : index
    %88 = vector.load %arg13[%c0_98, %c2_99, %c0_100] : memref<14x14x192xf32, #tpu.memory_space<vmem>>, vector<8x8x8xf32>
    %89 = vector.shape_cast %88 : vector<8x8x8xf32> to vector<64x8xf32>
    %c2_101 = arith.constant 2 : index
    %c0_102 = arith.constant 0 : index
    %c0_103 = arith.constant 0 : index
    %90 = vector.load %arg5[%c2_101, %c0_102, %c0_103] : memref<7x8x8xf32, #tpu.memory_space<vmem>>, vector<1x8x8xf32>
    %91 = vector.shape_cast %90 : vector<1x8x8xf32> to vector<8x8xf32>
    %cst_104 = arith.constant dense<0.000000e+00> : vector<64x8xf32>
    %92 = tpu.matmul %89, %91, %cst_104 {dimension_numbers = #tpu.dot_dimension_numbers<[1], [0], [0], [1], [0, 0, 1, 1], [], []>} : vector<64x8xf32>, vector<8x8xf32>, vector<64x8xf32> -> vector<64x8xf32>
    %93 = arith.addf %87, %92 : vector<64x8xf32>
    %c0_105 = arith.constant 0 : index
    %c3_106 = arith.constant 3 : index
    %c0_107 = arith.constant 0 : index
    %94 = vector.load %arg13[%c0_105, %c3_106, %c0_107] : memref<14x14x192xf32, #tpu.memory_space<vmem>>, vector<8x8x8xf32>
    %95 = vector.shape_cast %94 : vector<8x8x8xf32> to vector<64x8xf32>
    %c3_108 = arith.constant 3 : index
    %c0_109 = arith.constant 0 : index
    %c0_110 = arith.constant 0 : index
    %96 = vector.load %arg5[%c3_108, %c0_109, %c0_110] : memref<7x8x8xf32, #tpu.memory_space<vmem>>, vector<1x8x8xf32>
    %97 = vector.shape_cast %96 : vector<1x8x8xf32> to vector<8x8xf32>
    %cst_111 = arith.constant dense<0.000000e+00> : vector<64x8xf32>
    %98 = tpu.matmul %95, %97, %cst_111 {dimension_numbers = #tpu.dot_dimension_numbers<[1], [0], [0], [1], [0, 0, 1, 1], [], []>} : vector<64x8xf32>, vector<8x8xf32>, vector<64x8xf32> -> vector<64x8xf32>
    %99 = arith.addf %93, %98 : vector<64x8xf32>
    %c0_112 = arith.constant 0 : index
    %c4_113 = arith.constant 4 : index
    %c0_114 = arith.constant 0 : index
    %100 = vector.load %arg13[%c0_112, %c4_113, %c0_114] : memref<14x14x192xf32, #tpu.memory_space<vmem>>, vector<8x8x8xf32>
    %101 = vector.shape_cast %100 : vector<8x8x8xf32> to vector<64x8xf32>
    %c4_115 = arith.constant 4 : index
    %c0_116 = arith.constant 0 : index
    %c0_117 = arith.constant 0 : index
    %102 = vector.load %arg5[%c4_115, %c0_116, %c0_117] : memref<7x8x8xf32, #tpu.memory_space<vmem>>, vector<1x8x8xf32>
    %103 = vector.shape_cast %102 : vector<1x8x8xf32> to vector<8x8xf32>
    %cst_118 = arith.constant dense<0.000000e+00> : vector<64x8xf32>
    %104 = tpu.matmul %101, %103, %cst_118 {dimension_numbers = #tpu.dot_dimension_numbers<[1], [0], [0], [1], [0, 0, 1, 1], [], []>} : vector<64x8xf32>, vector<8x8xf32>, vector<64x8xf32> -> vector<64x8xf32>
    %105 = arith.addf %99, %104 : vector<64x8xf32>
    %c0_119 = arith.constant 0 : index
    %c5_120 = arith.constant 5 : index
    %c0_121 = arith.constant 0 : index
    %106 = vector.load %arg13[%c0_119, %c5_120, %c0_121] : memref<14x14x192xf32, #tpu.memory_space<vmem>>, vector<8x8x8xf32>
    %107 = vector.shape_cast %106 : vector<8x8x8xf32> to vector<64x8xf32>
    %c5_122 = arith.constant 5 : index
    %c0_123 = arith.constant 0 : index
    %c0_124 = arith.constant 0 : index
    %108 = vector.load %arg5[%c5_122, %c0_123, %c0_124] : memref<7x8x8xf32, #tpu.memory_space<vmem>>, vector<1x8x8xf32>
    %109 = vector.shape_cast %108 : vector<1x8x8xf32> to vector<8x8xf32>
    %cst_125 = arith.constant dense<0.000000e+00> : vector<64x8xf32>
    %110 = tpu.matmul %107, %109, %cst_125 {dimension_numbers = #tpu.dot_dimension_numbers<[1], [0], [0], [1], [0, 0, 1, 1], [], []>} : vector<64x8xf32>, vector<8x8xf32>, vector<64x8xf32> -> vector<64x8xf32>
    %111 = arith.addf %105, %110 : vector<64x8xf32>
    %c0_126 = arith.constant 0 : index
    %c6_127 = arith.constant 6 : index
    %c0_128 = arith.constant 0 : index
    %112 = vector.load %arg13[%c0_126, %c6_127, %c0_128] : memref<14x14x192xf32, #tpu.memory_space<vmem>>, vector<8x8x8xf32>
    %113 = vector.shape_cast %112 : vector<8x8x8xf32> to vector<64x8xf32>
    %c6_129 = arith.constant 6 : index
    %c0_130 = arith.constant 0 : index
    %c0_131 = arith.constant 0 : index
    %114 = vector.load %arg5[%c6_129, %c0_130, %c0_131] : memref<7x8x8xf32, #tpu.memory_space<vmem>>, vector<1x8x8xf32>
    %115 = vector.shape_cast %114 : vector<1x8x8xf32> to vector<8x8xf32>
    %cst_132 = arith.constant dense<0.000000e+00> : vector<64x8xf32>
    %116 = tpu.matmul %113, %115, %cst_132 {dimension_numbers = #tpu.dot_dimension_numbers<[1], [0], [0], [1], [0, 0, 1, 1], [], []>} : vector<64x8xf32>, vector<8x8xf32>, vector<64x8xf32> -> vector<64x8xf32>
    %117 = arith.addf %111, %116 : vector<64x8xf32>
    %118 = vector.shape_cast %117 : vector<64x8xf32> to vector<8x8x8xf32>
    %cst_133 = arith.constant 0.000000e+00 : f32
    %119 = vector.broadcast %cst_133 : f32 to vector<8x8x8xf32>
    %120 = arith.maximumf %118, %119 : vector<8x8x8xf32>
    %121 = vector.shape_cast %120 : vector<8x8x8xf32> to vector<64x8xf32>
    %c0_134 = arith.constant 0 : index
    %c0_135 = arith.constant 0 : index
    %122 = vector.load %arg6[%c0_134, %c0_135] : memref<8x8xf32, #tpu.memory_space<vmem>>, vector<8x8xf32>
    %cst_136 = arith.constant dense<0.000000e+00> : vector<64x8xf32>
    %123 = tpu.matmul %121, %122, %cst_136 {dimension_numbers = #tpu.dot_dimension_numbers<[1], [0], [0], [1], [0, 0, 1, 1], [], []>} : vector<64x8xf32>, vector<8x8xf32>, vector<64x8xf32> -> vector<64x8xf32>
    %124 = arith.addf %14, %123 : vector<64x8xf32>
    %c0_137 = arith.constant 0 : index
    %c0_138 = arith.constant 0 : index
    %c0_139 = arith.constant 0 : index
    %c384 = arith.constant 384 : index
    %125 = vector.load %arg1[%c0_137, %c0_138, %c0_139, %c384] : memref<1x8x8x768xf32, #tpu.memory_space<vmem>>, vector<1x8x8x192xf32>
    %126 = vector.shape_cast %125 : vector<1x8x8x192xf32> to vector<8x8x192xf32>
    %cst_140 = arith.constant 0.000000e+00 : f32
    %127 = vector.broadcast %cst_140 : f32 to vector<8x8x192xf32>
    %128 = arith.maximumf %126, %127 : vector<8x8x192xf32>
    %cst_141 = arith.constant 0.000000e+00 : f32
    %129 = vector.broadcast %cst_141 : f32 to vector<8x3x192xf32>
    %c0_142 = arith.constant 0 : index
    %c0_143 = arith.constant 0 : index
    %c0_144 = arith.constant 0 : index
    %130 = vector.load %arg13[%c0_142, %c0_143, %c0_144] : memref<14x14x192xf32, #tpu.memory_space<vmem>>, vector<8x3x192xf32>
    tpu.vector_store %arg13[%c0_142, %c0_143, %c0_144], %129 {strides = array<i32>} : memref<14x14x192xf32, #tpu.memory_space<vmem>>, vector<8x3x192xf32>,
    %cst_145 = arith.constant 0.000000e+00 : f32
    %131 = vector.broadcast %cst_145 : f32 to vector<8x3x192xf32>
    %c0_146 = arith.constant 0 : index
    %c11_147 = arith.constant 11 : index
    %c0_148 = arith.constant 0 : index
    %132 = vector.load %arg13[%c0_146, %c11_147, %c0_148] : memref<14x14x192xf32, #tpu.memory_space<vmem>>, vector<8x3x192xf32>
    tpu.vector_store %arg13[%c0_146, %c11_147, %c0_148], %131 {strides = array<i32>} : memref<14x14x192xf32, #tpu.memory_space<vmem>>, vector<8x3x192xf32>,
    %c0_149 = arith.constant 0 : index
    %c3_150 = arith.constant 3 : index
    %c0_151 = arith.constant 0 : index
    %133 = vector.load %arg13[%c0_149, %c3_150, %c0_151] : memref<14x14x192xf32, #tpu.memory_space<vmem>>, vector<8x8x192xf32>
    tpu.vector_store %arg13[%c0_149, %c3_150, %c0_151], %128 {strides = array<i32>} : memref<14x14x192xf32, #tpu.memory_space<vmem>>, vector<8x8x192xf32>,
    %cst_152 = arith.constant 0.000000e+00 : f32
    %134 = vector.broadcast %cst_152 : f32 to vector<64x8xf32>
    %c0_153 = arith.constant 0 : index
    %c0_154 = arith.constant 0 : index
    %c0_155 = arith.constant 0 : index
    %135 = vector.load %arg13[%c0_153, %c0_154, %c0_155] : memref<14x14x192xf32, #tpu.memory_space<vmem>>, vector<8x8x192xf32>
    %136 = vector.shape_cast %135 : vector<8x8x192xf32> to vector<64x192xf32>
    %c0_156 = arith.constant 0 : index
    %c0_157 = arith.constant 0 : index
    %c0_158 = arith.constant 0 : index
    %137 = vector.load %arg7[%c0_156, %c0_157, %c0_158] : memref<7x192x8xf32, #tpu.memory_space<vmem>>, vector<1x192x8xf32>
    %138 = vector.shape_cast %137 : vector<1x192x8xf32> to vector<192x8xf32>
    %cst_159 = arith.constant dense<0.000000e+00> : vector<64x8xf32>
    %139 = tpu.matmul %136, %138, %cst_159 {dimension_numbers = #tpu.dot_dimension_numbers<[1], [0], [0], [1], [0, 0, 1, 1], [], []>} : vector<64x192xf32>, vector<192x8xf32>, vector<64x8xf32> -> vector<64x8xf32>
    %140 = arith.addf %134, %139 : vector<64x8xf32>
    %c0_160 = arith.constant 0 : index
    %c1_161 = arith.constant 1 : index
    %c0_162 = arith.constant 0 : index
    %141 = vector.load %arg13[%c0_160, %c1_161, %c0_162] : memref<14x14x192xf32, #tpu.memory_space<vmem>>, vector<8x8x192xf32>
    %142 = vector.shape_cast %141 : vector<8x8x192xf32> to vector<64x192xf32>
    %c1_163 = arith.constant 1 : index
    %c0_164 = arith.constant 0 : index
    %c0_165 = arith.constant 0 : index
    %143 = vector.load %arg7[%c1_163, %c0_164, %c0_165] : memref<7x192x8xf32, #tpu.memory_space<vmem>>, vector<1x192x8xf32>
    %144 = vector.shape_cast %143 : vector<1x192x8xf32> to vector<192x8xf32>
    %cst_166 = arith.constant dense<0.000000e+00> : vector<64x8xf32>
    %145 = tpu.matmul %142, %144, %cst_166 {dimension_numbers = #tpu.dot_dimension_numbers<[1], [0], [0], [1], [0, 0, 1, 1], [], []>} : vector<64x192xf32>, vector<192x8xf32>, vector<64x8xf32> -> vector<64x8xf32>
    %146 = arith.addf %140, %145 : vector<64x8xf32>
    %c0_167 = arith.constant 0 : index
    %c2_168 = arith.constant 2 : index
    %c0_169 = arith.constant 0 : index
    %147 = vector.load %arg13[%c0_167, %c2_168, %c0_169] : memref<14x14x192xf32, #tpu.memory_space<vmem>>, vector<8x8x192xf32>
    %148 = vector.shape_cast %147 : vector<8x8x192xf32> to vector<64x192xf32>
    %c2_170 = arith.constant 2 : index
    %c0_171 = arith.constant 0 : index
    %c0_172 = arith.constant 0 : index
    %149 = vector.load %arg7[%c2_170, %c0_171, %c0_172] : memref<7x192x8xf32, #tpu.memory_space<vmem>>, vector<1x192x8xf32>
    %150 = vector.shape_cast %149 : vector<1x192x8xf32> to vector<192x8xf32>
    %cst_173 = arith.constant dense<0.000000e+00> : vector<64x8xf32>
    %151 = tpu.matmul %148, %150, %cst_173 {dimension_numbers = #tpu.dot_dimension_numbers<[1], [0], [0], [1], [0, 0, 1, 1], [], []>} : vector<64x192xf32>, vector<192x8xf32>, vector<64x8xf32> -> vector<64x8xf32>
    %152 = arith.addf %146, %151 : vector<64x8xf32>
    %c0_174 = arith.constant 0 : index
    %c3_175 = arith.constant 3 : index
    %c0_176 = arith.constant 0 : index
    %153 = vector.load %arg13[%c0_174, %c3_175, %c0_176] : memref<14x14x192xf32, #tpu.memory_space<vmem>>, vector<8x8x192xf32>
    %154 = vector.shape_cast %153 : vector<8x8x192xf32> to vector<64x192xf32>
    %c3_177 = arith.constant 3 : index
    %c0_178 = arith.constant 0 : index
    %c0_179 = arith.constant 0 : index
    %155 = vector.load %arg7[%c3_177, %c0_178, %c0_179] : memref<7x192x8xf32, #tpu.memory_space<vmem>>, vector<1x192x8xf32>
    %156 = vector.shape_cast %155 : vector<1x192x8xf32> to vector<192x8xf32>
    %cst_180 = arith.constant dense<0.000000e+00> : vector<64x8xf32>
    %157 = tpu.matmul %154, %156, %cst_180 {dimension_numbers = #tpu.dot_dimension_numbers<[1], [0], [0], [1], [0, 0, 1, 1], [], []>} : vector<64x192xf32>, vector<192x8xf32>, vector<64x8xf32> -> vector<64x8xf32>
    %158 = arith.addf %152, %157 : vector<64x8xf32>
    %c0_181 = arith.constant 0 : index
    %c4_182 = arith.constant 4 : index
    %c0_183 = arith.constant 0 : index
    %159 = vector.load %arg13[%c0_181, %c4_182, %c0_183] : memref<14x14x192xf32, #tpu.memory_space<vmem>>, vector<8x8x192xf32>
    %160 = vector.shape_cast %159 : vector<8x8x192xf32> to vector<64x192xf32>
    %c4_184 = arith.constant 4 : index
    %c0_185 = arith.constant 0 : index
    %c0_186 = arith.constant 0 : index
    %161 = vector.load %arg7[%c4_184, %c0_185, %c0_186] : memref<7x192x8xf32, #tpu.memory_space<vmem>>, vector<1x192x8xf32>
    %162 = vector.shape_cast %161 : vector<1x192x8xf32> to vector<192x8xf32>
    %cst_187 = arith.constant dense<0.000000e+00> : vector<64x8xf32>
    %163 = tpu.matmul %160, %162, %cst_187 {dimension_numbers = #tpu.dot_dimension_numbers<[1], [0], [0], [1], [0, 0, 1, 1], [], []>} : vector<64x192xf32>, vector<192x8xf32>, vector<64x8xf32> -> vector<64x8xf32>
    %164 = arith.addf %158, %163 : vector<64x8xf32>
    %c0_188 = arith.constant 0 : index
    %c5_189 = arith.constant 5 : index
    %c0_190 = arith.constant 0 : index
    %165 = vector.load %arg13[%c0_188, %c5_189, %c0_190] : memref<14x14x192xf32, #tpu.memory_space<vmem>>, vector<8x8x192xf32>
    %166 = vector.shape_cast %165 : vector<8x8x192xf32> to vector<64x192xf32>
    %c5_191 = arith.constant 5 : index
    %c0_192 = arith.constant 0 : index
    %c0_193 = arith.constant 0 : index
    %167 = vector.load %arg7[%c5_191, %c0_192, %c0_193] : memref<7x192x8xf32, #tpu.memory_space<vmem>>, vector<1x192x8xf32>
    %168 = vector.shape_cast %167 : vector<1x192x8xf32> to vector<192x8xf32>
    %cst_194 = arith.constant dense<0.000000e+00> : vector<64x8xf32>
    %169 = tpu.matmul %166, %168, %cst_194 {dimension_numbers = #tpu.dot_dimension_numbers<[1], [0], [0], [1], [0, 0, 1, 1], [], []>} : vector<64x192xf32>, vector<192x8xf32>, vector<64x8xf32> -> vector<64x8xf32>
    %170 = arith.addf %164, %169 : vector<64x8xf32>
    %c0_195 = arith.constant 0 : index
    %c6_196 = arith.constant 6 : index
    %c0_197 = arith.constant 0 : index
    %171 = vector.load %arg13[%c0_195, %c6_196, %c0_197] : memref<14x14x192xf32, #tpu.memory_space<vmem>>, vector<8x8x192xf32>
    %172 = vector.shape_cast %171 : vector<8x8x192xf32> to vector<64x192xf32>
    %c6_198 = arith.constant 6 : index
    %c0_199 = arith.constant 0 : index
    %c0_200 = arith.constant 0 : index
    %173 = vector.load %arg7[%c6_198, %c0_199, %c0_200] : memref<7x192x8xf32, #tpu.memory_space<vmem>>, vector<1x192x8xf32>
    %174 = vector.shape_cast %173 : vector<1x192x8xf32> to vector<192x8xf32>
    %cst_201 = arith.constant dense<0.000000e+00> : vector<64x8xf32>
    %175 = tpu.matmul %172, %174, %cst_201 {dimension_numbers = #tpu.dot_dimension_numbers<[1], [0], [0], [1], [0, 0, 1, 1], [], []>} : vector<64x192xf32>, vector<192x8xf32>, vector<64x8xf32> -> vector<64x8xf32>
    %176 = arith.addf %170, %175 : vector<64x8xf32>
    %177 = vector.shape_cast %176 : vector<64x8xf32> to vector<8x8x8xf32>
    %cst_202 = arith.constant 0.000000e+00 : f32
    %178 = vector.broadcast %cst_202 : f32 to vector<8x8x8xf32>
    %179 = arith.maximumf %177, %178 : vector<8x8x8xf32>
    %cst_203 = arith.constant 0.000000e+00 : f32
    %180 = vector.broadcast %cst_203 : f32 to vector<3x8x8xf32>
    %c0_204 = arith.constant 0 : index
    %c0_205 = arith.constant 0 : index
    %c0_206 = arith.constant 0 : index
    %181 = vector.load %arg13[%c0_204, %c0_205, %c0_206] : memref<14x14x192xf32, #tpu.memory_space<vmem>>, vector<3x8x8xf32>
    tpu.vector_store %arg13[%c0_204, %c0_205, %c0_206], %180 {strides = array<i32>} : memref<14x14x192xf32, #tpu.memory_space<vmem>>, vector<3x8x8xf32>,
    %cst_207 = arith.constant 0.000000e+00 : f32
    %182 = vector.broadcast %cst_207 : f32 to vector<3x8x8xf32>
    %c11_208 = arith.constant 11 : index
    %c0_209 = arith.constant 0 : index
    %c0_210 = arith.constant 0 : index
    %183 = vector.load %arg13[%c11_208, %c0_209, %c0_210] : memref<14x14x192xf32, #tpu.memory_space<vmem>>, vector<3x8x8xf32>
    tpu.vector_store %arg13[%c11_208, %c0_209, %c0_210], %182 {strides = array<i32>} : memref<14x14x192xf32, #tpu.memory_space<vmem>>, vector<3x8x8xf32>,
    %c3_211 = arith.constant 3 : index
    %c0_212 = arith.constant 0 : index
    %c0_213 = arith.constant 0 : index
    %184 = vector.load %arg13[%c3_211, %c0_212, %c0_213] : memref<14x14x192xf32, #tpu.memory_space<vmem>>, vector<8x8x8xf32>
    tpu.vector_store %arg13[%c3_211, %c0_212, %c0_213], %179 {strides = array<i32>} : memref<14x14x192xf32, #tpu.memory_space<vmem>>, vector<8x8x8xf32>,
    %cst_214 = arith.constant 0.000000e+00 : f32
    %185 = vector.broadcast %cst_214 : f32 to vector<64x8xf32>
    %c0_215 = arith.constant 0 : index
    %c0_216 = arith.constant 0 : index
    %c0_217 = arith.constant 0 : index
    %186 = vector.load %arg13[%c0_215, %c0_216, %c0_217] : memref<14x14x192xf32, #tpu.memory_space<vmem>>, vector<8x8x8xf32>
    %187 = vector.shape_cast %186 : vector<8x8x8xf32> to vector<64x8xf32>
    %c0_218 = arith.constant 0 : index
    %c0_219 = arith.constant 0 : index
    %c0_220 = arith.constant 0 : index
    %188 = vector.load %arg8[%c0_218, %c0_219, %c0_220] : memref<7x8x8xf32, #tpu.memory_space<vmem>>, vector<1x8x8xf32>
    %189 = vector.shape_cast %188 : vector<1x8x8xf32> to vector<8x8xf32>
    %cst_221 = arith.constant dense<0.000000e+00> : vector<64x8xf32>
    %190 = tpu.matmul %187, %189, %cst_221 {dimension_numbers = #tpu.dot_dimension_numbers<[1], [0], [0], [1], [0, 0, 1, 1], [], []>} : vector<64x8xf32>, vector<8x8xf32>, vector<64x8xf32> -> vector<64x8xf32>
    %191 = arith.addf %185, %190 : vector<64x8xf32>
    %c1_222 = arith.constant 1 : index
    %c0_223 = arith.constant 0 : index
    %c0_224 = arith.constant 0 : index
    %192 = vector.load %arg13[%c1_222, %c0_223, %c0_224] : memref<14x14x192xf32, #tpu.memory_space<vmem>>, vector<8x8x8xf32>
    %193 = vector.shape_cast %192 : vector<8x8x8xf32> to vector<64x8xf32>
    %c1_225 = arith.constant 1 : index
    %c0_226 = arith.constant 0 : index
    %c0_227 = arith.constant 0 : index
    %194 = vector.load %arg8[%c1_225, %c0_226, %c0_227] : memref<7x8x8xf32, #tpu.memory_space<vmem>>, vector<1x8x8xf32>
    %195 = vector.shape_cast %194 : vector<1x8x8xf32> to vector<8x8xf32>
    %cst_228 = arith.constant dense<0.000000e+00> : vector<64x8xf32>
    %196 = tpu.matmul %193, %195, %cst_228 {dimension_numbers = #tpu.dot_dimension_numbers<[1], [0], [0], [1], [0, 0, 1, 1], [], []>} : vector<64x8xf32>, vector<8x8xf32>, vector<64x8xf32> -> vector<64x8xf32>
    %197 = arith.addf %191, %196 : vector<64x8xf32>
    %c2_229 = arith.constant 2 : index
    %c0_230 = arith.constant 0 : index
    %c0_231 = arith.constant 0 : index
    %198 = vector.load %arg13[%c2_229, %c0_230, %c0_231] : memref<14x14x192xf32, #tpu.memory_space<vmem>>, vector<8x8x8xf32>
    %199 = vector.shape_cast %198 : vector<8x8x8xf32> to vector<64x8xf32>
    %c2_232 = arith.constant 2 : index
    %c0_233 = arith.constant 0 : index
    %c0_234 = arith.constant 0 : index
    %200 = vector.load %arg8[%c2_232, %c0_233, %c0_234] : memref<7x8x8xf32, #tpu.memory_space<vmem>>, vector<1x8x8xf32>
    %201 = vector.shape_cast %200 : vector<1x8x8xf32> to vector<8x8xf32>
    %cst_235 = arith.constant dense<0.000000e+00> : vector<64x8xf32>
    %202 = tpu.matmul %199, %201, %cst_235 {dimension_numbers = #tpu.dot_dimension_numbers<[1], [0], [0], [1], [0, 0, 1, 1], [], []>} : vector<64x8xf32>, vector<8x8xf32>, vector<64x8xf32> -> vector<64x8xf32>
    %203 = arith.addf %197, %202 : vector<64x8xf32>
    %c3_236 = arith.constant 3 : index
    %c0_237 = arith.constant 0 : index
    %c0_238 = arith.constant 0 : index
    %204 = vector.load %arg13[%c3_236, %c0_237, %c0_238] : memref<14x14x192xf32, #tpu.memory_space<vmem>>, vector<8x8x8xf32>
    %205 = vector.shape_cast %204 : vector<8x8x8xf32> to vector<64x8xf32>
    %c3_239 = arith.constant 3 : index
    %c0_240 = arith.constant 0 : index
    %c0_241 = arith.constant 0 : index
    %206 = vector.load %arg8[%c3_239, %c0_240, %c0_241] : memref<7x8x8xf32, #tpu.memory_space<vmem>>, vector<1x8x8xf32>
    %207 = vector.shape_cast %206 : vector<1x8x8xf32> to vector<8x8xf32>
    %cst_242 = arith.constant dense<0.000000e+00> : vector<64x8xf32>
    %208 = tpu.matmul %205, %207, %cst_242 {dimension_numbers = #tpu.dot_dimension_numbers<[1], [0], [0], [1], [0, 0, 1, 1], [], []>} : vector<64x8xf32>, vector<8x8xf32>, vector<64x8xf32> -> vector<64x8xf32>
    %209 = arith.addf %203, %208 : vector<64x8xf32>
    %c4_243 = arith.constant 4 : index
    %c0_244 = arith.constant 0 : index
    %c0_245 = arith.constant 0 : index
    %210 = vector.load %arg13[%c4_243, %c0_244, %c0_245] : memref<14x14x192xf32, #tpu.memory_space<vmem>>, vector<8x8x8xf32>
    %211 = vector.shape_cast %210 : vector<8x8x8xf32> to vector<64x8xf32>
    %c4_246 = arith.constant 4 : index
    %c0_247 = arith.constant 0 : index
    %c0_248 = arith.constant 0 : index
    %212 = vector.load %arg8[%c4_246, %c0_247, %c0_248] : memref<7x8x8xf32, #tpu.memory_space<vmem>>, vector<1x8x8xf32>
    %213 = vector.shape_cast %212 : vector<1x8x8xf32> to vector<8x8xf32>
    %cst_249 = arith.constant dense<0.000000e+00> : vector<64x8xf32>
    %214 = tpu.matmul %211, %213, %cst_249 {dimension_numbers = #tpu.dot_dimension_numbers<[1], [0], [0], [1], [0, 0, 1, 1], [], []>} : vector<64x8xf32>, vector<8x8xf32>, vector<64x8xf32> -> vector<64x8xf32>
    %215 = arith.addf %209, %214 : vector<64x8xf32>
    %c5_250 = arith.constant 5 : index
    %c0_251 = arith.constant 0 : index
    %c0_252 = arith.constant 0 : index
    %216 = vector.load %arg13[%c5_250, %c0_251, %c0_252] : memref<14x14x192xf32, #tpu.memory_space<vmem>>, vector<8x8x8xf32>
    %217 = vector.shape_cast %216 : vector<8x8x8xf32> to vector<64x8xf32>
    %c5_253 = arith.constant 5 : index
    %c0_254 = arith.constant 0 : index
    %c0_255 = arith.constant 0 : index
    %218 = vector.load %arg8[%c5_253, %c0_254, %c0_255] : memref<7x8x8xf32, #tpu.memory_space<vmem>>, vector<1x8x8xf32>
    %219 = vector.shape_cast %218 : vector<1x8x8xf32> to vector<8x8xf32>
    %cst_256 = arith.constant dense<0.000000e+00> : vector<64x8xf32>
    %220 = tpu.matmul %217, %219, %cst_256 {dimension_numbers = #tpu.dot_dimension_numbers<[1], [0], [0], [1], [0, 0, 1, 1], [], []>} : vector<64x8xf32>, vector<8x8xf32>, vector<64x8xf32> -> vector<64x8xf32>
    %221 = arith.addf %215, %220 : vector<64x8xf32>
    %c6_257 = arith.constant 6 : index
    %c0_258 = arith.constant 0 : index
    %c0_259 = arith.constant 0 : index
    %222 = vector.load %arg13[%c6_257, %c0_258, %c0_259] : memref<14x14x192xf32, #tpu.memory_space<vmem>>, vector<8x8x8xf32>
    %223 = vector.shape_cast %222 : vector<8x8x8xf32> to vector<64x8xf32>
    %c6_260 = arith.constant 6 : index
    %c0_261 = arith.constant 0 : index
    %c0_262 = arith.constant 0 : index
    %224 = vector.load %arg8[%c6_260, %c0_261, %c0_262] : memref<7x8x8xf32, #tpu.memory_space<vmem>>, vector<1x8x8xf32>
    %225 = vector.shape_cast %224 : vector<1x8x8xf32> to vector<8x8xf32>
    %cst_263 = arith.constant dense<0.000000e+00> : vector<64x8xf32>
    %226 = tpu.matmul %223, %225, %cst_263 {dimension_numbers = #tpu.dot_dimension_numbers<[1], [0], [0], [1], [0, 0, 1, 1], [], []>} : vector<64x8xf32>, vector<8x8xf32>, vector<64x8xf32> -> vector<64x8xf32>
    %227 = arith.addf %221, %226 : vector<64x8xf32>
    %228 = vector.shape_cast %227 : vector<64x8xf32> to vector<8x8x8xf32>
    %cst_264 = arith.constant 0.000000e+00 : f32
    %229 = vector.broadcast %cst_264 : f32 to vector<8x8x8xf32>
    %230 = arith.maximumf %228, %229 : vector<8x8x8xf32>
    %cst_265 = arith.constant 0.000000e+00 : f32
    %231 = vector.broadcast %cst_265 : f32 to vector<8x3x8xf32>
    %c0_266 = arith.constant 0 : index
    %c0_267 = arith.constant 0 : index
    %c0_268 = arith.constant 0 : index
    %232 = vector.load %arg13[%c0_266, %c0_267, %c0_268] : memref<14x14x192xf32, #tpu.memory_space<vmem>>, vector<8x3x8xf32>
    tpu.vector_store %arg13[%c0_266, %c0_267, %c0_268], %231 {strides = array<i32>} : memref<14x14x192xf32, #tpu.memory_space<vmem>>, vector<8x3x8xf32>,
    %cst_269 = arith.constant 0.000000e+00 : f32
    %233 = vector.broadcast %cst_269 : f32 to vector<8x3x8xf32>
    %c0_270 = arith.constant 0 : index
    %c11_271 = arith.constant 11 : index
    %c0_272 = arith.constant 0 : index
    %234 = vector.load %arg13[%c0_270, %c11_271, %c0_272] : memref<14x14x192xf32, #tpu.memory_space<vmem>>, vector<8x3x8xf32>
    tpu.vector_store %arg13[%c0_270, %c11_271, %c0_272], %233 {strides = array<i32>} : memref<14x14x192xf32, #tpu.memory_space<vmem>>, vector<8x3x8xf32>,
    %c0_273 = arith.constant 0 : index
    %c3_274 = arith.constant 3 : index
    %c0_275 = arith.constant 0 : index
    %235 = vector.load %arg13[%c0_273, %c3_274, %c0_275] : memref<14x14x192xf32, #tpu.memory_space<vmem>>, vector<8x8x8xf32>
    tpu.vector_store %arg13[%c0_273, %c3_274, %c0_275], %230 {strides = array<i32>} : memref<14x14x192xf32, #tpu.memory_space<vmem>>, vector<8x8x8xf32>,
    %cst_276 = arith.constant 0.000000e+00 : f32
    %236 = vector.broadcast %cst_276 : f32 to vector<64x8xf32>
    %c0_277 = arith.constant 0 : index
    %c0_278 = arith.constant 0 : index
    %c0_279 = arith.constant 0 : index
    %237 = vector.load %arg13[%c0_277, %c0_278, %c0_279] : memref<14x14x192xf32, #tpu.memory_space<vmem>>, vector<8x8x8xf32>
    %238 = vector.shape_cast %237 : vector<8x8x8xf32> to vector<64x8xf32>
    %c0_280 = arith.constant 0 : index
    %c0_281 = arith.constant 0 : index
    %c0_282 = arith.constant 0 : index
    %239 = vector.load %arg9[%c0_280, %c0_281, %c0_282] : memref<7x8x8xf32, #tpu.memory_space<vmem>>, vector<1x8x8xf32>
    %240 = vector.shape_cast %239 : vector<1x8x8xf32> to vector<8x8xf32>
    %cst_283 = arith.constant dense<0.000000e+00> : vector<64x8xf32>
    %241 = tpu.matmul %238, %240, %cst_283 {dimension_numbers = #tpu.dot_dimension_numbers<[1], [0], [0], [1], [0, 0, 1, 1], [], []>} : vector<64x8xf32>, vector<8x8xf32>, vector<64x8xf32> -> vector<64x8xf32>
    %242 = arith.addf %236, %241 : vector<64x8xf32>
    %c0_284 = arith.constant 0 : index
    %c1_285 = arith.constant 1 : index
    %c0_286 = arith.constant 0 : index
    %243 = vector.load %arg13[%c0_284, %c1_285, %c0_286] : memref<14x14x192xf32, #tpu.memory_space<vmem>>, vector<8x8x8xf32>
    %244 = vector.shape_cast %243 : vector<8x8x8xf32> to vector<64x8xf32>
    %c1_287 = arith.constant 1 : index
    %c0_288 = arith.constant 0 : index
    %c0_289 = arith.constant 0 : index
    %245 = vector.load %arg9[%c1_287, %c0_288, %c0_289] : memref<7x8x8xf32, #tpu.memory_space<vmem>>, vector<1x8x8xf32>
    %246 = vector.shape_cast %245 : vector<1x8x8xf32> to vector<8x8xf32>
    %cst_290 = arith.constant dense<0.000000e+00> : vector<64x8xf32>
    %247 = tpu.matmul %244, %246, %cst_290 {dimension_numbers = #tpu.dot_dimension_numbers<[1], [0], [0], [1], [0, 0, 1, 1], [], []>} : vector<64x8xf32>, vector<8x8xf32>, vector<64x8xf32> -> vector<64x8xf32>
    %248 = arith.addf %242, %247 : vector<64x8xf32>
    %c0_291 = arith.constant 0 : index
    %c2_292 = arith.constant 2 : index
    %c0_293 = arith.constant 0 : index
    %249 = vector.load %arg13[%c0_291, %c2_292, %c0_293] : memref<14x14x192xf32, #tpu.memory_space<vmem>>, vector<8x8x8xf32>
    %250 = vector.shape_cast %249 : vector<8x8x8xf32> to vector<64x8xf32>
    %c2_294 = arith.constant 2 : index
    %c0_295 = arith.constant 0 : index
    %c0_296 = arith.constant 0 : index
    %251 = vector.load %arg9[%c2_294, %c0_295, %c0_296] : memref<7x8x8xf32, #tpu.memory_space<vmem>>, vector<1x8x8xf32>
    %252 = vector.shape_cast %251 : vector<1x8x8xf32> to vector<8x8xf32>
    %cst_297 = arith.constant dense<0.000000e+00> : vector<64x8xf32>
    %253 = tpu.matmul %250, %252, %cst_297 {dimension_numbers = #tpu.dot_dimension_numbers<[1], [0], [0], [1], [0, 0, 1, 1], [], []>} : vector<64x8xf32>, vector<8x8xf32>, vector<64x8xf32> -> vector<64x8xf32>
    %254 = arith.addf %248, %253 : vector<64x8xf32>
    %c0_298 = arith.constant 0 : index
    %c3_299 = arith.constant 3 : index
    %c0_300 = arith.constant 0 : index
    %255 = vector.load %arg13[%c0_298, %c3_299, %c0_300] : memref<14x14x192xf32, #tpu.memory_space<vmem>>, vector<8x8x8xf32>
    %256 = vector.shape_cast %255 : vector<8x8x8xf32> to vector<64x8xf32>
    %c3_301 = arith.constant 3 : index
    %c0_302 = arith.constant 0 : index
    %c0_303 = arith.constant 0 : index
    %257 = vector.load %arg9[%c3_301, %c0_302, %c0_303] : memref<7x8x8xf32, #tpu.memory_space<vmem>>, vector<1x8x8xf32>
    %258 = vector.shape_cast %257 : vector<1x8x8xf32> to vector<8x8xf32>
    %cst_304 = arith.constant dense<0.000000e+00> : vector<64x8xf32>
    %259 = tpu.matmul %256, %258, %cst_304 {dimension_numbers = #tpu.dot_dimension_numbers<[1], [0], [0], [1], [0, 0, 1, 1], [], []>} : vector<64x8xf32>, vector<8x8xf32>, vector<64x8xf32> -> vector<64x8xf32>
    %260 = arith.addf %254, %259 : vector<64x8xf32>
    %c0_305 = arith.constant 0 : index
    %c4_306 = arith.constant 4 : index
    %c0_307 = arith.constant 0 : index
    %261 = vector.load %arg13[%c0_305, %c4_306, %c0_307] : memref<14x14x192xf32, #tpu.memory_space<vmem>>, vector<8x8x8xf32>
    %262 = vector.shape_cast %261 : vector<8x8x8xf32> to vector<64x8xf32>
    %c4_308 = arith.constant 4 : index
    %c0_309 = arith.constant 0 : index
    %c0_310 = arith.constant 0 : index
    %263 = vector.load %arg9[%c4_308, %c0_309, %c0_310] : memref<7x8x8xf32, #tpu.memory_space<vmem>>, vector<1x8x8xf32>
    %264 = vector.shape_cast %263 : vector<1x8x8xf32> to vector<8x8xf32>
    %cst_311 = arith.constant dense<0.000000e+00> : vector<64x8xf32>
    %265 = tpu.matmul %262, %264, %cst_311 {dimension_numbers = #tpu.dot_dimension_numbers<[1], [0], [0], [1], [0, 0, 1, 1], [], []>} : vector<64x8xf32>, vector<8x8xf32>, vector<64x8xf32> -> vector<64x8xf32>
    %266 = arith.addf %260, %265 : vector<64x8xf32>
    %c0_312 = arith.constant 0 : index
    %c5_313 = arith.constant 5 : index
    %c0_314 = arith.constant 0 : index
    %267 = vector.load %arg13[%c0_312, %c5_313, %c0_314] : memref<14x14x192xf32, #tpu.memory_space<vmem>>, vector<8x8x8xf32>
    %268 = vector.shape_cast %267 : vector<8x8x8xf32> to vector<64x8xf32>
    %c5_315 = arith.constant 5 : index
    %c0_316 = arith.constant 0 : index
    %c0_317 = arith.constant 0 : index
    %269 = vector.load %arg9[%c5_315, %c0_316, %c0_317] : memref<7x8x8xf32, #tpu.memory_space<vmem>>, vector<1x8x8xf32>
    %270 = vector.shape_cast %269 : vector<1x8x8xf32> to vector<8x8xf32>
    %cst_318 = arith.constant dense<0.000000e+00> : vector<64x8xf32>
    %271 = tpu.matmul %268, %270, %cst_318 {dimension_numbers = #tpu.dot_dimension_numbers<[1], [0], [0], [1], [0, 0, 1, 1], [], []>} : vector<64x8xf32>, vector<8x8xf32>, vector<64x8xf32> -> vector<64x8xf32>
    %272 = arith.addf %266, %271 : vector<64x8xf32>
    %c0_319 = arith.constant 0 : index
    %c6_320 = arith.constant 6 : index
    %c0_321 = arith.constant 0 : index
    %273 = vector.load %arg13[%c0_319, %c6_320, %c0_321] : memref<14x14x192xf32, #tpu.memory_space<vmem>>, vector<8x8x8xf32>
    %274 = vector.shape_cast %273 : vector<8x8x8xf32> to vector<64x8xf32>
    %c6_322 = arith.constant 6 : index
    %c0_323 = arith.constant 0 : index
    %c0_324 = arith.constant 0 : index
    %275 = vector.load %arg9[%c6_322, %c0_323, %c0_324] : memref<7x8x8xf32, #tpu.memory_space<vmem>>, vector<1x8x8xf32>
    %276 = vector.shape_cast %275 : vector<1x8x8xf32> to vector<8x8xf32>
    %cst_325 = arith.constant dense<0.000000e+00> : vector<64x8xf32>
    %277 = tpu.matmul %274, %276, %cst_325 {dimension_numbers = #tpu.dot_dimension_numbers<[1], [0], [0], [1], [0, 0, 1, 1], [], []>} : vector<64x8xf32>, vector<8x8xf32>, vector<64x8xf32> -> vector<64x8xf32>
    %278 = arith.addf %272, %277 : vector<64x8xf32>
    %279 = vector.shape_cast %278 : vector<64x8xf32> to vector<8x8x8xf32>
    %cst_326 = arith.constant 0.000000e+00 : f32
    %280 = vector.broadcast %cst_326 : f32 to vector<8x8x8xf32>
    %281 = arith.maximumf %279, %280 : vector<8x8x8xf32>
    %cst_327 = arith.constant 0.000000e+00 : f32
    %282 = vector.broadcast %cst_327 : f32 to vector<3x8x8xf32>
    %c0_328 = arith.constant 0 : index
    %c0_329 = arith.constant 0 : index
    %c0_330 = arith.constant 0 : index
    %283 = vector.load %arg13[%c0_328, %c0_329, %c0_330] : memref<14x14x192xf32, #tpu.memory_space<vmem>>, vector<3x8x8xf32>
    tpu.vector_store %arg13[%c0_328, %c0_329, %c0_330], %282 {strides = array<i32>} : memref<14x14x192xf32, #tpu.memory_space<vmem>>, vector<3x8x8xf32>,
    %cst_331 = arith.constant 0.000000e+00 : f32
    %284 = vector.broadcast %cst_331 : f32 to vector<3x8x8xf32>
    %c11_332 = arith.constant 11 : index
    %c0_333 = arith.constant 0 : index
    %c0_334 = arith.constant 0 : index
    %285 = vector.load %arg13[%c11_332, %c0_333, %c0_334] : memref<14x14x192xf32, #tpu.memory_space<vmem>>, vector<3x8x8xf32>
    tpu.vector_store %arg13[%c11_332, %c0_333, %c0_334], %284 {strides = array<i32>} : memref<14x14x192xf32, #tpu.memory_space<vmem>>, vector<3x8x8xf32>,
    %c3_335 = arith.constant 3 : index
    %c0_336 = arith.constant 0 : index
    %c0_337 = arith.constant 0 : index
    %286 = vector.load %arg13[%c3_335, %c0_336, %c0_337] : memref<14x14x192xf32, #tpu.memory_space<vmem>>, vector<8x8x8xf32>
    tpu.vector_store %arg13[%c3_335, %c0_336, %c0_337], %281 {strides = array<i32>} : memref<14x14x192xf32, #tpu.memory_space<vmem>>, vector<8x8x8xf32>,
    %cst_338 = arith.constant 0.000000e+00 : f32
    %287 = vector.broadcast %cst_338 : f32 to vector<64x8xf32>
    %c0_339 = arith.constant 0 : index
    %c0_340 = arith.constant 0 : index
    %c0_341 = arith.constant 0 : index
    %288 = vector.load %arg13[%c0_339, %c0_340, %c0_341] : memref<14x14x192xf32, #tpu.memory_space<vmem>>, vector<8x8x8xf32>
    %289 = vector.shape_cast %288 : vector<8x8x8xf32> to vector<64x8xf32>
    %c0_342 = arith.constant 0 : index
    %c0_343 = arith.constant 0 : index
    %c0_344 = arith.constant 0 : index
    %290 = vector.load %arg10[%c0_342, %c0_343, %c0_344] : memref<7x8x8xf32, #tpu.memory_space<vmem>>, vector<1x8x8xf32>
    %291 = vector.shape_cast %290 : vector<1x8x8xf32> to vector<8x8xf32>
    %cst_345 = arith.constant dense<0.000000e+00> : vector<64x8xf32>
    %292 = tpu.matmul %289, %291, %cst_345 {dimension_numbers = #tpu.dot_dimension_numbers<[1], [0], [0], [1], [0, 0, 1, 1], [], []>} : vector<64x8xf32>, vector<8x8xf32>, vector<64x8xf32> -> vector<64x8xf32>
    %293 = arith.addf %287, %292 : vector<64x8xf32>
    %c1_346 = arith.constant 1 : index
    %c0_347 = arith.constant 0 : index
    %c0_348 = arith.constant 0 : index
    %294 = vector.load %arg13[%c1_346, %c0_347, %c0_348] : memref<14x14x192xf32, #tpu.memory_space<vmem>>, vector<8x8x8xf32>
    %295 = vector.shape_cast %294 : vector<8x8x8xf32> to vector<64x8xf32>
    %c1_349 = arith.constant 1 : index
    %c0_350 = arith.constant 0 : index
    %c0_351 = arith.constant 0 : index
    %296 = vector.load %arg10[%c1_349, %c0_350, %c0_351] : memref<7x8x8xf32, #tpu.memory_space<vmem>>, vector<1x8x8xf32>
    %297 = vector.shape_cast %296 : vector<1x8x8xf32> to vector<8x8xf32>
    %cst_352 = arith.constant dense<0.000000e+00> : vector<64x8xf32>
    %298 = tpu.matmul %295, %297, %cst_352 {dimension_numbers = #tpu.dot_dimension_numbers<[1], [0], [0], [1], [0, 0, 1, 1], [], []>} : vector<64x8xf32>, vector<8x8xf32>, vector<64x8xf32> -> vector<64x8xf32>
    %299 = arith.addf %293, %298 : vector<64x8xf32>
    %c2_353 = arith.constant 2 : index
    %c0_354 = arith.constant 0 : index
    %c0_355 = arith.constant 0 : index
    %300 = vector.load %arg13[%c2_353, %c0_354, %c0_355] : memref<14x14x192xf32, #tpu.memory_space<vmem>>, vector<8x8x8xf32>
    %301 = vector.shape_cast %300 : vector<8x8x8xf32> to vector<64x8xf32>
    %c2_356 = arith.constant 2 : index
    %c0_357 = arith.constant 0 : index
    %c0_358 = arith.constant 0 : index
    %302 = vector.load %arg10[%c2_356, %c0_357, %c0_358] : memref<7x8x8xf32, #tpu.memory_space<vmem>>, vector<1x8x8xf32>
    %303 = vector.shape_cast %302 : vector<1x8x8xf32> to vector<8x8xf32>
    %cst_359 = arith.constant dense<0.000000e+00> : vector<64x8xf32>
    %304 = tpu.matmul %301, %303, %cst_359 {dimension_numbers = #tpu.dot_dimension_numbers<[1], [0], [0], [1], [0, 0, 1, 1], [], []>} : vector<64x8xf32>, vector<8x8xf32>, vector<64x8xf32> -> vector<64x8xf32>
    %305 = arith.addf %299, %304 : vector<64x8xf32>
    %c3_360 = arith.constant 3 : index
    %c0_361 = arith.constant 0 : index
    %c0_362 = arith.constant 0 : index
    %306 = vector.load %arg13[%c3_360, %c0_361, %c0_362] : memref<14x14x192xf32, #tpu.memory_space<vmem>>, vector<8x8x8xf32>
    %307 = vector.shape_cast %306 : vector<8x8x8xf32> to vector<64x8xf32>
    %c3_363 = arith.constant 3 : index
    %c0_364 = arith.constant 0 : index
    %c0_365 = arith.constant 0 : index
    %308 = vector.load %arg10[%c3_363, %c0_364, %c0_365] : memref<7x8x8xf32, #tpu.memory_space<vmem>>, vector<1x8x8xf32>
    %309 = vector.shape_cast %308 : vector<1x8x8xf32> to vector<8x8xf32>
    %cst_366 = arith.constant dense<0.000000e+00> : vector<64x8xf32>
    %310 = tpu.matmul %307, %309, %cst_366 {dimension_numbers = #tpu.dot_dimension_numbers<[1], [0], [0], [1], [0, 0, 1, 1], [], []>} : vector<64x8xf32>, vector<8x8xf32>, vector<64x8xf32> -> vector<64x8xf32>
    %311 = arith.addf %305, %310 : vector<64x8xf32>
    %c4_367 = arith.constant 4 : index
    %c0_368 = arith.constant 0 : index
    %c0_369 = arith.constant 0 : index
    %312 = vector.load %arg13[%c4_367, %c0_368, %c0_369] : memref<14x14x192xf32, #tpu.memory_space<vmem>>, vector<8x8x8xf32>
    %313 = vector.shape_cast %312 : vector<8x8x8xf32> to vector<64x8xf32>
    %c4_370 = arith.constant 4 : index
    %c0_371 = arith.constant 0 : index
    %c0_372 = arith.constant 0 : index
    %314 = vector.load %arg10[%c4_370, %c0_371, %c0_372] : memref<7x8x8xf32, #tpu.memory_space<vmem>>, vector<1x8x8xf32>
    %315 = vector.shape_cast %314 : vector<1x8x8xf32> to vector<8x8xf32>
    %cst_373 = arith.constant dense<0.000000e+00> : vector<64x8xf32>
    %316 = tpu.matmul %313, %315, %cst_373 {dimension_numbers = #tpu.dot_dimension_numbers<[1], [0], [0], [1], [0, 0, 1, 1], [], []>} : vector<64x8xf32>, vector<8x8xf32>, vector<64x8xf32> -> vector<64x8xf32>
    %317 = arith.addf %311, %316 : vector<64x8xf32>
    %c5_374 = arith.constant 5 : index
    %c0_375 = arith.constant 0 : index
    %c0_376 = arith.constant 0 : index
    %318 = vector.load %arg13[%c5_374, %c0_375, %c0_376] : memref<14x14x192xf32, #tpu.memory_space<vmem>>, vector<8x8x8xf32>
    %319 = vector.shape_cast %318 : vector<8x8x8xf32> to vector<64x8xf32>
    %c5_377 = arith.constant 5 : index
    %c0_378 = arith.constant 0 : index
    %c0_379 = arith.constant 0 : index
    %320 = vector.load %arg10[%c5_377, %c0_378, %c0_379] : memref<7x8x8xf32, #tpu.memory_space<vmem>>, vector<1x8x8xf32>
    %321 = vector.shape_cast %320 : vector<1x8x8xf32> to vector<8x8xf32>
    %cst_380 = arith.constant dense<0.000000e+00> : vector<64x8xf32>
    %322 = tpu.matmul %319, %321, %cst_380 {dimension_numbers = #tpu.dot_dimension_numbers<[1], [0], [0], [1], [0, 0, 1, 1], [], []>} : vector<64x8xf32>, vector<8x8xf32>, vector<64x8xf32> -> vector<64x8xf32>
    %323 = arith.addf %317, %322 : vector<64x8xf32>
    %c6_381 = arith.constant 6 : index
    %c0_382 = arith.constant 0 : index
    %c0_383 = arith.constant 0 : index
    %324 = vector.load %arg13[%c6_381, %c0_382, %c0_383] : memref<14x14x192xf32, #tpu.memory_space<vmem>>, vector<8x8x8xf32>
    %325 = vector.shape_cast %324 : vector<8x8x8xf32> to vector<64x8xf32>
    %c6_384 = arith.constant 6 : index
    %c0_385 = arith.constant 0 : index
    %c0_386 = arith.constant 0 : index
    %326 = vector.load %arg10[%c6_384, %c0_385, %c0_386] : memref<7x8x8xf32, #tpu.memory_space<vmem>>, vector<1x8x8xf32>
    %327 = vector.shape_cast %326 : vector<1x8x8xf32> to vector<8x8xf32>
    %cst_387 = arith.constant dense<0.000000e+00> : vector<64x8xf32>
    %328 = tpu.matmul %325, %327, %cst_387 {dimension_numbers = #tpu.dot_dimension_numbers<[1], [0], [0], [1], [0, 0, 1, 1], [], []>} : vector<64x8xf32>, vector<8x8xf32>, vector<64x8xf32> -> vector<64x8xf32>
    %329 = arith.addf %323, %328 : vector<64x8xf32>
    %330 = vector.shape_cast %329 : vector<64x8xf32> to vector<8x8x8xf32>
    %cst_388 = arith.constant 0.000000e+00 : f32
    %331 = vector.broadcast %cst_388 : f32 to vector<8x8x8xf32>
    %332 = arith.maximumf %330, %331 : vector<8x8x8xf32>
    %333 = vector.shape_cast %332 : vector<8x8x8xf32> to vector<64x8xf32>
    %c0_389 = arith.constant 0 : index
    %c0_390 = arith.constant 0 : index
    %334 = vector.load %arg11[%c0_389, %c0_390] : memref<8x8xf32, #tpu.memory_space<vmem>>, vector<8x8xf32>
    %cst_391 = arith.constant dense<0.000000e+00> : vector<64x8xf32>
    %335 = tpu.matmul %333, %334, %cst_391 {dimension_numbers = #tpu.dot_dimension_numbers<[1], [0], [0], [1], [0, 0, 1, 1], [], []>} : vector<64x8xf32>, vector<8x8xf32>, vector<64x8xf32> -> vector<64x8xf32>
    %336 = arith.addf %124, %335 : vector<64x8xf32>
    %337 = vector.shape_cast %336 : vector<64x8xf32> to vector<8x8x8xf32>
    %c0_392 = arith.constant 0 : index
    %c0_393 = arith.constant 0 : index
    %c0_394 = arith.constant 0 : index
    %c0_395 = arith.constant 0 : index
    %338 = vector.load %arg12[%c0_392, %c0_393, %c0_394, %c0_395] : memref<1x8x8x8xf32, #tpu.memory_space<vmem>>, vector<1x8x8x8xf32>
    %339 = vector.shape_cast %338 : vector<1x8x8x8xf32> to vector<8x8x8xf32>
    %340 = vector.shape_cast %337 : vector<8x8x8xf32> to vector<1x8x8x8xf32>
    tpu.vector_store %arg12[%c0_392, %c0_393, %c0_394, %c0_395], %340 {strides = array<i32>} : memref<1x8x8x8xf32, #tpu.memory_space<vmem>>, vector<1x8x8x8xf32>,
    return
  }
  func.func @transform_0(%arg0: i32) -> (i32, i32, i32, i32) {
    %c0_i32 = arith.constant 0 : i32
    %c0_i32_0 = arith.constant 0 : i32
    %c0_i32_1 = arith.constant 0 : i32
    %c0_i32_2 = arith.constant 0 : i32
    return %arg0, %c0_i32, %c0_i32_0, %c0_i32_1 : i32, i32, i32, i32
  }
  func.func @transform_1(%arg0: i32) -> (i32, i32) {
    %c0_i32 = arith.constant 0 : i32
    %c0_i32_0 = arith.constant 0 : i32
    %c0_i32_1 = arith.constant 0 : i32
    return %c0_i32, %c0_i32_0 : i32, i32
  }
  func.func @transform_2(%arg0: i32) -> (i32, i32) {
    %c0_i32 = arith.constant 0 : i32
    %c0_i32_0 = arith.constant 0 : i32
    %c0_i32_1 = arith.constant 0 : i32
    return %c0_i32, %c0_i32_0 : i32, i32
  }
  func.func @transform_3(%arg0: i32) -> (i32, i32, i32) {
    %c0_i32 = arith.constant 0 : i32
    %c0_i32_0 = arith.constant 0 : i32
    %c0_i32_1 = arith.constant 0 : i32
    %c0_i32_2 = arith.constant 0 : i32
    return %c0_i32, %c0_i32_0, %c0_i32_1 : i32, i32, i32
  }
  func.func @transform_4(%arg0: i32) -> (i32, i32, i32) {
    %c0_i32 = arith.constant 0 : i32
    %c0_i32_0 = arith.constant 0 : i32
    %c0_i32_1 = arith.constant 0 : i32
    %c0_i32_2 = arith.constant 0 : i32
    return %c0_i32, %c0_i32_0, %c0_i32_1 : i32, i32, i32
  }
  func.func @transform_5(%arg0: i32) -> (i32, i32) {
    %c0_i32 = arith.constant 0 : i32
    %c0_i32_0 = arith.constant 0 : i32
    %c0_i32_1 = arith.constant 0 : i32
    return %c0_i32, %c0_i32_0 : i32, i32
  }
  func.func @transform_6(%arg0: i32) -> (i32, i32, i32) {
    %c0_i32 = arith.constant 0 : i32
    %c0_i32_0 = arith.constant 0 : i32
    %c0_i32_1 = arith.constant 0 : i32
    %c0_i32_2 = arith.constant 0 : i32
    return %c0_i32, %c0_i32_0, %c0_i32_1 : i32, i32, i32
  }
  func.func @transform_7(%arg0: i32) -> (i32, i32, i32) {
    %c0_i32 = arith.constant 0 : i32
    %c0_i32_0 = arith.constant 0 : i32
    %c0_i32_1 = arith.constant 0 : i32
    %c0_i32_2 = arith.constant 0 : i32
    return %c0_i32, %c0_i32_0, %c0_i32_1 : i32, i32, i32
  }
  func.func @transform_8(%arg0: i32) -> (i32, i32, i32) {
    %c0_i32 = arith.constant 0 : i32
    %c0_i32_0 = arith.constant 0 : i32
    %c0_i32_1 = arith.constant 0 : i32
    %c0_i32_2 = arith.constant 0 : i32
    return %c0_i32, %c0_i32_0, %c0_i32_1 : i32, i32, i32
  }
  func.func @transform_9(%arg0: i32) -> (i32, i32, i32) {
    %c0_i32 = arith.constant 0 : i32
    %c0_i32_0 = arith.constant 0 : i32
    %c0_i32_1 = arith.constant 0 : i32
    %c0_i32_2 = arith.constant 0 : i32
    return %c0_i32, %c0_i32_0, %c0_i32_1 : i32, i32, i32
  }
  func.func @transform_10(%arg0: i32) -> (i32, i32) {
    %c0_i32 = arith.constant 0 : i32
    %c0_i32_0 = arith.constant 0 : i32
    %c0_i32_1 = arith.constant 0 : i32
    return %c0_i32, %c0_i32_0 : i32, i32
  }
  func.func @transform_11(%arg0: i32) -> (i32, i32, i32, i32) {
    %c0_i32 = arith.constant 0 : i32
    %c0_i32_0 = arith.constant 0 : i32
    %c0_i32_1 = arith.constant 0 : i32
    %c0_i32_2 = arith.constant 0 : i32
    return %arg0, %c0_i32, %c0_i32_0, %c0_i32_1 : i32, i32, i32, i32
  }
}

</mosaic_0001>

<llo_original>
// kernel: inception_c_dec_forward.1
$region0: #{inception_c_dec_forward.1}
  #allocation0 [shape = 'u32[]', space=smem, size = 0x4, offset = 0x4, fixed_abs, tag = 'smem constant byte address 0x4 - core index']
  #allocation1 [shape = 'u32[144,128]{1,0:T(1,128)}', space=vmem, size = 0x12000, scoped, tag = 'internal scratch']
  #allocation2 [shape = 'f32[14,14,192]{2,1,0:T(8,128)}', space=vmem, size = 0x38000, scoped, tag = 'scratch operand']
  %s0 = inlined_call_operand.vmem [shape: f32[2,8,8,768], index: 0, kind: input, shape index: {}]
  %s1 = inlined_call_operand.vmem [shape: f32[192,8], index: 1, kind: input, shape index: {}]
  %s2 = inlined_call_operand.vmem [shape: f32[192,8], index: 2, kind: input, shape index: {}]
  %s3 = inlined_call_operand.vmem [shape: f32[7,192,8], index: 3, kind: input, shape index: {}]
  %s4 = inlined_call_operand.vmem [shape: f32[7,8,8], index: 4, kind: input, shape index: {}]
  %s5 = inlined_call_operand.vmem [shape: f32[8,8], index: 5, kind: input, shape index: {}]
  %s6 = inlined_call_operand.vmem [shape: f32[7,192,8], index: 6, kind: input, shape index: {}]
  %s7 = inlined_call_operand.vmem [shape: f32[7,8,8], index: 7, kind: input, shape index: {}]
  %s8 = inlined_call_operand.vmem [shape: f32[7,8,8], index: 8, kind: input, shape index: {}]
  %s9 = inlined_call_operand.vmem [shape: f32[7,8,8], index: 9, kind: input, shape index: {}]
  %s10 = inlined_call_operand.vmem [shape: f32[8,8], index: 10, kind: input, shape index: {}]
  %s11 = inlined_call_operand.vmem [shape: f32[2,8,8,8], index: 11, kind: output, shape index: {}]
  %s12 = sld [smem:[#allocation0]]
  $region77: #{inception_c_dec_forward.1} parent=0
    _
  %s14 = ssub.s32 1, %s12
  %s15 = scalar_select 0, %s14, %s12
  loop: start=0, step=1, limit=4
  $region2: #{inception_c_dec_forward.1} parent=0 // loop_pre_header
    _
  $region3: #{inception_c_dec_forward.1} parent=0 // loop_header
    %s17 = sphi 0, %s21
    %p18 = scmp.ge.s32.totalorder %s17, 4
    %s27 = sphi 0, %s29
    %s30 = sphi 0, %s27
    %s31 = sphi 0, %s30
    %s47 = sphi 0, %s31
    %s51 = sphi 0, %s51
    %s53 = sphi 0, %s51
    %s54 = sphi 0, %s53
    %s68 = sphi 0, %s54
    %s72 = sphi 0, %s72
    %s74 = sphi 0, %s72
    %s75 = sphi 0, %s74
    %s89 = sphi 0, %s75
    %s93 = sphi 0, %s93
    %s95 = sphi 0, %s93
    %s96 = sphi 0, %s95
    %s110 = sphi 0, %s96
    %s114 = sphi 0, %s114
    %s116 = sphi 0, %s114
    %s117 = sphi 0, %s116
    %s131 = sphi 0, %s117
    %s135 = sphi 0, %s135
    %s137 = sphi 0, %s135
    %s138 = sphi 0, %s137
    %s152 = sphi 0, %s138
    %s156 = sphi 0, %s156
    %s158 = sphi 0, %s156
    %s159 = sphi 0, %s158
    %s173 = sphi 0, %s159
    %s177 = sphi 0, %s177
    %s179 = sphi 0, %s177
    %s180 = sphi 0, %s179
    %s194 = sphi 0, %s180
    %s198 = sphi 0, %s198
    %s200 = sphi 0, %s198
    %s201 = sphi 0, %s200
    %s215 = sphi 0, %s201
    %s219 = sphi 0, %s219
    %s221 = sphi 0, %s219
    %s222 = sphi 0, %s221
    %s236 = sphi 0, %s222
    %s240 = sphi 0, %s240
    %s242 = sphi 0, %s240
    %s243 = sphi 0, %s242
    %s257 = sphi 0, %s243
    %s263 = sphi 0, %s265
    %s266 = sphi 0, %s263
    %s267 = sphi 0, %s266
    %s283 = sphi 0, %s267
  $region4: #{inception_c_dec_forward.1} parent=0 // loop_header_branch
    %20 = sbr.rel (%p18) target = $region8
  $region5: #{inception_c_dec_forward.1} parent=0 // loop_body
    %s22 = ssub.s32 %s17, 1
    %s23 = ssub.s32 %s17, 2
    %s24 = sadd.s32 %s17, 1
    %s25 = ssub.s32 %s17, %s24
    %p26 = scmp.eq.s32.totalorder %s25, 0
    %s28 = sadd.s32 %s27, 1
    %s29 = scalar_select %p26, %s27, %s28
    %p32 = pneg %p26
    %p33 = scmp.eq.s32.totalorder %s17, 1
    %p34 = por %p32, %p33
    %p35 = scmp.ne.s32.totalorder %s27, %s30
    %p36 = scmp.eq.s32.totalorder %s17, 0
    %p37 = por %p35, %p36
    %p38 = scmp.ne.s32.totalorder %s27, %s30
    %p39 = scmp.eq.s32.totalorder %s22, 1
    %p40 = por %p38, %p39
    %p41 = scmp.ne.s32.totalorder %s30, %s31
    %p42 = scmp.eq.s32.totalorder %s22, 0
    %p43 = por %p41, %p42
    %p44 = scmp.ne.s32.totalorder %s30, %s31
    %p45 = scmp.eq.s32.totalorder %s23, 1
    %p46 = por %p44, %p45
    %p48 = scmp.ne.s32.totalorder %s31, %s47
    %p49 = scmp.eq.s32.totalorder %s23, 0
    %p50 = por %p48, %p49
    %s52 = sadd.s32 %s51, 1
    %p55 = scmp.eq.s32.totalorder %s17, 1
    %p56 = scmp.ne.s32.totalorder %s51, %s53
    %p57 = scmp.eq.s32.totalorder %s17, 0
    %p58 = por %p56, %p57
    %p59 = scmp.ne.s32.totalorder %s51, %s53
    %p60 = scmp.eq.s32.totalorder %s22, 1
    %p61 = por %p59, %p60
    %p62 = scmp.ne.s32.totalorder %s53, %s54
    %p63 = scmp.eq.s32.totalorder %s22, 0
    %p64 = por %p62, %p63
    %p65 = scmp.ne.s32.totalorder %s53, %s54
    %p66 = scmp.eq.s32.totalorder %s23, 1
    %p67 = por %p65, %p66
    %p69 = scmp.ne.s32.totalorder %s54, %s68
    %p70 = scmp.eq.s32.totalorder %s23, 0
    %p71 = por %p69, %p70
    %s73 = sadd.s32 %s72, 1
    %p76 = scmp.eq.s32.totalorder %s17, 1
    %p77 = scmp.ne.s32.totalorder %s72, %s74
    %p78 = scmp.eq.s32.totalorder %s17, 0
    %p79 = por %p77, %p78
    %p80 = scmp.ne.s32.totalorder %s72, %s74
    %p81 = scmp.eq.s32.totalorder %s22, 1
    %p82 = por %p80, %p81
    %p83 = scmp.ne.s32.totalorder %s74, %s75
    %p84 = scmp.eq.s32.totalorder %s22, 0
    %p85 = por %p83, %p84
    %p86 = scmp.ne.s32.totalorder %s74, %s75
    %p87 = scmp.eq.s32.totalorder %s23, 1
    %p88 = por %p86, %p87
    %p90 = scmp.ne.s32.totalorder %s75, %s89
    %p91 = scmp.eq.s32.totalorder %s23, 0
    %p92 = por %p90, %p91
    %s94 = sadd.s32 %s93, 1
    %p97 = scmp.eq.s32.totalorder %s17, 1
    %p98 = scmp.ne.s32.totalorder %s93, %s95
    %p99 = scmp.eq.s32.totalorder %s17, 0
    %p100 = por %p98, %p99
    %p101 = scmp.ne.s32.totalorder %s93, %s95
    %p102 = scmp.eq.s32.totalorder %s22, 1
    %p103 = por %p101, %p102
    %p104 = scmp.ne.s32.totalorder %s95, %s96
    %p105 = scmp.eq.s32.totalorder %s22, 0
    %p106 = por %p104, %p105
    %p107 = scmp.ne.s32.totalorder %s95, %s96
    %p108 = scmp.eq.s32.totalorder %s23, 1
    %p109 = por %p107, %p108
    %p111 = scmp.ne.s32.totalorder %s96, %s110
    %p112 = scmp.eq.s32.totalorder %s23, 0
    %p113 = por %p111, %p112
    %s115 = sadd.s32 %s114, 1
    %p118 = scmp.eq.s32.totalorder %s17, 1
    %p119 = scmp.ne.s32.totalorder %s114, %s116
    %p120 = scmp.eq.s32.totalorder %s17, 0
    %p121 = por %p119, %p120
    %p122 = scmp.ne.s32.totalorder %s114, %s116
    %p123 = scmp.eq.s32.totalorder %s22, 1
    %p124 = por %p122, %p123
    %p125 = scmp.ne.s32.totalorder %s116, %s117
    %p126 = scmp.eq.s32.totalorder %s22, 0
    %p127 = por %p125, %p126
    %p128 = scmp.ne.s32.totalorder %s116, %s117
    %p129 = scmp.eq.s32.totalorder %s23, 1
    %p130 = por %p128, %p129
    %p132 = scmp.ne.s32.totalorder %s117, %s131
    %p133 = scmp.eq.s32.totalorder %s23, 0
    %p134 = por %p132, %p133
    %s136 = sadd.s32 %s135, 1
    %p139 = scmp.eq.s32.totalorder %s17, 1
    %p140 = scmp.ne.s32.totalorder %s135, %s137
    %p141 = scmp.eq.s32.totalorder %s17, 0
    %p142 = por %p140, %p141
    %p143 = scmp.ne.s32.totalorder %s135, %s137
    %p144 = scmp.eq.s32.totalorder %s22, 1
    %p145 = por %p143, %p144
    %p146 = scmp.ne.s32.totalorder %s137, %s138
    %p147 = scmp.eq.s32.totalorder %s22, 0
    %p148 = por %p146, %p147
    %p149 = scmp.ne.s32.totalorder %s137, %s138
    %p150 = scmp.eq.s32.totalorder %s23, 1
    %p151 = por %p149, %p150
    %p153 = scmp.ne.s32.totalorder %s138, %s152
    %p154 = scmp.eq.s32.totalorder %s23, 0
    %p155 = por %p153, %p154
    %s157 = sadd.s32 %s156, 1
    %p160 = scmp.eq.s32.totalorder %s17, 1
    %p161 = scmp.ne.s32.totalorder %s156, %s158
    %p162 = scmp.eq.s32.totalorder %s17, 0
    %p163 = por %p161, %p162
    %p164 = scmp.ne.s32.totalorder %s156, %s158
    %p165 = scmp.eq.s32.totalorder %s22, 1
    %p166 = por %p164, %p165
    %p167 = scmp.ne.s32.totalorder %s158, %s159
    %p168 = scmp.eq.s32.totalorder %s22, 0
    %p169 = por %p167, %p168
    %p170 = scmp.ne.s32.totalorder %s158, %s159
    %p171 = scmp.eq.s32.totalorder %s23, 1
    %p172 = por %p170, %p171
    %p174 = scmp.ne.s32.totalorder %s159, %s173
    %p175 = scmp.eq.s32.totalorder %s23, 0
    %p176 = por %p174, %p175
    %s178 = sadd.s32 %s177, 1
    %p181 = scmp.eq.s32.totalorder %s17, 1
    %p182 = scmp.ne.s32.totalorder %s177, %s179
    %p183 = scmp.eq.s32.totalorder %s17, 0
    %p184 = por %p182, %p183
    %p185 = scmp.ne.s32.totalorder %s177, %s179
    %p186 = scmp.eq.s32.totalorder %s22, 1
    %p187 = por %p185, %p186
    %p188 = scmp.ne.s32.totalorder %s179, %s180
    %p189 = scmp.eq.s32.totalorder %s22, 0
    %p190 = por %p188, %p189
    %p191 = scmp.ne.s32.totalorder %s179, %s180
    %p192 = scmp.eq.s32.totalorder %s23, 1
    %p193 = por %p191, %p192
    %p195 = scmp.ne.s32.totalorder %s180, %s194
    %p196 = scmp.eq.s32.totalorder %s23, 0
    %p197 = por %p195, %p196
    %s199 = sadd.s32 %s198, 1
    %p202 = scmp.eq.s32.totalorder %s17, 1
    %p203 = scmp.ne.s32.totalorder %s198, %s200
    %p204 = scmp.eq.s32.totalorder %s17, 0
    %p205 = por %p203, %p204
    %p206 = scmp.ne.s32.totalorder %s198, %s200
    %p207 = scmp.eq.s32.totalorder %s22, 1
    %p208 = por %p206, %p207
    %p209 = scmp.ne.s32.totalorder %s200, %s201
    %p210 = scmp.eq.s32.totalorder %s22, 0
    %p211 = por %p209, %p210
    %p212 = scmp.ne.s32.totalorder %s200, %s201
    %p213 = scmp.eq.s32.totalorder %s23, 1
    %p214 = por %p212, %p213
    %p216 = scmp.ne.s32.totalorder %s201, %s215
    %p217 = scmp.eq.s32.totalorder %s23, 0
    %p218 = por %p216, %p217
    %s220 = sadd.s32 %s219, 1
    %p223 = scmp.eq.s32.totalorder %s17, 1
    %p224 = scmp.ne.s32.totalorder %s219, %s221
    %p225 = scmp.eq.s32.totalorder %s17, 0
    %p226 = por %p224, %p225
    %p227 = scmp.ne.s32.totalorder %s219, %s221
    %p228 = scmp.eq.s32.totalorder %s22, 1
    %p229 = por %p227, %p228
    %p230 = scmp.ne.s32.totalorder %s221, %s222
    %p231 = scmp.eq.s32.totalorder %s22, 0
    %p232 = por %p230, %p231
    %p233 = scmp.ne.s32.totalorder %s221, %s222
    %p234 = scmp.eq.s32.totalorder %s23, 1
    %p235 = por %p233, %p234
    %p237 = scmp.ne.s32.totalorder %s222, %s236
    %p238 = scmp.eq.s32.totalorder %s23, 0
    %p239 = por %p237, %p238
    %s241 = sadd.s32 %s240, 1
    %p244 = scmp.eq.s32.totalorder %s17, 1
    %p245 = scmp.ne.s32.totalorder %s240, %s242
    %p246 = scmp.eq.s32.totalorder %s17, 0
    %p247 = por %p245, %p246
    %p248 = scmp.ne.s32.totalorder %s240, %s242
    %p249 = scmp.eq.s32.totalorder %s22, 1
    %p250 = por %p248, %p249
    %p251 = scmp.ne.s32.totalorder %s242, %s243
    %p252 = scmp.eq.s32.totalorder %s22, 0
    %p253 = por %p251, %p252
    %p254 = scmp.ne.s32.totalorder %s242, %s243
    %p255 = scmp.eq.s32.totalorder %s23, 1
    %p256 = por %p254, %p255
    %p258 = scmp.ne.s32.totalorder %s243, %s257
    %p259 = scmp.eq.s32.totalorder %s23, 0
    %p260 = por %p258, %p259
    %s261 = ssub.s32 %s17, %s24
    %p262 = scmp.eq.s32.totalorder %s261, 0
    %s264 = sadd.s32 %s263, 1
    %s265 = scalar_select %p262, %s263, %s264
    %p268 = pneg %p262
    %p269 = scmp.eq.s32.totalorder %s17, 1
    %p270 = por %p268, %p269
    %p271 = scmp.ne.s32.totalorder %s263, %s266
    %p272 = scmp.eq.s32.totalorder %s17, 0
    %p273 = por %p271, %p272
    %p274 = scmp.ne.s32.totalorder %s263, %s266
    %p275 = scmp.eq.s32.totalorder %s22, 1
    %p276 = por %p274, %p275
    %p277 = scmp.ne.s32.totalorder %s266, %s267
    %p278 = scmp.eq.s32.totalorder %s22, 0
    %p279 = por %p277, %p278
    %p280 = scmp.ne.s32.totalorder %s266, %s267
    %p281 = scmp.eq.s32.totalorder %s23, 1
    %p282 = por %p280, %p281
    %p284 = scmp.ne.s32.totalorder %s267, %s283
    %p285 = scmp.eq.s32.totalorder %s23, 0
    %p286 = por %p284, %p285
    %p287 = scmp.le.s32.totalorder 1, %s17
    %p288 = scmp.lt.s32.totalorder %s17, 3
    %p289 = pnand %p287, %p288
    %p290 = pneg %p289
    // Predicated region
    $region9: #{inception_c_dec_forward.1} parent=5 // pred_check
      _
    $region10: #{inception_c_dec_forward.1} parent=5 // pred_check_branch
      %292 = sbr.rel (%p289) target = $region12
    $region11: #{inception_c_dec_forward.1} parent=5 // pred_region
      %s293 = ssub.s32 %s17, 1
      // Predicated region
      $region13: #{inception_c_dec_forward.1} parent=11 // pred_check
        %p294 = pneg %p64
      $region14: #{inception_c_dec_forward.1} parent=11 // pred_check_branch
        %296 = sbr.rel (%p294) target = $region16
      $region15: #{inception_c_dec_forward.1} parent=11 // pred_region
        _
      $region16: #{inception_c_dec_forward.1} parent=11 // pred_fallthru
        _
      // Predicated region
      $region17: #{inception_c_dec_forward.1} parent=11 // pred_check
        %p297 = pneg %p85
      $region18: #{inception_c_dec_forward.1} parent=11 // pred_check_branch
        %299 = sbr.rel (%p297) target = $region20
      $region19: #{inception_c_dec_forward.1} parent=11 // pred_region
        _
      $region20: #{inception_c_dec_forward.1} parent=11 // pred_fallthru
        _
      // Predicated region
      $region21: #{inception_c_dec_forward.1} parent=11 // pred_check
        %p300 = pneg %p106
      $region22: #{inception_c_dec_forward.1} parent=11 // pred_check_branch
        %302 = sbr.rel (%p300) target = $region24
      $region23: #{inception_c_dec_forward.1} parent=11 // pred_region
        _
      $region24: #{inception_c_dec_forward.1} parent=11 // pred_fallthru
        _
      // Predicated region
      $region25: #{inception_c_dec_forward.1} parent=11 // pred_check
        %p303 = pneg %p127
      $region26: #{inception_c_dec_forward.1} parent=11 // pred_check_branch
        %305 = sbr.rel (%p303) target = $region28
      $region27: #{inception_c_dec_forward.1} parent=11 // pred_region
        _
      $region28: #{inception_c_dec_forward.1} parent=11 // pred_fallthru
        _
      // Predicated region
      $region29: #{inception_c_dec_forward.1} parent=11 // pred_check
        %p306 = pneg %p148
      $region30: #{inception_c_dec_forward.1} parent=11 // pred_check_branch
        %308 = sbr.rel (%p306) target = $region32
      $region31: #{inception_c_dec_forward.1} parent=11 // pred_region
        _
      $region32: #{inception_c_dec_forward.1} parent=11 // pred_fallthru
        _
      // Predicated region
      $region33: #{inception_c_dec_forward.1} parent=11 // pred_check
        %p309 = pneg %p169
      $region34: #{inception_c_dec_forward.1} parent=11 // pred_check_branch
        %311 = sbr.rel (%p309) target = $region36
      $region35: #{inception_c_dec_forward.1} parent=11 // pred_region
        _
      $region36: #{inception_c_dec_forward.1} parent=11 // pred_fallthru
        _
      // Predicated region
      $region37: #{inception_c_dec_forward.1} parent=11 // pred_check
        %p312 = pneg %p190
      $region38: #{inception_c_dec_forward.1} parent=11 // pred_check_branch
        %314 = sbr.rel (%p312) target = $region40
      $region39: #{inception_c_dec_forward.1} parent=11 // pred_region
        _
      $region40: #{inception_c_dec_forward.1} parent=11 // pred_fallthru
        _
      // Predicated region
      $region41: #{inception_c_dec_forward.1} parent=11 // pred_check
        %p315 = pneg %p211
      $region42: #{inception_c_dec_forward.1} parent=11 // pred_check_branch
        %317 = sbr.rel (%p315) target = $region44
      $region43: #{inception_c_dec_forward.1} parent=11 // pred_region
        _
      $region44: #{inception_c_dec_forward.1} parent=11 // pred_fallthru
        _
      // Predicated region
      $region45: #{inception_c_dec_forward.1} parent=11 // pred_check
        %p318 = pneg %p232
      $region46: #{inception_c_dec_forward.1} parent=11 // pred_check_branch
        %320 = sbr.rel (%p318) target = $region48
      $region47: #{inception_c_dec_forward.1} parent=11 // pred_region
        _
      $region48: #{inception_c_dec_forward.1} parent=11 // pred_fallthru
        _
      // Predicated region
      $region49: #{inception_c_dec_forward.1} parent=11 // pred_check
        %p321 = pneg %p253
      $region50: #{inception_c_dec_forward.1} parent=11 // pred_check_branch
        %323 = sbr.rel (%p321) target = $region52
      $region51: #{inception_c_dec_forward.1} parent=11 // pred_region
        _
      $region52: #{inception_c_dec_forward.1} parent=11 // pred_fallthru
        _
    $region12: #{inception_c_dec_forward.1} parent=5 // pred_fallthru
      _
    %p324 = scmp.lt.s32.totalorder %s17, 2
    // Predicated region
    $region53: #{inception_c_dec_forward.1} parent=5 // pred_check
      %p325 = pneg %p324
    $region54: #{inception_c_dec_forward.1} parent=5 // pred_check_branch
      %327 = sbr.rel (%p325) target = $region56
    $region55: #{inception_c_dec_forward.1} parent=5 // pred_region
      // Predicated region
      $region57: #{inception_c_dec_forward.1} parent=55 // pred_check
        %p328 = pneg %p37
      $region58: #{inception_c_dec_forward.1} parent=55 // pred_check_branch
        %330 = sbr.rel (%p328) target = $region60
      $region59: #{inception_c_dec_forward.1} parent=55 // pred_region
        %p331 = scmp.lt.s32.totalorder %s17, 1
        %s332 = scalar_select %p331, %s17, 1
        %s333 = smul.addr %s332, 48
        %s334 = smul.addr %s333, 8
        %s335 = scalar_lea.vmem %s0, %s334
      $region60: #{inception_c_dec_forward.1} parent=55 // pred_fallthru
        _
    $region56: #{inception_c_dec_forward.1} parent=5 // pred_fallthru
      _
    %p336 = scmp.le.s32.totalorder 1, %s17
    %p337 = scmp.lt.s32.totalorder %s17, 3
    %p338 = pnand %p336, %p337
    %p339 = pneg %p338
    // Predicated region
    $region61: #{inception_c_dec_forward.1} parent=5 // pred_check
      _
    $region62: #{inception_c_dec_forward.1} parent=5 // pred_check_branch
      %341 = sbr.rel (%p338) target = $region64
    $region63: #{inception_c_dec_forward.1} parent=5 // pred_region
      %s342 = ssub.s32 %s17, 1
      %p343 = scmp.lt.s32.totalorder %s22, 1
      %s344 = scalar_select %p343, %s22, 1
      %s345 = smul.addr %s344, 48
      %s346 = smul.addr %s345, 8
      %s347 = scalar_lea.vmem %s0, %s346
      %p348 = pneg %p43
      %p349 = pneg %p40
      %p350 = pneg %p64
      %p351 = pneg %p61
      %p352 = pneg %p85
      %p353 = pneg %p82
      %p354 = pneg %p106
      %p355 = pneg %p103
      %p356 = pneg %p127
      %p357 = pneg %p124
      %p358 = pneg %p148
      %p359 = pneg %p145
      %p360 = pneg %p169
      %p361 = pneg %p166
      %p362 = pneg %p190
      %p363 = pneg %p187
      %p364 = pneg %p211
      %p365 = pneg %p208
      %p366 = pneg %p232
      %p367 = pneg %p229
      %p368 = pneg %p253
      %p369 = pneg %p250
      %p370 = pneg %p279
      %p371 = pneg %p276
      %p372 = scmp.lt.s32.totalorder %s22, 1
      %s373 = scalar_select %p372, %s22, 1
      %s374 = smul.addr %s373, 8
      %s375 = smul.addr %s374, 8
      %s376 = scalar_lea.vmem %s11, %s375
      %p377 = scmp.lt.s32.totalorder %s22, 1
      %s378 = scalar_select %p377, %s22, 1
      %s379 = smul.addr %s378, 48
      %s380 = smul.addr %s379, 8
      %s381 = scalar_lea.vmem %s0, %s380
      %p382 = scmp.lt.s32.totalorder %s22, 1
      %s383 = scalar_select %p382, %s22, 1
      %s384 = smul.addr %s383, 8
      %s385 = smul.addr %s384, 8
      %s386 = scalar_lea.vmem %s11, %s385
      %v387 = vld [vmem:[%s381] sm:$0xff]
      %v388 = vld [vmem:[%s381 + $0x8] sm:$0xff]
      %v389 = vld [vmem:[%s381 + $0x30] sm:$0xff]
      %v390 = vld [vmem:[%s381 + $0x38] sm:$0xff]
      %v391 = vld [vmem:[%s381 + $0x60] sm:$0xff]
      %v392 = vld [vmem:[%s381 + $0x68] sm:$0xff]
      %v393 = vld [vmem:[%s381 + $0x90] sm:$0xff]
      %v394 = vld [vmem:[%s381 + $0x98] sm:$0xff]
      %v395 = vld [vmem:[%s381 + $0xc0] sm:$0xff]
      %v396 = vld [vmem:[%s381 + $0xc8] sm:$0xff]
      %v397 = vld [vmem:[%s381 + $0xf0] sm:$0xff]
      %v398 = vld [vmem:[%s381 + $0xf8] sm:$0xff]
      %v399 = vld [vmem:[%s381 + $0x120] sm:$0xff]
      %v400 = vld [vmem:[%s381 + $0x128] sm:$0xff]
      %v401 = vld [vmem:[%s381 + $0x150] sm:$0xff]
      %v402 = vld [vmem:[%s381 + $0x158] sm:$0xff]
      %v403 = vmax.f32 %v387, 0.0
      %v404 = vmax.f32 %v388, 0.0
      %v405 = vmax.f32 %v389, 0.0
      %v406 = vmax.f32 %v390, 0.0
      %v407 = vmax.f32 %v391, 0.0
      %v408 = vmax.f32 %v392, 0.0
      %v409 = vmax.f32 %v393, 0.0
      %v410 = vmax.f32 %v394, 0.0
      %v411 = vmax.f32 %v395, 0.0
      %v412 = vmax.f32 %v396, 0.0
      %v413 = vmax.f32 %v397, 0.0
      %v414 = vmax.f32 %v398, 0.0
      %v415 = vmax.f32 %v399, 0.0
      %v416 = vmax.f32 %v400, 0.0
      %v417 = vmax.f32 %v401, 0.0
      %v418 = vmax.f32 %v402, 0.0
      %v419 = vld [vmem:[%s381 + $0x20] sm:$0xff]
      %v420 = vld [vmem:[%s381 + $0x28] sm:$0xff]
      %v421 = vld [vmem:[%s381 + $0x50] sm:$0xff]
      %v422 = vld [vmem:[%s381 + $0x58] sm:$0xff]
      %v423 = vld [vmem:[%s381 + $0x80] sm:$0xff]
      %v424 = vld [vmem:[%s381 + $0x88] sm:$0xff]
      %v425 = vld [vmem:[%s381 + $0xb0] sm:$0xff]
      %v426 = vld [vmem:[%s381 + $0xb8] sm:$0xff]
      %v427 = vld [vmem:[%s381 + $0xe0] sm:$0xff]
      %v428 = vld [vmem:[%s381 + $0xe8] sm:$0xff]
      %v429 = vld [vmem:[%s381 + $0x110] sm:$0xff]
      %v430 = vld [vmem:[%s381 + $0x118] sm:$0xff]
      %v431 = vld [vmem:[%s381 + $0x140] sm:$0xff]
      %v432 = vld [vmem:[%s381 + $0x148] sm:$0xff]
      %v433 = vld [vmem:[%s381 + $0x170] sm:$0xff]
      %v434 = vld [vmem:[%s381 + $0x178] sm:$0xff]
      %v435 = vmax.f32 %v419, 0.0
      %v436 = vmax.f32 %v420, 0.0
      %v437 = vmax.f32 %v421, 0.0
      %v438 = vmax.f32 %v422, 0.0
      %v439 = vmax.f32 %v423, 0.0
      %v440 = vmax.f32 %v424, 0.0
      %v441 = vmax.f32 %v425, 0.0
      %v442 = vmax.f32 %v426, 0.0
      %v443 = vmax.f32 %v427, 0.0
      %v444 = vmax.f32 %v428, 0.0
      %v445 = vmax.f32 %v429, 0.0
      %v446 = vmax.f32 %v430, 0.0
      %v447 = vmax.f32 %v431, 0.0
      %v448 = vmax.f32 %v432, 0.0
      %v449 = vmax.f32 %v433, 0.0
      %v450 = vmax.f32 %v434, 0.0
      %v451 = vld [vmem:[%s1] sm:$0xff]
      %v452 = vld [vmem:[%s1 + $0x8] sm:$0xff]
      %v453 = vld [vmem:[%s1 + $0x10] sm:$0xff]
      %v454 = vld [vmem:[%s1 + $0x18] sm:$0xff]
      %v455 = vld [vmem:[%s1 + $0x20] sm:$0xff]
      %v456 = vld [vmem:[%s1 + $0x28] sm:$0xff]
      %v457 = vld [vmem:[%s1 + $0x30] sm:$0xff]
      %v458 = vld [vmem:[%s1 + $0x38] sm:$0xff]
      %v459 = vld [vmem:[%s1 + $0x40] sm:$0xff]
      %v460 = vld [vmem:[%s1 + $0x48] sm:$0xff]
      %v461 = vld [vmem:[%s1 + $0x50] sm:$0xff]
      %v462 = vld [vmem:[%s1 + $0x58] sm:$0xff]
      %v463 = vld [vmem:[%s1 + $0x60] sm:$0xff]
      %v464 = vld [vmem:[%s1 + $0x68] sm:$0xff]
      %v465 = vld [vmem:[%s1 + $0x70] sm:$0xff]
      %v466 = vld [vmem:[%s1 + $0x78] sm:$0xff]
      %v467 = vld [vmem:[%s1 + $0x80] sm:$0xff]
      %v468 = vld [vmem:[%s1 + $0x88] sm:$0xff]
      %v469 = vld [vmem:[%s1 + $0x90] sm:$0xff]
      %v470 = vld [vmem:[%s1 + $0x98] sm:$0xff]
      %v471 = vld [vmem:[%s1 + $0xa0] sm:$0xff]
      %v472 = vld [vmem:[%s1 + $0xa8] sm:$0xff]
      %v473 = vld [vmem:[%s1 + $0xb0] sm:$0xff]
      %v474 = vld [vmem:[%s1 + $0xb8] sm:$0xff]
      %v475 = vld [vmem:[%s2] sm:$0xff]
      %v476 = vld [vmem:[%s2 + $0x8] sm:$0xff]
      %v477 = vld [vmem:[%s2 + $0x10] sm:$0xff]
      %v478 = vld [vmem:[%s2 + $0x18] sm:$0xff]
      %v479 = vld [vmem:[%s2 + $0x20] sm:$0xff]
      %v480 = vld [vmem:[%s2 + $0x28] sm:$0xff]
      %v481 = vld [vmem:[%s2 + $0x30] sm:$0xff]
      %v482 = vld [vmem:[%s2 + $0x38] sm:$0xff]
      %v483 = vld [vmem:[%s2 + $0x40] sm:$0xff]
      %v484 = vld [vmem:[%s2 + $0x48] sm:$0xff]
      %v485 = vld [vmem:[%s2 + $0x50] sm:$0xff]
      %v486 = vld [vmem:[%s2 + $0x58] sm:$0xff]
      %v487 = vld [vmem:[%s2 + $0x60] sm:$0xff]
      %v488 = vld [vmem:[%s2 + $0x68] sm:$0xff]
      %v489 = vld [vmem:[%s2 + $0x70] sm:$0xff]
      %v490 = vld [vmem:[%s2 + $0x78] sm:$0xff]
      %v491 = vld [vmem:[%s2 + $0x80] sm:$0xff]
      %v492 = vld [vmem:[%s2 + $0x88] sm:$0xff]
      %v493 = vld [vmem:[%s2 + $0x90] sm:$0xff]
      %v494 = vld [vmem:[%s2 + $0x98] sm:$0xff]
      %v495 = vld [vmem:[%s2 + $0xa0] sm:$0xff]
      %v496 = vld [vmem:[%s2 + $0xa8] sm:$0xff]
      %v497 = vld [vmem:[%s2 + $0xb0] sm:$0xff]
      %v498 = vld [vmem:[%s2 + $0xb8] sm:$0xff]
      %515 = vrot.lane.b32.xlu0 %v435, 64
      %v516 = vpop.permute.xlu0 %515
      %517 = vrot.lane.b32.xlu0 %v436, 64
      %v518 = vpop.permute.xlu0 %517
      %519 = vrot.lane.b32.xlu0 %v437, 64
      %v520 = vpop.permute.xlu0 %519
      %521 = vrot.lane.b32.xlu0 %v438, 64
      %v522 = vpop.permute.xlu0 %521
      %523 = vrot.lane.b32.xlu0 %v439, 64
      %v524 = vpop.permute.xlu0 %523
      %525 = vrot.lane.b32.xlu0 %v440, 64
      %v526 = vpop.permute.xlu0 %525
      %527 = vrot.lane.b32.xlu0 %v441, 64
      %v528 = vpop.permute.xlu0 %527
      %529 = vrot.lane.b32.xlu0 %v442, 64
      %v530 = vpop.permute.xlu0 %529
      %531 = vrot.lane.b32.xlu0 %v443, 64
      %v532 = vpop.permute.xlu0 %531
      %533 = vrot.lane.b32.xlu0 %v444, 64
      %v534 = vpop.permute.xlu0 %533
      %535 = vrot.lane.b32.xlu0 %v445, 64
      %v536 = vpop.permute.xlu0 %535
      %537 = vrot.lane.b32.xlu0 %v446, 64
      %v538 = vpop.permute.xlu0 %537
      %539 = vrot.lane.b32.xlu0 %v447, 64
      %v540 = vpop.permute.xlu0 %539
      %541 = vrot.lane.b32.xlu0 %v448, 64
      %v542 = vpop.permute.xlu0 %541
      %543 = vrot.lane.b32.xlu0 %v449, 64
      %v544 = vpop.permute.xlu0 %543
      %545 = vrot.lane.b32.xlu0 %v450, 64
      %v546 = vpop.permute.xlu0 %545
      %vm547 = vcmask 523264
      %v548 = vsel %vm547, %v516, %v518
      %v549 = vsel %vm547, %v520, %v522
      %v550 = vsel %vm547, %v524, %v526
      %v551 = vsel %vm547, %v528, %v530
      %v552 = vsel %vm547, %v532, %v534
      %v553 = vsel %vm547, %v536, %v538
      %v554 = vsel %vm547, %v540, %v542
      %v555 = vsel %vm547, %v544, %v546
      %v564 = vsel %vm547, %v518, 0
      %v566 = vsel %vm547, %v522, 0
      %v568 = vsel %vm547, %v526, 0
      %v570 = vsel %vm547, %v530, 0
      %v572 = vsel %vm547, %v534, 0
      %v574 = vsel %vm547, %v538, 0
      %v576 = vsel %vm547, %v542, 0
      %v578 = vsel %vm547, %v546, 0
      %580 = vmatprep.subr.mxu0 0.0
      %581 = vmatpush1.msra.mxu0 %v490
      %582 = vmatprep.subr.mxu0 0.0
      %583 = vmatpush1.msra.mxu0 %v489
      %584 = vmatprep.subr.mxu0 0.0
      %585 = vmatpush1.msra.mxu0 %v488
      %586 = vmatprep.subr.mxu0 0.0
      %587 = vmatpush1.msra.mxu0 %v487
      %588 = vmatprep.subr.mxu0 0.0
      %589 = vmatpush1.msra.mxu0 %v486
      %590 = vmatprep.subr.mxu0 0.0
      %591 = vmatpush1.msra.mxu0 %v485
      %592 = vmatprep.subr.mxu0 0.0
      %593 = vmatpush1.msra.mxu0 %v484
      %594 = vmatprep.subr.mxu0 0.0
      %595 = vmatpush1.msra.mxu0 %v483
      %596 = vmatprep.subr.mxu0 0.0
      %597 = vmatpush1.msra.mxu0 %v482
      %598 = vmatprep.subr.mxu0 0.0
      %599 = vmatpush1.msra.mxu0 %v481
      %600 = vmatprep.subr.mxu0 0.0
      %601 = vmatpush1.msra.mxu0 %v480
      %602 = vmatprep.subr.mxu0 0.0
      %603 = vmatpush1.msra.mxu0 %v479
      %604 = vmatprep.subr.mxu0 0.0
      %605 = vmatpush1.msra.mxu0 %v478
      %606 = vmatprep.subr.mxu0 0.0
      %607 = vmatpush1.msra.mxu0 %v477
      %608 = vmatprep.subr.mxu0 0.0
      %609 = vmatpush1.msra.mxu0 %v476
      %610 = vmatprep.subr.mxu0 0.0
      %611 = vmatpush1.msra.mxu0 %v475
      %612 = vmatprep.subr.mxu0 0.0
      %613 = vmatpush2.msra.mxu0 0.0
      %614 = vmatprep.subr.mxu0 0.0
      %615 = vmatpush2.msra.mxu0 0.0
      %616 = vmatprep.subr.mxu0 0.0
      %617 = vmatpush2.msra.mxu0 0.0
      %618 = vmatprep.subr.mxu0 0.0
      %619 = vmatpush2.msra.mxu0 0.0
      %620 = vmatprep.subr.mxu0 0.0
      %621 = vmatpush2.msra.mxu0 0.0
      %622 = vmatprep.subr.mxu0 0.0
      %623 = vmatpush2.msra.mxu0 0.0
      %624 = vmatprep.subr.mxu0 0.0
      %625 = vmatpush2.msra.mxu0 0.0
      %626 = vmatprep.subr.mxu0 0.0
      %627 = vmatpush2.msra.mxu0 0.0
      %628 = vmatprep.subr.mxu0 0.0
      %629 = vmatpush2.msra.mxu0 %v498
      %630 = vmatprep.subr.mxu0 0.0
      %631 = vmatpush2.msra.mxu0 %v497
      %632 = vmatprep.subr.mxu0 0.0
      %633 = vmatpush2.msra.mxu0 %v496
      %634 = vmatprep.subr.mxu0 0.0
      %635 = vmatpush2.msra.mxu0 %v495
      %636 = vmatprep.subr.mxu0 0.0
      %637 = vmatpush2.msra.mxu0 %v494
      %638 = vmatprep.subr.mxu0 0.0
      %639 = vmatpush2.msra.mxu0 %v493
      %640 = vmatprep.subr.mxu0 0.0
      %641 = vmatpush2.msra.mxu0 %v492
      %642 = vmatprep.subr.mxu0 0.0
      %643 = vmatpush2.msra.mxu0 %v491
      %644 = vmatprep.mubr.f32.mxu0 %v564
      %645 = vmatmul.mubr.f32.gmra.mxu0 %v548
      %v646 = vpop.f32.mrf.mxu0
      %v647 = vadd.f32 0.0, %v646
      %v648 = vpop.f32.mrf.mxu0
      %649 = vmatprep.mubr.f32.mxu0 %v566
      %650 = vmatmul.mubr.f32.gmra.mxu0 %v549
      %v651 = vpop.f32.mrf.mxu0
      %v652 = vadd.f32 0.0, %v651
      %v653 = vpop.f32.mrf.mxu0
      %654 = vmatprep.mubr.f32.mxu0 %v568
      %655 = vmatmul.mubr.f32.gmra.mxu0 %v550
      %v656 = vpop.f32.mrf.mxu0
      %v657 = vadd.f32 0.0, %v656
      %v658 = vpop.f32.mrf.mxu0
      %659 = vmatprep.mubr.f32.mxu0 %v570
      %660 = vmatmul.mubr.f32.gmra.mxu0 %v551
      %v661 = vpop.f32.mrf.mxu0
      %v662 = vadd.f32 0.0, %v661
      %v663 = vpop.f32.mrf.mxu0
      %664 = vmatprep.mubr.f32.mxu0 %v572
      %665 = vmatmul.mubr.f32.gmra.mxu0 %v552
      %v666 = vpop.f32.mrf.mxu0
      %v667 = vadd.f32 0.0, %v666
      %v668 = vpop.f32.mrf.mxu0
      %669 = vmatprep.mubr.f32.mxu0 %v574
      %670 = vmatmul.mubr.f32.gmra.mxu0 %v553
      %v671 = vpop.f32.mrf.mxu0
      %v672 = vadd.f32 0.0, %v671
      %v673 = vpop.f32.mrf.mxu0
      %674 = vmatprep.mubr.f32.mxu0 %v576
      %675 = vmatmul.mubr.f32.gmra.mxu0 %v554
      %v676 = vpop.f32.mrf.mxu0
      %v677 = vadd.f32 0.0, %v676
      %v678 = vpop.f32.mrf.mxu0
      %679 = vmatprep.mubr.f32.mxu0 %v578
      %680 = vmatmul.mubr.f32.gmra.mxu0 %v555
      %v681 = vpop.f32.mrf.mxu0
      %v682 = vadd.f32 0.0, %v681
      %v683 = vpop.f32.mrf.mxu0
      %684 = vdwg.mxu0
      %v686 = vsel %vm547, %v404, 0
      %v689 = vsel %vm547, %v406, 0
      %v692 = vsel %vm547, %v408, 0
      %v695 = vsel %vm547, %v410, 0
      %v698 = vsel %vm547, %v412, 0
      %v701 = vsel %vm547, %v414, 0
      %v704 = vsel %vm547, %v416, 0
      %v707 = vsel %vm547, %v418, 0
      %709 = vmatprep.subr.mxu0 0.0
      %710 = vmatpush1.msra.mxu0 %v466
      %711 = vmatprep.subr.mxu0 0.0
      %712 = vmatpush1.msra.mxu0 %v465
      %713 = vmatprep.subr.mxu0 0.0
      %714 = vmatpush1.msra.mxu0 %v464
      %715 = vmatprep.subr.mxu0 0.0
      %716 = vmatpush1.msra.mxu0 %v463
      %717 = vmatprep.subr.mxu0 0.0
      %718 = vmatpush1.msra.mxu0 %v462
      %719 = vmatprep.subr.mxu0 0.0
      %720 = vmatpush1.msra.mxu0 %v461
      %721 = vmatprep.subr.mxu0 0.0
      %722 = vmatpush1.msra.mxu0 %v460
      %723 = vmatprep.subr.mxu0 0.0
      %724 = vmatpush1.msra.mxu0 %v459
      %725 = vmatprep.subr.mxu0 0.0
      %726 = vmatpush1.msra.mxu0 %v458
      %727 = vmatprep.subr.mxu0 0.0
      %728 = vmatpush1.msra.mxu0 %v457
      %729 = vmatprep.subr.mxu0 0.0
      %730 = vmatpush1.msra.mxu0 %v456
      %731 = vmatprep.subr.mxu0 0.0
      %732 = vmatpush1.msra.mxu0 %v455
      %733 = vmatprep.subr.mxu0 0.0
      %734 = vmatpush1.msra.mxu0 %v454
      %735 = vmatprep.subr.mxu0 0.0
      %736 = vmatpush1.msra.mxu0 %v453
      %737 = vmatprep.subr.mxu0 0.0
      %738 = vmatpush1.msra.mxu0 %v452
      %739 = vmatprep.subr.mxu0 0.0
      %740 = vmatpush1.msra.mxu0 %v451
      %741 = vmatprep.subr.mxu0 0.0
      %742 = vmatpush2.msra.mxu0 0.0
      %743 = vmatprep.subr.mxu0 0.0
      %744 = vmatpush2.msra.mxu0 0.0
      %745 = vmatprep.subr.mxu0 0.0
      %746 = vmatpush2.msra.mxu0 0.0
      %747 = vmatprep.subr.mxu0 0.0
      %748 = vmatpush2.msra.mxu0 0.0
      %749 = vmatprep.subr.mxu0 0.0
      %750 = vmatpush2.msra.mxu0 0.0
      %751 = vmatprep.subr.mxu0 0.0
      %752 = vmatpush2.msra.mxu0 0.0
      %753 = vmatprep.subr.mxu0 0.0
      %754 = vmatpush2.msra.mxu0 0.0
      %755 = vmatprep.subr.mxu0 0.0
      %756 = vmatpush2.msra.mxu0 0.0
      %757 = vmatprep.subr.mxu0 0.0
      %758 = vmatpush2.msra.mxu0 %v474
      %759 = vmatprep.subr.mxu0 0.0
      %760 = vmatpush2.msra.mxu0 %v473
      %761 = vmatprep.subr.mxu0 0.0
      %762 = vmatpush2.msra.mxu0 %v472
      %763 = vmatprep.subr.mxu0 0.0
      %764 = vmatpush2.msra.mxu0 %v471
      %765 = vmatprep.subr.mxu0 0.0
      %766 = vmatpush2.msra.mxu0 %v470
      %767 = vmatprep.subr.mxu0 0.0
      %768 = vmatpush2.msra.mxu0 %v469
      %769 = vmatprep.subr.mxu0 0.0
      %770 = vmatpush2.msra.mxu0 %v468
      %771 = vmatprep.subr.mxu0 0.0
      %772 = vmatpush2.msra.mxu0 %v467
      %773 = vmatprep.mubr.f32.mxu0 %v686
      %774 = vmatmul.mubr.f32.gmra.mxu0 %v403
      %v775 = vpop.f32.mrf.mxu0
      %v776 = vadd.f32 %v647, %v775
      %v777 = vpop.f32.mrf.mxu0
      %778 = vmatprep.mubr.f32.mxu0 %v689
      %779 = vmatmul.mubr.f32.gmra.mxu0 %v405
      %v780 = vpop.f32.mrf.mxu0
      %v781 = vadd.f32 %v652, %v780
      %v782 = vpop.f32.mrf.mxu0
      %783 = vmatprep.mubr.f32.mxu0 %v692
      %784 = vmatmul.mubr.f32.gmra.mxu0 %v407
      %v785 = vpop.f32.mrf.mxu0
      %v786 = vadd.f32 %v657, %v785
      %v787 = vpop.f32.mrf.mxu0
      %788 = vmatprep.mubr.f32.mxu0 %v695
      %789 = vmatmul.mubr.f32.gmra.mxu0 %v409
      %v790 = vpop.f32.mrf.mxu0
      %v791 = vadd.f32 %v662, %v790
      %v792 = vpop.f32.mrf.mxu0
      %793 = vmatprep.mubr.f32.mxu0 %v698
      %794 = vmatmul.mubr.f32.gmra.mxu0 %v411
      %v795 = vpop.f32.mrf.mxu0
      %v796 = vadd.f32 %v667, %v795
      %v797 = vpop.f32.mrf.mxu0
      %798 = vmatprep.mubr.f32.mxu0 %v701
      %799 = vmatmul.mubr.f32.gmra.mxu0 %v413
      %v800 = vpop.f32.mrf.mxu0
      %v801 = vadd.f32 %v672, %v800
      %v802 = vpop.f32.mrf.mxu0
      %803 = vmatprep.mubr.f32.mxu0 %v704
      %804 = vmatmul.mubr.f32.gmra.mxu0 %v415
      %v805 = vpop.f32.mrf.mxu0
      %v806 = vadd.f32 %v677, %v805
      %v807 = vpop.f32.mrf.mxu0
      %808 = vmatprep.mubr.f32.mxu0 %v707
      %809 = vmatmul.mubr.f32.gmra.mxu0 %v417
      %v810 = vpop.f32.mrf.mxu0
      %v811 = vadd.f32 %v682, %v810
      %v812 = vpop.f32.mrf.mxu0
      %813 = vdwg.mxu0
      %v814 = vld [vmem:[%s381 + $0x8] sm:$0xff]
      %v815 = vld [vmem:[%s381 + $0x10] sm:$0xff]
      %v816 = vld [vmem:[%s381 + $0x38] sm:$0xff]
      %v817 = vld [vmem:[%s381 + $0x40] sm:$0xff]
      %v818 = vld [vmem:[%s381 + $0x68] sm:$0xff]
      %v819 = vld [vmem:[%s381 + $0x70] sm:$0xff]
      %v820 = vld [vmem:[%s381 + $0x98] sm:$0xff]
      %v821 = vld [vmem:[%s381 + $0xa0] sm:$0xff]
      %v822 = vld [vmem:[%s381 + $0xc8] sm:$0xff]
      %v823 = vld [vmem:[%s381 + $0xd0] sm:$0xff]
      %v824 = vld [vmem:[%s381 + $0xf8] sm:$0xff]
      %v825 = vld [vmem:[%s381 + $0x100] sm:$0xff]
      %v826 = vld [vmem:[%s381 + $0x128] sm:$0xff]
      %v827 = vld [vmem:[%s381 + $0x130] sm:$0xff]
      %v828 = vld [vmem:[%s381 + $0x158] sm:$0xff]
      %v829 = vld [vmem:[%s381 + $0x160] sm:$0xff]
      %v830 = vmax.f32 %v814, 0.0
      %v831 = vmax.f32 %v815, 0.0
      %v832 = vmax.f32 %v816, 0.0
      %v833 = vmax.f32 %v817, 0.0
      %v834 = vmax.f32 %v818, 0.0
      %v835 = vmax.f32 %v819, 0.0
      %v836 = vmax.f32 %v820, 0.0
      %v837 = vmax.f32 %v821, 0.0
      %v838 = vmax.f32 %v822, 0.0
      %v839 = vmax.f32 %v823, 0.0
      %v840 = vmax.f32 %v824, 0.0
      %v841 = vmax.f32 %v825, 0.0
      %v842 = vmax.f32 %v826, 0.0
      %v843 = vmax.f32 %v827, 0.0
      %v844 = vmax.f32 %v828, 0.0
      %v845 = vmax.f32 %v829, 0.0
      %846 = vst [vmem:[#allocation2] sm:$0xff] 0.0
      %847 = vst.msk [vmem:[#allocation2 + $0x8] sm:$0xff] %vm547, 0.0
      %848 = vst [vmem:[#allocation2 + $0x20] sm:$0xff] 0.0
      %849 = vst.msk [vmem:[#allocation2 + $0x28] sm:$0xff] %vm547, 0.0
      %850 = vst [vmem:[#allocation2 + $0x40] sm:$0xff] 0.0
      %851 = vst.msk [vmem:[#allocation2 + $0x48] sm:$0xff] %vm547, 0.0
      %s852 = scalar_lea.vmem [#allocation2], 352
      %853 = vst [vmem:[%s852] sm:$0xff] 0.0
      %854 = vst.msk [vmem:[%s852 + $0x8] sm:$0xff] %vm547, 0.0
      %855 = vst [vmem:[%s852 + $0x20] sm:$0xff] 0.0
      %856 = vst.msk [vmem:[%s852 + $0x28] sm:$0xff] %vm547, 0.0
      %857 = vst [vmem:[%s852 + $0x40] sm:$0xff] 0.0
      %858 = vst.msk [vmem:[%s852 + $0x48] sm:$0xff] %vm547, 0.0
      %875 = vrot.lane.b32.xlu0 %v830, 64
      %v876 = vpop.permute.xlu0 %875
      %877 = vrot.lane.b32.xlu0 %v831, 64
      %v878 = vpop.permute.xlu0 %877
      %879 = vrot.lane.b32.xlu0 %v832, 64
      %v880 = vpop.permute.xlu0 %879
      %881 = vrot.lane.b32.xlu0 %v833, 64
      %v882 = vpop.permute.xlu0 %881
      %883 = vrot.lane.b32.xlu0 %v834, 64
      %v884 = vpop.permute.xlu0 %883
      %885 = vrot.lane.b32.xlu0 %v835, 64
      %v886 = vpop.permute.xlu0 %885
      %887 = vrot.lane.b32.xlu0 %v836, 64
      %v888 = vpop.permute.xlu0 %887
      %889 = vrot.lane.b32.xlu0 %v837, 64
      %v890 = vpop.permute.xlu0 %889
      %891 = vrot.lane.b32.xlu0 %v838, 64
      %v892 = vpop.permute.xlu0 %891
      %893 = vrot.lane.b32.xlu0 %v839, 64
      %v894 = vpop.permute.xlu0 %893
      %895 = vrot.lane.b32.xlu0 %v840, 64
      %v896 = vpop.permute.xlu0 %895
      %897 = vrot.lane.b32.xlu0 %v841, 64
      %v898 = vpop.permute.xlu0 %897
      %899 = vrot.lane.b32.xlu0 %v842, 64
      %v900 = vpop.permute.xlu0 %899
      %901 = vrot.lane.b32.xlu0 %v843, 64
      %v902 = vpop.permute.xlu0 %901
      %903 = vrot.lane.b32.xlu0 %v844, 64
      %v904 = vpop.permute.xlu0 %903
      %905 = vrot.lane.b32.xlu0 %v845, 64
      %v906 = vpop.permute.xlu0 %905
      %v907 = vsel %vm547, %v876, %v878
      %v908 = vsel %vm547, %v880, %v882
      %v909 = vsel %vm547, %v884, %v886
      %v910 = vsel %vm547, %v888, %v890
      %v911 = vsel %vm547, %v892, %v894
      %v912 = vsel %vm547, %v896, %v898
      %v913 = vsel %vm547, %v900, %v902
      %v914 = vsel %vm547, %v904, %v906
      %s931 = scalar_lea.vmem [#allocation2], 96
      %932 = vst [vmem:[%s931] sm:$0xff] %v907
      %933 = vst.msk [vmem:[%s931 + $0x8] sm:$0xff] %vm547, %v878
      %934 = vst [vmem:[%s931 + $0x20] sm:$0xff] %v908
      %935 = vst.msk [vmem:[%s931 + $0x28] sm:$0xff] %vm547, %v882
      %936 = vst [vmem:[%s931 + $0x40] sm:$0xff] %v909
      %937 = vst.msk [vmem:[%s931 + $0x48] sm:$0xff] %vm547, %v886
      %938 = vst [vmem:[%s931 + $0x60] sm:$0xff] %v910
      %939 = vst.msk [vmem:[%s931 + $0x68] sm:$0xff] %vm547, %v890
      %940 = vst [vmem:[%s931 + $0x80] sm:$0xff] %v911
      %941 = vst.msk [vmem:[%s931 + $0x88] sm:$0xff] %vm547, %v894
      %942 = vst [vmem:[%s931 + $0xa0] sm:$0xff] %v912
      %943 = vst.msk [vmem:[%s931 + $0xa8] sm:$0xff] %vm547, %v898
      %944 = vst [vmem:[%s931 + $0xc0] sm:$0xff] %v913
      %945 = vst.msk [vmem:[%s931 + $0xc8] sm:$0xff] %vm547, %v902
      %946 = vst [vmem:[%s931 + $0xe0] sm:$0xff] %v914
      %947 = vst.msk [vmem:[%s931 + $0xe8] sm:$0xff] %vm547, %v906
      %v948 = vld [vmem:[#allocation2] sm:$0xff]
      %v949 = vld [vmem:[#allocation2 + $0x8] sm:$0xff]
      %v950 = vld [vmem:[#allocation2 + $0x20] sm:$0xff]
      %v951 = vld [vmem:[#allocation2 + $0x28] sm:$0xff]
      %v952 = vld [vmem:[#allocation2 + $0x40] sm:$0xff]
      %v953 = vld [vmem:[#allocation2 + $0x48] sm:$0xff]
      %v954 = vld [vmem:[#allocation2 + $0x60] sm:$0xff]
      %v955 = vld [vmem:[#allocation2 + $0x68] sm:$0xff]
      %v956 = vld [vmem:[#allocation2 + $0x80] sm:$0xff]
      %v957 = vld [vmem:[#allocation2 + $0x88] sm:$0xff]
      %v958 = vld [vmem:[#allocation2 + $0xa0] sm:$0xff]
      %v959 = vld [vmem:[#allocation2 + $0xa8] sm:$0xff]
      %v960 = vld [vmem:[#allocation2 + $0xc0] sm:$0xff]
      %v961 = vld [vmem:[#allocation2 + $0xc8] sm:$0xff]
      %v962 = vld [vmem:[#allocation2 + $0xe0] sm:$0xff]
      %v963 = vld [vmem:[#allocation2 + $0xe8] sm:$0xff]
      %v964 = vld [vmem:[%s3] sm:$0xff]
      %v965 = vld [vmem:[%s3 + $0x8] sm:$0xff]
      %v966 = vld [vmem:[%s3 + $0x10] sm:$0xff]
      %v967 = vld [vmem:[%s3 + $0x18] sm:$0xff]
      %v968 = vld [vmem:[%s3 + $0x20] sm:$0xff]
      %v969 = vld [vmem:[%s3 + $0x28] sm:$0xff]
      %v970 = vld [vmem:[%s3 + $0x30] sm:$0xff]
      %v971 = vld [vmem:[%s3 + $0x38] sm:$0xff]
      %v972 = vld [vmem:[%s3 + $0x40] sm:$0xff]
      %v973 = vld [vmem:[%s3 + $0x48] sm:$0xff]
      %v974 = vld [vmem:[%s3 + $0x50] sm:$0xff]
      %v975 = vld [vmem:[%s3 + $0x58] sm:$0xff]
      %v976 = vld [vmem:[%s3 + $0x60] sm:$0xff]
      %v977 = vld [vmem:[%s3 + $0x68] sm:$0xff]
      %v978 = vld [vmem:[%s3 + $0x70] sm:$0xff]
      %v979 = vld [vmem:[%s3 + $0x78] sm:$0xff]
      %v980 = vld [vmem:[%s3 + $0x80] sm:$0xff]
      %v981 = vld [vmem:[%s3 + $0x88] sm:$0xff]
      %v982 = vld [vmem:[%s3 + $0x90] sm:$0xff]
      %v983 = vld [vmem:[%s3 + $0x98] sm:$0xff]
      %v984 = vld [vmem:[%s3 + $0xa0] sm:$0xff]
      %v985 = vld [vmem:[%s3 + $0xa8] sm:$0xff]
      %v986 = vld [vmem:[%s3 + $0xb0] sm:$0xff]
      %v987 = vld [vmem:[%s3 + $0xb8] sm:$0xff]
      %s988 = scalar_lea.vmem [#allocation2], 32
      %v989 = vld [vmem:[%s988] sm:$0xff]
      %v990 = vld [vmem:[%s988 + $0x8] sm:$0xff]
      %v991 = vld [vmem:[%s988 + $0x20] sm:$0xff]
      %v992 = vld [vmem:[%s988 + $0x28] sm:$0xff]
      %v993 = vld [vmem:[%s988 + $0x40] sm:$0xff]
      %v994 = vld [vmem:[%s988 + $0x48] sm:$0xff]
      %v995 = vld [vmem:[%s988 + $0x60] sm:$0xff]
      %v996 = vld [vmem:[%s988 + $0x68] sm:$0xff]
      %v997 = vld [vmem:[%s988 + $0x80] sm:$0xff]
      %v998 = vld [vmem:[%s988 + $0x88] sm:$0xff]
      %v999 = vld [vmem:[%s988 + $0xa0] sm:$0xff]
      %v1000 = vld [vmem:[%s988 + $0xa8] sm:$0xff]
      %v1001 = vld [vmem:[%s988 + $0xc0] sm:$0xff]
      %v1002 = vld [vmem:[%s988 + $0xc8] sm:$0xff]
      %v1003 = vld [vmem:[%s988 + $0xe0] sm:$0xff]
      %v1004 = vld [vmem:[%s988 + $0xe8] sm:$0xff]
      %s1005 = scalar_lea.vmem %s3, 192
      %v1006 = vld [vmem:[%s1005] sm:$0xff]
      %v1007 = vld [vmem:[%s1005 + $0x8] sm:$0xff]
      %v1008 = vld [vmem:[%s1005 + $0x10] sm:$0xff]
      %v1009 = vld [vmem:[%s1005 + $0x18] sm:$0xff]
      %v1010 = vld [vmem:[%s1005 + $0x20] sm:$0xff]
      %v1011 = vld [vmem:[%s1005 + $0x28] sm:$0xff]
      %v1012 = vld [vmem:[%s1005 + $0x30] sm:$0xff]
      %v1013 = vld [vmem:[%s1005 + $0x38] sm:$0xff]
      %v1014 = vld [vmem:[%s1005 + $0x40] sm:$0xff]
      %v1015 = vld [vmem:[%s1005 + $0x48] sm:$0xff]
      %v1016 = vld [vmem:[%s1005 + $0x50] sm:$0xff]
      %v1017 = vld [vmem:[%s1005 + $0x58] sm:$0xff]
      %v1018 = vld [vmem:[%s1005 + $0x60] sm:$0xff]
      %v1019 = vld [vmem:[%s1005 + $0x68] sm:$0xff]
      %v1020 = vld [vmem:[%s1005 + $0x70] sm:$0xff]
      %v1021 = vld [vmem:[%s1005 + $0x78] sm:$0xff]
      %v1022 = vld [vmem:[%s1005 + $0x80] sm:$0xff]
      %v1023 = vld [vmem:[%s1005 + $0x88] sm:$0xff]
      %v1024 = vld [vmem:[%s1005 + $0x90] sm:$0xff]
      %v1025 = vld [vmem:[%s1005 + $0x98] sm:$0xff]
      %v1026 = vld [vmem:[%s1005 + $0xa0] sm:$0xff]
      %v1027 = vld [vmem:[%s1005 + $0xa8] sm:$0xff]
      %v1028 = vld [vmem:[%s1005 + $0xb0] sm:$0xff]
      %v1029 = vld [vmem:[%s1005 + $0xb8] sm:$0xff]
      %v1031 = vsel %vm547, %v990, 0
      %v1034 = vsel %vm547, %v992, 0
      %v1037 = vsel %vm547, %v994, 0
      %v1040 = vsel %vm547, %v996, 0
      %v1043 = vsel %vm547, %v998, 0
      %v1046 = vsel %vm547, %v1000, 0
      %v1049 = vsel %vm547, %v1002, 0
      %v1052 = vsel %vm547, %v1004, 0
      %1054 = vmatprep.subr.mxu0 0.0
      %1055 = vmatpush1.msra.mxu0 %v1021
      %1056 = vmatprep.subr.mxu0 0.0
      %1057 = vmatpush1.msra.mxu0 %v1020
      %1058 = vmatprep.subr.mxu0 0.0
      %1059 = vmatpush1.msra.mxu0 %v1019
      %1060 = vmatprep.subr.mxu0 0.0
      %1061 = vmatpush1.msra.mxu0 %v1018
      %1062 = vmatprep.subr.mxu0 0.0
      %1063 = vmatpush1.msra.mxu0 %v1017
      %1064 = vmatprep.subr.mxu0 0.0
      %1065 = vmatpush1.msra.mxu0 %v1016
      %1066 = vmatprep.subr.mxu0 0.0
      %1067 = vmatpush1.msra.mxu0 %v1015
      %1068 = vmatprep.subr.mxu0 0.0
      %1069 = vmatpush1.msra.mxu0 %v1014
      %1070 = vmatprep.subr.mxu0 0.0
      %1071 = vmatpush1.msra.mxu0 %v1013
      %1072 = vmatprep.subr.mxu0 0.0
      %1073 = vmatpush1.msra.mxu0 %v1012
      %1074 = vmatprep.subr.mxu0 0.0
      %1075 = vmatpush1.msra.mxu0 %v1011
      %1076 = vmatprep.subr.mxu0 0.0
      %1077 = vmatpush1.msra.mxu0 %v1010
      %1078 = vmatprep.subr.mxu0 0.0
      %1079 = vmatpush1.msra.mxu0 %v1009
      %1080 = vmatprep.subr.mxu0 0.0
      %1081 = vmatpush1.msra.mxu0 %v1008
      %1082 = vmatprep.subr.mxu0 0.0
      %1083 = vmatpush1.msra.mxu0 %v1007
      %1084 = vmatprep.subr.mxu0 0.0
      %1085 = vmatpush1.msra.mxu0 %v1006
      %1086 = vmatprep.subr.mxu0 0.0
      %1087 = vmatpush2.msra.mxu0 0.0
      %1088 = vmatprep.subr.mxu0 0.0
      %1089 = vmatpush2.msra.mxu0 0.0
      %1090 = vmatprep.subr.mxu0 0.0
      %1091 = vmatpush2.msra.mxu0 0.0
      %1092 = vmatprep.subr.mxu0 0.0
      %1093 = vmatpush2.msra.mxu0 0.0
      %1094 = vmatprep.subr.mxu0 0.0
      %1095 = vmatpush2.msra.mxu0 0.0
      %1096 = vmatprep.subr.mxu0 0.0
      %1097 = vmatpush2.msra.mxu0 0.0
      %1098 = vmatprep.subr.mxu0 0.0
      %1099 = vmatpush2.msra.mxu0 0.0
      %1100 = vmatprep.subr.mxu0 0.0
      %1101 = vmatpush2.msra.mxu0 0.0
      %1102 = vmatprep.subr.mxu0 0.0
      %1103 = vmatpush2.msra.mxu0 %v1029
      %1104 = vmatprep.subr.mxu0 0.0
      %1105 = vmatpush2.msra.mxu0 %v1028
      %1106 = vmatprep.subr.mxu0 0.0
      %1107 = vmatpush2.msra.mxu0 %v1027
      %1108 = vmatprep.subr.mxu0 0.0
      %1109 = vmatpush2.msra.mxu0 %v1026
      %1110 = vmatprep.subr.mxu0 0.0
      %1111 = vmatpush2.msra.mxu0 %v1025
      %1112 = vmatprep.subr.mxu0 0.0
      %1113 = vmatpush2.msra.mxu0 %v1024
      %1114 = vmatprep.subr.mxu0 0.0
      %1115 = vmatpush2.msra.mxu0 %v1023
      %1116 = vmatprep.subr.mxu0 0.0
      %1117 = vmatpush2.msra.mxu0 %v1022
      %1118 = vmatprep.mubr.f32.mxu0 %v1031
      %1119 = vmatmul.mubr.f32.gmra.mxu0 %v989
      %v1120 = vpop.f32.mrf.mxu0
      %v1121 = vadd.f32 0.0, %v1120
      %v1122 = vpop.f32.mrf.mxu0
      %1123 = vmatprep.mubr.f32.mxu0 %v1034
      %1124 = vmatmul.mubr.f32.gmra.mxu0 %v991
      %v1125 = vpop.f32.mrf.mxu0
      %v1126 = vadd.f32 0.0, %v1125
      %v1127 = vpop.f32.mrf.mxu0
      %1128 = vmatprep.mubr.f32.mxu0 %v1037
      %1129 = vmatmul.mubr.f32.gmra.mxu0 %v993
      %v1130 = vpop.f32.mrf.mxu0
      %v1131 = vadd.f32 0.0, %v1130
      %v1132 = vpop.f32.mrf.mxu0
      %1133 = vmatprep.mubr.f32.mxu0 %v1040
      %1134 = vmatmul.mubr.f32.gmra.mxu0 %v995
      %v1135 = vpop.f32.mrf.mxu0
      %v1136 = vadd.f32 0.0, %v1135
      %v1137 = vpop.f32.mrf.mxu0
      %1138 = vmatprep.mubr.f32.mxu0 %v1043
      %1139 = vmatmul.mubr.f32.gmra.mxu0 %v997
      %v1140 = vpop.f32.mrf.mxu0
      %v1141 = vadd.f32 0.0, %v1140
      %v1142 = vpop.f32.mrf.mxu0
      %1143 = vmatprep.mubr.f32.mxu0 %v1046
      %1144 = vmatmul.mubr.f32.gmra.mxu0 %v999
      %v1145 = vpop.f32.mrf.mxu0
      %v1146 = vadd.f32 0.0, %v1145
      %v1147 = vpop.f32.mrf.mxu0
      %1148 = vmatprep.mubr.f32.mxu0 %v1049
      %1149 = vmatmul.mubr.f32.gmra.mxu0 %v1001
      %v1150 = vpop.f32.mrf.mxu0
      %v1151 = vadd.f32 0.0, %v1150
      %v1152 = vpop.f32.mrf.mxu0
      %1153 = vmatprep.mubr.f32.mxu0 %v1052
      %1154 = vmatmul.mubr.f32.gmra.mxu0 %v1003
      %v1155 = vpop.f32.mrf.mxu0
      %v1156 = vadd.f32 0.0, %v1155
      %v1157 = vpop.f32.mrf.mxu0
      %1158 = vdwg.mxu0
      %v1160 = vsel %vm547, %v949, 0
      %v1163 = vsel %vm547, %v951, 0
      %v1166 = vsel %vm547, %v953, 0
      %v1169 = vsel %vm547, %v955, 0
      %v1172 = vsel %vm547, %v957, 0
      %v1175 = vsel %vm547, %v959, 0
      %v1178 = vsel %vm547, %v961, 0
      %v1181 = vsel %vm547, %v963, 0
      %1183 = vmatprep.subr.mxu0 0.0
      %1184 = vmatpush1.msra.mxu0 %v979
      %1185 = vmatprep.subr.mxu0 0.0
      %1186 = vmatpush1.msra.mxu0 %v978
      %1187 = vmatprep.subr.mxu0 0.0
      %1188 = vmatpush1.msra.mxu0 %v977
      %1189 = vmatprep.subr.mxu0 0.0
      %1190 = vmatpush1.msra.mxu0 %v976
      %1191 = vmatprep.subr.mxu0 0.0
      %1192 = vmatpush1.msra.mxu0 %v975
      %1193 = vmatprep.subr.mxu0 0.0
      %1194 = vmatpush1.msra.mxu0 %v974
      %1195 = vmatprep.subr.mxu0 0.0
      %1196 = vmatpush1.msra.mxu0 %v973
      %1197 = vmatprep.subr.mxu0 0.0
      %1198 = vmatpush1.msra.mxu0 %v972
      %1199 = vmatprep.subr.mxu0 0.0
      %1200 = vmatpush1.msra.mxu0 %v971
      %1201 = vmatprep.subr.mxu0 0.0
      %1202 = vmatpush1.msra.mxu0 %v970
      %1203 = vmatprep.subr.mxu0 0.0
      %1204 = vmatpush1.msra.mxu0 %v969
      %1205 = vmatprep.subr.mxu0 0.0
      %1206 = vmatpush1.msra.mxu0 %v968
      %1207 = vmatprep.subr.mxu0 0.0
      %1208 = vmatpush1.msra.mxu0 %v967
      %1209 = vmatprep.subr.mxu0 0.0
      %1210 = vmatpush1.msra.mxu0 %v966
      %1211 = vmatprep.subr.mxu0 0.0
      %1212 = vmatpush1.msra.mxu0 %v965
      %1213 = vmatprep.subr.mxu0 0.0
      %1214 = vmatpush1.msra.mxu0 %v964
      %1215 = vmatprep.subr.mxu0 0.0
      %1216 = vmatpush2.msra.mxu0 0.0
      %1217 = vmatprep.subr.mxu0 0.0
      %1218 = vmatpush2.msra.mxu0 0.0
      %1219 = vmatprep.subr.mxu0 0.0
      %1220 = vmatpush2.msra.mxu0 0.0
      %1221 = vmatprep.subr.mxu0 0.0
      %1222 = vmatpush2.msra.mxu0 0.0
      %1223 = vmatprep.subr.mxu0 0.0
      %1224 = vmatpush2.msra.mxu0 0.0
      %1225 = vmatprep.subr.mxu0 0.0
      %1226 = vmatpush2.msra.mxu0 0.0
      %1227 = vmatprep.subr.mxu0 0.0
      %1228 = vmatpush2.msra.mxu0 0.0
      %1229 = vmatprep.subr.mxu0 0.0
      %1230 = vmatpush2.msra.mxu0 0.0
      %1231 = vmatprep.subr.mxu0 0.0
      %1232 = vmatpush2.msra.mxu0 %v987
      %1233 = vmatprep.subr.mxu0 0.0
      %1234 = vmatpush2.msra.mxu0 %v986
      %1235 = vmatprep.subr.mxu0 0.0
      %1236 = vmatpush2.msra.mxu0 %v985
      %1237 = vmatprep.subr.mxu0 0.0
      %1238 = vmatpush2.msra.mxu0 %v984
      %1239 = vmatprep.subr.mxu0 0.0
      %1240 = vmatpush2.msra.mxu0 %v983
      %1241 = vmatprep.subr.mxu0 0.0
      %1242 = vmatpush2.msra.mxu0 %v982
      %1243 = vmatprep.subr.mxu0 0.0
      %1244 = vmatpush2.msra.mxu0 %v981
      %1245 = vmatprep.subr.mxu0 0.0
      %1246 = vmatpush2.msra.mxu0 %v980
      %1247 = vmatprep.mubr.f32.mxu0 %v1160
      %1248 = vmatmul.mubr.f32.gmra.mxu0 %v948
      %v1249 = vpop.f32.mrf.mxu0
      %v1250 = vadd.f32 %v1121, %v1249
      %v1251 = vpop.f32.mrf.mxu0
      %1252 = vmatprep.mubr.f32.mxu0 %v1163
      %1253 = vmatmul.mubr.f32.gmra.mxu0 %v950
      %v1254 = vpop.f32.mrf.mxu0
      %v1255 = vadd.f32 %v1126, %v1254
      %v1256 = vpop.f32.mrf.mxu0
      %1257 = vmatprep.mubr.f32.mxu0 %v1166
      %1258 = vmatmul.mubr.f32.gmra.mxu0 %v952
      %v1259 = vpop.f32.mrf.mxu0
      %v1260 = vadd.f32 %v1131, %v1259
      %v1261 = vpop.f32.mrf.mxu0
      %1262 = vmatprep.mubr.f32.mxu0 %v1169
      %1263 = vmatmul.mubr.f32.gmra.mxu0 %v954
      %v1264 = vpop.f32.mrf.mxu0
      %v1265 = vadd.f32 %v1136, %v1264
      %v1266 = vpop.f32.mrf.mxu0
      %1267 = vmatprep.mubr.f32.mxu0 %v1172
      %1268 = vmatmul.mubr.f32.gmra.mxu0 %v956
      %v1269 = vpop.f32.mrf.mxu0
      %v1270 = vadd.f32 %v1141, %v1269
      %v1271 = vpop.f32.mrf.mxu0
      %1272 = vmatprep.mubr.f32.mxu0 %v1175
      %1273 = vmatmul.mubr.f32.gmra.mxu0 %v958
      %v1274 = vpop.f32.mrf.mxu0
      %v1275 = vadd.f32 %v1146, %v1274
      %v1276 = vpop.f32.mrf.mxu0
      %1277 = vmatprep.mubr.f32.mxu0 %v1178
      %1278 = vmatmul.mubr.f32.gmra.mxu0 %v960
      %v1279 = vpop.f32.mrf.mxu0
      %v1280 = vadd.f32 %v1151, %v1279
      %v1281 = vpop.f32.mrf.mxu0
      %1282 = vmatprep.mubr.f32.mxu0 %v1181
      %1283 = vmatmul.mubr.f32.gmra.mxu0 %v962
      %v1284 = vpop.f32.mrf.mxu0
      %v1285 = vadd.f32 %v1156, %v1284
      %v1286 = vpop.f32.mrf.mxu0
      %1287 = vdwg.mxu0
      %s1288 = scalar_lea.vmem [#allocation2], 64
      %v1289 = vld [vmem:[%s1288] sm:$0xff]
      %v1290 = vld [vmem:[%s1288 + $0x8] sm:$0xff]
      %v1291 = vld [vmem:[%s1288 + $0x20] sm:$0xff]
      %v1292 = vld [vmem:[%s1288 + $0x28] sm:$0xff]
      %v1293 = vld [vmem:[%s1288 + $0x40] sm:$0xff]
      %v1294 = vld [vmem:[%s1288 + $0x48] sm:$0xff]
      %v1295 = vld [vmem:[%s1288 + $0x60] sm:$0xff]
      %v1296 = vld [vmem:[%s1288 + $0x68] sm:$0xff]
      %v1297 = vld [vmem:[%s1288 + $0x80] sm:$0xff]
      %v1298 = vld [vmem:[%s1288 + $0x88] sm:$0xff]
      %v1299 = vld [vmem:[%s1288 + $0xa0] sm:$0xff]
      %v1300 = vld [vmem:[%s1288 + $0xa8] sm:$0xff]
      %v1301 = vld [vmem:[%s1288 + $0xc0] sm:$0xff]
      %v1302 = vld [vmem:[%s1288 + $0xc8] sm:$0xff]
      %v1303 = vld [vmem:[%s1288 + $0xe0] sm:$0xff]
      %v1304 = vld [vmem:[%s1288 + $0xe8] sm:$0xff]
      %s1305 = scalar_lea.vmem %s3, 384
      %v1306 = vld [vmem:[%s1305] sm:$0xff]
      %v1307 = vld [vmem:[%s1305 + $0x8] sm:$0xff]
      %v1308 = vld [vmem:[%s1305 + $0x10] sm:$0xff]
      %v1309 = vld [vmem:[%s1305 + $0x18] sm:$0xff]
      %v1310 = vld [vmem:[%s1305 + $0x20] sm:$0xff]
      %v1311 = vld [vmem:[%s1305 + $0x28] sm:$0xff]
      %v1312 = vld [vmem:[%s1305 + $0x30] sm:$0xff]
      %v1313 = vld [vmem:[%s1305 + $0x38] sm:$0xff]
      %v1314 = vld [vmem:[%s1305 + $0x40] sm:$0xff]
      %v1315 = vld [vmem:[%s1305 + $0x48] sm:$0xff]
      %v1316 = vld [vmem:[%s1305 + $0x50] sm:$0xff]
      %v1317 = vld [vmem:[%s1305 + $0x58] sm:$0xff]
      %v1318 = vld [vmem:[%s1305 + $0x60] sm:$0xff]
      %v1319 = vld [vmem:[%s1305 + $0x68] sm:$0xff]
      %v1320 = vld [vmem:[%s1305 + $0x70] sm:$0xff]
      %v1321 = vld [vmem:[%s1305 + $0x78] sm:$0xff]
      %v1322 = vld [vmem:[%s1305 + $0x80] sm:$0xff]
      %v1323 = vld [vmem:[%s1305 + $0x88] sm:$0xff]
      %v1324 = vld [vmem:[%s1305 + $0x90] sm:$0xff]
      %v1325 = vld [vmem:[%s1305 + $0x98] sm:$0xff]
      %v1326 = vld [vmem:[%s1305 + $0xa0] sm:$0xff]
      %v1327 = vld [vmem:[%s1305 + $0xa8] sm:$0xff]
      %v1328 = vld [vmem:[%s1305 + $0xb0] sm:$0xff]
      %v1329 = vld [vmem:[%s1305 + $0xb8] sm:$0xff]
      %v1331 = vsel %vm547, %v1290, 0
      %v1334 = vsel %vm547, %v1292, 0
      %v1337 = vsel %vm547, %v1294, 0
      %v1340 = vsel %vm547, %v1296, 0
      %v1343 = vsel %vm547, %v1298, 0
      %v1346 = vsel %vm547, %v1300, 0
      %v1349 = vsel %vm547, %v1302, 0
      %v1352 = vsel %vm547, %v1304, 0
      %1354 = vmatprep.subr.mxu0 0.0
      %1355 = vmatpush1.msra.mxu0 %v1321
      %1356 = vmatprep.subr.mxu0 0.0
      %1357 = vmatpush1.msra.mxu0 %v1320
      %1358 = vmatprep.subr.mxu0 0.0
      %1359 = vmatpush1.msra.mxu0 %v1319
      %1360 = vmatprep.subr.mxu0 0.0
      %1361 = vmatpush1.msra.mxu0 %v1318
      %1362 = vmatprep.subr.mxu0 0.0
      %1363 = vmatpush1.msra.mxu0 %v1317
      %1364 = vmatprep.subr.mxu0 0.0
      %1365 = vmatpush1.msra.mxu0 %v1316
      %1366 = vmatprep.subr.mxu0 0.0
      %1367 = vmatpush1.msra.mxu0 %v1315
      %1368 = vmatprep.subr.mxu0 0.0
      %1369 = vmatpush1.msra.mxu0 %v1314
      %1370 = vmatprep.subr.mxu0 0.0
      %1371 = vmatpush1.msra.mxu0 %v1313
      %1372 = vmatprep.subr.mxu0 0.0
      %1373 = vmatpush1.msra.mxu0 %v1312
      %1374 = vmatprep.subr.mxu0 0.0
      %1375 = vmatpush1.msra.mxu0 %v1311
      %1376 = vmatprep.subr.mxu0 0.0
      %1377 = vmatpush1.msra.mxu0 %v1310
      %1378 = vmatprep.subr.mxu0 0.0
      %1379 = vmatpush1.msra.mxu0 %v1309
      %1380 = vmatprep.subr.mxu0 0.0
      %1381 = vmatpush1.msra.mxu0 %v1308
      %1382 = vmatprep.subr.mxu0 0.0
      %1383 = vmatpush1.msra.mxu0 %v1307
      %1384 = vmatprep.subr.mxu0 0.0
      %1385 = vmatpush1.msra.mxu0 %v1306
      %1386 = vmatprep.subr.mxu0 0.0
      %1387 = vmatpush2.msra.mxu0 0.0
      %1388 = vmatprep.subr.mxu0 0.0
      %1389 = vmatpush2.msra.mxu0 0.0
      %1390 = vmatprep.subr.mxu0 0.0
      %1391 = vmatpush2.msra.mxu0 0.0
      %1392 = vmatprep.subr.mxu0 0.0
      %1393 = vmatpush2.msra.mxu0 0.0
      %1394 = vmatprep.subr.mxu0 0.0
      %1395 = vmatpush2.msra.mxu0 0.0
      %1396 = vmatprep.subr.mxu0 0.0
      %1397 = vmatpush2.msra.mxu0 0.0
      %1398 = vmatprep.subr.mxu0 0.0
      %1399 = vmatpush2.msra.mxu0 0.0
      %1400 = vmatprep.subr.mxu0 0.0
      %1401 = vmatpush2.msra.mxu0 0.0
      %1402 = vmatprep.subr.mxu0 0.0
      %1403 = vmatpush2.msra.mxu0 %v1329
      %1404 = vmatprep.subr.mxu0 0.0
      %1405 = vmatpush2.msra.mxu0 %v1328
      %1406 = vmatprep.subr.mxu0 0.0
      %1407 = vmatpush2.msra.mxu0 %v1327
      %1408 = vmatprep.subr.mxu0 0.0
      %1409 = vmatpush2.msra.mxu0 %v1326
      %1410 = vmatprep.subr.mxu0 0.0
      %1411 = vmatpush2.msra.mxu0 %v1325
      %1412 = vmatprep.subr.mxu0 0.0
      %1413 = vmatpush2.msra.mxu0 %v1324
      %1414 = vmatprep.subr.mxu0 0.0
      %1415 = vmatpush2.msra.mxu0 %v1323
      %1416 = vmatprep.subr.mxu0 0.0
      %1417 = vmatpush2.msra.mxu0 %v1322
      %1418 = vmatprep.mubr.f32.mxu0 %v1331
      %1419 = vmatmul.mubr.f32.gmra.mxu0 %v1289
      %v1420 = vpop.f32.mrf.mxu0
      %v1421 = vadd.f32 0.0, %v1420
      %v1422 = vpop.f32.mrf.mxu0
      %1423 = vmatprep.mubr.f32.mxu0 %v1334
      %1424 = vmatmul.mubr.f32.gmra.mxu0 %v1291
      %v1425 = vpop.f32.mrf.mxu0
      %v1426 = vadd.f32 0.0, %v1425
      %v1427 = vpop.f32.mrf.mxu0
      %1428 = vmatprep.mubr.f32.mxu0 %v1337
      %1429 = vmatmul.mubr.f32.gmra.mxu0 %v1293
      %v1430 = vpop.f32.mrf.mxu0
      %v1431 = vadd.f32 0.0, %v1430
      %v1432 = vpop.f32.mrf.mxu0
      %1433 = vmatprep.mubr.f32.mxu0 %v1340
      %1434 = vmatmul.mubr.f32.gmra.mxu0 %v1295
      %v1435 = vpop.f32.mrf.mxu0
      %v1436 = vadd.f32 0.0, %v1435
      %v1437 = vpop.f32.mrf.mxu0
      %1438 = vmatprep.mubr.f32.mxu0 %v1343
      %1439 = vmatmul.mubr.f32.gmra.mxu0 %v1297
      %v1440 = vpop.f32.mrf.mxu0
      %v1441 = vadd.f32 0.0, %v1440
      %v1442 = vpop.f32.mrf.mxu0
      %1443 = vmatprep.mubr.f32.mxu0 %v1346
      %1444 = vmatmul.mubr.f32.gmra.mxu0 %v1299
      %v1445 = vpop.f32.mrf.mxu0
      %v1446 = vadd.f32 0.0, %v1445
      %v1447 = vpop.f32.mrf.mxu0
      %1448 = vmatprep.mubr.f32.mxu0 %v1349
      %1449 = vmatmul.mubr.f32.gmra.mxu0 %v1301
      %v1450 = vpop.f32.mrf.mxu0
      %v1451 = vadd.f32 0.0, %v1450
      %v1452 = vpop.f32.mrf.mxu0
      %1453 = vmatprep.mubr.f32.mxu0 %v1352
      %1454 = vmatmul.mubr.f32.gmra.mxu0 %v1303
      %v1455 = vpop.f32.mrf.mxu0
      %v1456 = vadd.f32 0.0, %v1455
      %v1457 = vpop.f32.mrf.mxu0
      %1458 = vdwg.mxu0
      %v1459 = vadd.f32 %v1250, %v1421
      %v1460 = vadd.f32 %v1255, %v1426
      %v1461 = vadd.f32 %v1260, %v1431
      %v1462 = vadd.f32 %v1265, %v1436
      %v1463 = vadd.f32 %v1270, %v1441
      %v1464 = vadd.f32 %v1275, %v1446
      %v1465 = vadd.f32 %v1280, %v1451
      %v1466 = vadd.f32 %v1285, %v1456
      %v1467 = vld [vmem:[%s931] sm:$0xff]
      %v1468 = vld [vmem:[%s931 + $0x8] sm:$0xff]
      %v1469 = vld [vmem:[%s931 + $0x20] sm:$0xff]
      %v1470 = vld [vmem:[%s931 + $0x28] sm:$0xff]
      %v1471 = vld [vmem:[%s931 + $0x40] sm:$0xff]
      %v1472 = vld [vmem:[%s931 + $0x48] sm:$0xff]
      %v1473 = vld [vmem:[%s931 + $0x60] sm:$0xff]
      %v1474 = vld [vmem:[%s931 + $0x68] sm:$0xff]
      %v1475 = vld [vmem:[%s931 + $0x80] sm:$0xff]
      %v1476 = vld [vmem:[%s931 + $0x88] sm:$0xff]
      %v1477 = vld [vmem:[%s931 + $0xa0] sm:$0xff]
      %v1478 = vld [vmem:[%s931 + $0xa8] sm:$0xff]
      %v1479 = vld [vmem:[%s931 + $0xc0] sm:$0xff]
      %v1480 = vld [vmem:[%s931 + $0xc8] sm:$0xff]
      %v1481 = vld [vmem:[%s931 + $0xe0] sm:$0xff]
      %v1482 = vld [vmem:[%s931 + $0xe8] sm:$0xff]
      %s1483 = scalar_lea.vmem %s3, 576
      %v1484 = vld [vmem:[%s1483] sm:$0xff]
      %v1485 = vld [vmem:[%s1483 + $0x8] sm:$0xff]
      %v1486 = vld [vmem:[%s1483 + $0x10] sm:$0xff]
      %v1487 = vld [vmem:[%s1483 + $0x18] sm:$0xff]
      %v1488 = vld [vmem:[%s1483 + $0x20] sm:$0xff]
      %v1489 = vld [vmem:[%s1483 + $0x28] sm:$0xff]
      %v1490 = vld [vmem:[%s1483 + $0x30] sm:$0xff]
      %v1491 = vld [vmem:[%s1483 + $0x38] sm:$0xff]
      %v1492 = vld [vmem:[%s1483 + $0x40] sm:$0xff]
      %v1493 = vld [vmem:[%s1483 + $0x48] sm:$0xff]
      %v1494 = vld [vmem:[%s1483 + $0x50] sm:$0xff]
      %v1495 = vld [vmem:[%s1483 + $0x58] sm:$0xff]
      %v1496 = vld [vmem:[%s1483 + $0x60] sm:$0xff]
      %v1497 = vld [vmem:[%s1483 + $0x68] sm:$0xff]
      %v1498 = vld [vmem:[%s1483 + $0x70] sm:$0xff]
      %v1499 = vld [vmem:[%s1483 + $0x78] sm:$0xff]
      %v1500 = vld [vmem:[%s1483 + $0x80] sm:$0xff]
      %v1501 = vld [vmem:[%s1483 + $0x88] sm:$0xff]
      %v1502 = vld [vmem:[%s1483 + $0x90] sm:$0xff]
      %v1503 = vld [vmem:[%s1483 + $0x98] sm:$0xff]
      %v1504 = vld [vmem:[%s1483 + $0xa0] sm:$0xff]
      %v1505 = vld [vmem:[%s1483 + $0xa8] sm:$0xff]
      %v1506 = vld [vmem:[%s1483 + $0xb0] sm:$0xff]
      %v1507 = vld [vmem:[%s1483 + $0xb8] sm:$0xff]
      %v1509 = vsel %vm547, %v1468, 0
      %v1512 = vsel %vm547, %v1470, 0
      %v1515 = vsel %vm547, %v1472, 0
      %v1518 = vsel %vm547, %v1474, 0
      %v1521 = vsel %vm547, %v1476, 0
      %v1524 = vsel %vm547, %v1478, 0
      %v1527 = vsel %vm547, %v1480, 0
      %v1530 = vsel %vm547, %v1482, 0
      %1532 = vmatprep.subr.mxu0 0.0
      %1533 = vmatpush1.msra.mxu0 %v1499
      %1534 = vmatprep.subr.mxu0 0.0
      %1535 = vmatpush1.msra.mxu0 %v1498
      %1536 = vmatprep.subr.mxu0 0.0
      %1537 = vmatpush1.msra.mxu0 %v1497
      %1538 = vmatprep.subr.mxu0 0.0
      %1539 = vmatpush1.msra.mxu0 %v1496
      %1540 = vmatprep.subr.mxu0 0.0
      %1541 = vmatpush1.msra.mxu0 %v1495
      %1542 = vmatprep.subr.mxu0 0.0
      %1543 = vmatpush1.msra.mxu0 %v1494
      %1544 = vmatprep.subr.mxu0 0.0
      %1545 = vmatpush1.msra.mxu0 %v1493
      %1546 = vmatprep.subr.mxu0 0.0
      %1547 = vmatpush1.msra.mxu0 %v1492
      %1548 = vmatprep.subr.mxu0 0.0
      %1549 = vmatpush1.msra.mxu0 %v1491
      %1550 = vmatprep.subr.mxu0 0.0
      %1551 = vmatpush1.msra.mxu0 %v1490
      %1552 = vmatprep.subr.mxu0 0.0
      %1553 = vmatpush1.msra.mxu0 %v1489
      %1554 = vmatprep.subr.mxu0 0.0
      %1555 = vmatpush1.msra.mxu0 %v1488
      %1556 = vmatprep.subr.mxu0 0.0
      %1557 = vmatpush1.msra.mxu0 %v1487
      %1558 = vmatprep.subr.mxu0 0.0
      %1559 = vmatpush1.msra.mxu0 %v1486
      %1560 = vmatprep.subr.mxu0 0.0
      %1561 = vmatpush1.msra.mxu0 %v1485
      %1562 = vmatprep.subr.mxu0 0.0
      %1563 = vmatpush1.msra.mxu0 %v1484
      %1564 = vmatprep.subr.mxu0 0.0
      %1565 = vmatpush2.msra.mxu0 0.0
      %1566 = vmatprep.subr.mxu0 0.0
      %1567 = vmatpush2.msra.mxu0 0.0
      %1568 = vmatprep.subr.mxu0 0.0
      %1569 = vmatpush2.msra.mxu0 0.0
      %1570 = vmatprep.subr.mxu0 0.0
      %1571 = vmatpush2.msra.mxu0 0.0
      %1572 = vmatprep.subr.mxu0 0.0
      %1573 = vmatpush2.msra.mxu0 0.0
      %1574 = vmatprep.subr.mxu0 0.0
      %1575 = vmatpush2.msra.mxu0 0.0
      %1576 = vmatprep.subr.mxu0 0.0
      %1577 = vmatpush2.msra.mxu0 0.0
      %1578 = vmatprep.subr.mxu0 0.0
      %1579 = vmatpush2.msra.mxu0 0.0
      %1580 = vmatprep.subr.mxu0 0.0
      %1581 = vmatpush2.msra.mxu0 %v1507
      %1582 = vmatprep.subr.mxu0 0.0
      %1583 = vmatpush2.msra.mxu0 %v1506
      %1584 = vmatprep.subr.mxu0 0.0
      %1585 = vmatpush2.msra.mxu0 %v1505
      %1586 = vmatprep.subr.mxu0 0.0
      %1587 = vmatpush2.msra.mxu0 %v1504
      %1588 = vmatprep.subr.mxu0 0.0
      %1589 = vmatpush2.msra.mxu0 %v1503
      %1590 = vmatprep.subr.mxu0 0.0
      %1591 = vmatpush2.msra.mxu0 %v1502
      %1592 = vmatprep.subr.mxu0 0.0
      %1593 = vmatpush2.msra.mxu0 %v1501
      %1594 = vmatprep.subr.mxu0 0.0
      %1595 = vmatpush2.msra.mxu0 %v1500
      %1596 = vmatprep.mubr.f32.mxu0 %v1509
      %1597 = vmatmul.mubr.f32.gmra.mxu0 %v1467
      %v1598 = vpop.f32.mrf.mxu0
      %v1599 = vadd.f32 0.0, %v1598
      %v1600 = vpop.f32.mrf.mxu0
      %1601 = vmatprep.mubr.f32.mxu0 %v1512
      %1602 = vmatmul.mubr.f32.gmra.mxu0 %v1469
      %v1603 = vpop.f32.mrf.mxu0
      %v1604 = vadd.f32 0.0, %v1603
      %v1605 = vpop.f32.mrf.mxu0
      %1606 = vmatprep.mubr.f32.mxu0 %v1515
      %1607 = vmatmul.mubr.f32.gmra.mxu0 %v1471
      %v1608 = vpop.f32.mrf.mxu0
      %v1609 = vadd.f32 0.0, %v1608
      %v1610 = vpop.f32.mrf.mxu0
      %1611 = vmatprep.mubr.f32.mxu0 %v1518
      %1612 = vmatmul.mubr.f32.gmra.mxu0 %v1473
      %v1613 = vpop.f32.mrf.mxu0
      %v1614 = vadd.f32 0.0, %v1613
      %v1615 = vpop.f32.mrf.mxu0
      %1616 = vmatprep.mubr.f32.mxu0 %v1521
      %1617 = vmatmul.mubr.f32.gmra.mxu0 %v1475
      %v1618 = vpop.f32.mrf.mxu0
      %v1619 = vadd.f32 0.0, %v1618
      %v1620 = vpop.f32.mrf.mxu0
      %1621 = vmatprep.mubr.f32.mxu0 %v1524
      %1622 = vmatmul.mubr.f32.gmra.mxu0 %v1477
      %v1623 = vpop.f32.mrf.mxu0
      %v1624 = vadd.f32 0.0, %v1623
      %v1625 = vpop.f32.mrf.mxu0
      %1626 = vmatprep.mubr.f32.mxu0 %v1527
      %1627 = vmatmul.mubr.f32.gmra.mxu0 %v1479
      %v1628 = vpop.f32.mrf.mxu0
      %v1629 = vadd.f32 0.0, %v1628
      %v1630 = vpop.f32.mrf.mxu0
      %1631 = vmatprep.mubr.f32.mxu0 %v1530
      %1632 = vmatmul.mubr.f32.gmra.mxu0 %v1481
      %v1633 = vpop.f32.mrf.mxu0
      %v1634 = vadd.f32 0.0, %v1633
      %v1635 = vpop.f32.mrf.mxu0
      %1636 = vdwg.mxu0
      %v1637 = vadd.f32 %v1459, %v1599
      %v1638 = vadd.f32 %v1460, %v1604
      %v1639 = vadd.f32 %v1461, %v1609
      %v1640 = vadd.f32 %v1462, %v1614
      %v1641 = vadd.f32 %v1463, %v1619
      %v1642 = vadd.f32 %v1464, %v1624
      %v1643 = vadd.f32 %v1465, %v1629
      %v1644 = vadd.f32 %v1466, %v1634
      %s1645 = scalar_lea.vmem [#allocation2], 128
      %v1646 = vld [vmem:[%s1645] sm:$0xff]
      %v1647 = vld [vmem:[%s1645 + $0x8] sm:$0xff]
      %v1648 = vld [vmem:[%s1645 + $0x20] sm:$0xff]
      %v1649 = vld [vmem:[%s1645 + $0x28] sm:$0xff]
      %v1650 = vld [vmem:[%s1645 + $0x40] sm:$0xff]
      %v1651 = vld [vmem:[%s1645 + $0x48] sm:$0xff]
      %v1652 = vld [vmem:[%s1645 + $0x60] sm:$0xff]
      %v1653 = vld [vmem:[%s1645 + $0x68] sm:$0xff]
      %v1654 = vld [vmem:[%s1645 + $0x80] sm:$0xff]
      %v1655 = vld [vmem:[%s1645 + $0x88] sm:$0xff]
      %v1656 = vld [vmem:[%s1645 + $0xa0] sm:$0xff]
      %v1657 = vld [vmem:[%s1645 + $0xa8] sm:$0xff]
      %v1658 = vld [vmem:[%s1645 + $0xc0] sm:$0xff]
      %v1659 = vld [vmem:[%s1645 + $0xc8] sm:$0xff]
      %v1660 = vld [vmem:[%s1645 + $0xe0] sm:$0xff]
      %v1661 = vld [vmem:[%s1645 + $0xe8] sm:$0xff]
      %s1662 = scalar_lea.vmem %s3, 768
      %v1663 = vld [vmem:[%s1662] sm:$0xff]
      %v1664 = vld [vmem:[%s1662 + $0x8] sm:$0xff]
      %v1665 = vld [vmem:[%s1662 + $0x10] sm:$0xff]
      %v1666 = vld [vmem:[%s1662 + $0x18] sm:$0xff]
      %v1667 = vld [vmem:[%s1662 + $0x20] sm:$0xff]
      %v1668 = vld [vmem:[%s1662 + $0x28] sm:$0xff]
      %v1669 = vld [vmem:[%s1662 + $0x30] sm:$0xff]
      %v1670 = vld [vmem:[%s1662 + $0x38] sm:$0xff]
      %v1671 = vld [vmem:[%s1662 + $0x40] sm:$0xff]
      %v1672 = vld [vmem:[%s1662 + $0x48] sm:$0xff]
      %v1673 = vld [vmem:[%s1662 + $0x50] sm:$0xff]
      %v1674 = vld [vmem:[%s1662 + $0x58] sm:$0xff]
      %v1675 = vld [vmem:[%s1662 + $0x60] sm:$0xff]
      %v1676 = vld [vmem:[%s1662 + $0x68] sm:$0xff]
      %v1677 = vld [vmem:[%s1662 + $0x70] sm:$0xff]
      %v1678 = vld [vmem:[%s1662 + $0x78] sm:$0xff]
      %v1679 = vld [vmem:[%s1662 + $0x80] sm:$0xff]
      %v1680 = vld [vmem:[%s1662 + $0x88] sm:$0xff]
      %v1681 = vld [vmem:[%s1662 + $0x90] sm:$0xff]
      %v1682 = vld [vmem:[%s1662 + $0x98] sm:$0xff]
      %v1683 = vld [vmem:[%s1662 + $0xa0] sm:$0xff]
      %v1684 = vld [vmem:[%s1662 + $0xa8] sm:$0xff]
      %v1685 = vld [vmem:[%s1662 + $0xb0] sm:$0xff]
      %v1686 = vld [vmem:[%s1662 + $0xb8] sm:$0xff]
      %v1688 = vsel %vm547, %v1647, 0
      %v1691 = vsel %vm547, %v1649, 0
      %v1694 = vsel %vm547, %v1651, 0
      %v1697 = vsel %vm547, %v1653, 0
      %v1700 = vsel %vm547, %v1655, 0
      %v1703 = vsel %vm547, %v1657, 0
      %v1706 = vsel %vm547, %v1659, 0
      %v1709 = vsel %vm547, %v1661, 0
      %1711 = vmatprep.subr.mxu0 0.0
      %1712 = vmatpush1.msra.mxu0 %v1678
      %1713 = vmatprep.subr.mxu0 0.0
      %1714 = vmatpush1.msra.mxu0 %v1677
      %1715 = vmatprep.subr.mxu0 0.0
      %1716 = vmatpush1.msra.mxu0 %v1676
      %1717 = vmatprep.subr.mxu0 0.0
      %1718 = vmatpush1.msra.mxu0 %v1675
      %1719 = vmatprep.subr.mxu0 0.0
      %1720 = vmatpush1.msra.mxu0 %v1674
      %1721 = vmatprep.subr.mxu0 0.0
      %1722 = vmatpush1.msra.mxu0 %v1673
      %1723 = vmatprep.subr.mxu0 0.0
      %1724 = vmatpush1.msra.mxu0 %v1672
      %1725 = vmatprep.subr.mxu0 0.0
      %1726 = vmatpush1.msra.mxu0 %v1671
      %1727 = vmatprep.subr.mxu0 0.0
      %1728 = vmatpush1.msra.mxu0 %v1670
      %1729 = vmatprep.subr.mxu0 0.0
      %1730 = vmatpush1.msra.mxu0 %v1669
      %1731 = vmatprep.subr.mxu0 0.0
      %1732 = vmatpush1.msra.mxu0 %v1668
      %1733 = vmatprep.subr.mxu0 0.0
      %1734 = vmatpush1.msra.mxu0 %v1667
      %1735 = vmatprep.subr.mxu0 0.0
      %1736 = vmatpush1.msra.mxu0 %v1666
      %1737 = vmatprep.subr.mxu0 0.0
      %1738 = vmatpush1.msra.mxu0 %v1665
      %1739 = vmatprep.subr.mxu0 0.0
      %1740 = vmatpush1.msra.mxu0 %v1664
      %1741 = vmatprep.subr.mxu0 0.0
      %1742 = vmatpush1.msra.mxu0 %v1663
      %1743 = vmatprep.subr.mxu0 0.0
      %1744 = vmatpush2.msra.mxu0 0.0
      %1745 = vmatprep.subr.mxu0 0.0
      %1746 = vmatpush2.msra.mxu0 0.0
      %1747 = vmatprep.subr.mxu0 0.0
      %1748 = vmatpush2.msra.mxu0 0.0
      %1749 = vmatprep.subr.mxu0 0.0
      %1750 = vmatpush2.msra.mxu0 0.0
      %1751 = vmatprep.subr.mxu0 0.0
      %1752 = vmatpush2.msra.mxu0 0.0
      %1753 = vmatprep.subr.mxu0 0.0
      %1754 = vmatpush2.msra.mxu0 0.0
      %1755 = vmatprep.subr.mxu0 0.0
      %1756 = vmatpush2.msra.mxu0 0.0
      %1757 = vmatprep.subr.mxu0 0.0
      %1758 = vmatpush2.msra.mxu0 0.0
      %1759 = vmatprep.subr.mxu0 0.0
      %1760 = vmatpush2.msra.mxu0 %v1686
      %1761 = vmatprep.subr.mxu0 0.0
      %1762 = vmatpush2.msra.mxu0 %v1685
      %1763 = vmatprep.subr.mxu0 0.0
      %1764 = vmatpush2.msra.mxu0 %v1684
      %1765 = vmatprep.subr.mxu0 0.0
      %1766 = vmatpush2.msra.mxu0 %v1683
      %1767 = vmatprep.subr.mxu0 0.0
      %1768 = vmatpush2.msra.mxu0 %v1682
      %1769 = vmatprep.subr.mxu0 0.0
      %1770 = vmatpush2.msra.mxu0 %v1681
      %1771 = vmatprep.subr.mxu0 0.0
      %1772 = vmatpush2.msra.mxu0 %v1680
      %1773 = vmatprep.subr.mxu0 0.0
      %1774 = vmatpush2.msra.mxu0 %v1679
      %1775 = vmatprep.mubr.f32.mxu0 %v1688
      %1776 = vmatmul.mubr.f32.gmra.mxu0 %v1646
      %v1777 = vpop.f32.mrf.mxu0
      %v1778 = vadd.f32 0.0, %v1777
      %v1779 = vpop.f32.mrf.mxu0
      %1780 = vmatprep.mubr.f32.mxu0 %v1691
      %1781 = vmatmul.mubr.f32.gmra.mxu0 %v1648
      %v1782 = vpop.f32.mrf.mxu0
      %v1783 = vadd.f32 0.0, %v1782
      %v1784 = vpop.f32.mrf.mxu0
      %1785 = vmatprep.mubr.f32.mxu0 %v1694
      %1786 = vmatmul.mubr.f32.gmra.mxu0 %v1650
      %v1787 = vpop.f32.mrf.mxu0
      %v1788 = vadd.f32 0.0, %v1787
      %v1789 = vpop.f32.mrf.mxu0
      %1790 = vmatprep.mubr.f32.mxu0 %v1697
      %1791 = vmatmul.mubr.f32.gmra.mxu0 %v1652
      %v1792 = vpop.f32.mrf.mxu0
      %v1793 = vadd.f32 0.0, %v1792
      %v1794 = vpop.f32.mrf.mxu0
      %1795 = vmatprep.mubr.f32.mxu0 %v1700
      %1796 = vmatmul.mubr.f32.gmra.mxu0 %v1654
      %v1797 = vpop.f32.mrf.mxu0
      %v1798 = vadd.f32 0.0, %v1797
      %v1799 = vpop.f32.mrf.mxu0
      %1800 = vmatprep.mubr.f32.mxu0 %v1703
      %1801 = vmatmul.mubr.f32.gmra.mxu0 %v1656
      %v1802 = vpop.f32.mrf.mxu0
      %v1803 = vadd.f32 0.0, %v1802
      %v1804 = vpop.f32.mrf.mxu0
      %1805 = vmatprep.mubr.f32.mxu0 %v1706
      %1806 = vmatmul.mubr.f32.gmra.mxu0 %v1658
      %v1807 = vpop.f32.mrf.mxu0
      %v1808 = vadd.f32 0.0, %v1807
      %v1809 = vpop.f32.mrf.mxu0
      %1810 = vmatprep.mubr.f32.mxu0 %v1709
      %1811 = vmatmul.mubr.f32.gmra.mxu0 %v1660
      %v1812 = vpop.f32.mrf.mxu0
      %v1813 = vadd.f32 0.0, %v1812
      %v1814 = vpop.f32.mrf.mxu0
      %1815 = vdwg.mxu0
      %v1816 = vadd.f32 %v1637, %v1778
      %v1817 = vadd.f32 %v1638, %v1783
      %v1818 = vadd.f32 %v1639, %v1788
      %v1819 = vadd.f32 %v1640, %v1793
      %v1820 = vadd.f32 %v1641, %v1798
      %v1821 = vadd.f32 %v1642, %v1803
      %v1822 = vadd.f32 %v1643, %v1808
      %v1823 = vadd.f32 %v1644, %v1813
      %s1824 = scalar_lea.vmem [#allocation2], 160
      %v1825 = vld [vmem:[%s1824] sm:$0xff]
      %v1826 = vld [vmem:[%s1824 + $0x8] sm:$0xff]
      %v1827 = vld [vmem:[%s1824 + $0x20] sm:$0xff]
      %v1828 = vld [vmem:[%s1824 + $0x28] sm:$0xff]
      %v1829 = vld [vmem:[%s1824 + $0x40] sm:$0xff]
      %v1830 = vld [vmem:[%s1824 + $0x48] sm:$0xff]
      %v1831 = vld [vmem:[%s1824 + $0x60] sm:$0xff]
      %v1832 = vld [vmem:[%s1824 + $0x68] sm:$0xff]
      %v1833 = vld [vmem:[%s1824 + $0x80] sm:$0xff]
      %v1834 = vld [vmem:[%s1824 + $0x88] sm:$0xff]
      %v1835 = vld [vmem:[%s1824 + $0xa0] sm:$0xff]
      %v1836 = vld [vmem:[%s1824 + $0xa8] sm:$0xff]
      %v1837 = vld [vmem:[%s1824 + $0xc0] sm:$0xff]
      %v1838 = vld [vmem:[%s1824 + $0xc8] sm:$0xff]
      %v1839 = vld [vmem:[%s1824 + $0xe0] sm:$0xff]
      %v1840 = vld [vmem:[%s1824 + $0xe8] sm:$0xff]
      %s1841 = scalar_lea.vmem %s3, 960
      %v1842 = vld [vmem:[%s1841] sm:$0xff]
      %v1843 = vld [vmem:[%s1841 + $0x8] sm:$0xff]
      %v1844 = vld [vmem:[%s1841 + $0x10] sm:$0xff]
      %v1845 = vld [vmem:[%s1841 + $0x18] sm:$0xff]
      %v1846 = vld [vmem:[%s1841 + $0x20] sm:$0xff]
      %v1847 = vld [vmem:[%s1841 + $0x28] sm:$0xff]
      %v1848 = vld [vmem:[%s1841 + $0x30] sm:$0xff]
      %v1849 = vld [vmem:[%s1841 + $0x38] sm:$0xff]
      %v1850 = vld [vmem:[%s1841 + $0x40] sm:$0xff]
      %v1851 = vld [vmem:[%s1841 + $0x48] sm:$0xff]
      %v1852 = vld [vmem:[%s1841 + $0x50] sm:$0xff]
      %v1853 = vld [vmem:[%s1841 + $0x58] sm:$0xff]
      %v1854 = vld [vmem:[%s1841 + $0x60] sm:$0xff]
      %v1855 = vld [vmem:[%s1841 + $0x68] sm:$0xff]
      %v1856 = vld [vmem:[%s1841 + $0x70] sm:$0xff]
      %v1857 = vld [vmem:[%s1841 + $0x78] sm:$0xff]
      %v1858 = vld [vmem:[%s1841 + $0x80] sm:$0xff]
      %v1859 = vld [vmem:[%s1841 + $0x88] sm:$0xff]
      %v1860 = vld [vmem:[%s1841 + $0x90] sm:$0xff]
      %v1861 = vld [vmem:[%s1841 + $0x98] sm:$0xff]
      %v1862 = vld [vmem:[%s1841 + $0xa0] sm:$0xff]
      %v1863 = vld [vmem:[%s1841 + $0xa8] sm:$0xff]
      %v1864 = vld [vmem:[%s1841 + $0xb0] sm:$0xff]
      %v1865 = vld [vmem:[%s1841 + $0xb8] sm:$0xff]
      %v1867 = vsel %vm547, %v1826, 0
      %v1870 = vsel %vm547, %v1828, 0
      %v1873 = vsel %vm547, %v1830, 0
      %v1876 = vsel %vm547, %v1832, 0
      %v1879 = vsel %vm547, %v1834, 0
      %v1882 = vsel %vm547, %v1836, 0
      %v1885 = vsel %vm547, %v1838, 0
      %v1888 = vsel %vm547, %v1840, 0
      %1890 = vmatprep.subr.mxu0 0.0
      %1891 = vmatpush1.msra.mxu0 %v1857
      %1892 = vmatprep.subr.mxu0 0.0
      %1893 = vmatpush1.msra.mxu0 %v1856
      %1894 = vmatprep.subr.mxu0 0.0
      %1895 = vmatpush1.msra.mxu0 %v1855
      %1896 = vmatprep.subr.mxu0 0.0
      %1897 = vmatpush1.msra.mxu0 %v1854
      %1898 = vmatprep.subr.mxu0 0.0
      %1899 = vmatpush1.msra.mxu0 %v1853
      %1900 = vmatprep.subr.mxu0 0.0
      %1901 = vmatpush1.msra.mxu0 %v1852
      %1902 = vmatprep.subr.mxu0 0.0
      %1903 = vmatpush1.msra.mxu0 %v1851
      %1904 = vmatprep.subr.mxu0 0.0
      %1905 = vmatpush1.msra.mxu0 %v1850
      %1906 = vmatprep.subr.mxu0 0.0
      %1907 = vmatpush1.msra.mxu0 %v1849
      %1908 = vmatprep.subr.mxu0 0.0
      %1909 = vmatpush1.msra.mxu0 %v1848
      %1910 = vmatprep.subr.mxu0 0.0
      %1911 = vmatpush1.msra.mxu0 %v1847
      %1912 = vmatprep.subr.mxu0 0.0
      %1913 = vmatpush1.msra.mxu0 %v1846
      %1914 = vmatprep.subr.mxu0 0.0
      %1915 = vmatpush1.msra.mxu0 %v1845
      %1916 = vmatprep.subr.mxu0 0.0
      %1917 = vmatpush1.msra.mxu0 %v1844
      %1918 = vmatprep.subr.mxu0 0.0
      %1919 = vmatpush1.msra.mxu0 %v1843
      %1920 = vmatprep.subr.mxu0 0.0
      %1921 = vmatpush1.msra.mxu0 %v1842
      %1922 = vmatprep.subr.mxu0 0.0
      %1923 = vmatpush2.msra.mxu0 0.0
      %1924 = vmatprep.subr.mxu0 0.0
      %1925 = vmatpush2.msra.mxu0 0.0
      %1926 = vmatprep.subr.mxu0 0.0
      %1927 = vmatpush2.msra.mxu0 0.0
      %1928 = vmatprep.subr.mxu0 0.0
      %1929 = vmatpush2.msra.mxu0 0.0
      %1930 = vmatprep.subr.mxu0 0.0
      %1931 = vmatpush2.msra.mxu0 0.0
      %1932 = vmatprep.subr.mxu0 0.0
      %1933 = vmatpush2.msra.mxu0 0.0
      %1934 = vmatprep.subr.mxu0 0.0
      %1935 = vmatpush2.msra.mxu0 0.0
      %1936 = vmatprep.subr.mxu0 0.0
      %1937 = vmatpush2.msra.mxu0 0.0
      %1938 = vmatprep.subr.mxu0 0.0
      %1939 = vmatpush2.msra.mxu0 %v1865
      %1940 = vmatprep.subr.mxu0 0.0
      %1941 = vmatpush2.msra.mxu0 %v1864
      %1942 = vmatprep.subr.mxu0 0.0
      %1943 = vmatpush2.msra.mxu0 %v1863
      %1944 = vmatprep.subr.mxu0 0.0
      %1945 = vmatpush2.msra.mxu0 %v1862
      %1946 = vmatprep.subr.mxu0 0.0
      %1947 = vmatpush2.msra.mxu0 %v1861
      %1948 = vmatprep.subr.mxu0 0.0
      %1949 = vmatpush2.msra.mxu0 %v1860
      %1950 = vmatprep.subr.mxu0 0.0
      %1951 = vmatpush2.msra.mxu0 %v1859
      %1952 = vmatprep.subr.mxu0 0.0
      %1953 = vmatpush2.msra.mxu0 %v1858
      %1954 = vmatprep.mubr.f32.mxu0 %v1867
      %1955 = vmatmul.mubr.f32.gmra.mxu0 %v1825
      %v1956 = vpop.f32.mrf.mxu0
      %v1957 = vadd.f32 0.0, %v1956
      %v1958 = vpop.f32.mrf.mxu0
      %1959 = vmatprep.mubr.f32.mxu0 %v1870
      %1960 = vmatmul.mubr.f32.gmra.mxu0 %v1827
      %v1961 = vpop.f32.mrf.mxu0
      %v1962 = vadd.f32 0.0, %v1961
      %v1963 = vpop.f32.mrf.mxu0
      %1964 = vmatprep.mubr.f32.mxu0 %v1873
      %1965 = vmatmul.mubr.f32.gmra.mxu0 %v1829
      %v1966 = vpop.f32.mrf.mxu0
      %v1967 = vadd.f32 0.0, %v1966
      %v1968 = vpop.f32.mrf.mxu0
      %1969 = vmatprep.mubr.f32.mxu0 %v1876
      %1970 = vmatmul.mubr.f32.gmra.mxu0 %v1831
      %v1971 = vpop.f32.mrf.mxu0
      %v1972 = vadd.f32 0.0, %v1971
      %v1973 = vpop.f32.mrf.mxu0
      %1974 = vmatprep.mubr.f32.mxu0 %v1879
      %1975 = vmatmul.mubr.f32.gmra.mxu0 %v1833
      %v1976 = vpop.f32.mrf.mxu0
      %v1977 = vadd.f32 0.0, %v1976
      %v1978 = vpop.f32.mrf.mxu0
      %1979 = vmatprep.mubr.f32.mxu0 %v1882
      %1980 = vmatmul.mubr.f32.gmra.mxu0 %v1835
      %v1981 = vpop.f32.mrf.mxu0
      %v1982 = vadd.f32 0.0, %v1981
      %v1983 = vpop.f32.mrf.mxu0
      %1984 = vmatprep.mubr.f32.mxu0 %v1885
      %1985 = vmatmul.mubr.f32.gmra.mxu0 %v1837
      %v1986 = vpop.f32.mrf.mxu0
      %v1987 = vadd.f32 0.0, %v1986
      %v1988 = vpop.f32.mrf.mxu0
      %1989 = vmatprep.mubr.f32.mxu0 %v1888
      %1990 = vmatmul.mubr.f32.gmra.mxu0 %v1839
      %v1991 = vpop.f32.mrf.mxu0
      %v1992 = vadd.f32 0.0, %v1991
      %v1993 = vpop.f32.mrf.mxu0
      %1994 = vdwg.mxu0
      %v1995 = vadd.f32 %v1816, %v1957
      %v1996 = vadd.f32 %v1817, %v1962
      %v1997 = vadd.f32 %v1818, %v1967
      %v1998 = vadd.f32 %v1819, %v1972
      %v1999 = vadd.f32 %v1820, %v1977
      %v2000 = vadd.f32 %v1821, %v1982
      %v2001 = vadd.f32 %v1822, %v1987
      %v2002 = vadd.f32 %v1823, %v1992
      %s2003 = scalar_lea.vmem [#allocation2], 192
      %v2004 = vld [vmem:[%s2003] sm:$0xff]
      %v2005 = vld [vmem:[%s2003 + $0x8] sm:$0xff]
      %v2006 = vld [vmem:[%s2003 + $0x20] sm:$0xff]
      %v2007 = vld [vmem:[%s2003 + $0x28] sm:$0xff]
      %v2008 = vld [vmem:[%s2003 + $0x40] sm:$0xff]
      %v2009 = vld [vmem:[%s2003 + $0x48] sm:$0xff]
      %v2010 = vld [vmem:[%s2003 + $0x60] sm:$0xff]
      %v2011 = vld [vmem:[%s2003 + $0x68] sm:$0xff]
      %v2012 = vld [vmem:[%s2003 + $0x80] sm:$0xff]
      %v2013 = vld [vmem:[%s2003 + $0x88] sm:$0xff]
      %v2014 = vld [vmem:[%s2003 + $0xa0] sm:$0xff]
      %v2015 = vld [vmem:[%s2003 + $0xa8] sm:$0xff]
      %v2016 = vld [vmem:[%s2003 + $0xc0] sm:$0xff]
      %v2017 = vld [vmem:[%s2003 + $0xc8] sm:$0xff]
      %v2018 = vld [vmem:[%s2003 + $0xe0] sm:$0xff]
      %v2019 = vld [vmem:[%s2003 + $0xe8] sm:$0xff]
      %s2020 = scalar_lea.vmem %s3, 1152
      %v2021 = vld [vmem:[%s2020] sm:$0xff]
      %v2022 = vld [vmem:[%s2020 + $0x8] sm:$0xff]
      %v2023 = vld [vmem:[%s2020 + $0x10] sm:$0xff]
      %v2024 = vld [vmem:[%s2020 + $0x18] sm:$0xff]
      %v2025 = vld [vmem:[%s2020 + $0x20] sm:$0xff]
      %v2026 = vld [vmem:[%s2020 + $0x28] sm:$0xff]
      %v2027 = vld [vmem:[%s2020 + $0x30] sm:$0xff]
      %v2028 = vld [vmem:[%s2020 + $0x38] sm:$0xff]
      %v2029 = vld [vmem:[%s2020 + $0x40] sm:$0xff]
      %v2030 = vld [vmem:[%s2020 + $0x48] sm:$0xff]
      %v2031 = vld [vmem:[%s2020 + $0x50] sm:$0xff]
      %v2032 = vld [vmem:[%s2020 + $0x58] sm:$0xff]
      %v2033 = vld [vmem:[%s2020 + $0x60] sm:$0xff]
      %v2034 = vld [vmem:[%s2020 + $0x68] sm:$0xff]
      %v2035 = vld [vmem:[%s2020 + $0x70] sm:$0xff]
      %v2036 = vld [vmem:[%s2020 + $0x78] sm:$0xff]
      %v2037 = vld [vmem:[%s2020 + $0x80] sm:$0xff]
      %v2038 = vld [vmem:[%s2020 + $0x88] sm:$0xff]
      %v2039 = vld [vmem:[%s2020 + $0x90] sm:$0xff]
      %v2040 = vld [vmem:[%s2020 + $0x98] sm:$0xff]
      %v2041 = vld [vmem:[%s2020 + $0xa0] sm:$0xff]
      %v2042 = vld [vmem:[%s2020 + $0xa8] sm:$0xff]
      %v2043 = vld [vmem:[%s2020 + $0xb0] sm:$0xff]
      %v2044 = vld [vmem:[%s2020 + $0xb8] sm:$0xff]
      %v2046 = vsel %vm547, %v2005, 0
      %v2049 = vsel %vm547, %v2007, 0
      %v2052 = vsel %vm547, %v2009, 0
      %v2055 = vsel %vm547, %v2011, 0
      %v2058 = vsel %vm547, %v2013, 0
      %v2061 = vsel %vm547, %v2015, 0
      %v2064 = vsel %vm547, %v2017, 0
      %v2067 = vsel %vm547, %v2019, 0
      %2069 = vmatprep.subr.mxu0 0.0
      %2070 = vmatpush1.msra.mxu0 %v2036
      %2071 = vmatprep.subr.mxu0 0.0
      %2072 = vmatpush1.msra.mxu0 %v2035
      %2073 = vmatprep.subr.mxu0 0.0
      %2074 = vmatpush1.msra.mxu0 %v2034
      %2075 = vmatprep.subr.mxu0 0.0
      %2076 = vmatpush1.msra.mxu0 %v2033
      %2077 = vmatprep.subr.mxu0 0.0
      %2078 = vmatpush1.msra.mxu0 %v2032
      %2079 = vmatprep.subr.mxu0 0.0
      %2080 = vmatpush1.msra.mxu0 %v2031
      %2081 = vmatprep.subr.mxu0 0.0
      %2082 = vmatpush1.msra.mxu0 %v2030
      %2083 = vmatprep.subr.mxu0 0.0
      %2084 = vmatpush1.msra.mxu0 %v2029
      %2085 = vmatprep.subr.mxu0 0.0
      %2086 = vmatpush1.msra.mxu0 %v2028
      %2087 = vmatprep.subr.mxu0 0.0
      %2088 = vmatpush1.msra.mxu0 %v2027
      %2089 = vmatprep.subr.mxu0 0.0
      %2090 = vmatpush1.msra.mxu0 %v2026
      %2091 = vmatprep.subr.mxu0 0.0
      %2092 = vmatpush1.msra.mxu0 %v2025
      %2093 = vmatprep.subr.mxu0 0.0
      %2094 = vmatpush1.msra.mxu0 %v2024
      %2095 = vmatprep.subr.mxu0 0.0
      %2096 = vmatpush1.msra.mxu0 %v2023
      %2097 = vmatprep.subr.mxu0 0.0
      %2098 = vmatpush1.msra.mxu0 %v2022
      %2099 = vmatprep.subr.mxu0 0.0
      %2100 = vmatpush1.msra.mxu0 %v2021
      %2101 = vmatprep.subr.mxu0 0.0
      %2102 = vmatpush2.msra.mxu0 0.0
      %2103 = vmatprep.subr.mxu0 0.0
      %2104 = vmatpush2.msra.mxu0 0.0
      %2105 = vmatprep.subr.mxu0 0.0
      %2106 = vmatpush2.msra.mxu0 0.0
      %2107 = vmatprep.subr.mxu0 0.0
      %2108 = vmatpush2.msra.mxu0 0.0
      %2109 = vmatprep.subr.mxu0 0.0
      %2110 = vmatpush2.msra.mxu0 0.0
      %2111 = vmatprep.subr.mxu0 0.0
      %2112 = vmatpush2.msra.mxu0 0.0
      %2113 = vmatprep.subr.mxu0 0.0
      %2114 = vmatpush2.msra.mxu0 0.0
      %2115 = vmatprep.subr.mxu0 0.0
      %2116 = vmatpush2.msra.mxu0 0.0
      %2117 = vmatprep.subr.mxu0 0.0
      %2118 = vmatpush2.msra.mxu0 %v2044
      %2119 = vmatprep.subr.mxu0 0.0
      %2120 = vmatpush2.msra.mxu0 %v2043
      %2121 = vmatprep.subr.mxu0 0.0
      %2122 = vmatpush2.msra.mxu0 %v2042
      %2123 = vmatprep.subr.mxu0 0.0
      %2124 = vmatpush2.msra.mxu0 %v2041
      %2125 = vmatprep.subr.mxu0 0.0
      %2126 = vmatpush2.msra.mxu0 %v2040
      %2127 = vmatprep.subr.mxu0 0.0
      %2128 = vmatpush2.msra.mxu0 %v2039
      %2129 = vmatprep.subr.mxu0 0.0
      %2130 = vmatpush2.msra.mxu0 %v2038
      %2131 = vmatprep.subr.mxu0 0.0
      %2132 = vmatpush2.msra.mxu0 %v2037
      %2133 = vmatprep.mubr.f32.mxu0 %v2046
      %2134 = vmatmul.mubr.f32.gmra.mxu0 %v2004
      %v2135 = vpop.f32.mrf.mxu0
      %v2136 = vadd.f32 0.0, %v2135
      %v2137 = vpop.f32.mrf.mxu0
      %2138 = vmatprep.mubr.f32.mxu0 %v2049
      %2139 = vmatmul.mubr.f32.gmra.mxu0 %v2006
      %v2140 = vpop.f32.mrf.mxu0
      %v2141 = vadd.f32 0.0, %v2140
      %v2142 = vpop.f32.mrf.mxu0
      %2143 = vmatprep.mubr.f32.mxu0 %v2052
      %2144 = vmatmul.mubr.f32.gmra.mxu0 %v2008
      %v2145 = vpop.f32.mrf.mxu0
      %v2146 = vadd.f32 0.0, %v2145
      %v2147 = vpop.f32.mrf.mxu0
      %2148 = vmatprep.mubr.f32.mxu0 %v2055
      %2149 = vmatmul.mubr.f32.gmra.mxu0 %v2010
      %v2150 = vpop.f32.mrf.mxu0
      %v2151 = vadd.f32 0.0, %v2150
      %v2152 = vpop.f32.mrf.mxu0
      %2153 = vmatprep.mubr.f32.mxu0 %v2058
      %2154 = vmatmul.mubr.f32.gmra.mxu0 %v2012
      %v2155 = vpop.f32.mrf.mxu0
      %v2156 = vadd.f32 0.0, %v2155
      %v2157 = vpop.f32.mrf.mxu0
      %2158 = vmatprep.mubr.f32.mxu0 %v2061
      %2159 = vmatmul.mubr.f32.gmra.mxu0 %v2014
      %v2160 = vpop.f32.mrf.mxu0
      %v2161 = vadd.f32 0.0, %v2160
      %v2162 = vpop.f32.mrf.mxu0
      %2163 = vmatprep.mubr.f32.mxu0 %v2064
      %2164 = vmatmul.mubr.f32.gmra.mxu0 %v2016
      %v2165 = vpop.f32.mrf.mxu0
      %v2166 = vadd.f32 0.0, %v2165
      %v2167 = vpop.f32.mrf.mxu0
      %2168 = vmatprep.mubr.f32.mxu0 %v2067
      %2169 = vmatmul.mubr.f32.gmra.mxu0 %v2018
      %v2170 = vpop.f32.mrf.mxu0
      %v2171 = vadd.f32 0.0, %v2170
      %v2172 = vpop.f32.mrf.mxu0
      %2173 = vdwg.mxu0
      %v2174 = vadd.f32 %v1995, %v2136
      %v2175 = vadd.f32 %v1996, %v2141
      %v2176 = vadd.f32 %v1997, %v2146
      %v2177 = vadd.f32 %v1998, %v2151
      %v2178 = vadd.f32 %v1999, %v2156
      %v2179 = vadd.f32 %v2000, %v2161
      %v2180 = vadd.f32 %v2001, %v2166
      %v2181 = vadd.f32 %v2002, %v2171
      %v2182 = vmax.f32 %v2174, 0.0
      %v2183 = vmax.f32 %v2175, 0.0
      %v2184 = vmax.f32 %v2176, 0.0
      %v2185 = vmax.f32 %v2177, 0.0
      %v2186 = vmax.f32 %v2178, 0.0
      %v2187 = vmax.f32 %v2179, 0.0
      %v2188 = vmax.f32 %v2180, 0.0
      %v2189 = vmax.f32 %v2181, 0.0
      %vm2190 = vcmask 59392
      %2191 = vst.msk [vmem:[#allocation2] sm:$0x7] %vm2190, 0.0
      %2192 = vst.msk [vmem:[#allocation2 + $0x20] sm:$0x7] %vm2190, 0.0
      %2193 = vst.msk [vmem:[#allocation2 + $0x40] sm:$0x7] %vm2190, 0.0
      %2194 = vst.msk [vmem:[#allocation2 + $0x60] sm:$0x7] %vm2190, 0.0
      %2195 = vst.msk [vmem:[#allocation2 + $0x80] sm:$0x7] %vm2190, 0.0
      %2196 = vst.msk [vmem:[#allocation2 + $0xa0] sm:$0x7] %vm2190, 0.0
      %2197 = vst.msk [vmem:[#allocation2 + $0xc0] sm:$0x7] %vm2190, 0.0
      %2198 = vst.msk [vmem:[#allocation2 + $0xe0] sm:$0x7] %vm2190, 0.0
      %vm2199 = vcmask 62467
      %2200 = vst.msk [vmem:[#allocation2 + $0x10] sm:$0x38] %vm2199, 0.0
      %2201 = vst.msk [vmem:[#allocation2 + $0x30] sm:$0x38] %vm2199, 0.0
      %2202 = vst.msk [vmem:[#allocation2 + $0x50] sm:$0x38] %vm2199, 0.0
      %2203 = vst.msk [vmem:[#allocation2 + $0x70] sm:$0x38] %vm2199, 0.0
      %2204 = vst.msk [vmem:[#allocation2 + $0x90] sm:$0x38] %vm2199, 0.0
      %2205 = vst.msk [vmem:[#allocation2 + $0xb0] sm:$0x38] %vm2199, 0.0
      %2206 = vst.msk [vmem:[#allocation2 + $0xd0] sm:$0x38] %vm2199, 0.0
      %2207 = vst.msk [vmem:[#allocation2 + $0xf0] sm:$0x38] %vm2199, 0.0
      %v2216 = vrot.slane %v2182, 5
      %v2217 = vrot.slane %v2183, 5
      %v2218 = vrot.slane %v2184, 5
      %v2219 = vrot.slane %v2185, 5
      %v2220 = vrot.slane %v2186, 5
      %v2221 = vrot.slane %v2187, 5
      %v2222 = vrot.slane %v2188, 5
      %v2223 = vrot.slane %v2189, 5
      %vm2232 = vcmask 64515
      %2233 = vst.msk [vmem:[#allocation2] sm:$0xf8] %vm2232, %v2216
      %2234 = vst.msk [vmem:[#allocation2 + $0x10] sm:$0x7] %vm2190, %v2216
      %2235 = vst.msk [vmem:[#allocation2 + $0x20] sm:$0xf8] %vm2232, %v2217
      %2236 = vst.msk [vmem:[#allocation2 + $0x30] sm:$0x7] %vm2190, %v2217
      %2237 = vst.msk [vmem:[#allocation2 + $0x40] sm:$0xf8] %vm2232, %v2218
      %2238 = vst.msk [vmem:[#allocation2 + $0x50] sm:$0x7] %vm2190, %v2218
      %2239 = vst.msk [vmem:[#allocation2 + $0x60] sm:$0xf8] %vm2232, %v2219
      %2240 = vst.msk [vmem:[#allocation2 + $0x70] sm:$0x7] %vm2190, %v2219
      %2241 = vst.msk [vmem:[#allocation2 + $0x80] sm:$0xf8] %vm2232, %v2220
      %2242 = vst.msk [vmem:[#allocation2 + $0x90] sm:$0x7] %vm2190, %v2220
      %2243 = vst.msk [vmem:[#allocation2 + $0xa0] sm:$0xf8] %vm2232, %v2221
      %2244 = vst.msk [vmem:[#allocation2 + $0xb0] sm:$0x7] %vm2190, %v2221
      %2245 = vst.msk [vmem:[#allocation2 + $0xc0] sm:$0xf8] %vm2232, %v2222
      %2246 = vst.msk [vmem:[#allocation2 + $0xd0] sm:$0x7] %vm2190, %v2222
      %2247 = vst.msk [vmem:[#allocation2 + $0xe0] sm:$0xf8] %vm2232, %v2223
      %2248 = vst.msk [vmem:[#allocation2 + $0xf0] sm:$0x7] %vm2190, %v2223
      %v2249 = vld [vmem:[#allocation2] sm:$0xff]
      %v2250 = vld [vmem:[#allocation2 + $0x20] sm:$0xff]
      %v2251 = vld [vmem:[#allocation2 + $0x40] sm:$0xff]
      %v2252 = vld [vmem:[#allocation2 + $0x60] sm:$0xff]
      %v2253 = vld [vmem:[#allocation2 + $0x80] sm:$0xff]
      %v2254 = vld [vmem:[#allocation2 + $0xa0] sm:$0xff]
      %v2255 = vld [vmem:[#allocation2 + $0xc0] sm:$0xff]
      %v2256 = vld [vmem:[#allocation2 + $0xe0] sm:$0xff]
      %v2257 = vld [vmem:[%s4] sm:$0xff]
      %v2258 = vld [vmem:[#allocation2] sm:$0xfe]
      %v2259 = vld [vmem:[#allocation2 + $0x10] sm:$0x1]
      %v2260 = vld [vmem:[#allocation2 + $0x20] sm:$0xfe]
      %v2261 = vld [vmem:[#allocation2 + $0x30] sm:$0x1]
      %v2262 = vld [vmem:[#allocation2 + $0x40] sm:$0xfe]
      %v2263 = vld [vmem:[#allocation2 + $0x50] sm:$0x1]
      %v2264 = vld [vmem:[#allocation2 + $0x60] sm:$0xfe]
      %v2265 = vld [vmem:[#allocation2 + $0x70] sm:$0x1]
      %v2266 = vld [vmem:[#allocation2 + $0x80] sm:$0xfe]
      %v2267 = vld [vmem:[#allocation2 + $0x90] sm:$0x1]
      %v2268 = vld [vmem:[#allocation2 + $0xa0] sm:$0xfe]
      %v2269 = vld [vmem:[#allocation2 + $0xb0] sm:$0x1]
      %v2270 = vld [vmem:[#allocation2 + $0xc0] sm:$0xfe]
      %v2271 = vld [vmem:[#allocation2 + $0xd0] sm:$0x1]
      %v2272 = vld [vmem:[#allocation2 + $0xe0] sm:$0xfe]
      %v2273 = vld [vmem:[#allocation2 + $0xf0] sm:$0x1]
      %vm2290 = vcmask 1046528
      %v2291 = vrot.slane %v2258, 1
      %v2292 = vrot.slane %v2259, 1
      %v2293 = vsel %vm2290, %v2291, %v2292
      %v2294 = vrot.slane %v2260, 1
      %v2295 = vrot.slane %v2261, 1
      %v2296 = vsel %vm2290, %v2294, %v2295
      %v2297 = vrot.slane %v2262, 1
      %v2298 = vrot.slane %v2263, 1
      %v2299 = vsel %vm2290, %v2297, %v2298
      %v2300 = vrot.slane %v2264, 1
      %v2301 = vrot.slane %v2265, 1
      %v2302 = vsel %vm2290, %v2300, %v2301
      %v2303 = vrot.slane %v2266, 1
      %v2304 = vrot.slane %v2267, 1
      %v2305 = vsel %vm2290, %v2303, %v2304
      %v2306 = vrot.slane %v2268, 1
      %v2307 = vrot.slane %v2269, 1
      %v2308 = vsel %vm2290, %v2306, %v2307
      %v2309 = vrot.slane %v2270, 1
      %v2310 = vrot.slane %v2271, 1
      %v2311 = vsel %vm2290, %v2309, %v2310
      %v2312 = vrot.slane %v2272, 1
      %v2313 = vrot.slane %v2273, 1
      %v2314 = vsel %vm2290, %v2312, %v2313
      %s2315 = scalar_lea.vmem %s4, 8
      %v2316 = vld [vmem:[%s2315] sm:$0xff]
      %vm2317 = vcmask 64512
      %v2318 = vsel %vm2317, %v2293, 0
      %v2320 = vsel %vm2317, %v2296, 0
      %v2322 = vsel %vm2317, %v2299, 0
      %v2324 = vsel %vm2317, %v2302, 0
      %v2326 = vsel %vm2317, %v2305, 0
      %v2328 = vsel %vm2317, %v2308, 0
      %v2330 = vsel %vm2317, %v2311, 0
      %v2332 = vsel %vm2317, %v2314, 0
      %2334 = vmatprep.subr.mxu0 0.0
      %2335 = vmatpush1.msra.mxu0 0.0
      %2336 = vmatprep.subr.mxu0 0.0
      %2337 = vmatpush1.msra.mxu0 0.0
      %2338 = vmatprep.subr.mxu0 0.0
      %2339 = vmatpush1.msra.mxu0 0.0
      %2340 = vmatprep.subr.mxu0 0.0
      %2341 = vmatpush1.msra.mxu0 0.0
      %2342 = vmatprep.subr.mxu0 0.0
      %2343 = vmatpush1.msra.mxu0 0.0
      %2344 = vmatprep.subr.mxu0 0.0
      %2345 = vmatpush1.msra.mxu0 0.0
      %2346 = vmatprep.subr.mxu0 0.0
      %2347 = vmatpush1.msra.mxu0 0.0
      %2348 = vmatprep.subr.mxu0 0.0
      %2349 = vmatpush1.msra.mxu0 0.0
      %2350 = vmatprep.subr.mxu0 0.0
      %2351 = vmatpush1.msra.mxu0 0.0
      %2352 = vmatprep.subr.mxu0 0.0
      %2353 = vmatpush1.msra.mxu0 0.0
      %2354 = vmatprep.subr.mxu0 0.0
      %2355 = vmatpush1.msra.mxu0 0.0
      %2356 = vmatprep.subr.mxu0 0.0
      %2357 = vmatpush1.msra.mxu0 0.0
      %2358 = vmatprep.subr.mxu0 0.0
      %2359 = vmatpush1.msra.mxu0 0.0
      %2360 = vmatprep.subr.mxu0 0.0
      %2361 = vmatpush1.msra.mxu0 0.0
      %2362 = vmatprep.subr.mxu0 0.0
      %2363 = vmatpush1.msra.mxu0 0.0
      %2364 = vmatprep.subr.mxu0 0.0
      %2365 = vmatpush1.msra.mxu0 %v2316
      %2366 = vmatprep.subr.mxu0 0.0
      %2367 = vmatpush2.msra.mxu0 0.0
      %2368 = vmatprep.subr.mxu0 0.0
      %2369 = vmatpush2.msra.mxu0 0.0
      %2370 = vmatprep.subr.mxu0 0.0
      %2371 = vmatpush2.msra.mxu0 0.0
      %2372 = vmatprep.subr.mxu0 0.0
      %2373 = vmatpush2.msra.mxu0 0.0
      %2374 = vmatprep.subr.mxu0 0.0
      %2375 = vmatpush2.msra.mxu0 0.0
      %2376 = vmatprep.subr.mxu0 0.0
      %2377 = vmatpush2.msra.mxu0 0.0
      %2378 = vmatprep.subr.mxu0 0.0
      %2379 = vmatpush2.msra.mxu0 0.0
      %2380 = vmatprep.subr.mxu0 0.0
      %2381 = vmatpush2.msra.mxu0 0.0
      %2382 = vmatprep.subr.mxu0 0.0
      %2383 = vmatpush2.msra.mxu0 0.0
      %2384 = vmatprep.subr.mxu0 0.0
      %2385 = vmatpush2.msra.mxu0 0.0
      %2386 = vmatprep.subr.mxu0 0.0
      %2387 = vmatpush2.msra.mxu0 0.0
      %2388 = vmatprep.subr.mxu0 0.0
      %2389 = vmatpush2.msra.mxu0 0.0
      %2390 = vmatprep.subr.mxu0 0.0
      %2391 = vmatpush2.msra.mxu0 0.0
      %2392 = vmatprep.subr.mxu0 0.0
      %2393 = vmatpush2.msra.mxu0 0.0
      %2394 = vmatprep.subr.mxu0 0.0
      %2395 = vmatpush2.msra.mxu0 0.0
      %2396 = vmatprep.subr.mxu0 0.0
      %2397 = vmatpush2.msra.mxu0 0.0
      %2398 = vmatprep.mubr.f32.mxu0 0.0
      %2399 = vmatmul.mubr.f32.gmra.mxu0 %v2318
      %v2400 = vpop.f32.mrf.mxu0
      %v2401 = vadd.f32 0.0, %v2400
      %v2402 = vpop.f32.mrf.mxu0
      %2403 = vmatprep.mubr.f32.mxu0 0.0
      %2404 = vmatmul.mubr.f32.gmra.mxu0 %v2320
      %v2405 = vpop.f32.mrf.mxu0
      %v2406 = vadd.f32 0.0, %v2405
      %v2407 = vpop.f32.mrf.mxu0
      %2408 = vmatprep.mubr.f32.mxu0 0.0
      %2409 = vmatmul.mubr.f32.gmra.mxu0 %v2322
      %v2410 = vpop.f32.mrf.mxu0
      %v2411 = vadd.f32 0.0, %v2410
      %v2412 = vpop.f32.mrf.mxu0
      %2413 = vmatprep.mubr.f32.mxu0 0.0
      %2414 = vmatmul.mubr.f32.gmra.mxu0 %v2324
      %v2415 = vpop.f32.mrf.mxu0
      %v2416 = vadd.f32 0.0, %v2415
      %v2417 = vpop.f32.mrf.mxu0
      %2418 = vmatprep.mubr.f32.mxu0 0.0
      %2419 = vmatmul.mubr.f32.gmra.mxu0 %v2326
      %v2420 = vpop.f32.mrf.mxu0
      %v2421 = vadd.f32 0.0, %v2420
      %v2422 = vpop.f32.mrf.mxu0
      %2423 = vmatprep.mubr.f32.mxu0 0.0
      %2424 = vmatmul.mubr.f32.gmra.mxu0 %v2328
      %v2425 = vpop.f32.mrf.mxu0
      %v2426 = vadd.f32 0.0, %v2425
      %v2427 = vpop.f32.mrf.mxu0
      %2428 = vmatprep.mubr.f32.mxu0 0.0
      %2429 = vmatmul.mubr.f32.gmra.mxu0 %v2330
      %v2430 = vpop.f32.mrf.mxu0
      %v2431 = vadd.f32 0.0, %v2430
      %v2432 = vpop.f32.mrf.mxu0
      %2433 = vmatprep.mubr.f32.mxu0 0.0
      %2434 = vmatmul.mubr.f32.gmra.mxu0 %v2332
      %v2435 = vpop.f32.mrf.mxu0
      %v2436 = vadd.f32 0.0, %v2435
      %v2437 = vpop.f32.mrf.mxu0
      %2438 = vdwg.mxu0
      %v2440 = vsel %vm2317, %v2249, 0
      %v2443 = vsel %vm2317, %v2250, 0
      %v2446 = vsel %vm2317, %v2251, 0
      %v2449 = vsel %vm2317, %v2252, 0
      %v2452 = vsel %vm2317, %v2253, 0
      %v2455 = vsel %vm2317, %v2254, 0
      %v2458 = vsel %vm2317, %v2255, 0
      %v2461 = vsel %vm2317, %v2256, 0
      %2463 = vmatprep.subr.mxu0 0.0
      %2464 = vmatpush1.msra.mxu0 0.0
      %2465 = vmatprep.subr.mxu0 0.0
      %2466 = vmatpush1.msra.mxu0 0.0
      %2467 = vmatprep.subr.mxu0 0.0
      %2468 = vmatpush1.msra.mxu0 0.0
      %2469 = vmatprep.subr.mxu0 0.0
      %2470 = vmatpush1.msra.mxu0 0.0
      %2471 = vmatprep.subr.mxu0 0.0
      %2472 = vmatpush1.msra.mxu0 0.0
      %2473 = vmatprep.subr.mxu0 0.0
      %2474 = vmatpush1.msra.mxu0 0.0
      %2475 = vmatprep.subr.mxu0 0.0
      %2476 = vmatpush1.msra.mxu0 0.0
      %2477 = vmatprep.subr.mxu0 0.0
      %2478 = vmatpush1.msra.mxu0 0.0
      %2479 = vmatprep.subr.mxu0 0.0
      %2480 = vmatpush1.msra.mxu0 0.0
      %2481 = vmatprep.subr.mxu0 0.0
      %2482 = vmatpush1.msra.mxu0 0.0
      %2483 = vmatprep.subr.mxu0 0.0
      %2484 = vmatpush1.msra.mxu0 0.0
      %2485 = vmatprep.subr.mxu0 0.0
      %2486 = vmatpush1.msra.mxu0 0.0
      %2487 = vmatprep.subr.mxu0 0.0
      %2488 = vmatpush1.msra.mxu0 0.0
      %2489 = vmatprep.subr.mxu0 0.0
      %2490 = vmatpush1.msra.mxu0 0.0
      %2491 = vmatprep.subr.mxu0 0.0
      %2492 = vmatpush1.msra.mxu0 0.0
      %2493 = vmatprep.subr.mxu0 0.0
      %2494 = vmatpush1.msra.mxu0 %v2257
      %2495 = vmatprep.subr.mxu0 0.0
      %2496 = vmatpush2.msra.mxu0 0.0
      %2497 = vmatprep.subr.mxu0 0.0
      %2498 = vmatpush2.msra.mxu0 0.0
      %2499 = vmatprep.subr.mxu0 0.0
      %2500 = vmatpush2.msra.mxu0 0.0
      %2501 = vmatprep.subr.mxu0 0.0
      %2502 = vmatpush2.msra.mxu0 0.0
      %2503 = vmatprep.subr.mxu0 0.0
      %2504 = vmatpush2.msra.mxu0 0.0
      %2505 = vmatprep.subr.mxu0 0.0
      %2506 = vmatpush2.msra.mxu0 0.0
      %2507 = vmatprep.subr.mxu0 0.0
      %2508 = vmatpush2.msra.mxu0 0.0
      %2509 = vmatprep.subr.mxu0 0.0
      %2510 = vmatpush2.msra.mxu0 0.0
      %2511 = vmatprep.subr.mxu0 0.0
      %2512 = vmatpush2.msra.mxu0 0.0
      %2513 = vmatprep.subr.mxu0 0.0
      %2514 = vmatpush2.msra.mxu0 0.0
      %2515 = vmatprep.subr.mxu0 0.0
      %2516 = vmatpush2.msra.mxu0 0.0
      %2517 = vmatprep.subr.mxu0 0.0
      %2518 = vmatpush2.msra.mxu0 0.0
      %2519 = vmatprep.subr.mxu0 0.0
      %2520 = vmatpush2.msra.mxu0 0.0
      %2521 = vmatprep.subr.mxu0 0.0
      %2522 = vmatpush2.msra.mxu0 0.0
      %2523 = vmatprep.subr.mxu0 0.0
      %2524 = vmatpush2.msra.mxu0 0.0
      %2525 = vmatprep.subr.mxu0 0.0
      %2526 = vmatpush2.msra.mxu0 0.0
      %2527 = vmatprep.mubr.f32.mxu0 0.0
      %2528 = vmatmul.mubr.f32.gmra.mxu0 %v2440
      %v2529 = vpop.f32.mrf.mxu0
      %v2530 = vadd.f32 %v2401, %v2529
      %v2531 = vpop.f32.mrf.mxu0
      %2532 = vmatprep.mubr.f32.mxu0 0.0
      %2533 = vmatmul.mubr.f32.gmra.mxu0 %v2443
      %v2534 = vpop.f32.mrf.mxu0
      %v2535 = vadd.f32 %v2406, %v2534
      %v2536 = vpop.f32.mrf.mxu0
      %2537 = vmatprep.mubr.f32.mxu0 0.0
      %2538 = vmatmul.mubr.f32.gmra.mxu0 %v2446
      %v2539 = vpop.f32.mrf.mxu0
      %v2540 = vadd.f32 %v2411, %v2539
      %v2541 = vpop.f32.mrf.mxu0
      %2542 = vmatprep.mubr.f32.mxu0 0.0
      %2543 = vmatmul.mubr.f32.gmra.mxu0 %v2449
      %v2544 = vpop.f32.mrf.mxu0
      %v2545 = vadd.f32 %v2416, %v2544
      %v2546 = vpop.f32.mrf.mxu0
      %2547 = vmatprep.mubr.f32.mxu0 0.0
      %2548 = vmatmul.mubr.f32.gmra.mxu0 %v2452
      %v2549 = vpop.f32.mrf.mxu0
      %v2550 = vadd.f32 %v2421, %v2549
      %v2551 = vpop.f32.mrf.mxu0
      %2552 = vmatprep.mubr.f32.mxu0 0.0
      %2553 = vmatmul.mubr.f32.gmra.mxu0 %v2455
      %v2554 = vpop.f32.mrf.mxu0
      %v2555 = vadd.f32 %v2426, %v2554
      %v2556 = vpop.f32.mrf.mxu0
      %2557 = vmatprep.mubr.f32.mxu0 0.0
      %2558 = vmatmul.mubr.f32.gmra.mxu0 %v2458
      %v2559 = vpop.f32.mrf.mxu0
      %v2560 = vadd.f32 %v2431, %v2559
      %v2561 = vpop.f32.mrf.mxu0
      %2562 = vmatprep.mubr.f32.mxu0 0.0
      %2563 = vmatmul.mubr.f32.gmra.mxu0 %v2461
      %v2564 = vpop.f32.mrf.mxu0
      %v2565 = vadd.f32 %v2436, %v2564
      %v2566 = vpop.f32.mrf.mxu0
      %2567 = vdwg.mxu0
      %v2568 = vld [vmem:[#allocation2] sm:$0xfc]
      %v2569 = vld [vmem:[#allocation2 + $0x10] sm:$0x3]
      %v2570 = vld [vmem:[#allocation2 + $0x20] sm:$0xfc]
      %v2571 = vld [vmem:[#allocation2 + $0x30] sm:$0x3]
      %v2572 = vld [vmem:[#allocation2 + $0x40] sm:$0xfc]
      %v2573 = vld [vmem:[#allocation2 + $0x50] sm:$0x3]
      %v2574 = vld [vmem:[#allocation2 + $0x60] sm:$0xfc]
      %v2575 = vld [vmem:[#allocation2 + $0x70] sm:$0x3]
      %v2576 = vld [vmem:[#allocation2 + $0x80] sm:$0xfc]
      %v2577 = vld [vmem:[#allocation2 + $0x90] sm:$0x3]
      %v2578 = vld [vmem:[#allocation2 + $0xa0] sm:$0xfc]
      %v2579 = vld [vmem:[#allocation2 + $0xb0] sm:$0x3]
      %v2580 = vld [vmem:[#allocation2 + $0xc0] sm:$0xfc]
      %v2581 = vld [vmem:[#allocation2 + $0xd0] sm:$0x3]
      %v2582 = vld [vmem:[#allocation2 + $0xe0] sm:$0xfc]
      %v2583 = vld [vmem:[#allocation2 + $0xf0] sm:$0x3]
      %vm2600 = vcmask 1045504
      %v2601 = vrot.slane %v2568, 2
      %v2602 = vrot.slane %v2569, 2
      %v2603 = vsel %vm2600, %v2601, %v2602
      %v2604 = vrot.slane %v2570, 2
      %v2605 = vrot.slane %v2571, 2
      %v2606 = vsel %vm2600, %v2604, %v2605
      %v2607 = vrot.slane %v2572, 2
      %v2608 = vrot.slane %v2573, 2
      %v2609 = vsel %vm2600, %v2607, %v2608
      %v2610 = vrot.slane %v2574, 2
      %v2611 = vrot.slane %v2575, 2
      %v2612 = vsel %vm2600, %v2610, %v2611
      %v2613 = vrot.slane %v2576, 2
      %v2614 = vrot.slane %v2577, 2
      %v2615 = vsel %vm2600, %v2613, %v2614
      %v2616 = vrot.slane %v2578, 2
      %v2617 = vrot.slane %v2579, 2
      %v2618 = vsel %vm2600, %v2616, %v2617
      %v2619 = vrot.slane %v2580, 2
      %v2620 = vrot.slane %v2581, 2
      %v2621 = vsel %vm2600, %v2619, %v2620
      %v2622 = vrot.slane %v2582, 2
      %v2623 = vrot.slane %v2583, 2
      %v2624 = vsel %vm2600, %v2622, %v2623
      %s2625 = scalar_lea.vmem %s4, 16
      %v2626 = vld [vmem:[%s2625] sm:$0xff]
      %v2627 = vsel %vm2317, %v2603, 0
      %v2629 = vsel %vm2317, %v2606, 0
      %v2631 = vsel %vm2317, %v2609, 0
      %v2633 = vsel %vm2317, %v2612, 0
      %v2635 = vsel %vm2317, %v2615, 0
      %v2637 = vsel %vm2317, %v2618, 0
      %v2639 = vsel %vm2317, %v2621, 0
      %v2641 = vsel %vm2317, %v2624, 0
      %2643 = vmatprep.subr.mxu0 0.0
      %2644 = vmatpush1.msra.mxu0 0.0
      %2645 = vmatprep.subr.mxu0 0.0
      %2646 = vmatpush1.msra.mxu0 0.0
      %2647 = vmatprep.subr.mxu0 0.0
      %2648 = vmatpush1.msra.mxu0 0.0
      %2649 = vmatprep.subr.mxu0 0.0
      %2650 = vmatpush1.msra.mxu0 0.0
      %2651 = vmatprep.subr.mxu0 0.0
      %2652 = vmatpush1.msra.mxu0 0.0
      %2653 = vmatprep.subr.mxu0 0.0
      %2654 = vmatpush1.msra.mxu0 0.0
      %2655 = vmatprep.subr.mxu0 0.0
      %2656 = vmatpush1.msra.mxu0 0.0
      %2657 = vmatprep.subr.mxu0 0.0
      %2658 = vmatpush1.msra.mxu0 0.0
      %2659 = vmatprep.subr.mxu0 0.0
      %2660 = vmatpush1.msra.mxu0 0.0
      %2661 = vmatprep.subr.mxu0 0.0
      %2662 = vmatpush1.msra.mxu0 0.0
      %2663 = vmatprep.subr.mxu0 0.0
      %2664 = vmatpush1.msra.mxu0 0.0
      %2665 = vmatprep.subr.mxu0 0.0
      %2666 = vmatpush1.msra.mxu0 0.0
      %2667 = vmatprep.subr.mxu0 0.0
      %2668 = vmatpush1.msra.mxu0 0.0
      %2669 = vmatprep.subr.mxu0 0.0
      %2670 = vmatpush1.msra.mxu0 0.0
      %2671 = vmatprep.subr.mxu0 0.0
      %2672 = vmatpush1.msra.mxu0 0.0
      %2673 = vmatprep.subr.mxu0 0.0
      %2674 = vmatpush1.msra.mxu0 %v2626
      %2675 = vmatprep.subr.mxu0 0.0
      %2676 = vmatpush2.msra.mxu0 0.0
      %2677 = vmatprep.subr.mxu0 0.0
      %2678 = vmatpush2.msra.mxu0 0.0
      %2679 = vmatprep.subr.mxu0 0.0
      %2680 = vmatpush2.msra.mxu0 0.0
      %2681 = vmatprep.subr.mxu0 0.0
      %2682 = vmatpush2.msra.mxu0 0.0
      %2683 = vmatprep.subr.mxu0 0.0
      %2684 = vmatpush2.msra.mxu0 0.0
      %2685 = vmatprep.subr.mxu0 0.0
      %2686 = vmatpush2.msra.mxu0 0.0
      %2687 = vmatprep.subr.mxu0 0.0
      %2688 = vmatpush2.msra.mxu0 0.0
      %2689 = vmatprep.subr.mxu0 0.0
      %2690 = vmatpush2.msra.mxu0 0.0
      %2691 = vmatprep.subr.mxu0 0.0
      %2692 = vmatpush2.msra.mxu0 0.0
      %2693 = vmatprep.subr.mxu0 0.0
      %2694 = vmatpush2.msra.mxu0 0.0
      %2695 = vmatprep.subr.mxu0 0.0
      %2696 = vmatpush2.msra.mxu0 0.0
      %2697 = vmatprep.subr.mxu0 0.0
      %2698 = vmatpush2.msra.mxu0 0.0
      %2699 = vmatprep.subr.mxu0 0.0
      %2700 = vmatpush2.msra.mxu0 0.0
      %2701 = vmatprep.subr.mxu0 0.0
      %2702 = vmatpush2.msra.mxu0 0.0
      %2703 = vmatprep.subr.mxu0 0.0
      %2704 = vmatpush2.msra.mxu0 0.0
      %2705 = vmatprep.subr.mxu0 0.0
      %2706 = vmatpush2.msra.mxu0 0.0
      %2707 = vmatprep.mubr.f32.mxu0 0.0
      %2708 = vmatmul.mubr.f32.gmra.mxu0 %v2627
      %v2709 = vpop.f32.mrf.mxu0
      %v2710 = vadd.f32 0.0, %v2709
      %v2711 = vpop.f32.mrf.mxu0
      %2712 = vmatprep.mubr.f32.mxu0 0.0
      %2713 = vmatmul.mubr.f32.gmra.mxu0 %v2629
      %v2714 = vpop.f32.mrf.mxu0
      %v2715 = vadd.f32 0.0, %v2714
      %v2716 = vpop.f32.mrf.mxu0
      %2717 = vmatprep.mubr.f32.mxu0 0.0
      %2718 = vmatmul.mubr.f32.gmra.mxu0 %v2631
      %v2719 = vpop.f32.mrf.mxu0
      %v2720 = vadd.f32 0.0, %v2719
      %v2721 = vpop.f32.mrf.mxu0
      %2722 = vmatprep.mubr.f32.mxu0 0.0
      %2723 = vmatmul.mubr.f32.gmra.mxu0 %v2633
      %v2724 = vpop.f32.mrf.mxu0
      %v2725 = vadd.f32 0.0, %v2724
      %v2726 = vpop.f32.mrf.mxu0
      %2727 = vmatprep.mubr.f32.mxu0 0.0
      %2728 = vmatmul.mubr.f32.gmra.mxu0 %v2635
      %v2729 = vpop.f32.mrf.mxu0
      %v2730 = vadd.f32 0.0, %v2729
      %v2731 = vpop.f32.mrf.mxu0
      %2732 = vmatprep.mubr.f32.mxu0 0.0
      %2733 = vmatmul.mubr.f32.gmra.mxu0 %v2637
      %v2734 = vpop.f32.mrf.mxu0
      %v2735 = vadd.f32 0.0, %v2734
      %v2736 = vpop.f32.mrf.mxu0
      %2737 = vmatprep.mubr.f32.mxu0 0.0
      %2738 = vmatmul.mubr.f32.gmra.mxu0 %v2639
      %v2739 = vpop.f32.mrf.mxu0
      %v2740 = vadd.f32 0.0, %v2739
      %v2741 = vpop.f32.mrf.mxu0
      %2742 = vmatprep.mubr.f32.mxu0 0.0
      %2743 = vmatmul.mubr.f32.gmra.mxu0 %v2641
      %v2744 = vpop.f32.mrf.mxu0
      %v2745 = vadd.f32 0.0, %v2744
      %v2746 = vpop.f32.mrf.mxu0
      %2747 = vdwg.mxu0
      %v2748 = vadd.f32 %v2530, %v2710
      %v2749 = vadd.f32 %v2535, %v2715
      %v2750 = vadd.f32 %v2540, %v2720
      %v2751 = vadd.f32 %v2545, %v2725
      %v2752 = vadd.f32 %v2550, %v2730
      %v2753 = vadd.f32 %v2555, %v2735
      %v2754 = vadd.f32 %v2560, %v2740
      %v2755 = vadd.f32 %v2565, %v2745
      %v2756 = vld [vmem:[#allocation2] sm:$0xf8]
      %v2757 = vld [vmem:[#allocation2 + $0x10] sm:$0x7]
      %v2758 = vld [vmem:[#allocation2 + $0x20] sm:$0xf8]
      %v2759 = vld [vmem:[#allocation2 + $0x30] sm:$0x7]
      %v2760 = vld [vmem:[#allocation2 + $0x40] sm:$0xf8]
      %v2761 = vld [vmem:[#allocation2 + $0x50] sm:$0x7]
      %v2762 = vld [vmem:[#allocation2 + $0x60] sm:$0xf8]
      %v2763 = vld [vmem:[#allocation2 + $0x70] sm:$0x7]
      %v2764 = vld [vmem:[#allocation2 + $0x80] sm:$0xf8]
      %v2765 = vld [vmem:[#allocation2 + $0x90] sm:$0x7]
      %v2766 = vld [vmem:[#allocation2 + $0xa0] sm:$0xf8]
      %v2767 = vld [vmem:[#allocation2 + $0xb0] sm:$0x7]
      %v2768 = vld [vmem:[#allocation2 + $0xc0] sm:$0xf8]
      %v2769 = vld [vmem:[#allocation2 + $0xd0] sm:$0x7]
      %v2770 = vld [vmem:[#allocation2 + $0xe0] sm:$0xf8]
      %v2771 = vld [vmem:[#allocation2 + $0xf0] sm:$0x7]
      %vm2788 = vcmask 1044480
      %v2789 = vrot.slane %v2756, 3
      %v2790 = vrot.slane %v2757, 3
      %v2791 = vsel %vm2788, %v2789, %v2790
      %v2792 = vrot.slane %v2758, 3
      %v2793 = vrot.slane %v2759, 3
      %v2794 = vsel %vm2788, %v2792, %v2793
      %v2795 = vrot.slane %v2760, 3
      %v2796 = vrot.slane %v2761, 3
      %v2797 = vsel %vm2788, %v2795, %v2796
      %v2798 = vrot.slane %v2762, 3
      %v2799 = vrot.slane %v2763, 3
      %v2800 = vsel %vm2788, %v2798, %v2799
      %v2801 = vrot.slane %v2764, 3
      %v2802 = vrot.slane %v2765, 3
      %v2803 = vsel %vm2788, %v2801, %v2802
      %v2804 = vrot.slane %v2766, 3
      %v2805 = vrot.slane %v2767, 3
      %v2806 = vsel %vm2788, %v2804, %v2805
      %v2807 = vrot.slane %v2768, 3
      %v2808 = vrot.slane %v2769, 3
      %v2809 = vsel %vm2788, %v2807, %v2808
      %v2810 = vrot.slane %v2770, 3
      %v2811 = vrot.slane %v2771, 3
      %v2812 = vsel %vm2788, %v2810, %v2811
      %s2813 = scalar_lea.vmem %s4, 24
      %v2814 = vld [vmem:[%s2813] sm:$0xff]
      %v2815 = vsel %vm2317, %v2791, 0
      %v2817 = vsel %vm2317, %v2794, 0
      %v2819 = vsel %vm2317, %v2797, 0
      %v2821 = vsel %vm2317, %v2800, 0
      %v2823 = vsel %vm2317, %v2803, 0
      %v2825 = vsel %vm2317, %v2806, 0
      %v2827 = vsel %vm2317, %v2809, 0
      %v2829 = vsel %vm2317, %v2812, 0
      %2831 = vmatprep.subr.mxu0 0.0
      %2832 = vmatpush1.msra.mxu0 0.0
      %2833 = vmatprep.subr.mxu0 0.0
      %2834 = vmatpush1.msra.mxu0 0.0
      %2835 = vmatprep.subr.mxu0 0.0
      %2836 = vmatpush1.msra.mxu0 0.0
      %2837 = vmatprep.subr.mxu0 0.0
      %2838 = vmatpush1.msra.mxu0 0.0
      %2839 = vmatprep.subr.mxu0 0.0
      %2840 = vmatpush1.msra.mxu0 0.0
      %2841 = vmatprep.subr.mxu0 0.0
      %2842 = vmatpush1.msra.mxu0 0.0
      %2843 = vmatprep.subr.mxu0 0.0
      %2844 = vmatpush1.msra.mxu0 0.0
      %2845 = vmatprep.subr.mxu0 0.0
      %2846 = vmatpush1.msra.mxu0 0.0
      %2847 = vmatprep.subr.mxu0 0.0
      %2848 = vmatpush1.msra.mxu0 0.0
      %2849 = vmatprep.subr.mxu0 0.0
      %2850 = vmatpush1.msra.mxu0 0.0
      %2851 = vmatprep.subr.mxu0 0.0
      %2852 = vmatpush1.msra.mxu0 0.0
      %2853 = vmatprep.subr.mxu0 0.0
      %2854 = vmatpush1.msra.mxu0 0.0
      %2855 = vmatprep.subr.mxu0 0.0
      %2856 = vmatpush1.msra.mxu0 0.0
      %2857 = vmatprep.subr.mxu0 0.0
      %2858 = vmatpush1.msra.mxu0 0.0
      %2859 = vmatprep.subr.mxu0 0.0
      %2860 = vmatpush1.msra.mxu0 0.0
      %2861 = vmatprep.subr.mxu0 0.0
      %2862 = vmatpush1.msra.mxu0 %v2814
      %2863 = vmatprep.subr.mxu0 0.0
      %2864 = vmatpush2.msra.mxu0 0.0
      %2865 = vmatprep.subr.mxu0 0.0
      %2866 = vmatpush2.msra.mxu0 0.0
      %2867 = vmatprep.subr.mxu0 0.0
      %2868 = vmatpush2.msra.mxu0 0.0
      %2869 = vmatprep.subr.mxu0 0.0
      %2870 = vmatpush2.msra.mxu0 0.0
      %2871 = vmatprep.subr.mxu0 0.0
      %2872 = vmatpush2.msra.mxu0 0.0
      %2873 = vmatprep.subr.mxu0 0.0
      %2874 = vmatpush2.msra.mxu0 0.0
      %2875 = vmatprep.subr.mxu0 0.0
      %2876 = vmatpush2.msra.mxu0 0.0
      %2877 = vmatprep.subr.mxu0 0.0
      %2878 = vmatpush2.msra.mxu0 0.0
      %2879 = vmatprep.subr.mxu0 0.0
      %2880 = vmatpush2.msra.mxu0 0.0
      %2881 = vmatprep.subr.mxu0 0.0
      %2882 = vmatpush2.msra.mxu0 0.0
      %2883 = vmatprep.subr.mxu0 0.0
      %2884 = vmatpush2.msra.mxu0 0.0
      %2885 = vmatprep.subr.mxu0 0.0
      %2886 = vmatpush2.msra.mxu0 0.0
      %2887 = vmatprep.subr.mxu0 0.0
      %2888 = vmatpush2.msra.mxu0 0.0
      %2889 = vmatprep.subr.mxu0 0.0
      %2890 = vmatpush2.msra.mxu0 0.0
      %2891 = vmatprep.subr.mxu0 0.0
      %2892 = vmatpush2.msra.mxu0 0.0
      %2893 = vmatprep.subr.mxu0 0.0
      %2894 = vmatpush2.msra.mxu0 0.0
      %2895 = vmatprep.mubr.f32.mxu0 0.0
      %2896 = vmatmul.mubr.f32.gmra.mxu0 %v2815
      %v2897 = vpop.f32.mrf.mxu0
      %v2898 = vadd.f32 0.0, %v2897
      %v2899 = vpop.f32.mrf.mxu0
      %2900 = vmatprep.mubr.f32.mxu0 0.0
      %2901 = vmatmul.mubr.f32.gmra.mxu0 %v2817
      %v2902 = vpop.f32.mrf.mxu0
      %v2903 = vadd.f32 0.0, %v2902
      %v2904 = vpop.f32.mrf.mxu0
      %2905 = vmatprep.mubr.f32.mxu0 0.0
      %2906 = vmatmul.mubr.f32.gmra.mxu0 %v2819
      %v2907 = vpop.f32.mrf.mxu0
      %v2908 = vadd.f32 0.0, %v2907
      %v2909 = vpop.f32.mrf.mxu0
      %2910 = vmatprep.mubr.f32.mxu0 0.0
      %2911 = vmatmul.mubr.f32.gmra.mxu0 %v2821
      %v2912 = vpop.f32.mrf.mxu0
      %v2913 = vadd.f32 0.0, %v2912
      %v2914 = vpop.f32.mrf.mxu0
      %2915 = vmatprep.mubr.f32.mxu0 0.0
      %2916 = vmatmul.mubr.f32.gmra.mxu0 %v2823
      %v2917 = vpop.f32.mrf.mxu0
      %v2918 = vadd.f32 0.0, %v2917
      %v2919 = vpop.f32.mrf.mxu0
      %2920 = vmatprep.mubr.f32.mxu0 0.0
      %2921 = vmatmul.mubr.f32.gmra.mxu0 %v2825
      %v2922 = vpop.f32.mrf.mxu0
      %v2923 = vadd.f32 0.0, %v2922
      %v2924 = vpop.f32.mrf.mxu0
      %2925 = vmatprep.mubr.f32.mxu0 0.0
      %2926 = vmatmul.mubr.f32.gmra.mxu0 %v2827
      %v2927 = vpop.f32.mrf.mxu0
      %v2928 = vadd.f32 0.0, %v2927
      %v2929 = vpop.f32.mrf.mxu0
      %2930 = vmatprep.mubr.f32.mxu0 0.0
      %2931 = vmatmul.mubr.f32.gmra.mxu0 %v2829
      %v2932 = vpop.f32.mrf.mxu0
      %v2933 = vadd.f32 0.0, %v2932
      %v2934 = vpop.f32.mrf.mxu0
      %2935 = vdwg.mxu0
      %v2936 = vadd.f32 %v2748, %v2898
      %v2937 = vadd.f32 %v2749, %v2903
      %v2938 = vadd.f32 %v2750, %v2908
      %v2939 = vadd.f32 %v2751, %v2913
      %v2940 = vadd.f32 %v2752, %v2918
      %v2941 = vadd.f32 %v2753, %v2923
      %v2942 = vadd.f32 %v2754, %v2928
      %v2943 = vadd.f32 %v2755, %v2933
      %v2944 = vld [vmem:[#allocation2] sm:$0xf0]
      %v2945 = vld [vmem:[#allocation2 + $0x10] sm:$0xf]
      %v2946 = vld [vmem:[#allocation2 + $0x20] sm:$0xf0]
      %v2947 = vld [vmem:[#allocation2 + $0x30] sm:$0xf]
      %v2948 = vld [vmem:[#allocation2 + $0x40] sm:$0xf0]
      %v2949 = vld [vmem:[#allocation2 + $0x50] sm:$0xf]
      %v2950 = vld [vmem:[#allocation2 + $0x60] sm:$0xf0]
      %v2951 = vld [vmem:[#allocation2 + $0x70] sm:$0xf]
      %v2952 = vld [vmem:[#allocation2 + $0x80] sm:$0xf0]
      %v2953 = vld [vmem:[#allocation2 + $0x90] sm:$0xf]
      %v2954 = vld [vmem:[#allocation2 + $0xa0] sm:$0xf0]
      %v2955 = vld [vmem:[#allocation2 + $0xb0] sm:$0xf]
      %v2956 = vld [vmem:[#allocation2 + $0xc0] sm:$0xf0]
      %v2957 = vld [vmem:[#allocation2 + $0xd0] sm:$0xf]
      %v2958 = vld [vmem:[#allocation2 + $0xe0] sm:$0xf0]
      %v2959 = vld [vmem:[#allocation2 + $0xf0] sm:$0xf]
      %vm2976 = vcmask 1043456
      %v2977 = vrot.slane %v2944, 4
      %v2978 = vrot.slane %v2945, 4
      %v2979 = vsel %vm2976, %v2977, %v2978
      %v2980 = vrot.slane %v2946, 4
      %v2981 = vrot.slane %v2947, 4
      %v2982 = vsel %vm2976, %v2980, %v2981
      %v2983 = vrot.slane %v2948, 4
      %v2984 = vrot.slane %v2949, 4
      %v2985 = vsel %vm2976, %v2983, %v2984
      %v2986 = vrot.slane %v2950, 4
      %v2987 = vrot.slane %v2951, 4
      %v2988 = vsel %vm2976, %v2986, %v2987
      %v2989 = vrot.slane %v2952, 4
      %v2990 = vrot.slane %v2953, 4
      %v2991 = vsel %vm2976, %v2989, %v2990
      %v2992 = vrot.slane %v2954, 4
      %v2993 = vrot.slane %v2955, 4
      %v2994 = vsel %vm2976, %v2992, %v2993
      %v2995 = vrot.slane %v2956, 4
      %v2996 = vrot.slane %v2957, 4
      %v2997 = vsel %vm2976, %v2995, %v2996
      %v2998 = vrot.slane %v2958, 4
      %v2999 = vrot.slane %v2959, 4
      %v3000 = vsel %vm2976, %v2998, %v2999
      %s3001 = scalar_lea.vmem %s4, 32
      %v3002 = vld [vmem:[%s3001] sm:$0xff]
      %v3003 = vsel %vm2317, %v2979, 0
      %v3005 = vsel %vm2317, %v2982, 0
      %v3007 = vsel %vm2317, %v2985, 0
      %v3009 = vsel %vm2317, %v2988, 0
      %v3011 = vsel %vm2317, %v2991, 0
      %v3013 = vsel %vm2317, %v2994, 0
      %v3015 = vsel %vm2317, %v2997, 0
      %v3017 = vsel %vm2317, %v3000, 0
      %3019 = vmatprep.subr.mxu0 0.0
      %3020 = vmatpush1.msra.mxu0 0.0
      %3021 = vmatprep.subr.mxu0 0.0
      %3022 = vmatpush1.msra.mxu0 0.0
      %3023 = vmatprep.subr.mxu0 0.0
      %3024 = vmatpush1.msra.mxu0 0.0
      %3025 = vmatprep.subr.mxu0 0.0
      %3026 = vmatpush1.msra.mxu0 0.0
      %3027 = vmatprep.subr.mxu0 0.0
      %3028 = vmatpush1.msra.mxu0 0.0
      %3029 = vmatprep.subr.mxu0 0.0
      %3030 = vmatpush1.msra.mxu0 0.0
      %3031 = vmatprep.subr.mxu0 0.0
      %3032 = vmatpush1.msra.mxu0 0.0
      %3033 = vmatprep.subr.mxu0 0.0
      %3034 = vmatpush1.msra.mxu0 0.0
      %3035 = vmatprep.subr.mxu0 0.0
      %3036 = vmatpush1.msra.mxu0 0.0
      %3037 = vmatprep.subr.mxu0 0.0
      %3038 = vmatpush1.msra.mxu0 0.0
      %3039 = vmatprep.subr.mxu0 0.0
      %3040 = vmatpush1.msra.mxu0 0.0
      %3041 = vmatprep.subr.mxu0 0.0
      %3042 = vmatpush1.msra.mxu0 0.0
      %3043 = vmatprep.subr.mxu0 0.0
      %3044 = vmatpush1.msra.mxu0 0.0
      %3045 = vmatprep.subr.mxu0 0.0
      %3046 = vmatpush1.msra.mxu0 0.0
      %3047 = vmatprep.subr.mxu0 0.0
      %3048 = vmatpush1.msra.mxu0 0.0
      %3049 = vmatprep.subr.mxu0 0.0
      %3050 = vmatpush1.msra.mxu0 %v3002
      %3051 = vmatprep.subr.mxu0 0.0
      %3052 = vmatpush2.msra.mxu0 0.0
      %3053 = vmatprep.subr.mxu0 0.0
      %3054 = vmatpush2.msra.mxu0 0.0
      %3055 = vmatprep.subr.mxu0 0.0
      %3056 = vmatpush2.msra.mxu0 0.0
      %3057 = vmatprep.subr.mxu0 0.0
      %3058 = vmatpush2.msra.mxu0 0.0
      %3059 = vmatprep.subr.mxu0 0.0
      %3060 = vmatpush2.msra.mxu0 0.0
      %3061 = vmatprep.subr.mxu0 0.0
      %3062 = vmatpush2.msra.mxu0 0.0
      %3063 = vmatprep.subr.mxu0 0.0
      %3064 = vmatpush2.msra.mxu0 0.0
      %3065 = vmatprep.subr.mxu0 0.0
      %3066 = vmatpush2.msra.mxu0 0.0
      %3067 = vmatprep.subr.mxu0 0.0
      %3068 = vmatpush2.msra.mxu0 0.0
      %3069 = vmatprep.subr.mxu0 0.0
      %3070 = vmatpush2.msra.mxu0 0.0
      %3071 = vmatprep.subr.mxu0 0.0
      %3072 = vmatpush2.msra.mxu0 0.0
      %3073 = vmatprep.subr.mxu0 0.0
      %3074 = vmatpush2.msra.mxu0 0.0
      %3075 = vmatprep.subr.mxu0 0.0
      %3076 = vmatpush2.msra.mxu0 0.0
      %3077 = vmatprep.subr.mxu0 0.0
      %3078 = vmatpush2.msra.mxu0 0.0
      %3079 = vmatprep.subr.mxu0 0.0
      %3080 = vmatpush2.msra.mxu0 0.0
      %3081 = vmatprep.subr.mxu0 0.0
      %3082 = vmatpush2.msra.mxu0 0.0
      %3083 = vmatprep.mubr.f32.mxu0 0.0
      %3084 = vmatmul.mubr.f32.gmra.mxu0 %v3003
      %v3085 = vpop.f32.mrf.mxu0
      %v3086 = vadd.f32 0.0, %v3085
      %v3087 = vpop.f32.mrf.mxu0
      %3088 = vmatprep.mubr.f32.mxu0 0.0
      %3089 = vmatmul.mubr.f32.gmra.mxu0 %v3005
      %v3090 = vpop.f32.mrf.mxu0
      %v3091 = vadd.f32 0.0, %v3090
      %v3092 = vpop.f32.mrf.mxu0
      %3093 = vmatprep.mubr.f32.mxu0 0.0
      %3094 = vmatmul.mubr.f32.gmra.mxu0 %v3007
      %v3095 = vpop.f32.mrf.mxu0
      %v3096 = vadd.f32 0.0, %v3095
      %v3097 = vpop.f32.mrf.mxu0
      %3098 = vmatprep.mubr.f32.mxu0 0.0
      %3099 = vmatmul.mubr.f32.gmra.mxu0 %v3009
      %v3100 = vpop.f32.mrf.mxu0
      %v3101 = vadd.f32 0.0, %v3100
      %v3102 = vpop.f32.mrf.mxu0
      %3103 = vmatprep.mubr.f32.mxu0 0.0
      %3104 = vmatmul.mubr.f32.gmra.mxu0 %v3011
      %v3105 = vpop.f32.mrf.mxu0
      %v3106 = vadd.f32 0.0, %v3105
      %v3107 = vpop.f32.mrf.mxu0
      %3108 = vmatprep.mubr.f32.mxu0 0.0
      %3109 = vmatmul.mubr.f32.gmra.mxu0 %v3013
      %v3110 = vpop.f32.mrf.mxu0
      %v3111 = vadd.f32 0.0, %v3110
      %v3112 = vpop.f32.mrf.mxu0
      %3113 = vmatprep.mubr.f32.mxu0 0.0
      %3114 = vmatmul.mubr.f32.gmra.mxu0 %v3015
      %v3115 = vpop.f32.mrf.mxu0
      %v3116 = vadd.f32 0.0, %v3115
      %v3117 = vpop.f32.mrf.mxu0
      %3118 = vmatprep.mubr.f32.mxu0 0.0
      %3119 = vmatmul.mubr.f32.gmra.mxu0 %v3017
      %v3120 = vpop.f32.mrf.mxu0
      %v3121 = vadd.f32 0.0, %v3120
      %v3122 = vpop.f32.mrf.mxu0
      %3123 = vdwg.mxu0
      %v3124 = vadd.f32 %v2936, %v3086
      %v3125 = vadd.f32 %v2937, %v3091
      %v3126 = vadd.f32 %v2938, %v3096
      %v3127 = vadd.f32 %v2939, %v3101
      %v3128 = vadd.f32 %v2940, %v3106
      %v3129 = vadd.f32 %v2941, %v3111
      %v3130 = vadd.f32 %v2942, %v3116
      %v3131 = vadd.f32 %v2943, %v3121
      %v3132 = vld [vmem:[#allocation2] sm:$0xe0]
      %v3133 = vld [vmem:[#allocation2 + $0x10] sm:$0x1f]
      %v3134 = vld [vmem:[#allocation2 + $0x20] sm:$0xe0]
      %v3135 = vld [vmem:[#allocation2 + $0x30] sm:$0x1f]
      %v3136 = vld [vmem:[#allocation2 + $0x40] sm:$0xe0]
      %v3137 = vld [vmem:[#allocation2 + $0x50] sm:$0x1f]
      %v3138 = vld [vmem:[#allocation2 + $0x60] sm:$0xe0]
      %v3139 = vld [vmem:[#allocation2 + $0x70] sm:$0x1f]
      %v3140 = vld [vmem:[#allocation2 + $0x80] sm:$0xe0]
      %v3141 = vld [vmem:[#allocation2 + $0x90] sm:$0x1f]
      %v3142 = vld [vmem:[#allocation2 + $0xa0] sm:$0xe0]
      %v3143 = vld [vmem:[#allocation2 + $0xb0] sm:$0x1f]
      %v3144 = vld [vmem:[#allocation2 + $0xc0] sm:$0xe0]
      %v3145 = vld [vmem:[#allocation2 + $0xd0] sm:$0x1f]
      %v3146 = vld [vmem:[#allocation2 + $0xe0] sm:$0xe0]
      %v3147 = vld [vmem:[#allocation2 + $0xf0] sm:$0x1f]
      %vm3164 = vcmask 1042432
      %v3165 = vrot.slane %v3132, 5
      %v3166 = vrot.slane %v3133, 5
      %v3167 = vsel %vm3164, %v3165, %v3166
      %v3168 = vrot.slane %v3134, 5
      %v3169 = vrot.slane %v3135, 5
      %v3170 = vsel %vm3164, %v3168, %v3169
      %v3171 = vrot.slane %v3136, 5
      %v3172 = vrot.slane %v3137, 5
      %v3173 = vsel %vm3164, %v3171, %v3172
      %v3174 = vrot.slane %v3138, 5
      %v3175 = vrot.slane %v3139, 5
      %v3176 = vsel %vm3164, %v3174, %v3175
      %v3177 = vrot.slane %v3140, 5
      %v3178 = vrot.slane %v3141, 5
      %v3179 = vsel %vm3164, %v3177, %v3178
      %v3180 = vrot.slane %v3142, 5
      %v3181 = vrot.slane %v3143, 5
      %v3182 = vsel %vm3164, %v3180, %v3181
      %v3183 = vrot.slane %v3144, 5
      %v3184 = vrot.slane %v3145, 5
      %v3185 = vsel %vm3164, %v3183, %v3184
      %v3186 = vrot.slane %v3146, 5
      %v3187 = vrot.slane %v3147, 5
      %v3188 = vsel %vm3164, %v3186, %v3187
      %s3189 = scalar_lea.vmem %s4, 40
      %v3190 = vld [vmem:[%s3189] sm:$0xff]
      %v3191 = vsel %vm2317, %v3167, 0
      %v3193 = vsel %vm2317, %v3170, 0
      %v3195 = vsel %vm2317, %v3173, 0
      %v3197 = vsel %vm2317, %v3176, 0
      %v3199 = vsel %vm2317, %v3179, 0
      %v3201 = vsel %vm2317, %v3182, 0
      %v3203 = vsel %vm2317, %v3185, 0
      %v3205 = vsel %vm2317, %v3188, 0
      %3207 = vmatprep.subr.mxu0 0.0
      %3208 = vmatpush1.msra.mxu0 0.0
      %3209 = vmatprep.subr.mxu0 0.0
      %3210 = vmatpush1.msra.mxu0 0.0
      %3211 = vmatprep.subr.mxu0 0.0
      %3212 = vmatpush1.msra.mxu0 0.0
      %3213 = vmatprep.subr.mxu0 0.0
      %3214 = vmatpush1.msra.mxu0 0.0
      %3215 = vmatprep.subr.mxu0 0.0
      %3216 = vmatpush1.msra.mxu0 0.0
      %3217 = vmatprep.subr.mxu0 0.0
      %3218 = vmatpush1.msra.mxu0 0.0
      %3219 = vmatprep.subr.mxu0 0.0
      %3220 = vmatpush1.msra.mxu0 0.0
      %3221 = vmatprep.subr.mxu0 0.0
      %3222 = vmatpush1.msra.mxu0 0.0
      %3223 = vmatprep.subr.mxu0 0.0
      %3224 = vmatpush1.msra.mxu0 0.0
      %3225 = vmatprep.subr.mxu0 0.0
      %3226 = vmatpush1.msra.mxu0 0.0
      %3227 = vmatprep.subr.mxu0 0.0
      %3228 = vmatpush1.msra.mxu0 0.0
      %3229 = vmatprep.subr.mxu0 0.0
      %3230 = vmatpush1.msra.mxu0 0.0
      %3231 = vmatprep.subr.mxu0 0.0
      %3232 = vmatpush1.msra.mxu0 0.0
      %3233 = vmatprep.subr.mxu0 0.0
      %3234 = vmatpush1.msra.mxu0 0.0
      %3235 = vmatprep.subr.mxu0 0.0
      %3236 = vmatpush1.msra.mxu0 0.0
      %3237 = vmatprep.subr.mxu0 0.0
      %3238 = vmatpush1.msra.mxu0 %v3190
      %3239 = vmatprep.subr.mxu0 0.0
      %3240 = vmatpush2.msra.mxu0 0.0
      %3241 = vmatprep.subr.mxu0 0.0
      %3242 = vmatpush2.msra.mxu0 0.0
      %3243 = vmatprep.subr.mxu0 0.0
      %3244 = vmatpush2.msra.mxu0 0.0
      %3245 = vmatprep.subr.mxu0 0.0
      %3246 = vmatpush2.msra.mxu0 0.0
      %3247 = vmatprep.subr.mxu0 0.0
      %3248 = vmatpush2.msra.mxu0 0.0
      %3249 = vmatprep.subr.mxu0 0.0
      %3250 = vmatpush2.msra.mxu0 0.0
      %3251 = vmatprep.subr.mxu0 0.0
      %3252 = vmatpush2.msra.mxu0 0.0
      %3253 = vmatprep.subr.mxu0 0.0
      %3254 = vmatpush2.msra.mxu0 0.0
      %3255 = vmatprep.subr.mxu0 0.0
      %3256 = vmatpush2.msra.mxu0 0.0
      %3257 = vmatprep.subr.mxu0 0.0
      %3258 = vmatpush2.msra.mxu0 0.0
      %3259 = vmatprep.subr.mxu0 0.0
      %3260 = vmatpush2.msra.mxu0 0.0
      %3261 = vmatprep.subr.mxu0 0.0
      %3262 = vmatpush2.msra.mxu0 0.0
      %3263 = vmatprep.subr.mxu0 0.0
      %3264 = vmatpush2.msra.mxu0 0.0
      %3265 = vmatprep.subr.mxu0 0.0
      %3266 = vmatpush2.msra.mxu0 0.0
      %3267 = vmatprep.subr.mxu0 0.0
      %3268 = vmatpush2.msra.mxu0 0.0
      %3269 = vmatprep.subr.mxu0 0.0
      %3270 = vmatpush2.msra.mxu0 0.0
      %3271 = vmatprep.mubr.f32.mxu0 0.0
      %3272 = vmatmul.mubr.f32.gmra.mxu0 %v3191
      %v3273 = vpop.f32.mrf.mxu0
      %v3274 = vadd.f32 0.0, %v3273
      %v3275 = vpop.f32.mrf.mxu0
      %3276 = vmatprep.mubr.f32.mxu0 0.0
      %3277 = vmatmul.mubr.f32.gmra.mxu0 %v3193
      %v3278 = vpop.f32.mrf.mxu0
      %v3279 = vadd.f32 0.0, %v3278
      %v3280 = vpop.f32.mrf.mxu0
      %3281 = vmatprep.mubr.f32.mxu0 0.0
      %3282 = vmatmul.mubr.f32.gmra.mxu0 %v3195
      %v3283 = vpop.f32.mrf.mxu0
      %v3284 = vadd.f32 0.0, %v3283
      %v3285 = vpop.f32.mrf.mxu0
      %3286 = vmatprep.mubr.f32.mxu0 0.0
      %3287 = vmatmul.mubr.f32.gmra.mxu0 %v3197
      %v3288 = vpop.f32.mrf.mxu0
      %v3289 = vadd.f32 0.0, %v3288
      %v3290 = vpop.f32.mrf.mxu0
      %3291 = vmatprep.mubr.f32.mxu0 0.0
      %3292 = vmatmul.mubr.f32.gmra.mxu0 %v3199
      %v3293 = vpop.f32.mrf.mxu0
      %v3294 = vadd.f32 0.0, %v3293
      %v3295 = vpop.f32.mrf.mxu0
      %3296 = vmatprep.mubr.f32.mxu0 0.0
      %3297 = vmatmul.mubr.f32.gmra.mxu0 %v3201
      %v3298 = vpop.f32.mrf.mxu0
      %v3299 = vadd.f32 0.0, %v3298
      %v3300 = vpop.f32.mrf.mxu0
      %3301 = vmatprep.mubr.f32.mxu0 0.0
      %3302 = vmatmul.mubr.f32.gmra.mxu0 %v3203
      %v3303 = vpop.f32.mrf.mxu0
      %v3304 = vadd.f32 0.0, %v3303
      %v3305 = vpop.f32.mrf.mxu0
      %3306 = vmatprep.mubr.f32.mxu0 0.0
      %3307 = vmatmul.mubr.f32.gmra.mxu0 %v3205
      %v3308 = vpop.f32.mrf.mxu0
      %v3309 = vadd.f32 0.0, %v3308
      %v3310 = vpop.f32.mrf.mxu0
      %3311 = vdwg.mxu0
      %v3312 = vadd.f32 %v3124, %v3274
      %v3313 = vadd.f32 %v3125, %v3279
      %v3314 = vadd.f32 %v3126, %v3284
      %v3315 = vadd.f32 %v3127, %v3289
      %v3316 = vadd.f32 %v3128, %v3294
      %v3317 = vadd.f32 %v3129, %v3299
      %v3318 = vadd.f32 %v3130, %v3304
      %v3319 = vadd.f32 %v3131, %v3309
      %v3320 = vld [vmem:[#allocation2] sm:$0xc0]
      %v3321 = vld [vmem:[#allocation2 + $0x10] sm:$0x3f]
      %v3322 = vld [vmem:[#allocation2 + $0x20] sm:$0xc0]
      %v3323 = vld [vmem:[#allocation2 + $0x30] sm:$0x3f]
      %v3324 = vld [vmem:[#allocation2 + $0x40] sm:$0xc0]
      %v3325 = vld [vmem:[#allocation2 + $0x50] sm:$0x3f]
      %v3326 = vld [vmem:[#allocation2 + $0x60] sm:$0xc0]
      %v3327 = vld [vmem:[#allocation2 + $0x70] sm:$0x3f]
      %v3328 = vld [vmem:[#allocation2 + $0x80] sm:$0xc0]
      %v3329 = vld [vmem:[#allocation2 + $0x90] sm:$0x3f]
      %v3330 = vld [vmem:[#allocation2 + $0xa0] sm:$0xc0]
      %v3331 = vld [vmem:[#allocation2 + $0xb0] sm:$0x3f]
      %v3332 = vld [vmem:[#allocation2 + $0xc0] sm:$0xc0]
      %v3333 = vld [vmem:[#allocation2 + $0xd0] sm:$0x3f]
      %v3334 = vld [vmem:[#allocation2 + $0xe0] sm:$0xc0]
      %v3335 = vld [vmem:[#allocation2 + $0xf0] sm:$0x3f]
      %vm3352 = vcmask 1041408
      %v3353 = vrot.slane %v3320, 6
      %v3354 = vrot.slane %v3321, 6
      %v3355 = vsel %vm3352, %v3353, %v3354
      %v3356 = vrot.slane %v3322, 6
      %v3357 = vrot.slane %v3323, 6
      %v3358 = vsel %vm3352, %v3356, %v3357
      %v3359 = vrot.slane %v3324, 6
      %v3360 = vrot.slane %v3325, 6
      %v3361 = vsel %vm3352, %v3359, %v3360
      %v3362 = vrot.slane %v3326, 6
      %v3363 = vrot.slane %v3327, 6
      %v3364 = vsel %vm3352, %v3362, %v3363
      %v3365 = vrot.slane %v3328, 6
      %v3366 = vrot.slane %v3329, 6
      %v3367 = vsel %vm3352, %v3365, %v3366
      %v3368 = vrot.slane %v3330, 6
      %v3369 = vrot.slane %v3331, 6
      %v3370 = vsel %vm3352, %v3368, %v3369
      %v3371 = vrot.slane %v3332, 6
      %v3372 = vrot.slane %v3333, 6
      %v3373 = vsel %vm3352, %v3371, %v3372
      %v3374 = vrot.slane %v3334, 6
      %v3375 = vrot.slane %v3335, 6
      %v3376 = vsel %vm3352, %v3374, %v3375
      %s3377 = scalar_lea.vmem %s4, 48
      %v3378 = vld [vmem:[%s3377] sm:$0xff]
      %v3379 = vsel %vm2317, %v3355, 0
      %v3381 = vsel %vm2317, %v3358, 0
      %v3383 = vsel %vm2317, %v3361, 0
      %v3385 = vsel %vm2317, %v3364, 0
      %v3387 = vsel %vm2317, %v3367, 0
      %v3389 = vsel %vm2317, %v3370, 0
      %v3391 = vsel %vm2317, %v3373, 0
      %v3393 = vsel %vm2317, %v3376, 0
      %3395 = vmatprep.subr.mxu0 0.0
      %3396 = vmatpush1.msra.mxu0 0.0
      %3397 = vmatprep.subr.mxu0 0.0
      %3398 = vmatpush1.msra.mxu0 0.0
      %3399 = vmatprep.subr.mxu0 0.0
      %3400 = vmatpush1.msra.mxu0 0.0
      %3401 = vmatprep.subr.mxu0 0.0
      %3402 = vmatpush1.msra.mxu0 0.0
      %3403 = vmatprep.subr.mxu0 0.0
      %3404 = vmatpush1.msra.mxu0 0.0
      %3405 = vmatprep.subr.mxu0 0.0
      %3406 = vmatpush1.msra.mxu0 0.0
      %3407 = vmatprep.subr.mxu0 0.0
      %3408 = vmatpush1.msra.mxu0 0.0
      %3409 = vmatprep.subr.mxu0 0.0
      %3410 = vmatpush1.msra.mxu0 0.0
      %3411 = vmatprep.subr.mxu0 0.0
      %3412 = vmatpush1.msra.mxu0 0.0
      %3413 = vmatprep.subr.mxu0 0.0
      %3414 = vmatpush1.msra.mxu0 0.0
      %3415 = vmatprep.subr.mxu0 0.0
      %3416 = vmatpush1.msra.mxu0 0.0
      %3417 = vmatprep.subr.mxu0 0.0
      %3418 = vmatpush1.msra.mxu0 0.0
      %3419 = vmatprep.subr.mxu0 0.0
      %3420 = vmatpush1.msra.mxu0 0.0
      %3421 = vmatprep.subr.mxu0 0.0
      %3422 = vmatpush1.msra.mxu0 0.0
      %3423 = vmatprep.subr.mxu0 0.0
      %3424 = vmatpush1.msra.mxu0 0.0
      %3425 = vmatprep.subr.mxu0 0.0
      %3426 = vmatpush1.msra.mxu0 %v3378
      %3427 = vmatprep.subr.mxu0 0.0
      %3428 = vmatpush2.msra.mxu0 0.0
      %3429 = vmatprep.subr.mxu0 0.0
      %3430 = vmatpush2.msra.mxu0 0.0
      %3431 = vmatprep.subr.mxu0 0.0
      %3432 = vmatpush2.msra.mxu0 0.0
      %3433 = vmatprep.subr.mxu0 0.0
      %3434 = vmatpush2.msra.mxu0 0.0
      %3435 = vmatprep.subr.mxu0 0.0
      %3436 = vmatpush2.msra.mxu0 0.0
      %3437 = vmatprep.subr.mxu0 0.0
      %3438 = vmatpush2.msra.mxu0 0.0
      %3439 = vmatprep.subr.mxu0 0.0
      %3440 = vmatpush2.msra.mxu0 0.0
      %3441 = vmatprep.subr.mxu0 0.0
      %3442 = vmatpush2.msra.mxu0 0.0
      %3443 = vmatprep.subr.mxu0 0.0
      %3444 = vmatpush2.msra.mxu0 0.0
      %3445 = vmatprep.subr.mxu0 0.0
      %3446 = vmatpush2.msra.mxu0 0.0
      %3447 = vmatprep.subr.mxu0 0.0
      %3448 = vmatpush2.msra.mxu0 0.0
      %3449 = vmatprep.subr.mxu0 0.0
      %3450 = vmatpush2.msra.mxu0 0.0
      %3451 = vmatprep.subr.mxu0 0.0
      %3452 = vmatpush2.msra.mxu0 0.0
      %3453 = vmatprep.subr.mxu0 0.0
      %3454 = vmatpush2.msra.mxu0 0.0
      %3455 = vmatprep.subr.mxu0 0.0
      %3456 = vmatpush2.msra.mxu0 0.0
      %3457 = vmatprep.subr.mxu0 0.0
      %3458 = vmatpush2.msra.mxu0 0.0
      %3459 = vmatprep.mubr.f32.mxu0 0.0
      %3460 = vmatmul.mubr.f32.gmra.mxu0 %v3379
      %v3461 = vpop.f32.mrf.mxu0
      %v3462 = vadd.f32 0.0, %v3461
      %v3463 = vpop.f32.mrf.mxu0
      %3464 = vmatprep.mubr.f32.mxu0 0.0
      %3465 = vmatmul.mubr.f32.gmra.mxu0 %v3381
      %v3466 = vpop.f32.mrf.mxu0
      %v3467 = vadd.f32 0.0, %v3466
      %v3468 = vpop.f32.mrf.mxu0
      %3469 = vmatprep.mubr.f32.mxu0 0.0
      %3470 = vmatmul.mubr.f32.gmra.mxu0 %v3383
      %v3471 = vpop.f32.mrf.mxu0
      %v3472 = vadd.f32 0.0, %v3471
      %v3473 = vpop.f32.mrf.mxu0
      %3474 = vmatprep.mubr.f32.mxu0 0.0
      %3475 = vmatmul.mubr.f32.gmra.mxu0 %v3385
      %v3476 = vpop.f32.mrf.mxu0
      %v3477 = vadd.f32 0.0, %v3476
      %v3478 = vpop.f32.mrf.mxu0
      %3479 = vmatprep.mubr.f32.mxu0 0.0
      %3480 = vmatmul.mubr.f32.gmra.mxu0 %v3387
      %v3481 = vpop.f32.mrf.mxu0
      %v3482 = vadd.f32 0.0, %v3481
      %v3483 = vpop.f32.mrf.mxu0
      %3484 = vmatprep.mubr.f32.mxu0 0.0
      %3485 = vmatmul.mubr.f32.gmra.mxu0 %v3389
      %v3486 = vpop.f32.mrf.mxu0
      %v3487 = vadd.f32 0.0, %v3486
      %v3488 = vpop.f32.mrf.mxu0
      %3489 = vmatprep.mubr.f32.mxu0 0.0
      %3490 = vmatmul.mubr.f32.gmra.mxu0 %v3391
      %v3491 = vpop.f32.mrf.mxu0
      %v3492 = vadd.f32 0.0, %v3491
      %v3493 = vpop.f32.mrf.mxu0
      %3494 = vmatprep.mubr.f32.mxu0 0.0
      %3495 = vmatmul.mubr.f32.gmra.mxu0 %v3393
      %v3496 = vpop.f32.mrf.mxu0
      %v3497 = vadd.f32 0.0, %v3496
      %v3498 = vpop.f32.mrf.mxu0
      %3499 = vdwg.mxu0
      %v3500 = vadd.f32 %v3312, %v3462
      %v3501 = vadd.f32 %v3313, %v3467
      %v3502 = vadd.f32 %v3314, %v3472
      %v3503 = vadd.f32 %v3315, %v3477
      %v3504 = vadd.f32 %v3316, %v3482
      %v3505 = vadd.f32 %v3317, %v3487
      %v3506 = vadd.f32 %v3318, %v3492
      %v3507 = vadd.f32 %v3319, %v3497
      %v3508 = vmax.f32 %v3500, 0.0
      %v3509 = vmax.f32 %v3501, 0.0
      %v3510 = vmax.f32 %v3502, 0.0
      %v3511 = vmax.f32 %v3503, 0.0
      %v3512 = vmax.f32 %v3504, 0.0
      %v3513 = vmax.f32 %v3505, 0.0
      %v3514 = vmax.f32 %v3506, 0.0
      %v3515 = vmax.f32 %v3507, 0.0
      %v3516 = vld [vmem:[%s5] sm:$0xff]
      %v3518 = vsel %vm2317, %v3508, 0
      %v3521 = vsel %vm2317, %v3509, 0
      %v3524 = vsel %vm2317, %v3510, 0
      %v3527 = vsel %vm2317, %v3511, 0
      %v3530 = vsel %vm2317, %v3512, 0
      %v3533 = vsel %vm2317, %v3513, 0
      %v3536 = vsel %vm2317, %v3514, 0
      %v3539 = vsel %vm2317, %v3515, 0
      %3541 = vmatprep.subr.mxu0 0.0
      %3542 = vmatpush1.msra.mxu0 0.0
      %3543 = vmatprep.subr.mxu0 0.0
      %3544 = vmatpush1.msra.mxu0 0.0
      %3545 = vmatprep.subr.mxu0 0.0
      %3546 = vmatpush1.msra.mxu0 0.0
      %3547 = vmatprep.subr.mxu0 0.0
      %3548 = vmatpush1.msra.mxu0 0.0
      %3549 = vmatprep.subr.mxu0 0.0
      %3550 = vmatpush1.msra.mxu0 0.0
      %3551 = vmatprep.subr.mxu0 0.0
      %3552 = vmatpush1.msra.mxu0 0.0
      %3553 = vmatprep.subr.mxu0 0.0
      %3554 = vmatpush1.msra.mxu0 0.0
      %3555 = vmatprep.subr.mxu0 0.0
      %3556 = vmatpush1.msra.mxu0 0.0
      %3557 = vmatprep.subr.mxu0 0.0
      %3558 = vmatpush1.msra.mxu0 0.0
      %3559 = vmatprep.subr.mxu0 0.0
      %3560 = vmatpush1.msra.mxu0 0.0
      %3561 = vmatprep.subr.mxu0 0.0
      %3562 = vmatpush1.msra.mxu0 0.0
      %3563 = vmatprep.subr.mxu0 0.0
      %3564 = vmatpush1.msra.mxu0 0.0
      %3565 = vmatprep.subr.mxu0 0.0
      %3566 = vmatpush1.msra.mxu0 0.0
      %3567 = vmatprep.subr.mxu0 0.0
      %3568 = vmatpush1.msra.mxu0 0.0
      %3569 = vmatprep.subr.mxu0 0.0
      %3570 = vmatpush1.msra.mxu0 0.0
      %3571 = vmatprep.subr.mxu0 0.0
      %3572 = vmatpush1.msra.mxu0 %v3516
      %3573 = vmatprep.subr.mxu0 0.0
      %3574 = vmatpush2.msra.mxu0 0.0
      %3575 = vmatprep.subr.mxu0 0.0
      %3576 = vmatpush2.msra.mxu0 0.0
      %3577 = vmatprep.subr.mxu0 0.0
      %3578 = vmatpush2.msra.mxu0 0.0
      %3579 = vmatprep.subr.mxu0 0.0
      %3580 = vmatpush2.msra.mxu0 0.0
      %3581 = vmatprep.subr.mxu0 0.0
      %3582 = vmatpush2.msra.mxu0 0.0
      %3583 = vmatprep.subr.mxu0 0.0
      %3584 = vmatpush2.msra.mxu0 0.0
      %3585 = vmatprep.subr.mxu0 0.0
      %3586 = vmatpush2.msra.mxu0 0.0
      %3587 = vmatprep.subr.mxu0 0.0
      %3588 = vmatpush2.msra.mxu0 0.0
      %3589 = vmatprep.subr.mxu0 0.0
      %3590 = vmatpush2.msra.mxu0 0.0
      %3591 = vmatprep.subr.mxu0 0.0
      %3592 = vmatpush2.msra.mxu0 0.0
      %3593 = vmatprep.subr.mxu0 0.0
      %3594 = vmatpush2.msra.mxu0 0.0
      %3595 = vmatprep.subr.mxu0 0.0
      %3596 = vmatpush2.msra.mxu0 0.0
      %3597 = vmatprep.subr.mxu0 0.0
      %3598 = vmatpush2.msra.mxu0 0.0
      %3599 = vmatprep.subr.mxu0 0.0
      %3600 = vmatpush2.msra.mxu0 0.0
      %3601 = vmatprep.subr.mxu0 0.0
      %3602 = vmatpush2.msra.mxu0 0.0
      %3603 = vmatprep.subr.mxu0 0.0
      %3604 = vmatpush2.msra.mxu0 0.0
      %3605 = vmatprep.mubr.f32.mxu0 0.0
      %3606 = vmatmul.mubr.f32.gmra.mxu0 %v3518
      %v3607 = vpop.f32.mrf.mxu0
      %v3608 = vadd.f32 0.0, %v3607
      %v3609 = vpop.f32.mrf.mxu0
      %3610 = vmatprep.mubr.f32.mxu0 0.0
      %3611 = vmatmul.mubr.f32.gmra.mxu0 %v3521
      %v3612 = vpop.f32.mrf.mxu0
      %v3613 = vadd.f32 0.0, %v3612
      %v3614 = vpop.f32.mrf.mxu0
      %3615 = vmatprep.mubr.f32.mxu0 0.0
      %3616 = vmatmul.mubr.f32.gmra.mxu0 %v3524
      %v3617 = vpop.f32.mrf.mxu0
      %v3618 = vadd.f32 0.0, %v3617
      %v3619 = vpop.f32.mrf.mxu0
      %3620 = vmatprep.mubr.f32.mxu0 0.0
      %3621 = vmatmul.mubr.f32.gmra.mxu0 %v3527
      %v3622 = vpop.f32.mrf.mxu0
      %v3623 = vadd.f32 0.0, %v3622
      %v3624 = vpop.f32.mrf.mxu0
      %3625 = vmatprep.mubr.f32.mxu0 0.0
      %3626 = vmatmul.mubr.f32.gmra.mxu0 %v3530
      %v3627 = vpop.f32.mrf.mxu0
      %v3628 = vadd.f32 0.0, %v3627
      %v3629 = vpop.f32.mrf.mxu0
      %3630 = vmatprep.mubr.f32.mxu0 0.0
      %3631 = vmatmul.mubr.f32.gmra.mxu0 %v3533
      %v3632 = vpop.f32.mrf.mxu0
      %v3633 = vadd.f32 0.0, %v3632
      %v3634 = vpop.f32.mrf.mxu0
      %3635 = vmatprep.mubr.f32.mxu0 0.0
      %3636 = vmatmul.mubr.f32.gmra.mxu0 %v3536
      %v3637 = vpop.f32.mrf.mxu0
      %v3638 = vadd.f32 0.0, %v3637
      %v3639 = vpop.f32.mrf.mxu0
      %3640 = vmatprep.mubr.f32.mxu0 0.0
      %3641 = vmatmul.mubr.f32.gmra.mxu0 %v3539
      %v3642 = vpop.f32.mrf.mxu0
      %v3643 = vadd.f32 0.0, %v3642
      %v3644 = vpop.f32.mrf.mxu0
      %3645 = vdwg.mxu0
      %v3646 = vadd.f32 %v776, %v3608
      %v3647 = vadd.f32 %v781, %v3613
      %v3648 = vadd.f32 %v786, %v3618
      %v3649 = vadd.f32 %v791, %v3623
      %v3650 = vadd.f32 %v796, %v3628
      %v3651 = vadd.f32 %v801, %v3633
      %v3652 = vadd.f32 %v806, %v3638
      %v3653 = vadd.f32 %v811, %v3643
      %v3654 = vld [vmem:[%s381 + $0x18] sm:$0xff]
      %v3655 = vld [vmem:[%s381 + $0x20] sm:$0xff]
      %v3656 = vld [vmem:[%s381 + $0x48] sm:$0xff]
      %v3657 = vld [vmem:[%s381 + $0x50] sm:$0xff]
      %v3658 = vld [vmem:[%s381 + $0x78] sm:$0xff]
      %v3659 = vld [vmem:[%s381 + $0x80] sm:$0xff]
      %v3660 = vld [vmem:[%s381 + $0xa8] sm:$0xff]
      %v3661 = vld [vmem:[%s381 + $0xb0] sm:$0xff]
      %v3662 = vld [vmem:[%s381 + $0xd8] sm:$0xff]
      %v3663 = vld [vmem:[%s381 + $0xe0] sm:$0xff]
      %v3664 = vld [vmem:[%s381 + $0x108] sm:$0xff]
      %v3665 = vld [vmem:[%s381 + $0x110] sm:$0xff]
      %v3666 = vld [vmem:[%s381 + $0x138] sm:$0xff]
      %v3667 = vld [vmem:[%s381 + $0x140] sm:$0xff]
      %v3668 = vld [vmem:[%s381 + $0x168] sm:$0xff]
      %v3669 = vld [vmem:[%s381 + $0x170] sm:$0xff]
      %v3670 = vmax.f32 %v3654, 0.0
      %v3671 = vmax.f32 %v3655, 0.0
      %v3672 = vmax.f32 %v3656, 0.0
      %v3673 = vmax.f32 %v3657, 0.0
      %v3674 = vmax.f32 %v3658, 0.0
      %v3675 = vmax.f32 %v3659, 0.0
      %v3676 = vmax.f32 %v3660, 0.0
      %v3677 = vmax.f32 %v3661, 0.0
      %v3678 = vmax.f32 %v3662, 0.0
      %v3679 = vmax.f32 %v3663, 0.0
      %v3680 = vmax.f32 %v3664, 0.0
      %v3681 = vmax.f32 %v3665, 0.0
      %v3682 = vmax.f32 %v3666, 0.0
      %v3683 = vmax.f32 %v3667, 0.0
      %v3684 = vmax.f32 %v3668, 0.0
      %v3685 = vmax.f32 %v3669, 0.0
      %3686 = vst [vmem:[#allocation2] sm:$0x7] 0.0
      %vm3687 = vcmask 518144
      %3688 = vst.msk [vmem:[#allocation2 + $0x8] sm:$0x7] %vm3687, 0.0
      %3689 = vst [vmem:[#allocation2 + $0x20] sm:$0x7] 0.0
      %3690 = vst.msk [vmem:[#allocation2 + $0x28] sm:$0x7] %vm3687, 0.0
      %3691 = vst [vmem:[#allocation2 + $0x40] sm:$0x7] 0.0
      %3692 = vst.msk [vmem:[#allocation2 + $0x48] sm:$0x7] %vm3687, 0.0
      %3693 = vst [vmem:[#allocation2 + $0x60] sm:$0x7] 0.0
      %3694 = vst.msk [vmem:[#allocation2 + $0x68] sm:$0x7] %vm3687, 0.0
      %3695 = vst [vmem:[#allocation2 + $0x80] sm:$0x7] 0.0
      %3696 = vst.msk [vmem:[#allocation2 + $0x88] sm:$0x7] %vm3687, 0.0
      %3697 = vst [vmem:[#allocation2 + $0xa0] sm:$0x7] 0.0
      %3698 = vst.msk [vmem:[#allocation2 + $0xa8] sm:$0x7] %vm3687, 0.0
      %3699 = vst [vmem:[#allocation2 + $0xc0] sm:$0x7] 0.0
      %3700 = vst.msk [vmem:[#allocation2 + $0xc8] sm:$0x7] %vm3687, 0.0
      %3701 = vst [vmem:[#allocation2 + $0xe0] sm:$0x7] 0.0
      %3702 = vst.msk [vmem:[#allocation2 + $0xe8] sm:$0x7] %vm3687, 0.0
      %3703 = vst [vmem:[#allocation2 + $0x10] sm:$0x38] 0.0
      %vm3704 = vcmask 521219
      %3705 = vst.msk [vmem:[#allocation2 + $0x18] sm:$0x38] %vm3704, 0.0
      %3706 = vst [vmem:[#allocation2 + $0x30] sm:$0x38] 0.0
      %3707 = vst.msk [vmem:[#allocation2 + $0x38] sm:$0x38] %vm3704, 0.0
      %3708 = vst [vmem:[#allocation2 + $0x50] sm:$0x38] 0.0
      %3709 = vst.msk [vmem:[#allocation2 + $0x58] sm:$0x38] %vm3704, 0.0
      %3710 = vst [vmem:[#allocation2 + $0x70] sm:$0x38] 0.0
      %3711 = vst.msk [vmem:[#allocation2 + $0x78] sm:$0x38] %vm3704, 0.0
      %3712 = vst [vmem:[#allocation2 + $0x90] sm:$0x38] 0.0
      %3713 = vst.msk [vmem:[#allocation2 + $0x98] sm:$0x38] %vm3704, 0.0
      %3714 = vst [vmem:[#allocation2 + $0xb0] sm:$0x38] 0.0
      %3715 = vst.msk [vmem:[#allocation2 + $0xb8] sm:$0x38] %vm3704, 0.0
      %3716 = vst [vmem:[#allocation2 + $0xd0] sm:$0x38] 0.0
      %3717 = vst.msk [vmem:[#allocation2 + $0xd8] sm:$0x38] %vm3704, 0.0
      %3718 = vst [vmem:[#allocation2 + $0xf0] sm:$0x38] 0.0
      %3719 = vst.msk [vmem:[#allocation2 + $0xf8] sm:$0x38] %vm3704, 0.0
      %v3736 = vrot.slane %v3670, 5
      %v3737 = vrot.slane %v3671, 5
      %v3738 = vrot.slane %v3672, 5
      %v3739 = vrot.slane %v3673, 5
      %v3740 = vrot.slane %v3674, 5
      %v3741 = vrot.slane %v3675, 5
      %v3742 = vrot.slane %v3676, 5
      %v3743 = vrot.slane %v3677, 5
      %v3744 = vrot.slane %v3678, 5
      %v3745 = vrot.slane %v3679, 5
      %v3746 = vrot.slane %v3680, 5
      %v3747 = vrot.slane %v3681, 5
      %v3748 = vrot.slane %v3682, 5
      %v3749 = vrot.slane %v3683, 5
      %v3750 = vrot.slane %v3684, 5
      %v3751 = vrot.slane %v3685, 5
      %3768 = vst [vmem:[#allocation2] sm:$0xf8] %v3736
      %vm3769 = vcmask 523267
      %3770 = vst.msk [vmem:[#allocation2 + $0x8] sm:$0xf8] %vm3769, %v3737
      %3771 = vst [vmem:[#allocation2 + $0x10] sm:$0x7] %v3736
      %3772 = vst.msk [vmem:[#allocation2 + $0x18] sm:$0x7] %vm3687, %v3737
      %3773 = vst [vmem:[#allocation2 + $0x20] sm:$0xf8] %v3738
      %3774 = vst.msk [vmem:[#allocation2 + $0x28] sm:$0xf8] %vm3769, %v3739
      %3775 = vst [vmem:[#allocation2 + $0x30] sm:$0x7] %v3738
      %3776 = vst.msk [vmem:[#allocation2 + $0x38] sm:$0x7] %vm3687, %v3739
      %3777 = vst [vmem:[#allocation2 + $0x40] sm:$0xf8] %v3740
      %3778 = vst.msk [vmem:[#allocation2 + $0x48] sm:$0xf8] %vm3769, %v3741
      %3779 = vst [vmem:[#allocation2 + $0x50] sm:$0x7] %v3740
      %3780 = vst.msk [vmem:[#allocation2 + $0x58] sm:$0x7] %vm3687, %v3741
      %3781 = vst [vmem:[#allocation2 + $0x60] sm:$0xf8] %v3742
      %3782 = vst.msk [vmem:[#allocation2 + $0x68] sm:$0xf8] %vm3769, %v3743
      %3783 = vst [vmem:[#allocation2 + $0x70] sm:$0x7] %v3742
      %3784 = vst.msk [vmem:[#allocation2 + $0x78] sm:$0x7] %vm3687, %v3743
      %3785 = vst [vmem:[#allocation2 + $0x80] sm:$0xf8] %v3744
      %3786 = vst.msk [vmem:[#allocation2 + $0x88] sm:$0xf8] %vm3769, %v3745
      %3787 = vst [vmem:[#allocation2 + $0x90] sm:$0x7] %v3744
      %3788 = vst.msk [vmem:[#allocation2 + $0x98] sm:$0x7] %vm3687, %v3745
      %3789 = vst [vmem:[#allocation2 + $0xa0] sm:$0xf8] %v3746
      %3790 = vst.msk [vmem:[#allocation2 + $0xa8] sm:$0xf8] %vm3769, %v3747
      %3791 = vst [vmem:[#allocation2 + $0xb0] sm:$0x7] %v3746
      %3792 = vst.msk [vmem:[#allocation2 + $0xb8] sm:$0x7] %vm3687, %v3747
      %3793 = vst [vmem:[#allocation2 + $0xc0] sm:$0xf8] %v3748
      %3794 = vst.msk [vmem:[#allocation2 + $0xc8] sm:$0xf8] %vm3769, %v3749
      %3795 = vst [vmem:[#allocation2 + $0xd0] sm:$0x7] %v3748
      %3796 = vst.msk [vmem:[#allocation2 + $0xd8] sm:$0x7] %vm3687, %v3749
      %3797 = vst [vmem:[#allocation2 + $0xe0] sm:$0xf8] %v3750
      %3798 = vst.msk [vmem:[#allocation2 + $0xe8] sm:$0xf8] %vm3769, %v3751
      %3799 = vst [vmem:[#allocation2 + $0xf0] sm:$0x7] %v3750
      %3800 = vst.msk [vmem:[#allocation2 + $0xf8] sm:$0x7] %vm3687, %v3751
      %v3801 = vld [vmem:[#allocation2] sm:$0xff]
      %v3802 = vld [vmem:[#allocation2 + $0x8] sm:$0xff]
      %v3803 = vld [vmem:[#allocation2 + $0x20] sm:$0xff]
      %v3804 = vld [vmem:[#allocation2 + $0x28] sm:$0xff]
      %v3805 = vld [vmem:[#allocation2 + $0x40] sm:$0xff]
      %v3806 = vld [vmem:[#allocation2 + $0x48] sm:$0xff]
      %v3807 = vld [vmem:[#allocation2 + $0x60] sm:$0xff]
      %v3808 = vld [vmem:[#allocation2 + $0x68] sm:$0xff]
      %v3809 = vld [vmem:[#allocation2 + $0x80] sm:$0xff]
      %v3810 = vld [vmem:[#allocation2 + $0x88] sm:$0xff]
      %v3811 = vld [vmem:[#allocation2 + $0xa0] sm:$0xff]
      %v3812 = vld [vmem:[#allocation2 + $0xa8] sm:$0xff]
      %v3813 = vld [vmem:[#allocation2 + $0xc0] sm:$0xff]
      %v3814 = vld [vmem:[#allocation2 + $0xc8] sm:$0xff]
      %v3815 = vld [vmem:[#allocation2 + $0xe0] sm:$0xff]
      %v3816 = vld [vmem:[#allocation2 + $0xe8] sm:$0xff]
      %v3817 = vld [vmem:[%s6] sm:$0xff]
      %v3818 = vld [vmem:[%s6 + $0x8] sm:$0xff]
      %v3819 = vld [vmem:[%s6 + $0x10] sm:$0xff]
      %v3820 = vld [vmem:[%s6 + $0x18] sm:$0xff]
      %v3821 = vld [vmem:[%s6 + $0x20] sm:$0xff]
      %v3822 = vld [vmem:[%s6 + $0x28] sm:$0xff]
      %v3823 = vld [vmem:[%s6 + $0x30] sm:$0xff]
      %v3824 = vld [vmem:[%s6 + $0x38] sm:$0xff]
      %v3825 = vld [vmem:[%s6 + $0x40] sm:$0xff]
      %v3826 = vld [vmem:[%s6 + $0x48] sm:$0xff]
      %v3827 = vld [vmem:[%s6 + $0x50] sm:$0xff]
      %v3828 = vld [vmem:[%s6 + $0x58] sm:$0xff]
      %v3829 = vld [vmem:[%s6 + $0x60] sm:$0xff]
      %v3830 = vld [vmem:[%s6 + $0x68] sm:$0xff]
      %v3831 = vld [vmem:[%s6 + $0x70] sm:$0xff]
      %v3832 = vld [vmem:[%s6 + $0x78] sm:$0xff]
      %v3833 = vld [vmem:[%s6 + $0x80] sm:$0xff]
      %v3834 = vld [vmem:[%s6 + $0x88] sm:$0xff]
      %v3835 = vld [vmem:[%s6 + $0x90] sm:$0xff]
      %v3836 = vld [vmem:[%s6 + $0x98] sm:$0xff]
      %v3837 = vld [vmem:[%s6 + $0xa0] sm:$0xff]
      %v3838 = vld [vmem:[%s6 + $0xa8] sm:$0xff]
      %v3839 = vld [vmem:[%s6 + $0xb0] sm:$0xff]
      %v3840 = vld [vmem:[%s6 + $0xb8] sm:$0xff]
      %v3841 = vld [vmem:[#allocation2] sm:$0xfe]
      %v3842 = vld [vmem:[#allocation2 + $0x8] sm:$0xfe]
      %v3843 = vld [vmem:[#allocation2 + $0x10] sm:$0x1]
      %v3844 = vld [vmem:[#allocation2 + $0x18] sm:$0x1]
      %v3845 = vld [vmem:[#allocation2 + $0x20] sm:$0xfe]
      %v3846 = vld [vmem:[#allocation2 + $0x28] sm:$0xfe]
      %v3847 = vld [vmem:[#allocation2 + $0x30] sm:$0x1]
      %v3848 = vld [vmem:[#allocation2 + $0x38] sm:$0x1]
      %v3849 = vld [vmem:[#allocation2 + $0x40] sm:$0xfe]
      %v3850 = vld [vmem:[#allocation2 + $0x48] sm:$0xfe]
      %v3851 = vld [vmem:[#allocation2 + $0x50] sm:$0x1]
      %v3852 = vld [vmem:[#allocation2 + $0x58] sm:$0x1]
      %v3853 = vld [vmem:[#allocation2 + $0x60] sm:$0xfe]
      %v3854 = vld [vmem:[#allocation2 + $0x68] sm:$0xfe]
      %v3855 = vld [vmem:[#allocation2 + $0x70] sm:$0x1]
      %v3856 = vld [vmem:[#allocation2 + $0x78] sm:$0x1]
      %v3857 = vld [vmem:[#allocation2 + $0x80] sm:$0xfe]
      %v3858 = vld [vmem:[#allocation2 + $0x88] sm:$0xfe]
      %v3859 = vld [vmem:[#allocation2 + $0x90] sm:$0x1]
      %v3860 = vld [vmem:[#allocation2 + $0x98] sm:$0x1]
      %v3861 = vld [vmem:[#allocation2 + $0xa0] sm:$0xfe]
      %v3862 = vld [vmem:[#allocation2 + $0xa8] sm:$0xfe]
      %v3863 = vld [vmem:[#allocation2 + $0xb0] sm:$0x1]
      %v3864 = vld [vmem:[#allocation2 + $0xb8] sm:$0x1]
      %v3865 = vld [vmem:[#allocation2 + $0xc0] sm:$0xfe]
      %v3866 = vld [vmem:[#allocation2 + $0xc8] sm:$0xfe]
      %v3867 = vld [vmem:[#allocation2 + $0xd0] sm:$0x1]
      %v3868 = vld [vmem:[#allocation2 + $0xd8] sm:$0x1]
      %v3869 = vld [vmem:[#allocation2 + $0xe0] sm:$0xfe]
      %v3870 = vld [vmem:[#allocation2 + $0xe8] sm:$0xfe]
      %v3871 = vld [vmem:[#allocation2 + $0xf0] sm:$0x1]
      %v3872 = vld [vmem:[#allocation2 + $0xf8] sm:$0x1]
      %v3905 = vrot.slane %v3841, 1
      %v3906 = vrot.slane %v3843, 1
      %v3907 = vsel %vm2290, %v3905, %v3906
      %v3908 = vrot.slane %v3842, 1
      %v3909 = vrot.slane %v3844, 1
      %v3910 = vsel %vm2290, %v3908, %v3909
      %v3911 = vrot.slane %v3845, 1
      %v3912 = vrot.slane %v3847, 1
      %v3913 = vsel %vm2290, %v3911, %v3912
      %v3914 = vrot.slane %v3846, 1
      %v3915 = vrot.slane %v3848, 1
      %v3916 = vsel %vm2290, %v3914, %v3915
      %v3917 = vrot.slane %v3849, 1
      %v3918 = vrot.slane %v3851, 1
      %v3919 = vsel %vm2290, %v3917, %v3918
      %v3920 = vrot.slane %v3850, 1
      %v3921 = vrot.slane %v3852, 1
      %v3922 = vsel %vm2290, %v3920, %v3921
      %v3923 = vrot.slane %v3853, 1
      %v3924 = vrot.slane %v3855, 1
      %v3925 = vsel %vm2290, %v3923, %v3924
      %v3926 = vrot.slane %v3854, 1
      %v3927 = vrot.slane %v3856, 1
      %v3928 = vsel %vm2290, %v3926, %v3927
      %v3929 = vrot.slane %v3857, 1
      %v3930 = vrot.slane %v3859, 1
      %v3931 = vsel %vm2290, %v3929, %v3930
      %v3932 = vrot.slane %v3858, 1
      %v3933 = vrot.slane %v3860, 1
      %v3934 = vsel %vm2290, %v3932, %v3933
      %v3935 = vrot.slane %v3861, 1
      %v3936 = vrot.slane %v3863, 1
      %v3937 = vsel %vm2290, %v3935, %v3936
      %v3938 = vrot.slane %v3862, 1
      %v3939 = vrot.slane %v3864, 1
      %v3940 = vsel %vm2290, %v3938, %v3939
      %v3941 = vrot.slane %v3865, 1
      %v3942 = vrot.slane %v3867, 1
      %v3943 = vsel %vm2290, %v3941, %v3942
      %v3944 = vrot.slane %v3866, 1
      %v3945 = vrot.slane %v3868, 1
      %v3946 = vsel %vm2290, %v3944, %v3945
      %v3947 = vrot.slane %v3869, 1
      %v3948 = vrot.slane %v3871, 1
      %v3949 = vsel %vm2290, %v3947, %v3948
      %v3950 = vrot.slane %v3870, 1
      %v3951 = vrot.slane %v3872, 1
      %v3952 = vsel %vm2290, %v3950, %v3951
      %s3961 = scalar_lea.vmem %s6, 192
      %v3962 = vld [vmem:[%s3961] sm:$0xff]
      %v3963 = vld [vmem:[%s3961 + $0x8] sm:$0xff]
      %v3964 = vld [vmem:[%s3961 + $0x10] sm:$0xff]
      %v3965 = vld [vmem:[%s3961 + $0x18] sm:$0xff]
      %v3966 = vld [vmem:[%s3961 + $0x20] sm:$0xff]
      %v3967 = vld [vmem:[%s3961 + $0x28] sm:$0xff]
      %v3968 = vld [vmem:[%s3961 + $0x30] sm:$0xff]
      %v3969 = vld [vmem:[%s3961 + $0x38] sm:$0xff]
      %v3970 = vld [vmem:[%s3961 + $0x40] sm:$0xff]
      %v3971 = vld [vmem:[%s3961 + $0x48] sm:$0xff]
      %v3972 = vld [vmem:[%s3961 + $0x50] sm:$0xff]
      %v3973 = vld [vmem:[%s3961 + $0x58] sm:$0xff]
      %v3974 = vld [vmem:[%s3961 + $0x60] sm:$0xff]
      %v3975 = vld [vmem:[%s3961 + $0x68] sm:$0xff]
      %v3976 = vld [vmem:[%s3961 + $0x70] sm:$0xff]
      %v3977 = vld [vmem:[%s3961 + $0x78] sm:$0xff]
      %v3978 = vld [vmem:[%s3961 + $0x80] sm:$0xff]
      %v3979 = vld [vmem:[%s3961 + $0x88] sm:$0xff]
      %v3980 = vld [vmem:[%s3961 + $0x90] sm:$0xff]
      %v3981 = vld [vmem:[%s3961 + $0x98] sm:$0xff]
      %v3982 = vld [vmem:[%s3961 + $0xa0] sm:$0xff]
      %v3983 = vld [vmem:[%s3961 + $0xa8] sm:$0xff]
      %v3984 = vld [vmem:[%s3961 + $0xb0] sm:$0xff]
      %v3985 = vld [vmem:[%s3961 + $0xb8] sm:$0xff]
      %v3986 = vsel %vm547, %v3910, 0
      %v3988 = vsel %vm547, %v3916, 0
      %v3990 = vsel %vm547, %v3922, 0
      %v3992 = vsel %vm547, %v3928, 0
      %v3994 = vsel %vm547, %v3934, 0
      %v3996 = vsel %vm547, %v3940, 0
      %v3998 = vsel %vm547, %v3946, 0
      %v4000 = vsel %vm547, %v3952, 0
      %4002 = vmatprep.subr.mxu0 0.0
      %4003 = vmatpush1.msra.mxu0 %v3977
      %4004 = vmatprep.subr.mxu0 0.0
      %4005 = vmatpush1.msra.mxu0 %v3976
      %4006 = vmatprep.subr.mxu0 0.0
      %4007 = vmatpush1.msra.mxu0 %v3975
      %4008 = vmatprep.subr.mxu0 0.0
      %4009 = vmatpush1.msra.mxu0 %v3974
      %4010 = vmatprep.subr.mxu0 0.0
      %4011 = vmatpush1.msra.mxu0 %v3973
      %4012 = vmatprep.subr.mxu0 0.0
      %4013 = vmatpush1.msra.mxu0 %v3972
      %4014 = vmatprep.subr.mxu0 0.0
      %4015 = vmatpush1.msra.mxu0 %v3971
      %4016 = vmatprep.subr.mxu0 0.0
      %4017 = vmatpush1.msra.mxu0 %v3970
      %4018 = vmatprep.subr.mxu0 0.0
      %4019 = vmatpush1.msra.mxu0 %v3969
      %4020 = vmatprep.subr.mxu0 0.0
      %4021 = vmatpush1.msra.mxu0 %v3968
      %4022 = vmatprep.subr.mxu0 0.0
      %4023 = vmatpush1.msra.mxu0 %v3967
      %4024 = vmatprep.subr.mxu0 0.0
      %4025 = vmatpush1.msra.mxu0 %v3966
      %4026 = vmatprep.subr.mxu0 0.0
      %4027 = vmatpush1.msra.mxu0 %v3965
      %4028 = vmatprep.subr.mxu0 0.0
      %4029 = vmatpush1.msra.mxu0 %v3964
      %4030 = vmatprep.subr.mxu0 0.0
      %4031 = vmatpush1.msra.mxu0 %v3963
      %4032 = vmatprep.subr.mxu0 0.0
      %4033 = vmatpush1.msra.mxu0 %v3962
      %4034 = vmatprep.subr.mxu0 0.0
      %4035 = vmatpush2.msra.mxu0 0.0
      %4036 = vmatprep.subr.mxu0 0.0
      %4037 = vmatpush2.msra.mxu0 0.0
      %4038 = vmatprep.subr.mxu0 0.0
      %4039 = vmatpush2.msra.mxu0 0.0
      %4040 = vmatprep.subr.mxu0 0.0
      %4041 = vmatpush2.msra.mxu0 0.0
      %4042 = vmatprep.subr.mxu0 0.0
      %4043 = vmatpush2.msra.mxu0 0.0
      %4044 = vmatprep.subr.mxu0 0.0
      %4045 = vmatpush2.msra.mxu0 0.0
      %4046 = vmatprep.subr.mxu0 0.0
      %4047 = vmatpush2.msra.mxu0 0.0
      %4048 = vmatprep.subr.mxu0 0.0
      %4049 = vmatpush2.msra.mxu0 0.0
      %4050 = vmatprep.subr.mxu0 0.0
      %4051 = vmatpush2.msra.mxu0 %v3985
      %4052 = vmatprep.subr.mxu0 0.0
      %4053 = vmatpush2.msra.mxu0 %v3984
      %4054 = vmatprep.subr.mxu0 0.0
      %4055 = vmatpush2.msra.mxu0 %v3983
      %4056 = vmatprep.subr.mxu0 0.0
      %4057 = vmatpush2.msra.mxu0 %v3982
      %4058 = vmatprep.subr.mxu0 0.0
      %4059 = vmatpush2.msra.mxu0 %v3981
      %4060 = vmatprep.subr.mxu0 0.0
      %4061 = vmatpush2.msra.mxu0 %v3980
      %4062 = vmatprep.subr.mxu0 0.0
      %4063 = vmatpush2.msra.mxu0 %v3979
      %4064 = vmatprep.subr.mxu0 0.0
      %4065 = vmatpush2.msra.mxu0 %v3978
      %4066 = vmatprep.mubr.f32.mxu0 %v3986
      %4067 = vmatmul.mubr.f32.gmra.mxu0 %v3907
      %v4068 = vpop.f32.mrf.mxu0
      %v4069 = vadd.f32 0.0, %v4068
      %v4070 = vpop.f32.mrf.mxu0
      %4071 = vmatprep.mubr.f32.mxu0 %v3988
      %4072 = vmatmul.mubr.f32.gmra.mxu0 %v3913
      %v4073 = vpop.f32.mrf.mxu0
      %v4074 = vadd.f32 0.0, %v4073
      %v4075 = vpop.f32.mrf.mxu0
      %4076 = vmatprep.mubr.f32.mxu0 %v3990
      %4077 = vmatmul.mubr.f32.gmra.mxu0 %v3919
      %v4078 = vpop.f32.mrf.mxu0
      %v4079 = vadd.f32 0.0, %v4078
      %v4080 = vpop.f32.mrf.mxu0
      %4081 = vmatprep.mubr.f32.mxu0 %v3992
      %4082 = vmatmul.mubr.f32.gmra.mxu0 %v3925
      %v4083 = vpop.f32.mrf.mxu0
      %v4084 = vadd.f32 0.0, %v4083
      %v4085 = vpop.f32.mrf.mxu0
      %4086 = vmatprep.mubr.f32.mxu0 %v3994
      %4087 = vmatmul.mubr.f32.gmra.mxu0 %v3931
      %v4088 = vpop.f32.mrf.mxu0
      %v4089 = vadd.f32 0.0, %v4088
      %v4090 = vpop.f32.mrf.mxu0
      %4091 = vmatprep.mubr.f32.mxu0 %v3996
      %4092 = vmatmul.mubr.f32.gmra.mxu0 %v3937
      %v4093 = vpop.f32.mrf.mxu0
      %v4094 = vadd.f32 0.0, %v4093
      %v4095 = vpop.f32.mrf.mxu0
      %4096 = vmatprep.mubr.f32.mxu0 %v3998
      %4097 = vmatmul.mubr.f32.gmra.mxu0 %v3943
      %v4098 = vpop.f32.mrf.mxu0
      %v4099 = vadd.f32 0.0, %v4098
      %v4100 = vpop.f32.mrf.mxu0
      %4101 = vmatprep.mubr.f32.mxu0 %v4000
      %4102 = vmatmul.mubr.f32.gmra.mxu0 %v3949
      %v4103 = vpop.f32.mrf.mxu0
      %v4104 = vadd.f32 0.0, %v4103
      %v4105 = vpop.f32.mrf.mxu0
      %4106 = vdwg.mxu0
      %v4108 = vsel %vm547, %v3802, 0
      %v4111 = vsel %vm547, %v3804, 0
      %v4114 = vsel %vm547, %v3806, 0
      %v4117 = vsel %vm547, %v3808, 0
      %v4120 = vsel %vm547, %v3810, 0
      %v4123 = vsel %vm547, %v3812, 0
      %v4126 = vsel %vm547, %v3814, 0
      %v4129 = vsel %vm547, %v3816, 0
      %4131 = vmatprep.subr.mxu0 0.0
      %4132 = vmatpush1.msra.mxu0 %v3832
      %4133 = vmatprep.subr.mxu0 0.0
      %4134 = vmatpush1.msra.mxu0 %v3831
      %4135 = vmatprep.subr.mxu0 0.0
      %4136 = vmatpush1.msra.mxu0 %v3830
      %4137 = vmatprep.subr.mxu0 0.0
      %4138 = vmatpush1.msra.mxu0 %v3829
      %4139 = vmatprep.subr.mxu0 0.0
      %4140 = vmatpush1.msra.mxu0 %v3828
      %4141 = vmatprep.subr.mxu0 0.0
      %4142 = vmatpush1.msra.mxu0 %v3827
      %4143 = vmatprep.subr.mxu0 0.0
      %4144 = vmatpush1.msra.mxu0 %v3826
      %4145 = vmatprep.subr.mxu0 0.0
      %4146 = vmatpush1.msra.mxu0 %v3825
      %4147 = vmatprep.subr.mxu0 0.0
      %4148 = vmatpush1.msra.mxu0 %v3824
      %4149 = vmatprep.subr.mxu0 0.0
      %4150 = vmatpush1.msra.mxu0 %v3823
      %4151 = vmatprep.subr.mxu0 0.0
      %4152 = vmatpush1.msra.mxu0 %v3822
      %4153 = vmatprep.subr.mxu0 0.0
      %4154 = vmatpush1.msra.mxu0 %v3821
      %4155 = vmatprep.subr.mxu0 0.0
      %4156 = vmatpush1.msra.mxu0 %v3820
      %4157 = vmatprep.subr.mxu0 0.0
      %4158 = vmatpush1.msra.mxu0 %v3819
      %4159 = vmatprep.subr.mxu0 0.0
      %4160 = vmatpush1.msra.mxu0 %v3818
      %4161 = vmatprep.subr.mxu0 0.0
      %4162 = vmatpush1.msra.mxu0 %v3817
      %4163 = vmatprep.subr.mxu0 0.0
      %4164 = vmatpush2.msra.mxu0 0.0
      %4165 = vmatprep.subr.mxu0 0.0
      %4166 = vmatpush2.msra.mxu0 0.0
      %4167 = vmatprep.subr.mxu0 0.0
      %4168 = vmatpush2.msra.mxu0 0.0
      %4169 = vmatprep.subr.mxu0 0.0
      %4170 = vmatpush2.msra.mxu0 0.0
      %4171 = vmatprep.subr.mxu0 0.0
      %4172 = vmatpush2.msra.mxu0 0.0
      %4173 = vmatprep.subr.mxu0 0.0
      %4174 = vmatpush2.msra.mxu0 0.0
      %4175 = vmatprep.subr.mxu0 0.0
      %4176 = vmatpush2.msra.mxu0 0.0
      %4177 = vmatprep.subr.mxu0 0.0
      %4178 = vmatpush2.msra.mxu0 0.0
      %4179 = vmatprep.subr.mxu0 0.0
      %4180 = vmatpush2.msra.mxu0 %v3840
      %4181 = vmatprep.subr.mxu0 0.0
      %4182 = vmatpush2.msra.mxu0 %v3839
      %4183 = vmatprep.subr.mxu0 0.0
      %4184 = vmatpush2.msra.mxu0 %v3838
      %4185 = vmatprep.subr.mxu0 0.0
      %4186 = vmatpush2.msra.mxu0 %v3837
      %4187 = vmatprep.subr.mxu0 0.0
      %4188 = vmatpush2.msra.mxu0 %v3836
      %4189 = vmatprep.subr.mxu0 0.0
      %4190 = vmatpush2.msra.mxu0 %v3835
      %4191 = vmatprep.subr.mxu0 0.0
      %4192 = vmatpush2.msra.mxu0 %v3834
      %4193 = vmatprep.subr.mxu0 0.0
      %4194 = vmatpush2.msra.mxu0 %v3833
      %4195 = vmatprep.mubr.f32.mxu0 %v4108
      %4196 = vmatmul.mubr.f32.gmra.mxu0 %v3801
      %v4197 = vpop.f32.mrf.mxu0
      %v4198 = vadd.f32 %v4069, %v4197
      %v4199 = vpop.f32.mrf.mxu0
      %4200 = vmatprep.mubr.f32.mxu0 %v4111
      %4201 = vmatmul.mubr.f32.gmra.mxu0 %v3803
      %v4202 = vpop.f32.mrf.mxu0
      %v4203 = vadd.f32 %v4074, %v4202
      %v4204 = vpop.f32.mrf.mxu0
      %4205 = vmatprep.mubr.f32.mxu0 %v4114
      %4206 = vmatmul.mubr.f32.gmra.mxu0 %v3805
      %v4207 = vpop.f32.mrf.mxu0
      %v4208 = vadd.f32 %v4079, %v4207
      %v4209 = vpop.f32.mrf.mxu0
      %4210 = vmatprep.mubr.f32.mxu0 %v4117
      %4211 = vmatmul.mubr.f32.gmra.mxu0 %v3807
      %v4212 = vpop.f32.mrf.mxu0
      %v4213 = vadd.f32 %v4084, %v4212
      %v4214 = vpop.f32.mrf.mxu0
      %4215 = vmatprep.mubr.f32.mxu0 %v4120
      %4216 = vmatmul.mubr.f32.gmra.mxu0 %v3809
      %v4217 = vpop.f32.mrf.mxu0
      %v4218 = vadd.f32 %v4089, %v4217
      %v4219 = vpop.f32.mrf.mxu0
      %4220 = vmatprep.mubr.f32.mxu0 %v4123
      %4221 = vmatmul.mubr.f32.gmra.mxu0 %v3811
      %v4222 = vpop.f32.mrf.mxu0
      %v4223 = vadd.f32 %v4094, %v4222
      %v4224 = vpop.f32.mrf.mxu0
      %4225 = vmatprep.mubr.f32.mxu0 %v4126
      %4226 = vmatmul.mubr.f32.gmra.mxu0 %v3813
      %v4227 = vpop.f32.mrf.mxu0
      %v4228 = vadd.f32 %v4099, %v4227
      %v4229 = vpop.f32.mrf.mxu0
      %4230 = vmatprep.mubr.f32.mxu0 %v4129
      %4231 = vmatmul.mubr.f32.gmra.mxu0 %v3815
      %v4232 = vpop.f32.mrf.mxu0
      %v4233 = vadd.f32 %v4104, %v4232
      %v4234 = vpop.f32.mrf.mxu0
      %4235 = vdwg.mxu0
      %v4236 = vld [vmem:[#allocation2] sm:$0xfc]
      %v4237 = vld [vmem:[#allocation2 + $0x8] sm:$0xfc]
      %v4238 = vld [vmem:[#allocation2 + $0x10] sm:$0x3]
      %v4239 = vld [vmem:[#allocation2 + $0x18] sm:$0x3]
      %v4240 = vld [vmem:[#allocation2 + $0x20] sm:$0xfc]
      %v4241 = vld [vmem:[#allocation2 + $0x28] sm:$0xfc]
      %v4242 = vld [vmem:[#allocation2 + $0x30] sm:$0x3]
      %v4243 = vld [vmem:[#allocation2 + $0x38] sm:$0x3]
      %v4244 = vld [vmem:[#allocation2 + $0x40] sm:$0xfc]
      %v4245 = vld [vmem:[#allocation2 + $0x48] sm:$0xfc]
      %v4246 = vld [vmem:[#allocation2 + $0x50] sm:$0x3]
      %v4247 = vld [vmem:[#allocation2 + $0x58] sm:$0x3]
      %v4248 = vld [vmem:[#allocation2 + $0x60] sm:$0xfc]
      %v4249 = vld [vmem:[#allocation2 + $0x68] sm:$0xfc]
      %v4250 = vld [vmem:[#allocation2 + $0x70] sm:$0x3]
      %v4251 = vld [vmem:[#allocation2 + $0x78] sm:$0x3]
      %v4252 = vld [vmem:[#allocation2 + $0x80] sm:$0xfc]
      %v4253 = vld [vmem:[#allocation2 + $0x88] sm:$0xfc]
      %v4254 = vld [vmem:[#allocation2 + $0x90] sm:$0x3]
      %v4255 = vld [vmem:[#allocation2 + $0x98] sm:$0x3]
      %v4256 = vld [vmem:[#allocation2 + $0xa0] sm:$0xfc]
      %v4257 = vld [vmem:[#allocation2 + $0xa8] sm:$0xfc]
      %v4258 = vld [vmem:[#allocation2 + $0xb0] sm:$0x3]
      %v4259 = vld [vmem:[#allocation2 + $0xb8] sm:$0x3]
      %v4260 = vld [vmem:[#allocation2 + $0xc0] sm:$0xfc]
      %v4261 = vld [vmem:[#allocation2 + $0xc8] sm:$0xfc]
      %v4262 = vld [vmem:[#allocation2 + $0xd0] sm:$0x3]
      %v4263 = vld [vmem:[#allocation2 + $0xd8] sm:$0x3]
      %v4264 = vld [vmem:[#allocation2 + $0xe0] sm:$0xfc]
      %v4265 = vld [vmem:[#allocation2 + $0xe8] sm:$0xfc]
      %v4266 = vld [vmem:[#allocation2 + $0xf0] sm:$0x3]
      %v4267 = vld [vmem:[#allocation2 + $0xf8] sm:$0x3]
      %v4300 = vrot.slane %v4236, 2
      %v4301 = vrot.slane %v4238, 2
      %v4302 = vsel %vm2600, %v4300, %v4301
      %v4303 = vrot.slane %v4237, 2
      %v4304 = vrot.slane %v4239, 2
      %v4305 = vsel %vm2600, %v4303, %v4304
      %v4306 = vrot.slane %v4240, 2
      %v4307 = vrot.slane %v4242, 2
      %v4308 = vsel %vm2600, %v4306, %v4307
      %v4309 = vrot.slane %v4241, 2
      %v4310 = vrot.slane %v4243, 2
      %v4311 = vsel %vm2600, %v4309, %v4310
      %v4312 = vrot.slane %v4244, 2
      %v4313 = vrot.slane %v4246, 2
      %v4314 = vsel %vm2600, %v4312, %v4313
      %v4315 = vrot.slane %v4245, 2
      %v4316 = vrot.slane %v4247, 2
      %v4317 = vsel %vm2600, %v4315, %v4316
      %v4318 = vrot.slane %v4248, 2
      %v4319 = vrot.slane %v4250, 2
      %v4320 = vsel %vm2600, %v4318, %v4319
      %v4321 = vrot.slane %v4249, 2
      %v4322 = vrot.slane %v4251, 2
      %v4323 = vsel %vm2600, %v4321, %v4322
      %v4324 = vrot.slane %v4252, 2
      %v4325 = vrot.slane %v4254, 2
      %v4326 = vsel %vm2600, %v4324, %v4325
      %v4327 = vrot.slane %v4253, 2
      %v4328 = vrot.slane %v4255, 2
      %v4329 = vsel %vm2600, %v4327, %v4328
      %v4330 = vrot.slane %v4256, 2
      %v4331 = vrot.slane %v4258, 2
      %v4332 = vsel %vm2600, %v4330, %v4331
      %v4333 = vrot.slane %v4257, 2
      %v4334 = vrot.slane %v4259, 2
      %v4335 = vsel %vm2600, %v4333, %v4334
      %v4336 = vrot.slane %v4260, 2
      %v4337 = vrot.slane %v4262, 2
      %v4338 = vsel %vm2600, %v4336, %v4337
      %v4339 = vrot.slane %v4261, 2
      %v4340 = vrot.slane %v4263, 2
      %v4341 = vsel %vm2600, %v4339, %v4340
      %v4342 = vrot.slane %v4264, 2
      %v4343 = vrot.slane %v4266, 2
      %v4344 = vsel %vm2600, %v4342, %v4343
      %v4345 = vrot.slane %v4265, 2
      %v4346 = vrot.slane %v4267, 2
      %v4347 = vsel %vm2600, %v4345, %v4346
      %s4356 = scalar_lea.vmem %s6, 384
      %v4357 = vld [vmem:[%s4356] sm:$0xff]
      %v4358 = vld [vmem:[%s4356 + $0x8] sm:$0xff]
      %v4359 = vld [vmem:[%s4356 + $0x10] sm:$0xff]
      %v4360 = vld [vmem:[%s4356 + $0x18] sm:$0xff]
      %v4361 = vld [vmem:[%s4356 + $0x20] sm:$0xff]
      %v4362 = vld [vmem:[%s4356 + $0x28] sm:$0xff]
      %v4363 = vld [vmem:[%s4356 + $0x30] sm:$0xff]
      %v4364 = vld [vmem:[%s4356 + $0x38] sm:$0xff]
      %v4365 = vld [vmem:[%s4356 + $0x40] sm:$0xff]
      %v4366 = vld [vmem:[%s4356 + $0x48] sm:$0xff]
      %v4367 = vld [vmem:[%s4356 + $0x50] sm:$0xff]
      %v4368 = vld [vmem:[%s4356 + $0x58] sm:$0xff]
      %v4369 = vld [vmem:[%s4356 + $0x60] sm:$0xff]
      %v4370 = vld [vmem:[%s4356 + $0x68] sm:$0xff]
      %v4371 = vld [vmem:[%s4356 + $0x70] sm:$0xff]
      %v4372 = vld [vmem:[%s4356 + $0x78] sm:$0xff]
      %v4373 = vld [vmem:[%s4356 + $0x80] sm:$0xff]
      %v4374 = vld [vmem:[%s4356 + $0x88] sm:$0xff]
      %v4375 = vld [vmem:[%s4356 + $0x90] sm:$0xff]
      %v4376 = vld [vmem:[%s4356 + $0x98] sm:$0xff]
      %v4377 = vld [vmem:[%s4356 + $0xa0] sm:$0xff]
      %v4378 = vld [vmem:[%s4356 + $0xa8] sm:$0xff]
      %v4379 = vld [vmem:[%s4356 + $0xb0] sm:$0xff]
      %v4380 = vld [vmem:[%s4356 + $0xb8] sm:$0xff]
      %v4381 = vsel %vm547, %v4305, 0
      %v4383 = vsel %vm547, %v4311, 0
      %v4385 = vsel %vm547, %v4317, 0
      %v4387 = vsel %vm547, %v4323, 0
      %v4389 = vsel %vm547, %v4329, 0
      %v4391 = vsel %vm547, %v4335, 0
      %v4393 = vsel %vm547, %v4341, 0
      %v4395 = vsel %vm547, %v4347, 0
      %4397 = vmatprep.subr.mxu0 0.0
      %4398 = vmatpush1.msra.mxu0 %v4372
      %4399 = vmatprep.subr.mxu0 0.0
      %4400 = vmatpush1.msra.mxu0 %v4371
      %4401 = vmatprep.subr.mxu0 0.0
      %4402 = vmatpush1.msra.mxu0 %v4370
      %4403 = vmatprep.subr.mxu0 0.0
      %4404 = vmatpush1.msra.mxu0 %v4369
      %4405 = vmatprep.subr.mxu0 0.0
      %4406 = vmatpush1.msra.mxu0 %v4368
      %4407 = vmatprep.subr.mxu0 0.0
      %4408 = vmatpush1.msra.mxu0 %v4367
      %4409 = vmatprep.subr.mxu0 0.0
      %4410 = vmatpush1.msra.mxu0 %v4366
      %4411 = vmatprep.subr.mxu0 0.0
      %4412 = vmatpush1.msra.mxu0 %v4365
      %4413 = vmatprep.subr.mxu0 0.0
      %4414 = vmatpush1.msra.mxu0 %v4364
      %4415 = vmatprep.subr.mxu0 0.0
      %4416 = vmatpush1.msra.mxu0 %v4363
      %4417 = vmatprep.subr.mxu0 0.0
      %4418 = vmatpush1.msra.mxu0 %v4362
      %4419 = vmatprep.subr.mxu0 0.0
      %4420 = vmatpush1.msra.mxu0 %v4361
      %4421 = vmatprep.subr.mxu0 0.0
      %4422 = vmatpush1.msra.mxu0 %v4360
      %4423 = vmatprep.subr.mxu0 0.0
      %4424 = vmatpush1.msra.mxu0 %v4359
      %4425 = vmatprep.subr.mxu0 0.0
      %4426 = vmatpush1.msra.mxu0 %v4358
      %4427 = vmatprep.subr.mxu0 0.0
      %4428 = vmatpush1.msra.mxu0 %v4357
      %4429 = vmatprep.subr.mxu0 0.0
      %4430 = vmatpush2.msra.mxu0 0.0
      %4431 = vmatprep.subr.mxu0 0.0
      %4432 = vmatpush2.msra.mxu0 0.0
      %4433 = vmatprep.subr.mxu0 0.0
      %4434 = vmatpush2.msra.mxu0 0.0
      %4435 = vmatprep.subr.mxu0 0.0
      %4436 = vmatpush2.msra.mxu0 0.0
      %4437 = vmatprep.subr.mxu0 0.0
      %4438 = vmatpush2.msra.mxu0 0.0
      %4439 = vmatprep.subr.mxu0 0.0
      %4440 = vmatpush2.msra.mxu0 0.0
      %4441 = vmatprep.subr.mxu0 0.0
      %4442 = vmatpush2.msra.mxu0 0.0
      %4443 = vmatprep.subr.mxu0 0.0
      %4444 = vmatpush2.msra.mxu0 0.0
      %4445 = vmatprep.subr.mxu0 0.0
      %4446 = vmatpush2.msra.mxu0 %v4380
      %4447 = vmatprep.subr.mxu0 0.0
      %4448 = vmatpush2.msra.mxu0 %v4379
      %4449 = vmatprep.subr.mxu0 0.0
      %4450 = vmatpush2.msra.mxu0 %v4378
      %4451 = vmatprep.subr.mxu0 0.0
      %4452 = vmatpush2.msra.mxu0 %v4377
      %4453 = vmatprep.subr.mxu0 0.0
      %4454 = vmatpush2.msra.mxu0 %v4376
      %4455 = vmatprep.subr.mxu0 0.0
      %4456 = vmatpush2.msra.mxu0 %v4375
      %4457 = vmatprep.subr.mxu0 0.0
      %4458 = vmatpush2.msra.mxu0 %v4374
      %4459 = vmatprep.subr.mxu0 0.0
      %4460 = vmatpush2.msra.mxu0 %v4373
      %4461 = vmatprep.mubr.f32.mxu0 %v4381
      %4462 = vmatmul.mubr.f32.gmra.mxu0 %v4302
      %v4463 = vpop.f32.mrf.mxu0
      %v4464 = vadd.f32 0.0, %v4463
      %v4465 = vpop.f32.mrf.mxu0
      %4466 = vmatprep.mubr.f32.mxu0 %v4383
      %4467 = vmatmul.mubr.f32.gmra.mxu0 %v4308
      %v4468 = vpop.f32.mrf.mxu0
      %v4469 = vadd.f32 0.0, %v4468
      %v4470 = vpop.f32.mrf.mxu0
      %4471 = vmatprep.mubr.f32.mxu0 %v4385
      %4472 = vmatmul.mubr.f32.gmra.mxu0 %v4314
      %v4473 = vpop.f32.mrf.mxu0
      %v4474 = vadd.f32 0.0, %v4473
      %v4475 = vpop.f32.mrf.mxu0
      %4476 = vmatprep.mubr.f32.mxu0 %v4387
      %4477 = vmatmul.mubr.f32.gmra.mxu0 %v4320
      %v4478 = vpop.f32.mrf.mxu0
      %v4479 = vadd.f32 0.0, %v4478
      %v4480 = vpop.f32.mrf.mxu0
      %4481 = vmatprep.mubr.f32.mxu0 %v4389
      %4482 = vmatmul.mubr.f32.gmra.mxu0 %v4326
      %v4483 = vpop.f32.mrf.mxu0
      %v4484 = vadd.f32 0.0, %v4483
      %v4485 = vpop.f32.mrf.mxu0
      %4486 = vmatprep.mubr.f32.mxu0 %v4391
      %4487 = vmatmul.mubr.f32.gmra.mxu0 %v4332
      %v4488 = vpop.f32.mrf.mxu0
      %v4489 = vadd.f32 0.0, %v4488
      %v4490 = vpop.f32.mrf.mxu0
      %4491 = vmatprep.mubr.f32.mxu0 %v4393
      %4492 = vmatmul.mubr.f32.gmra.mxu0 %v4338
      %v4493 = vpop.f32.mrf.mxu0
      %v4494 = vadd.f32 0.0, %v4493
      %v4495 = vpop.f32.mrf.mxu0
      %4496 = vmatprep.mubr.f32.mxu0 %v4395
      %4497 = vmatmul.mubr.f32.gmra.mxu0 %v4344
      %v4498 = vpop.f32.mrf.mxu0
      %v4499 = vadd.f32 0.0, %v4498
      %v4500 = vpop.f32.mrf.mxu0
      %4501 = vdwg.mxu0
      %v4502 = vadd.f32 %v4198, %v4464
      %v4503 = vadd.f32 %v4203, %v4469
      %v4504 = vadd.f32 %v4208, %v4474
      %v4505 = vadd.f32 %v4213, %v4479
      %v4506 = vadd.f32 %v4218, %v4484
      %v4507 = vadd.f32 %v4223, %v4489
      %v4508 = vadd.f32 %v4228, %v4494
      %v4509 = vadd.f32 %v4233, %v4499
      %v4510 = vld [vmem:[#allocation2] sm:$0xf8]
      %v4511 = vld [vmem:[#allocation2 + $0x8] sm:$0xf8]
      %v4512 = vld [vmem:[#allocation2 + $0x10] sm:$0x7]
      %v4513 = vld [vmem:[#allocation2 + $0x18] sm:$0x7]
      %v4514 = vld [vmem:[#allocation2 + $0x20] sm:$0xf8]
      %v4515 = vld [vmem:[#allocation2 + $0x28] sm:$0xf8]
      %v4516 = vld [vmem:[#allocation2 + $0x30] sm:$0x7]
      %v4517 = vld [vmem:[#allocation2 + $0x38] sm:$0x7]
      %v4518 = vld [vmem:[#allocation2 + $0x40] sm:$0xf8]
      %v4519 = vld [vmem:[#allocation2 + $0x48] sm:$0xf8]
      %v4520 = vld [vmem:[#allocation2 + $0x50] sm:$0x7]
      %v4521 = vld [vmem:[#allocation2 + $0x58] sm:$0x7]
      %v4522 = vld [vmem:[#allocation2 + $0x60] sm:$0xf8]
      %v4523 = vld [vmem:[#allocation2 + $0x68] sm:$0xf8]
      %v4524 = vld [vmem:[#allocation2 + $0x70] sm:$0x7]
      %v4525 = vld [vmem:[#allocation2 + $0x78] sm:$0x7]
      %v4526 = vld [vmem:[#allocation2 + $0x80] sm:$0xf8]
      %v4527 = vld [vmem:[#allocation2 + $0x88] sm:$0xf8]
      %v4528 = vld [vmem:[#allocation2 + $0x90] sm:$0x7]
      %v4529 = vld [vmem:[#allocation2 + $0x98] sm:$0x7]
      %v4530 = vld [vmem:[#allocation2 + $0xa0] sm:$0xf8]
      %v4531 = vld [vmem:[#allocation2 + $0xa8] sm:$0xf8]
      %v4532 = vld [vmem:[#allocation2 + $0xb0] sm:$0x7]
      %v4533 = vld [vmem:[#allocation2 + $0xb8] sm:$0x7]
      %v4534 = vld [vmem:[#allocation2 + $0xc0] sm:$0xf8]
      %v4535 = vld [vmem:[#allocation2 + $0xc8] sm:$0xf8]
      %v4536 = vld [vmem:[#allocation2 + $0xd0] sm:$0x7]
      %v4537 = vld [vmem:[#allocation2 + $0xd8] sm:$0x7]
      %v4538 = vld [vmem:[#allocation2 + $0xe0] sm:$0xf8]
      %v4539 = vld [vmem:[#allocation2 + $0xe8] sm:$0xf8]
      %v4540 = vld [vmem:[#allocation2 + $0xf0] sm:$0x7]
      %v4541 = vld [vmem:[#allocation2 + $0xf8] sm:$0x7]
      %v4574 = vrot.slane %v4510, 3
      %v4575 = vrot.slane %v4512, 3
      %v4576 = vsel %vm2788, %v4574, %v4575
      %v4577 = vrot.slane %v4511, 3
      %v4578 = vrot.slane %v4513, 3
      %v4579 = vsel %vm2788, %v4577, %v4578
      %v4580 = vrot.slane %v4514, 3
      %v4581 = vrot.slane %v4516, 3
      %v4582 = vsel %vm2788, %v4580, %v4581
      %v4583 = vrot.slane %v4515, 3
      %v4584 = vrot.slane %v4517, 3
      %v4585 = vsel %vm2788, %v4583, %v4584
      %v4586 = vrot.slane %v4518, 3
      %v4587 = vrot.slane %v4520, 3
      %v4588 = vsel %vm2788, %v4586, %v4587
      %v4589 = vrot.slane %v4519, 3
      %v4590 = vrot.slane %v4521, 3
      %v4591 = vsel %vm2788, %v4589, %v4590
      %v4592 = vrot.slane %v4522, 3
      %v4593 = vrot.slane %v4524, 3
      %v4594 = vsel %vm2788, %v4592, %v4593
      %v4595 = vrot.slane %v4523, 3
      %v4596 = vrot.slane %v4525, 3
      %v4597 = vsel %vm2788, %v4595, %v4596
      %v4598 = vrot.slane %v4526, 3
      %v4599 = vrot.slane %v4528, 3
      %v4600 = vsel %vm2788, %v4598, %v4599
      %v4601 = vrot.slane %v4527, 3
      %v4602 = vrot.slane %v4529, 3
      %v4603 = vsel %vm2788, %v4601, %v4602
      %v4604 = vrot.slane %v4530, 3
      %v4605 = vrot.slane %v4532, 3
      %v4606 = vsel %vm2788, %v4604, %v4605
      %v4607 = vrot.slane %v4531, 3
      %v4608 = vrot.slane %v4533, 3
      %v4609 = vsel %vm2788, %v4607, %v4608
      %v4610 = vrot.slane %v4534, 3
      %v4611 = vrot.slane %v4536, 3
      %v4612 = vsel %vm2788, %v4610, %v4611
      %v4613 = vrot.slane %v4535, 3
      %v4614 = vrot.slane %v4537, 3
      %v4615 = vsel %vm2788, %v4613, %v4614
      %v4616 = vrot.slane %v4538, 3
      %v4617 = vrot.slane %v4540, 3
      %v4618 = vsel %vm2788, %v4616, %v4617
      %v4619 = vrot.slane %v4539, 3
      %v4620 = vrot.slane %v4541, 3
      %v4621 = vsel %vm2788, %v4619, %v4620
      %s4630 = scalar_lea.vmem %s6, 576
      %v4631 = vld [vmem:[%s4630] sm:$0xff]
      %v4632 = vld [vmem:[%s4630 + $0x8] sm:$0xff]
      %v4633 = vld [vmem:[%s4630 + $0x10] sm:$0xff]
      %v4634 = vld [vmem:[%s4630 + $0x18] sm:$0xff]
      %v4635 = vld [vmem:[%s4630 + $0x20] sm:$0xff]
      %v4636 = vld [vmem:[%s4630 + $0x28] sm:$0xff]
      %v4637 = vld [vmem:[%s4630 + $0x30] sm:$0xff]
      %v4638 = vld [vmem:[%s4630 + $0x38] sm:$0xff]
      %v4639 = vld [vmem:[%s4630 + $0x40] sm:$0xff]
      %v4640 = vld [vmem:[%s4630 + $0x48] sm:$0xff]
      %v4641 = vld [vmem:[%s4630 + $0x50] sm:$0xff]
      %v4642 = vld [vmem:[%s4630 + $0x58] sm:$0xff]
      %v4643 = vld [vmem:[%s4630 + $0x60] sm:$0xff]
      %v4644 = vld [vmem:[%s4630 + $0x68] sm:$0xff]
      %v4645 = vld [vmem:[%s4630 + $0x70] sm:$0xff]
      %v4646 = vld [vmem:[%s4630 + $0x78] sm:$0xff]
      %v4647 = vld [vmem:[%s4630 + $0x80] sm:$0xff]
      %v4648 = vld [vmem:[%s4630 + $0x88] sm:$0xff]
      %v4649 = vld [vmem:[%s4630 + $0x90] sm:$0xff]
      %v4650 = vld [vmem:[%s4630 + $0x98] sm:$0xff]
      %v4651 = vld [vmem:[%s4630 + $0xa0] sm:$0xff]
      %v4652 = vld [vmem:[%s4630 + $0xa8] sm:$0xff]
      %v4653 = vld [vmem:[%s4630 + $0xb0] sm:$0xff]
      %v4654 = vld [vmem:[%s4630 + $0xb8] sm:$0xff]
      %v4655 = vsel %vm547, %v4579, 0
      %v4657 = vsel %vm547, %v4585, 0
      %v4659 = vsel %vm547, %v4591, 0
      %v4661 = vsel %vm547, %v4597, 0
      %v4663 = vsel %vm547, %v4603, 0
      %v4665 = vsel %vm547, %v4609, 0
      %v4667 = vsel %vm547, %v4615, 0
      %v4669 = vsel %vm547, %v4621, 0
      %4671 = vmatprep.subr.mxu0 0.0
      %4672 = vmatpush1.msra.mxu0 %v4646
      %4673 = vmatprep.subr.mxu0 0.0
      %4674 = vmatpush1.msra.mxu0 %v4645
      %4675 = vmatprep.subr.mxu0 0.0
      %4676 = vmatpush1.msra.mxu0 %v4644
      %4677 = vmatprep.subr.mxu0 0.0
      %4678 = vmatpush1.msra.mxu0 %v4643
      %4679 = vmatprep.subr.mxu0 0.0
      %4680 = vmatpush1.msra.mxu0 %v4642
      %4681 = vmatprep.subr.mxu0 0.0
      %4682 = vmatpush1.msra.mxu0 %v4641
      %4683 = vmatprep.subr.mxu0 0.0
      %4684 = vmatpush1.msra.mxu0 %v4640
      %4685 = vmatprep.subr.mxu0 0.0
      %4686 = vmatpush1.msra.mxu0 %v4639
      %4687 = vmatprep.subr.mxu0 0.0
      %4688 = vmatpush1.msra.mxu0 %v4638
      %4689 = vmatprep.subr.mxu0 0.0
      %4690 = vmatpush1.msra.mxu0 %v4637
      %4691 = vmatprep.subr.mxu0 0.0
      %4692 = vmatpush1.msra.mxu0 %v4636
      %4693 = vmatprep.subr.mxu0 0.0
      %4694 = vmatpush1.msra.mxu0 %v4635
      %4695 = vmatprep.subr.mxu0 0.0
      %4696 = vmatpush1.msra.mxu0 %v4634
      %4697 = vmatprep.subr.mxu0 0.0
      %4698 = vmatpush1.msra.mxu0 %v4633
      %4699 = vmatprep.subr.mxu0 0.0
      %4700 = vmatpush1.msra.mxu0 %v4632
      %4701 = vmatprep.subr.mxu0 0.0
      %4702 = vmatpush1.msra.mxu0 %v4631
      %4703 = vmatprep.subr.mxu0 0.0
      %4704 = vmatpush2.msra.mxu0 0.0
      %4705 = vmatprep.subr.mxu0 0.0
      %4706 = vmatpush2.msra.mxu0 0.0
      %4707 = vmatprep.subr.mxu0 0.0
      %4708 = vmatpush2.msra.mxu0 0.0
      %4709 = vmatprep.subr.mxu0 0.0
      %4710 = vmatpush2.msra.mxu0 0.0
      %4711 = vmatprep.subr.mxu0 0.0
      %4712 = vmatpush2.msra.mxu0 0.0
      %4713 = vmatprep.subr.mxu0 0.0
      %4714 = vmatpush2.msra.mxu0 0.0
      %4715 = vmatprep.subr.mxu0 0.0
      %4716 = vmatpush2.msra.mxu0 0.0
      %4717 = vmatprep.subr.mxu0 0.0
      %4718 = vmatpush2.msra.mxu0 0.0
      %4719 = vmatprep.subr.mxu0 0.0
      %4720 = vmatpush2.msra.mxu0 %v4654
      %4721 = vmatprep.subr.mxu0 0.0
      %4722 = vmatpush2.msra.mxu0 %v4653
      %4723 = vmatprep.subr.mxu0 0.0
      %4724 = vmatpush2.msra.mxu0 %v4652
      %4725 = vmatprep.subr.mxu0 0.0
      %4726 = vmatpush2.msra.mxu0 %v4651
      %4727 = vmatprep.subr.mxu0 0.0
      %4728 = vmatpush2.msra.mxu0 %v4650
      %4729 = vmatprep.subr.mxu0 0.0
      %4730 = vmatpush2.msra.mxu0 %v4649
      %4731 = vmatprep.subr.mxu0 0.0
      %4732 = vmatpush2.msra.mxu0 %v4648
      %4733 = vmatprep.subr.mxu0 0.0
      %4734 = vmatpush2.msra.mxu0 %v4647
      %4735 = vmatprep.mubr.f32.mxu0 %v4655
      %4736 = vmatmul.mubr.f32.gmra.mxu0 %v4576
      %v4737 = vpop.f32.mrf.mxu0
      %v4738 = vadd.f32 0.0, %v4737
      %v4739 = vpop.f32.mrf.mxu0
      %4740 = vmatprep.mubr.f32.mxu0 %v4657
      %4741 = vmatmul.mubr.f32.gmra.mxu0 %v4582
      %v4742 = vpop.f32.mrf.mxu0
      %v4743 = vadd.f32 0.0, %v4742
      %v4744 = vpop.f32.mrf.mxu0
      %4745 = vmatprep.mubr.f32.mxu0 %v4659
      %4746 = vmatmul.mubr.f32.gmra.mxu0 %v4588
      %v4747 = vpop.f32.mrf.mxu0
      %v4748 = vadd.f32 0.0, %v4747
      %v4749 = vpop.f32.mrf.mxu0
      %4750 = vmatprep.mubr.f32.mxu0 %v4661
      %4751 = vmatmul.mubr.f32.gmra.mxu0 %v4594
      %v4752 = vpop.f32.mrf.mxu0
      %v4753 = vadd.f32 0.0, %v4752
      %v4754 = vpop.f32.mrf.mxu0
      %4755 = vmatprep.mubr.f32.mxu0 %v4663
      %4756 = vmatmul.mubr.f32.gmra.mxu0 %v4600
      %v4757 = vpop.f32.mrf.mxu0
      %v4758 = vadd.f32 0.0, %v4757
      %v4759 = vpop.f32.mrf.mxu0
      %4760 = vmatprep.mubr.f32.mxu0 %v4665
      %4761 = vmatmul.mubr.f32.gmra.mxu0 %v4606
      %v4762 = vpop.f32.mrf.mxu0
      %v4763 = vadd.f32 0.0, %v4762
      %v4764 = vpop.f32.mrf.mxu0
      %4765 = vmatprep.mubr.f32.mxu0 %v4667
      %4766 = vmatmul.mubr.f32.gmra.mxu0 %v4612
      %v4767 = vpop.f32.mrf.mxu0
      %v4768 = vadd.f32 0.0, %v4767
      %v4769 = vpop.f32.mrf.mxu0
      %4770 = vmatprep.mubr.f32.mxu0 %v4669
      %4771 = vmatmul.mubr.f32.gmra.mxu0 %v4618
      %v4772 = vpop.f32.mrf.mxu0
      %v4773 = vadd.f32 0.0, %v4772
      %v4774 = vpop.f32.mrf.mxu0
      %4775 = vdwg.mxu0
      %v4776 = vadd.f32 %v4502, %v4738
      %v4777 = vadd.f32 %v4503, %v4743
      %v4778 = vadd.f32 %v4504, %v4748
      %v4779 = vadd.f32 %v4505, %v4753
      %v4780 = vadd.f32 %v4506, %v4758
      %v4781 = vadd.f32 %v4507, %v4763
      %v4782 = vadd.f32 %v4508, %v4768
      %v4783 = vadd.f32 %v4509, %v4773
      %v4784 = vld [vmem:[#allocation2] sm:$0xf0]
      %v4785 = vld [vmem:[#allocation2 + $0x8] sm:$0xf0]
      %v4786 = vld [vmem:[#allocation2 + $0x10] sm:$0xf]
      %v4787 = vld [vmem:[#allocation2 + $0x18] sm:$0xf]
      %v4788 = vld [vmem:[#allocation2 + $0x20] sm:$0xf0]
      %v4789 = vld [vmem:[#allocation2 + $0x28] sm:$0xf0]
      %v4790 = vld [vmem:[#allocation2 + $0x30] sm:$0xf]
      %v4791 = vld [vmem:[#allocation2 + $0x38] sm:$0xf]
      %v4792 = vld [vmem:[#allocation2 + $0x40] sm:$0xf0]
      %v4793 = vld [vmem:[#allocation2 + $0x48] sm:$0xf0]
      %v4794 = vld [vmem:[#allocation2 + $0x50] sm:$0xf]
      %v4795 = vld [vmem:[#allocation2 + $0x58] sm:$0xf]
      %v4796 = vld [vmem:[#allocation2 + $0x60] sm:$0xf0]
      %v4797 = vld [vmem:[#allocation2 + $0x68] sm:$0xf0]
      %v4798 = vld [vmem:[#allocation2 + $0x70] sm:$0xf]
      %v4799 = vld [vmem:[#allocation2 + $0x78] sm:$0xf]
      %v4800 = vld [vmem:[#allocation2 + $0x80] sm:$0xf0]
      %v4801 = vld [vmem:[#allocation2 + $0x88] sm:$0xf0]
      %v4802 = vld [vmem:[#allocation2 + $0x90] sm:$0xf]
      %v4803 = vld [vmem:[#allocation2 + $0x98] sm:$0xf]
      %v4804 = vld [vmem:[#allocation2 + $0xa0] sm:$0xf0]
      %v4805 = vld [vmem:[#allocation2 + $0xa8] sm:$0xf0]
      %v4806 = vld [vmem:[#allocation2 + $0xb0] sm:$0xf]
      %v4807 = vld [vmem:[#allocation2 + $0xb8] sm:$0xf]
      %v4808 = vld [vmem:[#allocation2 + $0xc0] sm:$0xf0]
      %v4809 = vld [vmem:[#allocation2 + $0xc8] sm:$0xf0]
      %v4810 = vld [vmem:[#allocation2 + $0xd0] sm:$0xf]
      %v4811 = vld [vmem:[#allocation2 + $0xd8] sm:$0xf]
      %v4812 = vld [vmem:[#allocation2 + $0xe0] sm:$0xf0]
      %v4813 = vld [vmem:[#allocation2 + $0xe8] sm:$0xf0]
      %v4814 = vld [vmem:[#allocation2 + $0xf0] sm:$0xf]
      %v4815 = vld [vmem:[#allocation2 + $0xf8] sm:$0xf]
      %v4848 = vrot.slane %v4784, 4
      %v4849 = vrot.slane %v4786, 4
      %v4850 = vsel %vm2976, %v4848, %v4849
      %v4851 = vrot.slane %v4785, 4
      %v4852 = vrot.slane %v4787, 4
      %v4853 = vsel %vm2976, %v4851, %v4852
      %v4854 = vrot.slane %v4788, 4
      %v4855 = vrot.slane %v4790, 4
      %v4856 = vsel %vm2976, %v4854, %v4855
      %v4857 = vrot.slane %v4789, 4
      %v4858 = vrot.slane %v4791, 4
      %v4859 = vsel %vm2976, %v4857, %v4858
      %v4860 = vrot.slane %v4792, 4
      %v4861 = vrot.slane %v4794, 4
      %v4862 = vsel %vm2976, %v4860, %v4861
      %v4863 = vrot.slane %v4793, 4
      %v4864 = vrot.slane %v4795, 4
      %v4865 = vsel %vm2976, %v4863, %v4864
      %v4866 = vrot.slane %v4796, 4
      %v4867 = vrot.slane %v4798, 4
      %v4868 = vsel %vm2976, %v4866, %v4867
      %v4869 = vrot.slane %v4797, 4
      %v4870 = vrot.slane %v4799, 4
      %v4871 = vsel %vm2976, %v4869, %v4870
      %v4872 = vrot.slane %v4800, 4
      %v4873 = vrot.slane %v4802, 4
      %v4874 = vsel %vm2976, %v4872, %v4873
      %v4875 = vrot.slane %v4801, 4
      %v4876 = vrot.slane %v4803, 4
      %v4877 = vsel %vm2976, %v4875, %v4876
      %v4878 = vrot.slane %v4804, 4
      %v4879 = vrot.slane %v4806, 4
      %v4880 = vsel %vm2976, %v4878, %v4879
      %v4881 = vrot.slane %v4805, 4
      %v4882 = vrot.slane %v4807, 4
      %v4883 = vsel %vm2976, %v4881, %v4882
      %v4884 = vrot.slane %v4808, 4
      %v4885 = vrot.slane %v4810, 4
      %v4886 = vsel %vm2976, %v4884, %v4885
      %v4887 = vrot.slane %v4809, 4
      %v4888 = vrot.slane %v4811, 4
      %v4889 = vsel %vm2976, %v4887, %v4888
      %v4890 = vrot.slane %v4812, 4
      %v4891 = vrot.slane %v4814, 4
      %v4892 = vsel %vm2976, %v4890, %v4891
      %v4893 = vrot.slane %v4813, 4
      %v4894 = vrot.slane %v4815, 4
      %v4895 = vsel %vm2976, %v4893, %v4894
      %s4904 = scalar_lea.vmem %s6, 768
      %v4905 = vld [vmem:[%s4904] sm:$0xff]
      %v4906 = vld [vmem:[%s4904 + $0x8] sm:$0xff]
      %v4907 = vld [vmem:[%s4904 + $0x10] sm:$0xff]
      %v4908 = vld [vmem:[%s4904 + $0x18] sm:$0xff]
      %v4909 = vld [vmem:[%s4904 + $0x20] sm:$0xff]
      %v4910 = vld [vmem:[%s4904 + $0x28] sm:$0xff]
      %v4911 = vld [vmem:[%s4904 + $0x30] sm:$0xff]
      %v4912 = vld [vmem:[%s4904 + $0x38] sm:$0xff]
      %v4913 = vld [vmem:[%s4904 + $0x40] sm:$0xff]
      %v4914 = vld [vmem:[%s4904 + $0x48] sm:$0xff]
      %v4915 = vld [vmem:[%s4904 + $0x50] sm:$0xff]
      %v4916 = vld [vmem:[%s4904 + $0x58] sm:$0xff]
      %v4917 = vld [vmem:[%s4904 + $0x60] sm:$0xff]
      %v4918 = vld [vmem:[%s4904 + $0x68] sm:$0xff]
      %v4919 = vld [vmem:[%s4904 + $0x70] sm:$0xff]
      %v4920 = vld [vmem:[%s4904 + $0x78] sm:$0xff]
      %v4921 = vld [vmem:[%s4904 + $0x80] sm:$0xff]
      %v4922 = vld [vmem:[%s4904 + $0x88] sm:$0xff]
      %v4923 = vld [vmem:[%s4904 + $0x90] sm:$0xff]
      %v4924 = vld [vmem:[%s4904 + $0x98] sm:$0xff]
      %v4925 = vld [vmem:[%s4904 + $0xa0] sm:$0xff]
      %v4926 = vld [vmem:[%s4904 + $0xa8] sm:$0xff]
      %v4927 = vld [vmem:[%s4904 + $0xb0] sm:$0xff]
      %v4928 = vld [vmem:[%s4904 + $0xb8] sm:$0xff]
      %v4929 = vsel %vm547, %v4853, 0
      %v4931 = vsel %vm547, %v4859, 0
      %v4933 = vsel %vm547, %v4865, 0
      %v4935 = vsel %vm547, %v4871, 0
      %v4937 = vsel %vm547, %v4877, 0
      %v4939 = vsel %vm547, %v4883, 0
      %v4941 = vsel %vm547, %v4889, 0
      %v4943 = vsel %vm547, %v4895, 0
      %4945 = vmatprep.subr.mxu0 0.0
      %4946 = vmatpush1.msra.mxu0 %v4920
      %4947 = vmatprep.subr.mxu0 0.0
      %4948 = vmatpush1.msra.mxu0 %v4919
      %4949 = vmatprep.subr.mxu0 0.0
      %4950 = vmatpush1.msra.mxu0 %v4918
      %4951 = vmatprep.subr.mxu0 0.0
      %4952 = vmatpush1.msra.mxu0 %v4917
      %4953 = vmatprep.subr.mxu0 0.0
      %4954 = vmatpush1.msra.mxu0 %v4916
      %4955 = vmatprep.subr.mxu0 0.0
      %4956 = vmatpush1.msra.mxu0 %v4915
      %4957 = vmatprep.subr.mxu0 0.0
      %4958 = vmatpush1.msra.mxu0 %v4914
      %4959 = vmatprep.subr.mxu0 0.0
      %4960 = vmatpush1.msra.mxu0 %v4913
      %4961 = vmatprep.subr.mxu0 0.0
      %4962 = vmatpush1.msra.mxu0 %v4912
      %4963 = vmatprep.subr.mxu0 0.0
      %4964 = vmatpush1.msra.mxu0 %v4911
      %4965 = vmatprep.subr.mxu0 0.0
      %4966 = vmatpush1.msra.mxu0 %v4910
      %4967 = vmatprep.subr.mxu0 0.0
      %4968 = vmatpush1.msra.mxu0 %v4909
      %4969 = vmatprep.subr.mxu0 0.0
      %4970 = vmatpush1.msra.mxu0 %v4908
      %4971 = vmatprep.subr.mxu0 0.0
      %4972 = vmatpush1.msra.mxu0 %v4907
      %4973 = vmatprep.subr.mxu0 0.0
      %4974 = vmatpush1.msra.mxu0 %v4906
      %4975 = vmatprep.subr.mxu0 0.0
      %4976 = vmatpush1.msra.mxu0 %v4905
      %4977 = vmatprep.subr.mxu0 0.0
      %4978 = vmatpush2.msra.mxu0 0.0
      %4979 = vmatprep.subr.mxu0 0.0
      %4980 = vmatpush2.msra.mxu0 0.0
      %4981 = vmatprep.subr.mxu0 0.0
      %4982 = vmatpush2.msra.mxu0 0.0
      %4983 = vmatprep.subr.mxu0 0.0
      %4984 = vmatpush2.msra.mxu0 0.0
      %4985 = vmatprep.subr.mxu0 0.0
      %4986 = vmatpush2.msra.mxu0 0.0
      %4987 = vmatprep.subr.mxu0 0.0
      %4988 = vmatpush2.msra.mxu0 0.0
      %4989 = vmatprep.subr.mxu0 0.0
      %4990 = vmatpush2.msra.mxu0 0.0
      %4991 = vmatprep.subr.mxu0 0.0
      %4992 = vmatpush2.msra.mxu0 0.0
      %4993 = vmatprep.subr.mxu0 0.0
      %4994 = vmatpush2.msra.mxu0 %v4928
      %4995 = vmatprep.subr.mxu0 0.0
      %4996 = vmatpush2.msra.mxu0 %v4927
      %4997 = vmatprep.subr.mxu0 0.0
      %4998 = vmatpush2.msra.mxu0 %v4926
      %4999 = vmatprep.subr.mxu0 0.0
      %5000 = vmatpush2.msra.mxu0 %v4925
      %5001 = vmatprep.subr.mxu0 0.0
      %5002 = vmatpush2.msra.mxu0 %v4924
      %5003 = vmatprep.subr.mxu0 0.0
      %5004 = vmatpush2.msra.mxu0 %v4923
      %5005 = vmatprep.subr.mxu0 0.0
      %5006 = vmatpush2.msra.mxu0 %v4922
      %5007 = vmatprep.subr.mxu0 0.0
      %5008 = vmatpush2.msra.mxu0 %v4921
      %5009 = vmatprep.mubr.f32.mxu0 %v4929
      %5010 = vmatmul.mubr.f32.gmra.mxu0 %v4850
      %v5011 = vpop.f32.mrf.mxu0
      %v5012 = vadd.f32 0.0, %v5011
      %v5013 = vpop.f32.mrf.mxu0
      %5014 = vmatprep.mubr.f32.mxu0 %v4931
      %5015 = vmatmul.mubr.f32.gmra.mxu0 %v4856
      %v5016 = vpop.f32.mrf.mxu0
      %v5017 = vadd.f32 0.0, %v5016
      %v5018 = vpop.f32.mrf.mxu0
      %5019 = vmatprep.mubr.f32.mxu0 %v4933
      %5020 = vmatmul.mubr.f32.gmra.mxu0 %v4862
      %v5021 = vpop.f32.mrf.mxu0
      %v5022 = vadd.f32 0.0, %v5021
      %v5023 = vpop.f32.mrf.mxu0
      %5024 = vmatprep.mubr.f32.mxu0 %v4935
      %5025 = vmatmul.mubr.f32.gmra.mxu0 %v4868
      %v5026 = vpop.f32.mrf.mxu0
      %v5027 = vadd.f32 0.0, %v5026
      %v5028 = vpop.f32.mrf.mxu0
      %5029 = vmatprep.mubr.f32.mxu0 %v4937
      %5030 = vmatmul.mubr.f32.gmra.mxu0 %v4874
      %v5031 = vpop.f32.mrf.mxu0
      %v5032 = vadd.f32 0.0, %v5031
      %v5033 = vpop.f32.mrf.mxu0
      %5034 = vmatprep.mubr.f32.mxu0 %v4939
      %5035 = vmatmul.mubr.f32.gmra.mxu0 %v4880
      %v5036 = vpop.f32.mrf.mxu0
      %v5037 = vadd.f32 0.0, %v5036
      %v5038 = vpop.f32.mrf.mxu0
      %5039 = vmatprep.mubr.f32.mxu0 %v4941
      %5040 = vmatmul.mubr.f32.gmra.mxu0 %v4886
      %v5041 = vpop.f32.mrf.mxu0
      %v5042 = vadd.f32 0.0, %v5041
      %v5043 = vpop.f32.mrf.mxu0
      %5044 = vmatprep.mubr.f32.mxu0 %v4943
      %5045 = vmatmul.mubr.f32.gmra.mxu0 %v4892
      %v5046 = vpop.f32.mrf.mxu0
      %v5047 = vadd.f32 0.0, %v5046
      %v5048 = vpop.f32.mrf.mxu0
      %5049 = vdwg.mxu0
      %v5050 = vadd.f32 %v4776, %v5012
      %v5051 = vadd.f32 %v4777, %v5017
      %v5052 = vadd.f32 %v4778, %v5022
      %v5053 = vadd.f32 %v4779, %v5027
      %v5054 = vadd.f32 %v4780, %v5032
      %v5055 = vadd.f32 %v4781, %v5037
      %v5056 = vadd.f32 %v4782, %v5042
      %v5057 = vadd.f32 %v4783, %v5047
      %v5058 = vld [vmem:[#allocation2] sm:$0xe0]
      %v5059 = vld [vmem:[#allocation2 + $0x8] sm:$0xe0]
      %v5060 = vld [vmem:[#allocation2 + $0x10] sm:$0x1f]
      %v5061 = vld [vmem:[#allocation2 + $0x18] sm:$0x1f]
      %v5062 = vld [vmem:[#allocation2 + $0x20] sm:$0xe0]
      %v5063 = vld [vmem:[#allocation2 + $0x28] sm:$0xe0]
      %v5064 = vld [vmem:[#allocation2 + $0x30] sm:$0x1f]
      %v5065 = vld [vmem:[#allocation2 + $0x38] sm:$0x1f]
      %v5066 = vld [vmem:[#allocation2 + $0x40] sm:$0xe0]
      %v5067 = vld [vmem:[#allocation2 + $0x48] sm:$0xe0]
      %v5068 = vld [vmem:[#allocation2 + $0x50] sm:$0x1f]
      %v5069 = vld [vmem:[#allocation2 + $0x58] sm:$0x1f]
      %v5070 = vld [vmem:[#allocation2 + $0x60] sm:$0xe0]
      %v5071 = vld [vmem:[#allocation2 + $0x68] sm:$0xe0]
      %v5072 = vld [vmem:[#allocation2 + $0x70] sm:$0x1f]
      %v5073 = vld [vmem:[#allocation2 + $0x78] sm:$0x1f]
      %v5074 = vld [vmem:[#allocation2 + $0x80] sm:$0xe0]
      %v5075 = vld [vmem:[#allocation2 + $0x88] sm:$0xe0]
      %v5076 = vld [vmem:[#allocation2 + $0x90] sm:$0x1f]
      %v5077 = vld [vmem:[#allocation2 + $0x98] sm:$0x1f]
      %v5078 = vld [vmem:[#allocation2 + $0xa0] sm:$0xe0]
      %v5079 = vld [vmem:[#allocation2 + $0xa8] sm:$0xe0]
      %v5080 = vld [vmem:[#allocation2 + $0xb0] sm:$0x1f]
      %v5081 = vld [vmem:[#allocation2 + $0xb8] sm:$0x1f]
      %v5082 = vld [vmem:[#allocation2 + $0xc0] sm:$0xe0]
      %v5083 = vld [vmem:[#allocation2 + $0xc8] sm:$0xe0]
      %v5084 = vld [vmem:[#allocation2 + $0xd0] sm:$0x1f]
      %v5085 = vld [vmem:[#allocation2 + $0xd8] sm:$0x1f]
      %v5086 = vld [vmem:[#allocation2 + $0xe0] sm:$0xe0]
      %v5087 = vld [vmem:[#allocation2 + $0xe8] sm:$0xe0]
      %v5088 = vld [vmem:[#allocation2 + $0xf0] sm:$0x1f]
      %v5089 = vld [vmem:[#allocation2 + $0xf8] sm:$0x1f]
      %v5122 = vrot.slane %v5058, 5
      %v5123 = vrot.slane %v5060, 5
      %v5124 = vsel %vm3164, %v5122, %v5123
      %v5125 = vrot.slane %v5059, 5
      %v5126 = vrot.slane %v5061, 5
      %v5127 = vsel %vm3164, %v5125, %v5126
      %v5128 = vrot.slane %v5062, 5
      %v5129 = vrot.slane %v5064, 5
      %v5130 = vsel %vm3164, %v5128, %v5129
      %v5131 = vrot.slane %v5063, 5
      %v5132 = vrot.slane %v5065, 5
      %v5133 = vsel %vm3164, %v5131, %v5132
      %v5134 = vrot.slane %v5066, 5
      %v5135 = vrot.slane %v5068, 5
      %v5136 = vsel %vm3164, %v5134, %v5135
      %v5137 = vrot.slane %v5067, 5
      %v5138 = vrot.slane %v5069, 5
      %v5139 = vsel %vm3164, %v5137, %v5138
      %v5140 = vrot.slane %v5070, 5
      %v5141 = vrot.slane %v5072, 5
      %v5142 = vsel %vm3164, %v5140, %v5141
      %v5143 = vrot.slane %v5071, 5
      %v5144 = vrot.slane %v5073, 5
      %v5145 = vsel %vm3164, %v5143, %v5144
      %v5146 = vrot.slane %v5074, 5
      %v5147 = vrot.slane %v5076, 5
      %v5148 = vsel %vm3164, %v5146, %v5147
      %v5149 = vrot.slane %v5075, 5
      %v5150 = vrot.slane %v5077, 5
      %v5151 = vsel %vm3164, %v5149, %v5150
      %v5152 = vrot.slane %v5078, 5
      %v5153 = vrot.slane %v5080, 5
      %v5154 = vsel %vm3164, %v5152, %v5153
      %v5155 = vrot.slane %v5079, 5
      %v5156 = vrot.slane %v5081, 5
      %v5157 = vsel %vm3164, %v5155, %v5156
      %v5158 = vrot.slane %v5082, 5
      %v5159 = vrot.slane %v5084, 5
      %v5160 = vsel %vm3164, %v5158, %v5159
      %v5161 = vrot.slane %v5083, 5
      %v5162 = vrot.slane %v5085, 5
      %v5163 = vsel %vm3164, %v5161, %v5162
      %v5164 = vrot.slane %v5086, 5
      %v5165 = vrot.slane %v5088, 5
      %v5166 = vsel %vm3164, %v5164, %v5165
      %v5167 = vrot.slane %v5087, 5
      %v5168 = vrot.slane %v5089, 5
      %v5169 = vsel %vm3164, %v5167, %v5168
      %s5178 = scalar_lea.vmem %s6, 960
      %v5179 = vld [vmem:[%s5178] sm:$0xff]
      %v5180 = vld [vmem:[%s5178 + $0x8] sm:$0xff]
      %v5181 = vld [vmem:[%s5178 + $0x10] sm:$0xff]
      %v5182 = vld [vmem:[%s5178 + $0x18] sm:$0xff]
      %v5183 = vld [vmem:[%s5178 + $0x20] sm:$0xff]
      %v5184 = vld [vmem:[%s5178 + $0x28] sm:$0xff]
      %v5185 = vld [vmem:[%s5178 + $0x30] sm:$0xff]
      %v5186 = vld [vmem:[%s5178 + $0x38] sm:$0xff]
      %v5187 = vld [vmem:[%s5178 + $0x40] sm:$0xff]
      %v5188 = vld [vmem:[%s5178 + $0x48] sm:$0xff]
      %v5189 = vld [vmem:[%s5178 + $0x50] sm:$0xff]
      %v5190 = vld [vmem:[%s5178 + $0x58] sm:$0xff]
      %v5191 = vld [vmem:[%s5178 + $0x60] sm:$0xff]
      %v5192 = vld [vmem:[%s5178 + $0x68] sm:$0xff]
      %v5193 = vld [vmem:[%s5178 + $0x70] sm:$0xff]
      %v5194 = vld [vmem:[%s5178 + $0x78] sm:$0xff]
      %v5195 = vld [vmem:[%s5178 + $0x80] sm:$0xff]
      %v5196 = vld [vmem:[%s5178 + $0x88] sm:$0xff]
      %v5197 = vld [vmem:[%s5178 + $0x90] sm:$0xff]
      %v5198 = vld [vmem:[%s5178 + $0x98] sm:$0xff]
      %v5199 = vld [vmem:[%s5178 + $0xa0] sm:$0xff]
      %v5200 = vld [vmem:[%s5178 + $0xa8] sm:$0xff]
      %v5201 = vld [vmem:[%s5178 + $0xb0] sm:$0xff]
      %v5202 = vld [vmem:[%s5178 + $0xb8] sm:$0xff]
      %v5203 = vsel %vm547, %v5127, 0
      %v5205 = vsel %vm547, %v5133, 0
      %v5207 = vsel %vm547, %v5139, 0
      %v5209 = vsel %vm547, %v5145, 0
      %v5211 = vsel %vm547, %v5151, 0
      %v5213 = vsel %vm547, %v5157, 0
      %v5215 = vsel %vm547, %v5163, 0
      %v5217 = vsel %vm547, %v5169, 0
      %5219 = vmatprep.subr.mxu0 0.0
      %5220 = vmatpush1.msra.mxu0 %v5194
      %5221 = vmatprep.subr.mxu0 0.0
      %5222 = vmatpush1.msra.mxu0 %v5193
      %5223 = vmatprep.subr.mxu0 0.0
      %5224 = vmatpush1.msra.mxu0 %v5192
      %5225 = vmatprep.subr.mxu0 0.0
      %5226 = vmatpush1.msra.mxu0 %v5191
      %5227 = vmatprep.subr.mxu0 0.0
      %5228 = vmatpush1.msra.mxu0 %v5190
      %5229 = vmatprep.subr.mxu0 0.0
      %5230 = vmatpush1.msra.mxu0 %v5189
      %5231 = vmatprep.subr.mxu0 0.0
      %5232 = vmatpush1.msra.mxu0 %v5188
      %5233 = vmatprep.subr.mxu0 0.0
      %5234 = vmatpush1.msra.mxu0 %v5187
      %5235 = vmatprep.subr.mxu0 0.0
      %5236 = vmatpush1.msra.mxu0 %v5186
      %5237 = vmatprep.subr.mxu0 0.0
      %5238 = vmatpush1.msra.mxu0 %v5185
      %5239 = vmatprep.subr.mxu0 0.0
      %5240 = vmatpush1.msra.mxu0 %v5184
      %5241 = vmatprep.subr.mxu0 0.0
      %5242 = vmatpush1.msra.mxu0 %v5183
      %5243 = vmatprep.subr.mxu0 0.0
      %5244 = vmatpush1.msra.mxu0 %v5182
      %5245 = vmatprep.subr.mxu0 0.0
      %5246 = vmatpush1.msra.mxu0 %v5181
      %5247 = vmatprep.subr.mxu0 0.0
      %5248 = vmatpush1.msra.mxu0 %v5180
      %5249 = vmatprep.subr.mxu0 0.0
      %5250 = vmatpush1.msra.mxu0 %v5179
      %5251 = vmatprep.subr.mxu0 0.0
      %5252 = vmatpush2.msra.mxu0 0.0
      %5253 = vmatprep.subr.mxu0 0.0
      %5254 = vmatpush2.msra.mxu0 0.0
      %5255 = vmatprep.subr.mxu0 0.0
      %5256 = vmatpush2.msra.mxu0 0.0
      %5257 = vmatprep.subr.mxu0 0.0
      %5258 = vmatpush2.msra.mxu0 0.0
      %5259 = vmatprep.subr.mxu0 0.0
      %5260 = vmatpush2.msra.mxu0 0.0
      %5261 = vmatprep.subr.mxu0 0.0
      %5262 = vmatpush2.msra.mxu0 0.0
      %5263 = vmatprep.subr.mxu0 0.0
      %5264 = vmatpush2.msra.mxu0 0.0
      %5265 = vmatprep.subr.mxu0 0.0
      %5266 = vmatpush2.msra.mxu0 0.0
      %5267 = vmatprep.subr.mxu0 0.0
      %5268 = vmatpush2.msra.mxu0 %v5202
      %5269 = vmatprep.subr.mxu0 0.0
      %5270 = vmatpush2.msra.mxu0 %v5201
      %5271 = vmatprep.subr.mxu0 0.0
      %5272 = vmatpush2.msra.mxu0 %v5200
      %5273 = vmatprep.subr.mxu0 0.0
      %5274 = vmatpush2.msra.mxu0 %v5199
      %5275 = vmatprep.subr.mxu0 0.0
      %5276 = vmatpush2.msra.mxu0 %v5198
      %5277 = vmatprep.subr.mxu0 0.0
      %5278 = vmatpush2.msra.mxu0 %v5197
      %5279 = vmatprep.subr.mxu0 0.0
      %5280 = vmatpush2.msra.mxu0 %v5196
      %5281 = vmatprep.subr.mxu0 0.0
      %5282 = vmatpush2.msra.mxu0 %v5195
      %5283 = vmatprep.mubr.f32.mxu0 %v5203
      %5284 = vmatmul.mubr.f32.gmra.mxu0 %v5124
      %v5285 = vpop.f32.mrf.mxu0
      %v5286 = vadd.f32 0.0, %v5285
      %v5287 = vpop.f32.mrf.mxu0
      %5288 = vmatprep.mubr.f32.mxu0 %v5205
      %5289 = vmatmul.mubr.f32.gmra.mxu0 %v5130
      %v5290 = vpop.f32.mrf.mxu0
      %v5291 = vadd.f32 0.0, %v5290
      %v5292 = vpop.f32.mrf.mxu0
      %5293 = vmatprep.mubr.f32.mxu0 %v5207
      %5294 = vmatmul.mubr.f32.gmra.mxu0 %v5136
      %v5295 = vpop.f32.mrf.mxu0
      %v5296 = vadd.f32 0.0, %v5295
      %v5297 = vpop.f32.mrf.mxu0
      %5298 = vmatprep.mubr.f32.mxu0 %v5209
      %5299 = vmatmul.mubr.f32.gmra.mxu0 %v5142
      %v5300 = vpop.f32.mrf.mxu0
      %v5301 = vadd.f32 0.0, %v5300
      %v5302 = vpop.f32.mrf.mxu0
      %5303 = vmatprep.mubr.f32.mxu0 %v5211
      %5304 = vmatmul.mubr.f32.gmra.mxu0 %v5148
      %v5305 = vpop.f32.mrf.mxu0
      %v5306 = vadd.f32 0.0, %v5305
      %v5307 = vpop.f32.mrf.mxu0
      %5308 = vmatprep.mubr.f32.mxu0 %v5213
      %5309 = vmatmul.mubr.f32.gmra.mxu0 %v5154
      %v5310 = vpop.f32.mrf.mxu0
      %v5311 = vadd.f32 0.0, %v5310
      %v5312 = vpop.f32.mrf.mxu0
      %5313 = vmatprep.mubr.f32.mxu0 %v5215
      %5314 = vmatmul.mubr.f32.gmra.mxu0 %v5160
      %v5315 = vpop.f32.mrf.mxu0
      %v5316 = vadd.f32 0.0, %v5315
      %v5317 = vpop.f32.mrf.mxu0
      %5318 = vmatprep.mubr.f32.mxu0 %v5217
      %5319 = vmatmul.mubr.f32.gmra.mxu0 %v5166
      %v5320 = vpop.f32.mrf.mxu0
      %v5321 = vadd.f32 0.0, %v5320
      %v5322 = vpop.f32.mrf.mxu0
      %5323 = vdwg.mxu0
      %v5324 = vadd.f32 %v5050, %v5286
      %v5325 = vadd.f32 %v5051, %v5291
      %v5326 = vadd.f32 %v5052, %v5296
      %v5327 = vadd.f32 %v5053, %v5301
      %v5328 = vadd.f32 %v5054, %v5306
      %v5329 = vadd.f32 %v5055, %v5311
      %v5330 = vadd.f32 %v5056, %v5316
      %v5331 = vadd.f32 %v5057, %v5321
      %v5332 = vld [vmem:[#allocation2] sm:$0xc0]
      %v5333 = vld [vmem:[#allocation2 + $0x8] sm:$0xc0]
      %v5334 = vld [vmem:[#allocation2 + $0x10] sm:$0x3f]
      %v5335 = vld [vmem:[#allocation2 + $0x18] sm:$0x3f]
      %v5336 = vld [vmem:[#allocation2 + $0x20] sm:$0xc0]
      %v5337 = vld [vmem:[#allocation2 + $0x28] sm:$0xc0]
      %v5338 = vld [vmem:[#allocation2 + $0x30] sm:$0x3f]
      %v5339 = vld [vmem:[#allocation2 + $0x38] sm:$0x3f]
      %v5340 = vld [vmem:[#allocation2 + $0x40] sm:$0xc0]
      %v5341 = vld [vmem:[#allocation2 + $0x48] sm:$0xc0]
      %v5342 = vld [vmem:[#allocation2 + $0x50] sm:$0x3f]
      %v5343 = vld [vmem:[#allocation2 + $0x58] sm:$0x3f]
      %v5344 = vld [vmem:[#allocation2 + $0x60] sm:$0xc0]
      %v5345 = vld [vmem:[#allocation2 + $0x68] sm:$0xc0]
      %v5346 = vld [vmem:[#allocation2 + $0x70] sm:$0x3f]
      %v5347 = vld [vmem:[#allocation2 + $0x78] sm:$0x3f]
      %v5348 = vld [vmem:[#allocation2 + $0x80] sm:$0xc0]
      %v5349 = vld [vmem:[#allocation2 + $0x88] sm:$0xc0]
      %v5350 = vld [vmem:[#allocation2 + $0x90] sm:$0x3f]
      %v5351 = vld [vmem:[#allocation2 + $0x98] sm:$0x3f]
      %v5352 = vld [vmem:[#allocation2 + $0xa0] sm:$0xc0]
      %v5353 = vld [vmem:[#allocation2 + $0xa8] sm:$0xc0]
      %v5354 = vld [vmem:[#allocation2 + $0xb0] sm:$0x3f]
      %v5355 = vld [vmem:[#allocation2 + $0xb8] sm:$0x3f]
      %v5356 = vld [vmem:[#allocation2 + $0xc0] sm:$0xc0]
      %v5357 = vld [vmem:[#allocation2 + $0xc8] sm:$0xc0]
      %v5358 = vld [vmem:[#allocation2 + $0xd0] sm:$0x3f]
      %v5359 = vld [vmem:[#allocation2 + $0xd8] sm:$0x3f]
      %v5360 = vld [vmem:[#allocation2 + $0xe0] sm:$0xc0]
      %v5361 = vld [vmem:[#allocation2 + $0xe8] sm:$0xc0]
      %v5362 = vld [vmem:[#allocation2 + $0xf0] sm:$0x3f]
      %v5363 = vld [vmem:[#allocation2 + $0xf8] sm:$0x3f]
      %v5396 = vrot.slane %v5332, 6
      %v5397 = vrot.slane %v5334, 6
      %v5398 = vsel %vm3352, %v5396, %v5397
      %v5399 = vrot.slane %v5333, 6
      %v5400 = vrot.slane %v5335, 6
      %v5401 = vsel %vm3352, %v5399, %v5400
      %v5402 = vrot.slane %v5336, 6
      %v5403 = vrot.slane %v5338, 6
      %v5404 = vsel %vm3352, %v5402, %v5403
      %v5405 = vrot.slane %v5337, 6
      %v5406 = vrot.slane %v5339, 6
      %v5407 = vsel %vm3352, %v5405, %v5406
      %v5408 = vrot.slane %v5340, 6
      %v5409 = vrot.slane %v5342, 6
      %v5410 = vsel %vm3352, %v5408, %v5409
      %v5411 = vrot.slane %v5341, 6
      %v5412 = vrot.slane %v5343, 6
      %v5413 = vsel %vm3352, %v5411, %v5412
      %v5414 = vrot.slane %v5344, 6
      %v5415 = vrot.slane %v5346, 6
      %v5416 = vsel %vm3352, %v5414, %v5415
      %v5417 = vrot.slane %v5345, 6
      %v5418 = vrot.slane %v5347, 6
      %v5419 = vsel %vm3352, %v5417, %v5418
      %v5420 = vrot.slane %v5348, 6
      %v5421 = vrot.slane %v5350, 6
      %v5422 = vsel %vm3352, %v5420, %v5421
      %v5423 = vrot.slane %v5349, 6
      %v5424 = vrot.slane %v5351, 6
      %v5425 = vsel %vm3352, %v5423, %v5424
      %v5426 = vrot.slane %v5352, 6
      %v5427 = vrot.slane %v5354, 6
      %v5428 = vsel %vm3352, %v5426, %v5427
      %v5429 = vrot.slane %v5353, 6
      %v5430 = vrot.slane %v5355, 6
      %v5431 = vsel %vm3352, %v5429, %v5430
      %v5432 = vrot.slane %v5356, 6
      %v5433 = vrot.slane %v5358, 6
      %v5434 = vsel %vm3352, %v5432, %v5433
      %v5435 = vrot.slane %v5357, 6
      %v5436 = vrot.slane %v5359, 6
      %v5437 = vsel %vm3352, %v5435, %v5436
      %v5438 = vrot.slane %v5360, 6
      %v5439 = vrot.slane %v5362, 6
      %v5440 = vsel %vm3352, %v5438, %v5439
      %v5441 = vrot.slane %v5361, 6
      %v5442 = vrot.slane %v5363, 6
      %v5443 = vsel %vm3352, %v5441, %v5442
      %s5452 = scalar_lea.vmem %s6, 1152
      %v5453 = vld [vmem:[%s5452] sm:$0xff]
      %v5454 = vld [vmem:[%s5452 + $0x8] sm:$0xff]
      %v5455 = vld [vmem:[%s5452 + $0x10] sm:$0xff]
      %v5456 = vld [vmem:[%s5452 + $0x18] sm:$0xff]
      %v5457 = vld [vmem:[%s5452 + $0x20] sm:$0xff]
      %v5458 = vld [vmem:[%s5452 + $0x28] sm:$0xff]
      %v5459 = vld [vmem:[%s5452 + $0x30] sm:$0xff]
      %v5460 = vld [vmem:[%s5452 + $0x38] sm:$0xff]
      %v5461 = vld [vmem:[%s5452 + $0x40] sm:$0xff]
      %v5462 = vld [vmem:[%s5452 + $0x48] sm:$0xff]
      %v5463 = vld [vmem:[%s5452 + $0x50] sm:$0xff]
      %v5464 = vld [vmem:[%s5452 + $0x58] sm:$0xff]
      %v5465 = vld [vmem:[%s5452 + $0x60] sm:$0xff]
      %v5466 = vld [vmem:[%s5452 + $0x68] sm:$0xff]
      %v5467 = vld [vmem:[%s5452 + $0x70] sm:$0xff]
      %v5468 = vld [vmem:[%s5452 + $0x78] sm:$0xff]
      %v5469 = vld [vmem:[%s5452 + $0x80] sm:$0xff]
      %v5470 = vld [vmem:[%s5452 + $0x88] sm:$0xff]
      %v5471 = vld [vmem:[%s5452 + $0x90] sm:$0xff]
      %v5472 = vld [vmem:[%s5452 + $0x98] sm:$0xff]
      %v5473 = vld [vmem:[%s5452 + $0xa0] sm:$0xff]
      %v5474 = vld [vmem:[%s5452 + $0xa8] sm:$0xff]
      %v5475 = vld [vmem:[%s5452 + $0xb0] sm:$0xff]
      %v5476 = vld [vmem:[%s5452 + $0xb8] sm:$0xff]
      %v5477 = vsel %vm547, %v5401, 0
      %v5479 = vsel %vm547, %v5407, 0
      %v5481 = vsel %vm547, %v5413, 0
      %v5483 = vsel %vm547, %v5419, 0
      %v5485 = vsel %vm547, %v5425, 0
      %v5487 = vsel %vm547, %v5431, 0
      %v5489 = vsel %vm547, %v5437, 0
      %v5491 = vsel %vm547, %v5443, 0
      %5493 = vmatprep.subr.mxu0 0.0
      %5494 = vmatpush1.msra.mxu0 %v5468
      %5495 = vmatprep.subr.mxu0 0.0
      %5496 = vmatpush1.msra.mxu0 %v5467
      %5497 = vmatprep.subr.mxu0 0.0
      %5498 = vmatpush1.msra.mxu0 %v5466
      %5499 = vmatprep.subr.mxu0 0.0
      %5500 = vmatpush1.msra.mxu0 %v5465
      %5501 = vmatprep.subr.mxu0 0.0
      %5502 = vmatpush1.msra.mxu0 %v5464
      %5503 = vmatprep.subr.mxu0 0.0
      %5504 = vmatpush1.msra.mxu0 %v5463
      %5505 = vmatprep.subr.mxu0 0.0
      %5506 = vmatpush1.msra.mxu0 %v5462
      %5507 = vmatprep.subr.mxu0 0.0
      %5508 = vmatpush1.msra.mxu0 %v5461
      %5509 = vmatprep.subr.mxu0 0.0
      %5510 = vmatpush1.msra.mxu0 %v5460
      %5511 = vmatprep.subr.mxu0 0.0
      %5512 = vmatpush1.msra.mxu0 %v5459
      %5513 = vmatprep.subr.mxu0 0.0
      %5514 = vmatpush1.msra.mxu0 %v5458
      %5515 = vmatprep.subr.mxu0 0.0
      %5516 = vmatpush1.msra.mxu0 %v5457
      %5517 = vmatprep.subr.mxu0 0.0
      %5518 = vmatpush1.msra.mxu0 %v5456
      %5519 = vmatprep.subr.mxu0 0.0
      %5520 = vmatpush1.msra.mxu0 %v5455
      %5521 = vmatprep.subr.mxu0 0.0
      %5522 = vmatpush1.msra.mxu0 %v5454
      %5523 = vmatprep.subr.mxu0 0.0
      %5524 = vmatpush1.msra.mxu0 %v5453
      %5525 = vmatprep.subr.mxu0 0.0
      %5526 = vmatpush2.msra.mxu0 0.0
      %5527 = vmatprep.subr.mxu0 0.0
      %5528 = vmatpush2.msra.mxu0 0.0
      %5529 = vmatprep.subr.mxu0 0.0
      %5530 = vmatpush2.msra.mxu0 0.0
      %5531 = vmatprep.subr.mxu0 0.0
      %5532 = vmatpush2.msra.mxu0 0.0
      %5533 = vmatprep.subr.mxu0 0.0
      %5534 = vmatpush2.msra.mxu0 0.0
      %5535 = vmatprep.subr.mxu0 0.0
      %5536 = vmatpush2.msra.mxu0 0.0
      %5537 = vmatprep.subr.mxu0 0.0
      %5538 = vmatpush2.msra.mxu0 0.0
      %5539 = vmatprep.subr.mxu0 0.0
      %5540 = vmatpush2.msra.mxu0 0.0
      %5541 = vmatprep.subr.mxu0 0.0
      %5542 = vmatpush2.msra.mxu0 %v5476
      %5543 = vmatprep.subr.mxu0 0.0
      %5544 = vmatpush2.msra.mxu0 %v5475
      %5545 = vmatprep.subr.mxu0 0.0
      %5546 = vmatpush2.msra.mxu0 %v5474
      %5547 = vmatprep.subr.mxu0 0.0
      %5548 = vmatpush2.msra.mxu0 %v5473
      %5549 = vmatprep.subr.mxu0 0.0
      %5550 = vmatpush2.msra.mxu0 %v5472
      %5551 = vmatprep.subr.mxu0 0.0
      %5552 = vmatpush2.msra.mxu0 %v5471
      %5553 = vmatprep.subr.mxu0 0.0
      %5554 = vmatpush2.msra.mxu0 %v5470
      %5555 = vmatprep.subr.mxu0 0.0
      %5556 = vmatpush2.msra.mxu0 %v5469
      %5557 = vmatprep.mubr.f32.mxu0 %v5477
      %5558 = vmatmul.mubr.f32.gmra.mxu0 %v5398
      %v5559 = vpop.f32.mrf.mxu0
      %v5560 = vadd.f32 0.0, %v5559
      %v5561 = vpop.f32.mrf.mxu0
      %5562 = vmatprep.mubr.f32.mxu0 %v5479
      %5563 = vmatmul.mubr.f32.gmra.mxu0 %v5404
      %v5564 = vpop.f32.mrf.mxu0
      %v5565 = vadd.f32 0.0, %v5564
      %v5566 = vpop.f32.mrf.mxu0
      %5567 = vmatprep.mubr.f32.mxu0 %v5481
      %5568 = vmatmul.mubr.f32.gmra.mxu0 %v5410
      %v5569 = vpop.f32.mrf.mxu0
      %v5570 = vadd.f32 0.0, %v5569
      %v5571 = vpop.f32.mrf.mxu0
      %5572 = vmatprep.mubr.f32.mxu0 %v5483
      %5573 = vmatmul.mubr.f32.gmra.mxu0 %v5416
      %v5574 = vpop.f32.mrf.mxu0
      %v5575 = vadd.f32 0.0, %v5574
      %v5576 = vpop.f32.mrf.mxu0
      %5577 = vmatprep.mubr.f32.mxu0 %v5485
      %5578 = vmatmul.mubr.f32.gmra.mxu0 %v5422
      %v5579 = vpop.f32.mrf.mxu0
      %v5580 = vadd.f32 0.0, %v5579
      %v5581 = vpop.f32.mrf.mxu0
      %5582 = vmatprep.mubr.f32.mxu0 %v5487
      %5583 = vmatmul.mubr.f32.gmra.mxu0 %v5428
      %v5584 = vpop.f32.mrf.mxu0
      %v5585 = vadd.f32 0.0, %v5584
      %v5586 = vpop.f32.mrf.mxu0
      %5587 = vmatprep.mubr.f32.mxu0 %v5489
      %5588 = vmatmul.mubr.f32.gmra.mxu0 %v5434
      %v5589 = vpop.f32.mrf.mxu0
      %v5590 = vadd.f32 0.0, %v5589
      %v5591 = vpop.f32.mrf.mxu0
      %5592 = vmatprep.mubr.f32.mxu0 %v5491
      %5593 = vmatmul.mubr.f32.gmra.mxu0 %v5440
      %v5594 = vpop.f32.mrf.mxu0
      %v5595 = vadd.f32 0.0, %v5594
      %v5596 = vpop.f32.mrf.mxu0
      %5597 = vdwg.mxu0
      %v5598 = vadd.f32 %v5324, %v5560
      %v5599 = vadd.f32 %v5325, %v5565
      %v5600 = vadd.f32 %v5326, %v5570
      %v5601 = vadd.f32 %v5327, %v5575
      %v5602 = vadd.f32 %v5328, %v5580
      %v5603 = vadd.f32 %v5329, %v5585
      %v5604 = vadd.f32 %v5330, %v5590
      %v5605 = vadd.f32 %v5331, %v5595
      %v5606 = vmax.f32 %v5598, 0.0
      %v5607 = vmax.f32 %v5599, 0.0
      %v5608 = vmax.f32 %v5600, 0.0
      %v5609 = vmax.f32 %v5601, 0.0
      %v5610 = vmax.f32 %v5602, 0.0
      %v5611 = vmax.f32 %v5603, 0.0
      %v5612 = vmax.f32 %v5604, 0.0
      %v5613 = vmax.f32 %v5605, 0.0
      %5614 = vst.msk [vmem:[#allocation2] sm:$0xff] %vm2317, 0.0
      %5615 = vst.msk [vmem:[#allocation2 + $0x20] sm:$0xff] %vm2317, 0.0
      %5616 = vst.msk [vmem:[#allocation2 + $0x40] sm:$0xff] %vm2317, 0.0
      %5617 = vst.msk [vmem:[%s852] sm:$0xff] %vm2317, 0.0
      %5618 = vst.msk [vmem:[%s852 + $0x20] sm:$0xff] %vm2317, 0.0
      %5619 = vst.msk [vmem:[%s852 + $0x40] sm:$0xff] %vm2317, 0.0
      %5620 = vst.msk [vmem:[%s931] sm:$0xff] %vm2317, %v5606
      %5621 = vst.msk [vmem:[%s931 + $0x20] sm:$0xff] %vm2317, %v5607
      %5622 = vst.msk [vmem:[%s931 + $0x40] sm:$0xff] %vm2317, %v5608
      %5623 = vst.msk [vmem:[%s931 + $0x60] sm:$0xff] %vm2317, %v5609
      %5624 = vst.msk [vmem:[%s931 + $0x80] sm:$0xff] %vm2317, %v5610
      %5625 = vst.msk [vmem:[%s931 + $0xa0] sm:$0xff] %vm2317, %v5611
      %5626 = vst.msk [vmem:[%s931 + $0xc0] sm:$0xff] %vm2317, %v5612
      %5627 = vst.msk [vmem:[%s931 + $0xe0] sm:$0xff] %vm2317, %v5613
      %v5628 = vld [vmem:[#allocation2] sm:$0xff]
      %v5629 = vld [vmem:[#allocation2 + $0x20] sm:$0xff]
      %v5630 = vld [vmem:[#allocation2 + $0x40] sm:$0xff]
      %v5631 = vld [vmem:[#allocation2 + $0x60] sm:$0xff]
      %v5632 = vld [vmem:[#allocation2 + $0x80] sm:$0xff]
      %v5633 = vld [vmem:[#allocation2 + $0xa0] sm:$0xff]
      %v5634 = vld [vmem:[#allocation2 + $0xc0] sm:$0xff]
      %v5635 = vld [vmem:[#allocation2 + $0xe0] sm:$0xff]
      %v5636 = vld [vmem:[%s7] sm:$0xff]
      %v5637 = vld [vmem:[%s988] sm:$0xff]
      %v5638 = vld [vmem:[%s988 + $0x20] sm:$0xff]
      %v5639 = vld [vmem:[%s988 + $0x40] sm:$0xff]
      %v5640 = vld [vmem:[%s988 + $0x60] sm:$0xff]
      %v5641 = vld [vmem:[%s988 + $0x80] sm:$0xff]
      %v5642 = vld [vmem:[%s988 + $0xa0] sm:$0xff]
      %v5643 = vld [vmem:[%s988 + $0xc0] sm:$0xff]
      %v5644 = vld [vmem:[%s988 + $0xe0] sm:$0xff]
      %s5645 = scalar_lea.vmem %s7, 8
      %v5646 = vld [vmem:[%s5645] sm:$0xff]
      %v5648 = vsel %vm2317, %v5637, 0
      %v5651 = vsel %vm2317, %v5638, 0
      %v5654 = vsel %vm2317, %v5639, 0
      %v5657 = vsel %vm2317, %v5640, 0
      %v5660 = vsel %vm2317, %v5641, 0
      %v5663 = vsel %vm2317, %v5642, 0
      %v5666 = vsel %vm2317, %v5643, 0
      %v5669 = vsel %vm2317, %v5644, 0
      %5671 = vmatprep.subr.mxu0 0.0
      %5672 = vmatpush1.msra.mxu0 0.0
      %5673 = vmatprep.subr.mxu0 0.0
      %5674 = vmatpush1.msra.mxu0 0.0
      %5675 = vmatprep.subr.mxu0 0.0
      %5676 = vmatpush1.msra.mxu0 0.0
      %5677 = vmatprep.subr.mxu0 0.0
      %5678 = vmatpush1.msra.mxu0 0.0
      %5679 = vmatprep.subr.mxu0 0.0
      %5680 = vmatpush1.msra.mxu0 0.0
      %5681 = vmatprep.subr.mxu0 0.0
      %5682 = vmatpush1.msra.mxu0 0.0
      %5683 = vmatprep.subr.mxu0 0.0
      %5684 = vmatpush1.msra.mxu0 0.0
      %5685 = vmatprep.subr.mxu0 0.0
      %5686 = vmatpush1.msra.mxu0 0.0
      %5687 = vmatprep.subr.mxu0 0.0
      %5688 = vmatpush1.msra.mxu0 0.0
      %5689 = vmatprep.subr.mxu0 0.0
      %5690 = vmatpush1.msra.mxu0 0.0
      %5691 = vmatprep.subr.mxu0 0.0
      %5692 = vmatpush1.msra.mxu0 0.0
      %5693 = vmatprep.subr.mxu0 0.0
      %5694 = vmatpush1.msra.mxu0 0.0
      %5695 = vmatprep.subr.mxu0 0.0
      %5696 = vmatpush1.msra.mxu0 0.0
      %5697 = vmatprep.subr.mxu0 0.0
      %5698 = vmatpush1.msra.mxu0 0.0
      %5699 = vmatprep.subr.mxu0 0.0
      %5700 = vmatpush1.msra.mxu0 0.0
      %5701 = vmatprep.subr.mxu0 0.0
      %5702 = vmatpush1.msra.mxu0 %v5646
      %5703 = vmatprep.subr.mxu0 0.0
      %5704 = vmatpush2.msra.mxu0 0.0
      %5705 = vmatprep.subr.mxu0 0.0
      %5706 = vmatpush2.msra.mxu0 0.0
      %5707 = vmatprep.subr.mxu0 0.0
      %5708 = vmatpush2.msra.mxu0 0.0
      %5709 = vmatprep.subr.mxu0 0.0
      %5710 = vmatpush2.msra.mxu0 0.0
      %5711 = vmatprep.subr.mxu0 0.0
      %5712 = vmatpush2.msra.mxu0 0.0
      %5713 = vmatprep.subr.mxu0 0.0
      %5714 = vmatpush2.msra.mxu0 0.0
      %5715 = vmatprep.subr.mxu0 0.0
      %5716 = vmatpush2.msra.mxu0 0.0
      %5717 = vmatprep.subr.mxu0 0.0
      %5718 = vmatpush2.msra.mxu0 0.0
      %5719 = vmatprep.subr.mxu0 0.0
      %5720 = vmatpush2.msra.mxu0 0.0
      %5721 = vmatprep.subr.mxu0 0.0
      %5722 = vmatpush2.msra.mxu0 0.0
      %5723 = vmatprep.subr.mxu0 0.0
      %5724 = vmatpush2.msra.mxu0 0.0
      %5725 = vmatprep.subr.mxu0 0.0
      %5726 = vmatpush2.msra.mxu0 0.0
      %5727 = vmatprep.subr.mxu0 0.0
      %5728 = vmatpush2.msra.mxu0 0.0
      %5729 = vmatprep.subr.mxu0 0.0
      %5730 = vmatpush2.msra.mxu0 0.0
      %5731 = vmatprep.subr.mxu0 0.0
      %5732 = vmatpush2.msra.mxu0 0.0
      %5733 = vmatprep.subr.mxu0 0.0
      %5734 = vmatpush2.msra.mxu0 0.0
      %5735 = vmatprep.mubr.f32.mxu0 0.0
      %5736 = vmatmul.mubr.f32.gmra.mxu0 %v5648
      %v5737 = vpop.f32.mrf.mxu0
      %v5738 = vadd.f32 0.0, %v5737
      %v5739 = vpop.f32.mrf.mxu0
      %5740 = vmatprep.mubr.f32.mxu0 0.0
      %5741 = vmatmul.mubr.f32.gmra.mxu0 %v5651
      %v5742 = vpop.f32.mrf.mxu0
      %v5743 = vadd.f32 0.0, %v5742
      %v5744 = vpop.f32.mrf.mxu0
      %5745 = vmatprep.mubr.f32.mxu0 0.0
      %5746 = vmatmul.mubr.f32.gmra.mxu0 %v5654
      %v5747 = vpop.f32.mrf.mxu0
      %v5748 = vadd.f32 0.0, %v5747
      %v5749 = vpop.f32.mrf.mxu0
      %5750 = vmatprep.mubr.f32.mxu0 0.0
      %5751 = vmatmul.mubr.f32.gmra.mxu0 %v5657
      %v5752 = vpop.f32.mrf.mxu0
      %v5753 = vadd.f32 0.0, %v5752
      %v5754 = vpop.f32.mrf.mxu0
      %5755 = vmatprep.mubr.f32.mxu0 0.0
      %5756 = vmatmul.mubr.f32.gmra.mxu0 %v5660
      %v5757 = vpop.f32.mrf.mxu0
      %v5758 = vadd.f32 0.0, %v5757
      %v5759 = vpop.f32.mrf.mxu0
      %5760 = vmatprep.mubr.f32.mxu0 0.0
      %5761 = vmatmul.mubr.f32.gmra.mxu0 %v5663
      %v5762 = vpop.f32.mrf.mxu0
      %v5763 = vadd.f32 0.0, %v5762
      %v5764 = vpop.f32.mrf.mxu0
      %5765 = vmatprep.mubr.f32.mxu0 0.0
      %5766 = vmatmul.mubr.f32.gmra.mxu0 %v5666
      %v5767 = vpop.f32.mrf.mxu0
      %v5768 = vadd.f32 0.0, %v5767
      %v5769 = vpop.f32.mrf.mxu0
      %5770 = vmatprep.mubr.f32.mxu0 0.0
      %5771 = vmatmul.mubr.f32.gmra.mxu0 %v5669
      %v5772 = vpop.f32.mrf.mxu0
      %v5773 = vadd.f32 0.0, %v5772
      %v5774 = vpop.f32.mrf.mxu0
      %5775 = vdwg.mxu0
      %v5777 = vsel %vm2317, %v5628, 0
      %v5780 = vsel %vm2317, %v5629, 0
      %v5783 = vsel %vm2317, %v5630, 0
      %v5786 = vsel %vm2317, %v5631, 0
      %v5789 = vsel %vm2317, %v5632, 0
      %v5792 = vsel %vm2317, %v5633, 0
      %v5795 = vsel %vm2317, %v5634, 0
      %v5798 = vsel %vm2317, %v5635, 0
      %5800 = vmatprep.subr.mxu0 0.0
      %5801 = vmatpush1.msra.mxu0 0.0
      %5802 = vmatprep.subr.mxu0 0.0
      %5803 = vmatpush1.msra.mxu0 0.0
      %5804 = vmatprep.subr.mxu0 0.0
      %5805 = vmatpush1.msra.mxu0 0.0
      %5806 = vmatprep.subr.mxu0 0.0
      %5807 = vmatpush1.msra.mxu0 0.0
      %5808 = vmatprep.subr.mxu0 0.0
      %5809 = vmatpush1.msra.mxu0 0.0
      %5810 = vmatprep.subr.mxu0 0.0
      %5811 = vmatpush1.msra.mxu0 0.0
      %5812 = vmatprep.subr.mxu0 0.0
      %5813 = vmatpush1.msra.mxu0 0.0
      %5814 = vmatprep.subr.mxu0 0.0
      %5815 = vmatpush1.msra.mxu0 0.0
      %5816 = vmatprep.subr.mxu0 0.0
      %5817 = vmatpush1.msra.mxu0 0.0
      %5818 = vmatprep.subr.mxu0 0.0
      %5819 = vmatpush1.msra.mxu0 0.0
      %5820 = vmatprep.subr.mxu0 0.0
      %5821 = vmatpush1.msra.mxu0 0.0
      %5822 = vmatprep.subr.mxu0 0.0
      %5823 = vmatpush1.msra.mxu0 0.0
      %5824 = vmatprep.subr.mxu0 0.0
      %5825 = vmatpush1.msra.mxu0 0.0
      %5826 = vmatprep.subr.mxu0 0.0
      %5827 = vmatpush1.msra.mxu0 0.0
      %5828 = vmatprep.subr.mxu0 0.0
      %5829 = vmatpush1.msra.mxu0 0.0
      %5830 = vmatprep.subr.mxu0 0.0
      %5831 = vmatpush1.msra.mxu0 %v5636
      %5832 = vmatprep.subr.mxu0 0.0
      %5833 = vmatpush2.msra.mxu0 0.0
      %5834 = vmatprep.subr.mxu0 0.0
      %5835 = vmatpush2.msra.mxu0 0.0
      %5836 = vmatprep.subr.mxu0 0.0
      %5837 = vmatpush2.msra.mxu0 0.0
      %5838 = vmatprep.subr.mxu0 0.0
      %5839 = vmatpush2.msra.mxu0 0.0
      %5840 = vmatprep.subr.mxu0 0.0
      %5841 = vmatpush2.msra.mxu0 0.0
      %5842 = vmatprep.subr.mxu0 0.0
      %5843 = vmatpush2.msra.mxu0 0.0
      %5844 = vmatprep.subr.mxu0 0.0
      %5845 = vmatpush2.msra.mxu0 0.0
      %5846 = vmatprep.subr.mxu0 0.0
      %5847 = vmatpush2.msra.mxu0 0.0
      %5848 = vmatprep.subr.mxu0 0.0
      %5849 = vmatpush2.msra.mxu0 0.0
      %5850 = vmatprep.subr.mxu0 0.0
      %5851 = vmatpush2.msra.mxu0 0.0
      %5852 = vmatprep.subr.mxu0 0.0
      %5853 = vmatpush2.msra.mxu0 0.0
      %5854 = vmatprep.subr.mxu0 0.0
      %5855 = vmatpush2.msra.mxu0 0.0
      %5856 = vmatprep.subr.mxu0 0.0
      %5857 = vmatpush2.msra.mxu0 0.0
      %5858 = vmatprep.subr.mxu0 0.0
      %5859 = vmatpush2.msra.mxu0 0.0
      %5860 = vmatprep.subr.mxu0 0.0
      %5861 = vmatpush2.msra.mxu0 0.0
      %5862 = vmatprep.subr.mxu0 0.0
      %5863 = vmatpush2.msra.mxu0 0.0
      %5864 = vmatprep.mubr.f32.mxu0 0.0
      %5865 = vmatmul.mubr.f32.gmra.mxu0 %v5777
      %v5866 = vpop.f32.mrf.mxu0
      %v5867 = vadd.f32 %v5738, %v5866
      %v5868 = vpop.f32.mrf.mxu0
      %5869 = vmatprep.mubr.f32.mxu0 0.0
      %5870 = vmatmul.mubr.f32.gmra.mxu0 %v5780
      %v5871 = vpop.f32.mrf.mxu0
      %v5872 = vadd.f32 %v5743, %v5871
      %v5873 = vpop.f32.mrf.mxu0
      %5874 = vmatprep.mubr.f32.mxu0 0.0
      %5875 = vmatmul.mubr.f32.gmra.mxu0 %v5783
      %v5876 = vpop.f32.mrf.mxu0
      %v5877 = vadd.f32 %v5748, %v5876
      %v5878 = vpop.f32.mrf.mxu0
      %5879 = vmatprep.mubr.f32.mxu0 0.0
      %5880 = vmatmul.mubr.f32.gmra.mxu0 %v5786
      %v5881 = vpop.f32.mrf.mxu0
      %v5882 = vadd.f32 %v5753, %v5881
      %v5883 = vpop.f32.mrf.mxu0
      %5884 = vmatprep.mubr.f32.mxu0 0.0
      %5885 = vmatmul.mubr.f32.gmra.mxu0 %v5789
      %v5886 = vpop.f32.mrf.mxu0
      %v5887 = vadd.f32 %v5758, %v5886
      %v5888 = vpop.f32.mrf.mxu0
      %5889 = vmatprep.mubr.f32.mxu0 0.0
      %5890 = vmatmul.mubr.f32.gmra.mxu0 %v5792
      %v5891 = vpop.f32.mrf.mxu0
      %v5892 = vadd.f32 %v5763, %v5891
      %v5893 = vpop.f32.mrf.mxu0
      %5894 = vmatprep.mubr.f32.mxu0 0.0
      %5895 = vmatmul.mubr.f32.gmra.mxu0 %v5795
      %v5896 = vpop.f32.mrf.mxu0
      %v5897 = vadd.f32 %v5768, %v5896
      %v5898 = vpop.f32.mrf.mxu0
      %5899 = vmatprep.mubr.f32.mxu0 0.0
      %5900 = vmatmul.mubr.f32.gmra.mxu0 %v5798
      %v5901 = vpop.f32.mrf.mxu0
      %v5902 = vadd.f32 %v5773, %v5901
      %v5903 = vpop.f32.mrf.mxu0
      %5904 = vdwg.mxu0
      %v5905 = vld [vmem:[%s1288] sm:$0xff]
      %v5906 = vld [vmem:[%s1288 + $0x20] sm:$0xff]
      %v5907 = vld [vmem:[%s1288 + $0x40] sm:$0xff]
      %v5908 = vld [vmem:[%s1288 + $0x60] sm:$0xff]
      %v5909 = vld [vmem:[%s1288 + $0x80] sm:$0xff]
      %v5910 = vld [vmem:[%s1288 + $0xa0] sm:$0xff]
      %v5911 = vld [vmem:[%s1288 + $0xc0] sm:$0xff]
      %v5912 = vld [vmem:[%s1288 + $0xe0] sm:$0xff]
      %s5913 = scalar_lea.vmem %s7, 16
      %v5914 = vld [vmem:[%s5913] sm:$0xff]
      %v5916 = vsel %vm2317, %v5905, 0
      %v5919 = vsel %vm2317, %v5906, 0
      %v5922 = vsel %vm2317, %v5907, 0
      %v5925 = vsel %vm2317, %v5908, 0
      %v5928 = vsel %vm2317, %v5909, 0
      %v5931 = vsel %vm2317, %v5910, 0
      %v5934 = vsel %vm2317, %v5911, 0
      %v5937 = vsel %vm2317, %v5912, 0
      %5939 = vmatprep.subr.mxu0 0.0
      %5940 = vmatpush1.msra.mxu0 0.0
      %5941 = vmatprep.subr.mxu0 0.0
      %5942 = vmatpush1.msra.mxu0 0.0
      %5943 = vmatprep.subr.mxu0 0.0
      %5944 = vmatpush1.msra.mxu0 0.0
      %5945 = vmatprep.subr.mxu0 0.0
      %5946 = vmatpush1.msra.mxu0 0.0
      %5947 = vmatprep.subr.mxu0 0.0
      %5948 = vmatpush1.msra.mxu0 0.0
      %5949 = vmatprep.subr.mxu0 0.0
      %5950 = vmatpush1.msra.mxu0 0.0
      %5951 = vmatprep.subr.mxu0 0.0
      %5952 = vmatpush1.msra.mxu0 0.0
      %5953 = vmatprep.subr.mxu0 0.0
      %5954 = vmatpush1.msra.mxu0 0.0
      %5955 = vmatprep.subr.mxu0 0.0
      %5956 = vmatpush1.msra.mxu0 0.0
      %5957 = vmatprep.subr.mxu0 0.0
      %5958 = vmatpush1.msra.mxu0 0.0
      %5959 = vmatprep.subr.mxu0 0.0
      %5960 = vmatpush1.msra.mxu0 0.0
      %5961 = vmatprep.subr.mxu0 0.0
      %5962 = vmatpush1.msra.mxu0 0.0
      %5963 = vmatprep.subr.mxu0 0.0
      %5964 = vmatpush1.msra.mxu0 0.0
      %5965 = vmatprep.subr.mxu0 0.0
      %5966 = vmatpush1.msra.mxu0 0.0
      %5967 = vmatprep.subr.mxu0 0.0
      %5968 = vmatpush1.msra.mxu0 0.0
      %5969 = vmatprep.subr.mxu0 0.0
      %5970 = vmatpush1.msra.mxu0 %v5914
      %5971 = vmatprep.subr.mxu0 0.0
      %5972 = vmatpush2.msra.mxu0 0.0
      %5973 = vmatprep.subr.mxu0 0.0
      %5974 = vmatpush2.msra.mxu0 0.0
      %5975 = vmatprep.subr.mxu0 0.0
      %5976 = vmatpush2.msra.mxu0 0.0
      %5977 = vmatprep.subr.mxu0 0.0
      %5978 = vmatpush2.msra.mxu0 0.0
      %5979 = vmatprep.subr.mxu0 0.0
      %5980 = vmatpush2.msra.mxu0 0.0
      %5981 = vmatprep.subr.mxu0 0.0
      %5982 = vmatpush2.msra.mxu0 0.0
      %5983 = vmatprep.subr.mxu0 0.0
      %5984 = vmatpush2.msra.mxu0 0.0
      %5985 = vmatprep.subr.mxu0 0.0
      %5986 = vmatpush2.msra.mxu0 0.0
      %5987 = vmatprep.subr.mxu0 0.0
      %5988 = vmatpush2.msra.mxu0 0.0
      %5989 = vmatprep.subr.mxu0 0.0
      %5990 = vmatpush2.msra.mxu0 0.0
      %5991 = vmatprep.subr.mxu0 0.0
      %5992 = vmatpush2.msra.mxu0 0.0
      %5993 = vmatprep.subr.mxu0 0.0
      %5994 = vmatpush2.msra.mxu0 0.0
      %5995 = vmatprep.subr.mxu0 0.0
      %5996 = vmatpush2.msra.mxu0 0.0
      %5997 = vmatprep.subr.mxu0 0.0
      %5998 = vmatpush2.msra.mxu0 0.0
      %5999 = vmatprep.subr.mxu0 0.0
      %6000 = vmatpush2.msra.mxu0 0.0
      %6001 = vmatprep.subr.mxu0 0.0
      %6002 = vmatpush2.msra.mxu0 0.0
      %6003 = vmatprep.mubr.f32.mxu0 0.0
      %6004 = vmatmul.mubr.f32.gmra.mxu0 %v5916
      %v6005 = vpop.f32.mrf.mxu0
      %v6006 = vadd.f32 0.0, %v6005
      %v6007 = vpop.f32.mrf.mxu0
      %6008 = vmatprep.mubr.f32.mxu0 0.0
      %6009 = vmatmul.mubr.f32.gmra.mxu0 %v5919
      %v6010 = vpop.f32.mrf.mxu0
      %v6011 = vadd.f32 0.0, %v6010
      %v6012 = vpop.f32.mrf.mxu0
      %6013 = vmatprep.mubr.f32.mxu0 0.0
      %6014 = vmatmul.mubr.f32.gmra.mxu0 %v5922
      %v6015 = vpop.f32.mrf.mxu0
      %v6016 = vadd.f32 0.0, %v6015
      %v6017 = vpop.f32.mrf.mxu0
      %6018 = vmatprep.mubr.f32.mxu0 0.0
      %6019 = vmatmul.mubr.f32.gmra.mxu0 %v5925
      %v6020 = vpop.f32.mrf.mxu0
      %v6021 = vadd.f32 0.0, %v6020
      %v6022 = vpop.f32.mrf.mxu0
      %6023 = vmatprep.mubr.f32.mxu0 0.0
      %6024 = vmatmul.mubr.f32.gmra.mxu0 %v5928
      %v6025 = vpop.f32.mrf.mxu0
      %v6026 = vadd.f32 0.0, %v6025
      %v6027 = vpop.f32.mrf.mxu0
      %6028 = vmatprep.mubr.f32.mxu0 0.0
      %6029 = vmatmul.mubr.f32.gmra.mxu0 %v5931
      %v6030 = vpop.f32.mrf.mxu0
      %v6031 = vadd.f32 0.0, %v6030
      %v6032 = vpop.f32.mrf.mxu0
      %6033 = vmatprep.mubr.f32.mxu0 0.0
      %6034 = vmatmul.mubr.f32.gmra.mxu0 %v5934
      %v6035 = vpop.f32.mrf.mxu0
      %v6036 = vadd.f32 0.0, %v6035
      %v6037 = vpop.f32.mrf.mxu0
      %6038 = vmatprep.mubr.f32.mxu0 0.0
      %6039 = vmatmul.mubr.f32.gmra.mxu0 %v5937
      %v6040 = vpop.f32.mrf.mxu0
      %v6041 = vadd.f32 0.0, %v6040
      %v6042 = vpop.f32.mrf.mxu0
      %6043 = vdwg.mxu0
      %v6044 = vadd.f32 %v5867, %v6006
      %v6045 = vadd.f32 %v5872, %v6011
      %v6046 = vadd.f32 %v5877, %v6016
      %v6047 = vadd.f32 %v5882, %v6021
      %v6048 = vadd.f32 %v5887, %v6026
      %v6049 = vadd.f32 %v5892, %v6031
      %v6050 = vadd.f32 %v5897, %v6036
      %v6051 = vadd.f32 %v5902, %v6041
      %v6052 = vld [vmem:[%s931] sm:$0xff]
      %v6053 = vld [vmem:[%s931 + $0x20] sm:$0xff]
      %v6054 = vld [vmem:[%s931 + $0x40] sm:$0xff]
      %v6055 = vld [vmem:[%s931 + $0x60] sm:$0xff]
      %v6056 = vld [vmem:[%s931 + $0x80] sm:$0xff]
      %v6057 = vld [vmem:[%s931 + $0xa0] sm:$0xff]
      %v6058 = vld [vmem:[%s931 + $0xc0] sm:$0xff]
      %v6059 = vld [vmem:[%s931 + $0xe0] sm:$0xff]
      %s6060 = scalar_lea.vmem %s7, 24
      %v6061 = vld [vmem:[%s6060] sm:$0xff]
      %v6063 = vsel %vm2317, %v6052, 0
      %v6066 = vsel %vm2317, %v6053, 0
      %v6069 = vsel %vm2317, %v6054, 0
      %v6072 = vsel %vm2317, %v6055, 0
      %v6075 = vsel %vm2317, %v6056, 0
      %v6078 = vsel %vm2317, %v6057, 0
      %v6081 = vsel %vm2317, %v6058, 0
      %v6084 = vsel %vm2317, %v6059, 0
      %6086 = vmatprep.subr.mxu0 0.0
      %6087 = vmatpush1.msra.mxu0 0.0
      %6088 = vmatprep.subr.mxu0 0.0
      %6089 = vmatpush1.msra.mxu0 0.0
      %6090 = vmatprep.subr.mxu0 0.0
      %6091 = vmatpush1.msra.mxu0 0.0
      %6092 = vmatprep.subr.mxu0 0.0
      %6093 = vmatpush1.msra.mxu0 0.0
      %6094 = vmatprep.subr.mxu0 0.0
      %6095 = vmatpush1.msra.mxu0 0.0
      %6096 = vmatprep.subr.mxu0 0.0
      %6097 = vmatpush1.msra.mxu0 0.0
      %6098 = vmatprep.subr.mxu0 0.0
      %6099 = vmatpush1.msra.mxu0 0.0
      %6100 = vmatprep.subr.mxu0 0.0
      %6101 = vmatpush1.msra.mxu0 0.0
      %6102 = vmatprep.subr.mxu0 0.0
      %6103 = vmatpush1.msra.mxu0 0.0
      %6104 = vmatprep.subr.mxu0 0.0
      %6105 = vmatpush1.msra.mxu0 0.0
      %6106 = vmatprep.subr.mxu0 0.0
      %6107 = vmatpush1.msra.mxu0 0.0
      %6108 = vmatprep.subr.mxu0 0.0
      %6109 = vmatpush1.msra.mxu0 0.0
      %6110 = vmatprep.subr.mxu0 0.0
      %6111 = vmatpush1.msra.mxu0 0.0
      %6112 = vmatprep.subr.mxu0 0.0
      %6113 = vmatpush1.msra.mxu0 0.0
      %6114 = vmatprep.subr.mxu0 0.0
      %6115 = vmatpush1.msra.mxu0 0.0
      %6116 = vmatprep.subr.mxu0 0.0
      %6117 = vmatpush1.msra.mxu0 %v6061
      %6118 = vmatprep.subr.mxu0 0.0
      %6119 = vmatpush2.msra.mxu0 0.0
      %6120 = vmatprep.subr.mxu0 0.0
      %6121 = vmatpush2.msra.mxu0 0.0
      %6122 = vmatprep.subr.mxu0 0.0
      %6123 = vmatpush2.msra.mxu0 0.0
      %6124 = vmatprep.subr.mxu0 0.0
      %6125 = vmatpush2.msra.mxu0 0.0
      %6126 = vmatprep.subr.mxu0 0.0
      %6127 = vmatpush2.msra.mxu0 0.0
      %6128 = vmatprep.subr.mxu0 0.0
      %6129 = vmatpush2.msra.mxu0 0.0
      %6130 = vmatprep.subr.mxu0 0.0
      %6131 = vmatpush2.msra.mxu0 0.0
      %6132 = vmatprep.subr.mxu0 0.0
      %6133 = vmatpush2.msra.mxu0 0.0
      %6134 = vmatprep.subr.mxu0 0.0
      %6135 = vmatpush2.msra.mxu0 0.0
      %6136 = vmatprep.subr.mxu0 0.0
      %6137 = vmatpush2.msra.mxu0 0.0
      %6138 = vmatprep.subr.mxu0 0.0
      %6139 = vmatpush2.msra.mxu0 0.0
      %6140 = vmatprep.subr.mxu0 0.0
      %6141 = vmatpush2.msra.mxu0 0.0
      %6142 = vmatprep.subr.mxu0 0.0
      %6143 = vmatpush2.msra.mxu0 0.0
      %6144 = vmatprep.subr.mxu0 0.0
      %6145 = vmatpush2.msra.mxu0 0.0
      %6146 = vmatprep.subr.mxu0 0.0
      %6147 = vmatpush2.msra.mxu0 0.0
      %6148 = vmatprep.subr.mxu0 0.0
      %6149 = vmatpush2.msra.mxu0 0.0
      %6150 = vmatprep.mubr.f32.mxu0 0.0
      %6151 = vmatmul.mubr.f32.gmra.mxu0 %v6063
      %v6152 = vpop.f32.mrf.mxu0
      %v6153 = vadd.f32 0.0, %v6152
      %v6154 = vpop.f32.mrf.mxu0
      %6155 = vmatprep.mubr.f32.mxu0 0.0
      %6156 = vmatmul.mubr.f32.gmra.mxu0 %v6066
      %v6157 = vpop.f32.mrf.mxu0
      %v6158 = vadd.f32 0.0, %v6157
      %v6159 = vpop.f32.mrf.mxu0
      %6160 = vmatprep.mubr.f32.mxu0 0.0
      %6161 = vmatmul.mubr.f32.gmra.mxu0 %v6069
      %v6162 = vpop.f32.mrf.mxu0
      %v6163 = vadd.f32 0.0, %v6162
      %v6164 = vpop.f32.mrf.mxu0
      %6165 = vmatprep.mubr.f32.mxu0 0.0
      %6166 = vmatmul.mubr.f32.gmra.mxu0 %v6072
      %v6167 = vpop.f32.mrf.mxu0
      %v6168 = vadd.f32 0.0, %v6167
      %v6169 = vpop.f32.mrf.mxu0
      %6170 = vmatprep.mubr.f32.mxu0 0.0
      %6171 = vmatmul.mubr.f32.gmra.mxu0 %v6075
      %v6172 = vpop.f32.mrf.mxu0
      %v6173 = vadd.f32 0.0, %v6172
      %v6174 = vpop.f32.mrf.mxu0
      %6175 = vmatprep.mubr.f32.mxu0 0.0
      %6176 = vmatmul.mubr.f32.gmra.mxu0 %v6078
      %v6177 = vpop.f32.mrf.mxu0
      %v6178 = vadd.f32 0.0, %v6177
      %v6179 = vpop.f32.mrf.mxu0
      %6180 = vmatprep.mubr.f32.mxu0 0.0
      %6181 = vmatmul.mubr.f32.gmra.mxu0 %v6081
      %v6182 = vpop.f32.mrf.mxu0
      %v6183 = vadd.f32 0.0, %v6182
      %v6184 = vpop.f32.mrf.mxu0
      %6185 = vmatprep.mubr.f32.mxu0 0.0
      %6186 = vmatmul.mubr.f32.gmra.mxu0 %v6084
      %v6187 = vpop.f32.mrf.mxu0
      %v6188 = vadd.f32 0.0, %v6187
      %v6189 = vpop.f32.mrf.mxu0
      %6190 = vdwg.mxu0
      %v6191 = vadd.f32 %v6044, %v6153
      %v6192 = vadd.f32 %v6045, %v6158
      %v6193 = vadd.f32 %v6046, %v6163
      %v6194 = vadd.f32 %v6047, %v6168
      %v6195 = vadd.f32 %v6048, %v6173
      %v6196 = vadd.f32 %v6049, %v6178
      %v6197 = vadd.f32 %v6050, %v6183
      %v6198 = vadd.f32 %v6051, %v6188
      %v6199 = vld [vmem:[%s1645] sm:$0xff]
      %v6200 = vld [vmem:[%s1645 + $0x20] sm:$0xff]
      %v6201 = vld [vmem:[%s1645 + $0x40] sm:$0xff]
      %v6202 = vld [vmem:[%s1645 + $0x60] sm:$0xff]
      %v6203 = vld [vmem:[%s1645 + $0x80] sm:$0xff]
      %v6204 = vld [vmem:[%s1645 + $0xa0] sm:$0xff]
      %v6205 = vld [vmem:[%s1645 + $0xc0] sm:$0xff]
      %v6206 = vld [vmem:[%s1645 + $0xe0] sm:$0xff]
      %s6207 = scalar_lea.vmem %s7, 32
      %v6208 = vld [vmem:[%s6207] sm:$0xff]
      %v6210 = vsel %vm2317, %v6199, 0
      %v6213 = vsel %vm2317, %v6200, 0
      %v6216 = vsel %vm2317, %v6201, 0
      %v6219 = vsel %vm2317, %v6202, 0
      %v6222 = vsel %vm2317, %v6203, 0
      %v6225 = vsel %vm2317, %v6204, 0
      %v6228 = vsel %vm2317, %v6205, 0
      %v6231 = vsel %vm2317, %v6206, 0
      %6233 = vmatprep.subr.mxu0 0.0
      %6234 = vmatpush1.msra.mxu0 0.0
      %6235 = vmatprep.subr.mxu0 0.0
      %6236 = vmatpush1.msra.mxu0 0.0
      %6237 = vmatprep.subr.mxu0 0.0
      %6238 = vmatpush1.msra.mxu0 0.0
      %6239 = vmatprep.subr.mxu0 0.0
      %6240 = vmatpush1.msra.mxu0 0.0
      %6241 = vmatprep.subr.mxu0 0.0
      %6242 = vmatpush1.msra.mxu0 0.0
      %6243 = vmatprep.subr.mxu0 0.0
      %6244 = vmatpush1.msra.mxu0 0.0
      %6245 = vmatprep.subr.mxu0 0.0
      %6246 = vmatpush1.msra.mxu0 0.0
      %6247 = vmatprep.subr.mxu0 0.0
      %6248 = vmatpush1.msra.mxu0 0.0
      %6249 = vmatprep.subr.mxu0 0.0
      %6250 = vmatpush1.msra.mxu0 0.0
      %6251 = vmatprep.subr.mxu0 0.0
      %6252 = vmatpush1.msra.mxu0 0.0
      %6253 = vmatprep.subr.mxu0 0.0
      %6254 = vmatpush1.msra.mxu0 0.0
      %6255 = vmatprep.subr.mxu0 0.0
      %6256 = vmatpush1.msra.mxu0 0.0
      %6257 = vmatprep.subr.mxu0 0.0
      %6258 = vmatpush1.msra.mxu0 0.0
      %6259 = vmatprep.subr.mxu0 0.0
      %6260 = vmatpush1.msra.mxu0 0.0
      %6261 = vmatprep.subr.mxu0 0.0
      %6262 = vmatpush1.msra.mxu0 0.0
      %6263 = vmatprep.subr.mxu0 0.0
      %6264 = vmatpush1.msra.mxu0 %v6208
      %6265 = vmatprep.subr.mxu0 0.0
      %6266 = vmatpush2.msra.mxu0 0.0
      %6267 = vmatprep.subr.mxu0 0.0
      %6268 = vmatpush2.msra.mxu0 0.0
      %6269 = vmatprep.subr.mxu0 0.0
      %6270 = vmatpush2.msra.mxu0 0.0
      %6271 = vmatprep.subr.mxu0 0.0
      %6272 = vmatpush2.msra.mxu0 0.0
      %6273 = vmatprep.subr.mxu0 0.0
      %6274 = vmatpush2.msra.mxu0 0.0
      %6275 = vmatprep.subr.mxu0 0.0
      %6276 = vmatpush2.msra.mxu0 0.0
      %6277 = vmatprep.subr.mxu0 0.0
      %6278 = vmatpush2.msra.mxu0 0.0
      %6279 = vmatprep.subr.mxu0 0.0
      %6280 = vmatpush2.msra.mxu0 0.0
      %6281 = vmatprep.subr.mxu0 0.0
      %6282 = vmatpush2.msra.mxu0 0.0
      %6283 = vmatprep.subr.mxu0 0.0
      %6284 = vmatpush2.msra.mxu0 0.0
      %6285 = vmatprep.subr.mxu0 0.0
      %6286 = vmatpush2.msra.mxu0 0.0
      %6287 = vmatprep.subr.mxu0 0.0
      %6288 = vmatpush2.msra.mxu0 0.0
      %6289 = vmatprep.subr.mxu0 0.0
      %6290 = vmatpush2.msra.mxu0 0.0
      %6291 = vmatprep.subr.mxu0 0.0
      %6292 = vmatpush2.msra.mxu0 0.0
      %6293 = vmatprep.subr.mxu0 0.0
      %6294 = vmatpush2.msra.mxu0 0.0
      %6295 = vmatprep.subr.mxu0 0.0
      %6296 = vmatpush2.msra.mxu0 0.0
      %6297 = vmatprep.mubr.f32.mxu0 0.0
      %6298 = vmatmul.mubr.f32.gmra.mxu0 %v6210
      %v6299 = vpop.f32.mrf.mxu0
      %v6300 = vadd.f32 0.0, %v6299
      %v6301 = vpop.f32.mrf.mxu0
      %6302 = vmatprep.mubr.f32.mxu0 0.0
      %6303 = vmatmul.mubr.f32.gmra.mxu0 %v6213
      %v6304 = vpop.f32.mrf.mxu0
      %v6305 = vadd.f32 0.0, %v6304
      %v6306 = vpop.f32.mrf.mxu0
      %6307 = vmatprep.mubr.f32.mxu0 0.0
      %6308 = vmatmul.mubr.f32.gmra.mxu0 %v6216
      %v6309 = vpop.f32.mrf.mxu0
      %v6310 = vadd.f32 0.0, %v6309
      %v6311 = vpop.f32.mrf.mxu0
      %6312 = vmatprep.mubr.f32.mxu0 0.0
      %6313 = vmatmul.mubr.f32.gmra.mxu0 %v6219
      %v6314 = vpop.f32.mrf.mxu0
      %v6315 = vadd.f32 0.0, %v6314
      %v6316 = vpop.f32.mrf.mxu0
      %6317 = vmatprep.mubr.f32.mxu0 0.0
      %6318 = vmatmul.mubr.f32.gmra.mxu0 %v6222
      %v6319 = vpop.f32.mrf.mxu0
      %v6320 = vadd.f32 0.0, %v6319
      %v6321 = vpop.f32.mrf.mxu0
      %6322 = vmatprep.mubr.f32.mxu0 0.0
      %6323 = vmatmul.mubr.f32.gmra.mxu0 %v6225
      %v6324 = vpop.f32.mrf.mxu0
      %v6325 = vadd.f32 0.0, %v6324
      %v6326 = vpop.f32.mrf.mxu0
      %6327 = vmatprep.mubr.f32.mxu0 0.0
      %6328 = vmatmul.mubr.f32.gmra.mxu0 %v6228
      %v6329 = vpop.f32.mrf.mxu0
      %v6330 = vadd.f32 0.0, %v6329
      %v6331 = vpop.f32.mrf.mxu0
      %6332 = vmatprep.mubr.f32.mxu0 0.0
      %6333 = vmatmul.mubr.f32.gmra.mxu0 %v6231
      %v6334 = vpop.f32.mrf.mxu0
      %v6335 = vadd.f32 0.0, %v6334
      %v6336 = vpop.f32.mrf.mxu0
      %6337 = vdwg.mxu0
      %v6338 = vadd.f32 %v6191, %v6300
      %v6339 = vadd.f32 %v6192, %v6305
      %v6340 = vadd.f32 %v6193, %v6310
      %v6341 = vadd.f32 %v6194, %v6315
      %v6342 = vadd.f32 %v6195, %v6320
      %v6343 = vadd.f32 %v6196, %v6325
      %v6344 = vadd.f32 %v6197, %v6330
      %v6345 = vadd.f32 %v6198, %v6335
      %v6346 = vld [vmem:[%s1824] sm:$0xff]
      %v6347 = vld [vmem:[%s1824 + $0x20] sm:$0xff]
      %v6348 = vld [vmem:[%s1824 + $0x40] sm:$0xff]
      %v6349 = vld [vmem:[%s1824 + $0x60] sm:$0xff]
      %v6350 = vld [vmem:[%s1824 + $0x80] sm:$0xff]
      %v6351 = vld [vmem:[%s1824 + $0xa0] sm:$0xff]
      %v6352 = vld [vmem:[%s1824 + $0xc0] sm:$0xff]
      %v6353 = vld [vmem:[%s1824 + $0xe0] sm:$0xff]
      %s6354 = scalar_lea.vmem %s7, 40
      %v6355 = vld [vmem:[%s6354] sm:$0xff]
      %v6357 = vsel %vm2317, %v6346, 0
      %v6360 = vsel %vm2317, %v6347, 0
      %v6363 = vsel %vm2317, %v6348, 0
      %v6366 = vsel %vm2317, %v6349, 0
      %v6369 = vsel %vm2317, %v6350, 0
      %v6372 = vsel %vm2317, %v6351, 0
      %v6375 = vsel %vm2317, %v6352, 0
      %v6378 = vsel %vm2317, %v6353, 0
      %6380 = vmatprep.subr.mxu0 0.0
      %6381 = vmatpush1.msra.mxu0 0.0
      %6382 = vmatprep.subr.mxu0 0.0
      %6383 = vmatpush1.msra.mxu0 0.0
      %6384 = vmatprep.subr.mxu0 0.0
      %6385 = vmatpush1.msra.mxu0 0.0
      %6386 = vmatprep.subr.mxu0 0.0
      %6387 = vmatpush1.msra.mxu0 0.0
      %6388 = vmatprep.subr.mxu0 0.0
      %6389 = vmatpush1.msra.mxu0 0.0
      %6390 = vmatprep.subr.mxu0 0.0
      %6391 = vmatpush1.msra.mxu0 0.0
      %6392 = vmatprep.subr.mxu0 0.0
      %6393 = vmatpush1.msra.mxu0 0.0
      %6394 = vmatprep.subr.mxu0 0.0
      %6395 = vmatpush1.msra.mxu0 0.0
      %6396 = vmatprep.subr.mxu0 0.0
      %6397 = vmatpush1.msra.mxu0 0.0
      %6398 = vmatprep.subr.mxu0 0.0
      %6399 = vmatpush1.msra.mxu0 0.0
      %6400 = vmatprep.subr.mxu0 0.0
      %6401 = vmatpush1.msra.mxu0 0.0
      %6402 = vmatprep.subr.mxu0 0.0
      %6403 = vmatpush1.msra.mxu0 0.0
      %6404 = vmatprep.subr.mxu0 0.0
      %6405 = vmatpush1.msra.mxu0 0.0
      %6406 = vmatprep.subr.mxu0 0.0
      %6407 = vmatpush1.msra.mxu0 0.0
      %6408 = vmatprep.subr.mxu0 0.0
      %6409 = vmatpush1.msra.mxu0 0.0
      %6410 = vmatprep.subr.mxu0 0.0
      %6411 = vmatpush1.msra.mxu0 %v6355
      %6412 = vmatprep.subr.mxu0 0.0
      %6413 = vmatpush2.msra.mxu0 0.0
      %6414 = vmatprep.subr.mxu0 0.0
      %6415 = vmatpush2.msra.mxu0 0.0
      %6416 = vmatprep.subr.mxu0 0.0
      %6417 = vmatpush2.msra.mxu0 0.0
      %6418 = vmatprep.subr.mxu0 0.0
      %6419 = vmatpush2.msra.mxu0 0.0
      %6420 = vmatprep.subr.mxu0 0.0
      %6421 = vmatpush2.msra.mxu0 0.0
      %6422 = vmatprep.subr.mxu0 0.0
      %6423 = vmatpush2.msra.mxu0 0.0
      %6424 = vmatprep.subr.mxu0 0.0
      %6425 = vmatpush2.msra.mxu0 0.0
      %6426 = vmatprep.subr.mxu0 0.0
      %6427 = vmatpush2.msra.mxu0 0.0
      %6428 = vmatprep.subr.mxu0 0.0
      %6429 = vmatpush2.msra.mxu0 0.0
      %6430 = vmatprep.subr.mxu0 0.0
      %6431 = vmatpush2.msra.mxu0 0.0
      %6432 = vmatprep.subr.mxu0 0.0
      %6433 = vmatpush2.msra.mxu0 0.0
      %6434 = vmatprep.subr.mxu0 0.0
      %6435 = vmatpush2.msra.mxu0 0.0
      %6436 = vmatprep.subr.mxu0 0.0
      %6437 = vmatpush2.msra.mxu0 0.0
      %6438 = vmatprep.subr.mxu0 0.0
      %6439 = vmatpush2.msra.mxu0 0.0
      %6440 = vmatprep.subr.mxu0 0.0
      %6441 = vmatpush2.msra.mxu0 0.0
      %6442 = vmatprep.subr.mxu0 0.0
      %6443 = vmatpush2.msra.mxu0 0.0
      %6444 = vmatprep.mubr.f32.mxu0 0.0
      %6445 = vmatmul.mubr.f32.gmra.mxu0 %v6357
      %v6446 = vpop.f32.mrf.mxu0
      %v6447 = vadd.f32 0.0, %v6446
      %v6448 = vpop.f32.mrf.mxu0
      %6449 = vmatprep.mubr.f32.mxu0 0.0
      %6450 = vmatmul.mubr.f32.gmra.mxu0 %v6360
      %v6451 = vpop.f32.mrf.mxu0
      %v6452 = vadd.f32 0.0, %v6451
      %v6453 = vpop.f32.mrf.mxu0
      %6454 = vmatprep.mubr.f32.mxu0 0.0
      %6455 = vmatmul.mubr.f32.gmra.mxu0 %v6363
      %v6456 = vpop.f32.mrf.mxu0
      %v6457 = vadd.f32 0.0, %v6456
      %v6458 = vpop.f32.mrf.mxu0
      %6459 = vmatprep.mubr.f32.mxu0 0.0
      %6460 = vmatmul.mubr.f32.gmra.mxu0 %v6366
      %v6461 = vpop.f32.mrf.mxu0
      %v6462 = vadd.f32 0.0, %v6461
      %v6463 = vpop.f32.mrf.mxu0
      %6464 = vmatprep.mubr.f32.mxu0 0.0
      %6465 = vmatmul.mubr.f32.gmra.mxu0 %v6369
      %v6466 = vpop.f32.mrf.mxu0
      %v6467 = vadd.f32 0.0, %v6466
      %v6468 = vpop.f32.mrf.mxu0
      %6469 = vmatprep.mubr.f32.mxu0 0.0
      %6470 = vmatmul.mubr.f32.gmra.mxu0 %v6372
      %v6471 = vpop.f32.mrf.mxu0
      %v6472 = vadd.f32 0.0, %v6471
      %v6473 = vpop.f32.mrf.mxu0
      %6474 = vmatprep.mubr.f32.mxu0 0.0
      %6475 = vmatmul.mubr.f32.gmra.mxu0 %v6375
      %v6476 = vpop.f32.mrf.mxu0
      %v6477 = vadd.f32 0.0, %v6476
      %v6478 = vpop.f32.mrf.mxu0
      %6479 = vmatprep.mubr.f32.mxu0 0.0
      %6480 = vmatmul.mubr.f32.gmra.mxu0 %v6378
      %v6481 = vpop.f32.mrf.mxu0
      %v6482 = vadd.f32 0.0, %v6481
      %v6483 = vpop.f32.mrf.mxu0
      %6484 = vdwg.mxu0
      %v6485 = vadd.f32 %v6338, %v6447
      %v6486 = vadd.f32 %v6339, %v6452
      %v6487 = vadd.f32 %v6340, %v6457
      %v6488 = vadd.f32 %v6341, %v6462
      %v6489 = vadd.f32 %v6342, %v6467
      %v6490 = vadd.f32 %v6343, %v6472
      %v6491 = vadd.f32 %v6344, %v6477
      %v6492 = vadd.f32 %v6345, %v6482
      %v6493 = vld [vmem:[%s2003] sm:$0xff]
      %v6494 = vld [vmem:[%s2003 + $0x20] sm:$0xff]
      %v6495 = vld [vmem:[%s2003 + $0x40] sm:$0xff]
      %v6496 = vld [vmem:[%s2003 + $0x60] sm:$0xff]
      %v6497 = vld [vmem:[%s2003 + $0x80] sm:$0xff]
      %v6498 = vld [vmem:[%s2003 + $0xa0] sm:$0xff]
      %v6499 = vld [vmem:[%s2003 + $0xc0] sm:$0xff]
      %v6500 = vld [vmem:[%s2003 + $0xe0] sm:$0xff]
      %s6501 = scalar_lea.vmem %s7, 48
      %v6502 = vld [vmem:[%s6501] sm:$0xff]
      %v6504 = vsel %vm2317, %v6493, 0
      %v6507 = vsel %vm2317, %v6494, 0
      %v6510 = vsel %vm2317, %v6495, 0
      %v6513 = vsel %vm2317, %v6496, 0
      %v6516 = vsel %vm2317, %v6497, 0
      %v6519 = vsel %vm2317, %v6498, 0
      %v6522 = vsel %vm2317, %v6499, 0
      %v6525 = vsel %vm2317, %v6500, 0
      %6527 = vmatprep.subr.mxu0 0.0
      %6528 = vmatpush1.msra.mxu0 0.0
      %6529 = vmatprep.subr.mxu0 0.0
      %6530 = vmatpush1.msra.mxu0 0.0
      %6531 = vmatprep.subr.mxu0 0.0
      %6532 = vmatpush1.msra.mxu0 0.0
      %6533 = vmatprep.subr.mxu0 0.0
      %6534 = vmatpush1.msra.mxu0 0.0
      %6535 = vmatprep.subr.mxu0 0.0
      %6536 = vmatpush1.msra.mxu0 0.0
      %6537 = vmatprep.subr.mxu0 0.0
      %6538 = vmatpush1.msra.mxu0 0.0
      %6539 = vmatprep.subr.mxu0 0.0
      %6540 = vmatpush1.msra.mxu0 0.0
      %6541 = vmatprep.subr.mxu0 0.0
      %6542 = vmatpush1.msra.mxu0 0.0
      %6543 = vmatprep.subr.mxu0 0.0
      %6544 = vmatpush1.msra.mxu0 0.0
      %6545 = vmatprep.subr.mxu0 0.0
      %6546 = vmatpush1.msra.mxu0 0.0
      %6547 = vmatprep.subr.mxu0 0.0
      %6548 = vmatpush1.msra.mxu0 0.0
      %6549 = vmatprep.subr.mxu0 0.0
      %6550 = vmatpush1.msra.mxu0 0.0
      %6551 = vmatprep.subr.mxu0 0.0
      %6552 = vmatpush1.msra.mxu0 0.0
      %6553 = vmatprep.subr.mxu0 0.0
      %6554 = vmatpush1.msra.mxu0 0.0
      %6555 = vmatprep.subr.mxu0 0.0
      %6556 = vmatpush1.msra.mxu0 0.0
      %6557 = vmatprep.subr.mxu0 0.0
      %6558 = vmatpush1.msra.mxu0 %v6502
      %6559 = vmatprep.subr.mxu0 0.0
      %6560 = vmatpush2.msra.mxu0 0.0
      %6561 = vmatprep.subr.mxu0 0.0
      %6562 = vmatpush2.msra.mxu0 0.0
      %6563 = vmatprep.subr.mxu0 0.0
      %6564 = vmatpush2.msra.mxu0 0.0
      %6565 = vmatprep.subr.mxu0 0.0
      %6566 = vmatpush2.msra.mxu0 0.0
      %6567 = vmatprep.subr.mxu0 0.0
      %6568 = vmatpush2.msra.mxu0 0.0
      %6569 = vmatprep.subr.mxu0 0.0
      %6570 = vmatpush2.msra.mxu0 0.0
      %6571 = vmatprep.subr.mxu0 0.0
      %6572 = vmatpush2.msra.mxu0 0.0
      %6573 = vmatprep.subr.mxu0 0.0
      %6574 = vmatpush2.msra.mxu0 0.0
      %6575 = vmatprep.subr.mxu0 0.0
      %6576 = vmatpush2.msra.mxu0 0.0
      %6577 = vmatprep.subr.mxu0 0.0
      %6578 = vmatpush2.msra.mxu0 0.0
      %6579 = vmatprep.subr.mxu0 0.0
      %6580 = vmatpush2.msra.mxu0 0.0
      %6581 = vmatprep.subr.mxu0 0.0
      %6582 = vmatpush2.msra.mxu0 0.0
      %6583 = vmatprep.subr.mxu0 0.0
      %6584 = vmatpush2.msra.mxu0 0.0
      %6585 = vmatprep.subr.mxu0 0.0
      %6586 = vmatpush2.msra.mxu0 0.0
      %6587 = vmatprep.subr.mxu0 0.0
      %6588 = vmatpush2.msra.mxu0 0.0
      %6589 = vmatprep.subr.mxu0 0.0
      %6590 = vmatpush2.msra.mxu0 0.0
      %6591 = vmatprep.mubr.f32.mxu0 0.0
      %6592 = vmatmul.mubr.f32.gmra.mxu0 %v6504
      %v6593 = vpop.f32.mrf.mxu0
      %v6594 = vadd.f32 0.0, %v6593
      %v6595 = vpop.f32.mrf.mxu0
      %6596 = vmatprep.mubr.f32.mxu0 0.0
      %6597 = vmatmul.mubr.f32.gmra.mxu0 %v6507
      %v6598 = vpop.f32.mrf.mxu0
      %v6599 = vadd.f32 0.0, %v6598
      %v6600 = vpop.f32.mrf.mxu0
      %6601 = vmatprep.mubr.f32.mxu0 0.0
      %6602 = vmatmul.mubr.f32.gmra.mxu0 %v6510
      %v6603 = vpop.f32.mrf.mxu0
      %v6604 = vadd.f32 0.0, %v6603
      %v6605 = vpop.f32.mrf.mxu0
      %6606 = vmatprep.mubr.f32.mxu0 0.0
      %6607 = vmatmul.mubr.f32.gmra.mxu0 %v6513
      %v6608 = vpop.f32.mrf.mxu0
      %v6609 = vadd.f32 0.0, %v6608
      %v6610 = vpop.f32.mrf.mxu0
      %6611 = vmatprep.mubr.f32.mxu0 0.0
      %6612 = vmatmul.mubr.f32.gmra.mxu0 %v6516
      %v6613 = vpop.f32.mrf.mxu0
      %v6614 = vadd.f32 0.0, %v6613
      %v6615 = vpop.f32.mrf.mxu0
      %6616 = vmatprep.mubr.f32.mxu0 0.0
      %6617 = vmatmul.mubr.f32.gmra.mxu0 %v6519
      %v6618 = vpop.f32.mrf.mxu0
      %v6619 = vadd.f32 0.0, %v6618
      %v6620 = vpop.f32.mrf.mxu0
      %6621 = vmatprep.mubr.f32.mxu0 0.0
      %6622 = vmatmul.mubr.f32.gmra.mxu0 %v6522
      %v6623 = vpop.f32.mrf.mxu0
      %v6624 = vadd.f32 0.0, %v6623
      %v6625 = vpop.f32.mrf.mxu0
      %6626 = vmatprep.mubr.f32.mxu0 0.0
      %6627 = vmatmul.mubr.f32.gmra.mxu0 %v6525
      %v6628 = vpop.f32.mrf.mxu0
      %v6629 = vadd.f32 0.0, %v6628
      %v6630 = vpop.f32.mrf.mxu0
      %6631 = vdwg.mxu0
      %v6632 = vadd.f32 %v6485, %v6594
      %v6633 = vadd.f32 %v6486, %v6599
      %v6634 = vadd.f32 %v6487, %v6604
      %v6635 = vadd.f32 %v6488, %v6609
      %v6636 = vadd.f32 %v6489, %v6614
      %v6637 = vadd.f32 %v6490, %v6619
      %v6638 = vadd.f32 %v6491, %v6624
      %v6639 = vadd.f32 %v6492, %v6629
      %v6640 = vmax.f32 %v6632, 0.0
      %v6641 = vmax.f32 %v6633, 0.0
      %v6642 = vmax.f32 %v6634, 0.0
      %v6643 = vmax.f32 %v6635, 0.0
      %v6644 = vmax.f32 %v6636, 0.0
      %v6645 = vmax.f32 %v6637, 0.0
      %v6646 = vmax.f32 %v6638, 0.0
      %v6647 = vmax.f32 %v6639, 0.0
      %6648 = vst.msk [vmem:[#allocation2] sm:$0x7] %vm2190, 0.0
      %6649 = vst.msk [vmem:[#allocation2 + $0x20] sm:$0x7] %vm2190, 0.0
      %6650 = vst.msk [vmem:[#allocation2 + $0x40] sm:$0x7] %vm2190, 0.0
      %6651 = vst.msk [vmem:[#allocation2 + $0x60] sm:$0x7] %vm2190, 0.0
      %6652 = vst.msk [vmem:[#allocation2 + $0x80] sm:$0x7] %vm2190, 0.0
      %6653 = vst.msk [vmem:[#allocation2 + $0xa0] sm:$0x7] %vm2190, 0.0
      %6654 = vst.msk [vmem:[#allocation2 + $0xc0] sm:$0x7] %vm2190, 0.0
      %6655 = vst.msk [vmem:[#allocation2 + $0xe0] sm:$0x7] %vm2190, 0.0
      %6656 = vst.msk [vmem:[#allocation2 + $0x10] sm:$0x38] %vm2199, 0.0
      %6657 = vst.msk [vmem:[#allocation2 + $0x30] sm:$0x38] %vm2199, 0.0
      %6658 = vst.msk [vmem:[#allocation2 + $0x50] sm:$0x38] %vm2199, 0.0
      %6659 = vst.msk [vmem:[#allocation2 + $0x70] sm:$0x38] %vm2199, 0.0
      %6660 = vst.msk [vmem:[#allocation2 + $0x90] sm:$0x38] %vm2199, 0.0
      %6661 = vst.msk [vmem:[#allocation2 + $0xb0] sm:$0x38] %vm2199, 0.0
      %6662 = vst.msk [vmem:[#allocation2 + $0xd0] sm:$0x38] %vm2199, 0.0
      %6663 = vst.msk [vmem:[#allocation2 + $0xf0] sm:$0x38] %vm2199, 0.0
      %v6672 = vrot.slane %v6640, 5
      %v6673 = vrot.slane %v6641, 5
      %v6674 = vrot.slane %v6642, 5
      %v6675 = vrot.slane %v6643, 5
      %v6676 = vrot.slane %v6644, 5
      %v6677 = vrot.slane %v6645, 5
      %v6678 = vrot.slane %v6646, 5
      %v6679 = vrot.slane %v6647, 5
      %6688 = vst.msk [vmem:[#allocation2] sm:$0xf8] %vm2232, %v6672
      %6689 = vst.msk [vmem:[#allocation2 + $0x10] sm:$0x7] %vm2190, %v6672
      %6690 = vst.msk [vmem:[#allocation2 + $0x20] sm:$0xf8] %vm2232, %v6673
      %6691 = vst.msk [vmem:[#allocation2 + $0x30] sm:$0x7] %vm2190, %v6673
      %6692 = vst.msk [vmem:[#allocation2 + $0x40] sm:$0xf8] %vm2232, %v6674
      %6693 = vst.msk [vmem:[#allocation2 + $0x50] sm:$0x7] %vm2190, %v6674
      %6694 = vst.msk [vmem:[#allocation2 + $0x60] sm:$0xf8] %vm2232, %v6675
      %6695 = vst.msk [vmem:[#allocation2 + $0x70] sm:$0x7] %vm2190, %v6675
      %6696 = vst.msk [vmem:[#allocation2 + $0x80] sm:$0xf8] %vm2232, %v6676
      %6697 = vst.msk [vmem:[#allocation2 + $0x90] sm:$0x7] %vm2190, %v6676
      %6698 = vst.msk [vmem:[#allocation2 + $0xa0] sm:$0xf8] %vm2232, %v6677
      %6699 = vst.msk [vmem:[#allocation2 + $0xb0] sm:$0x7] %vm2190, %v6677
      %6700 = vst.msk [vmem:[#allocation2 + $0xc0] sm:$0xf8] %vm2232, %v6678
      %6701 = vst.msk [vmem:[#allocation2 + $0xd0] sm:$0x7] %vm2190, %v6678
      %6702 = vst.msk [vmem:[#allocation2 + $0xe0] sm:$0xf8] %vm2232, %v6679
      %6703 = vst.msk [vmem:[#allocation2 + $0xf0] sm:$0x7] %vm2190, %v6679
      %v6704 = vld [vmem:[#allocation2] sm:$0xff]
      %v6705 = vld [vmem:[#allocation2 + $0x20] sm:$0xff]
      %v6706 = vld [vmem:[#allocation2 + $0x40] sm:$0xff]
      %v6707 = vld [vmem:[#allocation2 + $0x60] sm:$0xff]
      %v6708 = vld [vmem:[#allocation2 + $0x80] sm:$0xff]
      %v6709 = vld [vmem:[#allocation2 + $0xa0] sm:$0xff]
      %v6710 = vld [vmem:[#allocation2 + $0xc0] sm:$0xff]
      %v6711 = vld [vmem:[#allocation2 + $0xe0] sm:$0xff]
      %v6712 = vld [vmem:[%s8] sm:$0xff]
      %v6713 = vld [vmem:[#allocation2] sm:$0xfe]
      %v6714 = vld [vmem:[#allocation2 + $0x10] sm:$0x1]
      %v6715 = vld [vmem:[#allocation2 + $0x20] sm:$0xfe]
      %v6716 = vld [vmem:[#allocation2 + $0x30] sm:$0x1]
      %v6717 = vld [vmem:[#allocation2 + $0x40] sm:$0xfe]
      %v6718 = vld [vmem:[#allocation2 + $0x50] sm:$0x1]
      %v6719 = vld [vmem:[#allocation2 + $0x60] sm:$0xfe]
      %v6720 = vld [vmem:[#allocation2 + $0x70] sm:$0x1]
      %v6721 = vld [vmem:[#allocation2 + $0x80] sm:$0xfe]
      %v6722 = vld [vmem:[#allocation2 + $0x90] sm:$0x1]
      %v6723 = vld [vmem:[#allocation2 + $0xa0] sm:$0xfe]
      %v6724 = vld [vmem:[#allocation2 + $0xb0] sm:$0x1]
      %v6725 = vld [vmem:[#allocation2 + $0xc0] sm:$0xfe]
      %v6726 = vld [vmem:[#allocation2 + $0xd0] sm:$0x1]
      %v6727 = vld [vmem:[#allocation2 + $0xe0] sm:$0xfe]
      %v6728 = vld [vmem:[#allocation2 + $0xf0] sm:$0x1]
      %v6745 = vrot.slane %v6713, 1
      %v6746 = vrot.slane %v6714, 1
      %v6747 = vsel %vm2290, %v6745, %v6746
      %v6748 = vrot.slane %v6715, 1
      %v6749 = vrot.slane %v6716, 1
      %v6750 = vsel %vm2290, %v6748, %v6749
      %v6751 = vrot.slane %v6717, 1
      %v6752 = vrot.slane %v6718, 1
      %v6753 = vsel %vm2290, %v6751, %v6752
      %v6754 = vrot.slane %v6719, 1
      %v6755 = vrot.slane %v6720, 1
      %v6756 = vsel %vm2290, %v6754, %v6755
      %v6757 = vrot.slane %v6721, 1
      %v6758 = vrot.slane %v6722, 1
      %v6759 = vsel %vm2290, %v6757, %v6758
      %v6760 = vrot.slane %v6723, 1
      %v6761 = vrot.slane %v6724, 1
      %v6762 = vsel %vm2290, %v6760, %v6761
      %v6763 = vrot.slane %v6725, 1
      %v6764 = vrot.slane %v6726, 1
      %v6765 = vsel %vm2290, %v6763, %v6764
      %v6766 = vrot.slane %v6727, 1
      %v6767 = vrot.slane %v6728, 1
      %v6768 = vsel %vm2290, %v6766, %v6767
      %s6769 = scalar_lea.vmem %s8, 8
      %v6770 = vld [vmem:[%s6769] sm:$0xff]
      %v6771 = vsel %vm2317, %v6747, 0
      %v6773 = vsel %vm2317, %v6750, 0
      %v6775 = vsel %vm2317, %v6753, 0
      %v6777 = vsel %vm2317, %v6756, 0
      %v6779 = vsel %vm2317, %v6759, 0
      %v6781 = vsel %vm2317, %v6762, 0
      %v6783 = vsel %vm2317, %v6765, 0
      %v6785 = vsel %vm2317, %v6768, 0
      %6787 = vmatprep.subr.mxu0 0.0
      %6788 = vmatpush1.msra.mxu0 0.0
      %6789 = vmatprep.subr.mxu0 0.0
      %6790 = vmatpush1.msra.mxu0 0.0
      %6791 = vmatprep.subr.mxu0 0.0
      %6792 = vmatpush1.msra.mxu0 0.0
      %6793 = vmatprep.subr.mxu0 0.0
      %6794 = vmatpush1.msra.mxu0 0.0
      %6795 = vmatprep.subr.mxu0 0.0
      %6796 = vmatpush1.msra.mxu0 0.0
      %6797 = vmatprep.subr.mxu0 0.0
      %6798 = vmatpush1.msra.mxu0 0.0
      %6799 = vmatprep.subr.mxu0 0.0
      %6800 = vmatpush1.msra.mxu0 0.0
      %6801 = vmatprep.subr.mxu0 0.0
      %6802 = vmatpush1.msra.mxu0 0.0
      %6803 = vmatprep.subr.mxu0 0.0
      %6804 = vmatpush1.msra.mxu0 0.0
      %6805 = vmatprep.subr.mxu0 0.0
      %6806 = vmatpush1.msra.mxu0 0.0
      %6807 = vmatprep.subr.mxu0 0.0
      %6808 = vmatpush1.msra.mxu0 0.0
      %6809 = vmatprep.subr.mxu0 0.0
      %6810 = vmatpush1.msra.mxu0 0.0
      %6811 = vmatprep.subr.mxu0 0.0
      %6812 = vmatpush1.msra.mxu0 0.0
      %6813 = vmatprep.subr.mxu0 0.0
      %6814 = vmatpush1.msra.mxu0 0.0
      %6815 = vmatprep.subr.mxu0 0.0
      %6816 = vmatpush1.msra.mxu0 0.0
      %6817 = vmatprep.subr.mxu0 0.0
      %6818 = vmatpush1.msra.mxu0 %v6770
      %6819 = vmatprep.subr.mxu0 0.0
      %6820 = vmatpush2.msra.mxu0 0.0
      %6821 = vmatprep.subr.mxu0 0.0
      %6822 = vmatpush2.msra.mxu0 0.0
      %6823 = vmatprep.subr.mxu0 0.0
      %6824 = vmatpush2.msra.mxu0 0.0
      %6825 = vmatprep.subr.mxu0 0.0
      %6826 = vmatpush2.msra.mxu0 0.0
      %6827 = vmatprep.subr.mxu0 0.0
      %6828 = vmatpush2.msra.mxu0 0.0
      %6829 = vmatprep.subr.mxu0 0.0
      %6830 = vmatpush2.msra.mxu0 0.0
      %6831 = vmatprep.subr.mxu0 0.0
      %6832 = vmatpush2.msra.mxu0 0.0
      %6833 = vmatprep.subr.mxu0 0.0
      %6834 = vmatpush2.msra.mxu0 0.0
      %6835 = vmatprep.subr.mxu0 0.0
      %6836 = vmatpush2.msra.mxu0 0.0
      %6837 = vmatprep.subr.mxu0 0.0
      %6838 = vmatpush2.msra.mxu0 0.0
      %6839 = vmatprep.subr.mxu0 0.0
      %6840 = vmatpush2.msra.mxu0 0.0
      %6841 = vmatprep.subr.mxu0 0.0
      %6842 = vmatpush2.msra.mxu0 0.0
      %6843 = vmatprep.subr.mxu0 0.0
      %6844 = vmatpush2.msra.mxu0 0.0
      %6845 = vmatprep.subr.mxu0 0.0
      %6846 = vmatpush2.msra.mxu0 0.0
      %6847 = vmatprep.subr.mxu0 0.0
      %6848 = vmatpush2.msra.mxu0 0.0
      %6849 = vmatprep.subr.mxu0 0.0
      %6850 = vmatpush2.msra.mxu0 0.0
      %6851 = vmatprep.mubr.f32.mxu0 0.0
      %6852 = vmatmul.mubr.f32.gmra.mxu0 %v6771
      %v6853 = vpop.f32.mrf.mxu0
      %v6854 = vadd.f32 0.0, %v6853
      %v6855 = vpop.f32.mrf.mxu0
      %6856 = vmatprep.mubr.f32.mxu0 0.0
      %6857 = vmatmul.mubr.f32.gmra.mxu0 %v6773
      %v6858 = vpop.f32.mrf.mxu0
      %v6859 = vadd.f32 0.0, %v6858
      %v6860 = vpop.f32.mrf.mxu0
      %6861 = vmatprep.mubr.f32.mxu0 0.0
      %6862 = vmatmul.mubr.f32.gmra.mxu0 %v6775
      %v6863 = vpop.f32.mrf.mxu0
      %v6864 = vadd.f32 0.0, %v6863
      %v6865 = vpop.f32.mrf.mxu0
      %6866 = vmatprep.mubr.f32.mxu0 0.0
      %6867 = vmatmul.mubr.f32.gmra.mxu0 %v6777
      %v6868 = vpop.f32.mrf.mxu0
      %v6869 = vadd.f32 0.0, %v6868
      %v6870 = vpop.f32.mrf.mxu0
      %6871 = vmatprep.mubr.f32.mxu0 0.0
      %6872 = vmatmul.mubr.f32.gmra.mxu0 %v6779
      %v6873 = vpop.f32.mrf.mxu0
      %v6874 = vadd.f32 0.0, %v6873
      %v6875 = vpop.f32.mrf.mxu0
      %6876 = vmatprep.mubr.f32.mxu0 0.0
      %6877 = vmatmul.mubr.f32.gmra.mxu0 %v6781
      %v6878 = vpop.f32.mrf.mxu0
      %v6879 = vadd.f32 0.0, %v6878
      %v6880 = vpop.f32.mrf.mxu0
      %6881 = vmatprep.mubr.f32.mxu0 0.0
      %6882 = vmatmul.mubr.f32.gmra.mxu0 %v6783
      %v6883 = vpop.f32.mrf.mxu0
      %v6884 = vadd.f32 0.0, %v6883
      %v6885 = vpop.f32.mrf.mxu0
      %6886 = vmatprep.mubr.f32.mxu0 0.0
      %6887 = vmatmul.mubr.f32.gmra.mxu0 %v6785
      %v6888 = vpop.f32.mrf.mxu0
      %v6889 = vadd.f32 0.0, %v6888
      %v6890 = vpop.f32.mrf.mxu0
      %6891 = vdwg.mxu0
      %v6893 = vsel %vm2317, %v6704, 0
      %v6896 = vsel %vm2317, %v6705, 0
      %v6899 = vsel %vm2317, %v6706, 0
      %v6902 = vsel %vm2317, %v6707, 0
      %v6905 = vsel %vm2317, %v6708, 0
      %v6908 = vsel %vm2317, %v6709, 0
      %v6911 = vsel %vm2317, %v6710, 0
      %v6914 = vsel %vm2317, %v6711, 0
      %6916 = vmatprep.subr.mxu0 0.0
      %6917 = vmatpush1.msra.mxu0 0.0
      %6918 = vmatprep.subr.mxu0 0.0
      %6919 = vmatpush1.msra.mxu0 0.0
      %6920 = vmatprep.subr.mxu0 0.0
      %6921 = vmatpush1.msra.mxu0 0.0
      %6922 = vmatprep.subr.mxu0 0.0
      %6923 = vmatpush1.msra.mxu0 0.0
      %6924 = vmatprep.subr.mxu0 0.0
      %6925 = vmatpush1.msra.mxu0 0.0
      %6926 = vmatprep.subr.mxu0 0.0
      %6927 = vmatpush1.msra.mxu0 0.0
      %6928 = vmatprep.subr.mxu0 0.0
      %6929 = vmatpush1.msra.mxu0 0.0
      %6930 = vmatprep.subr.mxu0 0.0
      %6931 = vmatpush1.msra.mxu0 0.0
      %6932 = vmatprep.subr.mxu0 0.0
      %6933 = vmatpush1.msra.mxu0 0.0
      %6934 = vmatprep.subr.mxu0 0.0
      %6935 = vmatpush1.msra.mxu0 0.0
      %6936 = vmatprep.subr.mxu0 0.0
      %6937 = vmatpush1.msra.mxu0 0.0
      %6938 = vmatprep.subr.mxu0 0.0
      %6939 = vmatpush1.msra.mxu0 0.0
      %6940 = vmatprep.subr.mxu0 0.0
      %6941 = vmatpush1.msra.mxu0 0.0
      %6942 = vmatprep.subr.mxu0 0.0
      %6943 = vmatpush1.msra.mxu0 0.0
      %6944 = vmatprep.subr.mxu0 0.0
      %6945 = vmatpush1.msra.mxu0 0.0
      %6946 = vmatprep.subr.mxu0 0.0
      %6947 = vmatpush1.msra.mxu0 %v6712
      %6948 = vmatprep.subr.mxu0 0.0
      %6949 = vmatpush2.msra.mxu0 0.0
      %6950 = vmatprep.subr.mxu0 0.0
      %6951 = vmatpush2.msra.mxu0 0.0
      %6952 = vmatprep.subr.mxu0 0.0
      %6953 = vmatpush2.msra.mxu0 0.0
      %6954 = vmatprep.subr.mxu0 0.0
      %6955 = vmatpush2.msra.mxu0 0.0
      %6956 = vmatprep.subr.mxu0 0.0
      %6957 = vmatpush2.msra.mxu0 0.0
      %6958 = vmatprep.subr.mxu0 0.0
      %6959 = vmatpush2.msra.mxu0 0.0
      %6960 = vmatprep.subr.mxu0 0.0
      %6961 = vmatpush2.msra.mxu0 0.0
      %6962 = vmatprep.subr.mxu0 0.0
      %6963 = vmatpush2.msra.mxu0 0.0
      %6964 = vmatprep.subr.mxu0 0.0
      %6965 = vmatpush2.msra.mxu0 0.0
      %6966 = vmatprep.subr.mxu0 0.0
      %6967 = vmatpush2.msra.mxu0 0.0
      %6968 = vmatprep.subr.mxu0 0.0
      %6969 = vmatpush2.msra.mxu0 0.0
      %6970 = vmatprep.subr.mxu0 0.0
      %6971 = vmatpush2.msra.mxu0 0.0
      %6972 = vmatprep.subr.mxu0 0.0
      %6973 = vmatpush2.msra.mxu0 0.0
      %6974 = vmatprep.subr.mxu0 0.0
      %6975 = vmatpush2.msra.mxu0 0.0
      %6976 = vmatprep.subr.mxu0 0.0
      %6977 = vmatpush2.msra.mxu0 0.0
      %6978 = vmatprep.subr.mxu0 0.0
      %6979 = vmatpush2.msra.mxu0 0.0
      %6980 = vmatprep.mubr.f32.mxu0 0.0
      %6981 = vmatmul.mubr.f32.gmra.mxu0 %v6893
      %v6982 = vpop.f32.mrf.mxu0
      %v6983 = vadd.f32 %v6854, %v6982
      %v6984 = vpop.f32.mrf.mxu0
      %6985 = vmatprep.mubr.f32.mxu0 0.0
      %6986 = vmatmul.mubr.f32.gmra.mxu0 %v6896
      %v6987 = vpop.f32.mrf.mxu0
      %v6988 = vadd.f32 %v6859, %v6987
      %v6989 = vpop.f32.mrf.mxu0
      %6990 = vmatprep.mubr.f32.mxu0 0.0
      %6991 = vmatmul.mubr.f32.gmra.mxu0 %v6899
      %v6992 = vpop.f32.mrf.mxu0
      %v6993 = vadd.f32 %v6864, %v6992
      %v6994 = vpop.f32.mrf.mxu0
      %6995 = vmatprep.mubr.f32.mxu0 0.0
      %6996 = vmatmul.mubr.f32.gmra.mxu0 %v6902
      %v6997 = vpop.f32.mrf.mxu0
      %v6998 = vadd.f32 %v6869, %v6997
      %v6999 = vpop.f32.mrf.mxu0
      %7000 = vmatprep.mubr.f32.mxu0 0.0
      %7001 = vmatmul.mubr.f32.gmra.mxu0 %v6905
      %v7002 = vpop.f32.mrf.mxu0
      %v7003 = vadd.f32 %v6874, %v7002
      %v7004 = vpop.f32.mrf.mxu0
      %7005 = vmatprep.mubr.f32.mxu0 0.0
      %7006 = vmatmul.mubr.f32.gmra.mxu0 %v6908
      %v7007 = vpop.f32.mrf.mxu0
      %v7008 = vadd.f32 %v6879, %v7007
      %v7009 = vpop.f32.mrf.mxu0
      %7010 = vmatprep.mubr.f32.mxu0 0.0
      %7011 = vmatmul.mubr.f32.gmra.mxu0 %v6911
      %v7012 = vpop.f32.mrf.mxu0
      %v7013 = vadd.f32 %v6884, %v7012
      %v7014 = vpop.f32.mrf.mxu0
      %7015 = vmatprep.mubr.f32.mxu0 0.0
      %7016 = vmatmul.mubr.f32.gmra.mxu0 %v6914
      %v7017 = vpop.f32.mrf.mxu0
      %v7018 = vadd.f32 %v6889, %v7017
      %v7019 = vpop.f32.mrf.mxu0
      %7020 = vdwg.mxu0
      %v7021 = vld [vmem:[#allocation2] sm:$0xfc]
      %v7022 = vld [vmem:[#allocation2 + $0x10] sm:$0x3]
      %v7023 = vld [vmem:[#allocation2 + $0x20] sm:$0xfc]
      %v7024 = vld [vmem:[#allocation2 + $0x30] sm:$0x3]
      %v7025 = vld [vmem:[#allocation2 + $0x40] sm:$0xfc]
      %v7026 = vld [vmem:[#allocation2 + $0x50] sm:$0x3]
      %v7027 = vld [vmem:[#allocation2 + $0x60] sm:$0xfc]
      %v7028 = vld [vmem:[#allocation2 + $0x70] sm:$0x3]
      %v7029 = vld [vmem:[#allocation2 + $0x80] sm:$0xfc]
      %v7030 = vld [vmem:[#allocation2 + $0x90] sm:$0x3]
      %v7031 = vld [vmem:[#allocation2 + $0xa0] sm:$0xfc]
      %v7032 = vld [vmem:[#allocation2 + $0xb0] sm:$0x3]
      %v7033 = vld [vmem:[#allocation2 + $0xc0] sm:$0xfc]
      %v7034 = vld [vmem:[#allocation2 + $0xd0] sm:$0x3]
      %v7035 = vld [vmem:[#allocation2 + $0xe0] sm:$0xfc]
      %v7036 = vld [vmem:[#allocation2 + $0xf0] sm:$0x3]
      %v7053 = vrot.slane %v7021, 2
      %v7054 = vrot.slane %v7022, 2
      %v7055 = vsel %vm2600, %v7053, %v7054
      %v7056 = vrot.slane %v7023, 2
      %v7057 = vrot.slane %v7024, 2
      %v7058 = vsel %vm2600, %v7056, %v7057
      %v7059 = vrot.slane %v7025, 2
      %v7060 = vrot.slane %v7026, 2
      %v7061 = vsel %vm2600, %v7059, %v7060
      %v7062 = vrot.slane %v7027, 2
      %v7063 = vrot.slane %v7028, 2
      %v7064 = vsel %vm2600, %v7062, %v7063
      %v7065 = vrot.slane %v7029, 2
      %v7066 = vrot.slane %v7030, 2
      %v7067 = vsel %vm2600, %v7065, %v7066
      %v7068 = vrot.slane %v7031, 2
      %v7069 = vrot.slane %v7032, 2
      %v7070 = vsel %vm2600, %v7068, %v7069
      %v7071 = vrot.slane %v7033, 2
      %v7072 = vrot.slane %v7034, 2
      %v7073 = vsel %vm2600, %v7071, %v7072
      %v7074 = vrot.slane %v7035, 2
      %v7075 = vrot.slane %v7036, 2
      %v7076 = vsel %vm2600, %v7074, %v7075
      %s7077 = scalar_lea.vmem %s8, 16
      %v7078 = vld [vmem:[%s7077] sm:$0xff]
      %v7079 = vsel %vm2317, %v7055, 0
      %v7081 = vsel %vm2317, %v7058, 0
      %v7083 = vsel %vm2317, %v7061, 0
      %v7085 = vsel %vm2317, %v7064, 0
      %v7087 = vsel %vm2317, %v7067, 0
      %v7089 = vsel %vm2317, %v7070, 0
      %v7091 = vsel %vm2317, %v7073, 0
      %v7093 = vsel %vm2317, %v7076, 0
      %7095 = vmatprep.subr.mxu0 0.0
      %7096 = vmatpush1.msra.mxu0 0.0
      %7097 = vmatprep.subr.mxu0 0.0
      %7098 = vmatpush1.msra.mxu0 0.0
      %7099 = vmatprep.subr.mxu0 0.0
      %7100 = vmatpush1.msra.mxu0 0.0
      %7101 = vmatprep.subr.mxu0 0.0
      %7102 = vmatpush1.msra.mxu0 0.0
      %7103 = vmatprep.subr.mxu0 0.0
      %7104 = vmatpush1.msra.mxu0 0.0
      %7105 = vmatprep.subr.mxu0 0.0
      %7106 = vmatpush1.msra.mxu0 0.0
      %7107 = vmatprep.subr.mxu0 0.0
      %7108 = vmatpush1.msra.mxu0 0.0
      %7109 = vmatprep.subr.mxu0 0.0
      %7110 = vmatpush1.msra.mxu0 0.0
      %7111 = vmatprep.subr.mxu0 0.0
      %7112 = vmatpush1.msra.mxu0 0.0
      %7113 = vmatprep.subr.mxu0 0.0
      %7114 = vmatpush1.msra.mxu0 0.0
      %7115 = vmatprep.subr.mxu0 0.0
      %7116 = vmatpush1.msra.mxu0 0.0
      %7117 = vmatprep.subr.mxu0 0.0
      %7118 = vmatpush1.msra.mxu0 0.0
      %7119 = vmatprep.subr.mxu0 0.0
      %7120 = vmatpush1.msra.mxu0 0.0
      %7121 = vmatprep.subr.mxu0 0.0
      %7122 = vmatpush1.msra.mxu0 0.0
      %7123 = vmatprep.subr.mxu0 0.0
      %7124 = vmatpush1.msra.mxu0 0.0
      %7125 = vmatprep.subr.mxu0 0.0
      %7126 = vmatpush1.msra.mxu0 %v7078
      %7127 = vmatprep.subr.mxu0 0.0
      %7128 = vmatpush2.msra.mxu0 0.0
      %7129 = vmatprep.subr.mxu0 0.0
      %7130 = vmatpush2.msra.mxu0 0.0
      %7131 = vmatprep.subr.mxu0 0.0
      %7132 = vmatpush2.msra.mxu0 0.0
      %7133 = vmatprep.subr.mxu0 0.0
      %7134 = vmatpush2.msra.mxu0 0.0
      %7135 = vmatprep.subr.mxu0 0.0
      %7136 = vmatpush2.msra.mxu0 0.0
      %7137 = vmatprep.subr.mxu0 0.0
      %7138 = vmatpush2.msra.mxu0 0.0
      %7139 = vmatprep.subr.mxu0 0.0
      %7140 = vmatpush2.msra.mxu0 0.0
      %7141 = vmatprep.subr.mxu0 0.0
      %7142 = vmatpush2.msra.mxu0 0.0
      %7143 = vmatprep.subr.mxu0 0.0
      %7144 = vmatpush2.msra.mxu0 0.0
      %7145 = vmatprep.subr.mxu0 0.0
      %7146 = vmatpush2.msra.mxu0 0.0
      %7147 = vmatprep.subr.mxu0 0.0
      %7148 = vmatpush2.msra.mxu0 0.0
      %7149 = vmatprep.subr.mxu0 0.0
      %7150 = vmatpush2.msra.mxu0 0.0
      %7151 = vmatprep.subr.mxu0 0.0
      %7152 = vmatpush2.msra.mxu0 0.0
      %7153 = vmatprep.subr.mxu0 0.0
      %7154 = vmatpush2.msra.mxu0 0.0
      %7155 = vmatprep.subr.mxu0 0.0
      %7156 = vmatpush2.msra.mxu0 0.0
      %7157 = vmatprep.subr.mxu0 0.0
      %7158 = vmatpush2.msra.mxu0 0.0
      %7159 = vmatprep.mubr.f32.mxu0 0.0
      %7160 = vmatmul.mubr.f32.gmra.mxu0 %v7079
      %v7161 = vpop.f32.mrf.mxu0
      %v7162 = vadd.f32 0.0, %v7161
      %v7163 = vpop.f32.mrf.mxu0
      %7164 = vmatprep.mubr.f32.mxu0 0.0
      %7165 = vmatmul.mubr.f32.gmra.mxu0 %v7081
      %v7166 = vpop.f32.mrf.mxu0
      %v7167 = vadd.f32 0.0, %v7166
      %v7168 = vpop.f32.mrf.mxu0
      %7169 = vmatprep.mubr.f32.mxu0 0.0
      %7170 = vmatmul.mubr.f32.gmra.mxu0 %v7083
      %v7171 = vpop.f32.mrf.mxu0
      %v7172 = vadd.f32 0.0, %v7171
      %v7173 = vpop.f32.mrf.mxu0
      %7174 = vmatprep.mubr.f32.mxu0 0.0
      %7175 = vmatmul.mubr.f32.gmra.mxu0 %v7085
      %v7176 = vpop.f32.mrf.mxu0
      %v7177 = vadd.f32 0.0, %v7176
      %v7178 = vpop.f32.mrf.mxu0
      %7179 = vmatprep.mubr.f32.mxu0 0.0
      %7180 = vmatmul.mubr.f32.gmra.mxu0 %v7087
      %v7181 = vpop.f32.mrf.mxu0
      %v7182 = vadd.f32 0.0, %v7181
      %v7183 = vpop.f32.mrf.mxu0
      %7184 = vmatprep.mubr.f32.mxu0 0.0
      %7185 = vmatmul.mubr.f32.gmra.mxu0 %v7089
      %v7186 = vpop.f32.mrf.mxu0
      %v7187 = vadd.f32 0.0, %v7186
      %v7188 = vpop.f32.mrf.mxu0
      %7189 = vmatprep.mubr.f32.mxu0 0.0
      %7190 = vmatmul.mubr.f32.gmra.mxu0 %v7091
      %v7191 = vpop.f32.mrf.mxu0
      %v7192 = vadd.f32 0.0, %v7191
      %v7193 = vpop.f32.mrf.mxu0
      %7194 = vmatprep.mubr.f32.mxu0 0.0
      %7195 = vmatmul.mubr.f32.gmra.mxu0 %v7093
      %v7196 = vpop.f32.mrf.mxu0
      %v7197 = vadd.f32 0.0, %v7196
      %v7198 = vpop.f32.mrf.mxu0
      %7199 = vdwg.mxu0
      %v7200 = vadd.f32 %v6983, %v7162
      %v7201 = vadd.f32 %v6988, %v7167
      %v7202 = vadd.f32 %v6993, %v7172
      %v7203 = vadd.f32 %v6998, %v7177
      %v7204 = vadd.f32 %v7003, %v7182
      %v7205 = vadd.f32 %v7008, %v7187
      %v7206 = vadd.f32 %v7013, %v7192
      %v7207 = vadd.f32 %v7018, %v7197
      %v7208 = vld [vmem:[#allocation2] sm:$0xf8]
      %v7209 = vld [vmem:[#allocation2 + $0x10] sm:$0x7]
      %v7210 = vld [vmem:[#allocation2 + $0x20] sm:$0xf8]
      %v7211 = vld [vmem:[#allocation2 + $0x30] sm:$0x7]
      %v7212 = vld [vmem:[#allocation2 + $0x40] sm:$0xf8]
      %v7213 = vld [vmem:[#allocation2 + $0x50] sm:$0x7]
      %v7214 = vld [vmem:[#allocation2 + $0x60] sm:$0xf8]
      %v7215 = vld [vmem:[#allocation2 + $0x70] sm:$0x7]
      %v7216 = vld [vmem:[#allocation2 + $0x80] sm:$0xf8]
      %v7217 = vld [vmem:[#allocation2 + $0x90] sm:$0x7]
      %v7218 = vld [vmem:[#allocation2 + $0xa0] sm:$0xf8]
      %v7219 = vld [vmem:[#allocation2 + $0xb0] sm:$0x7]
      %v7220 = vld [vmem:[#allocation2 + $0xc0] sm:$0xf8]
      %v7221 = vld [vmem:[#allocation2 + $0xd0] sm:$0x7]
      %v7222 = vld [vmem:[#allocation2 + $0xe0] sm:$0xf8]
      %v7223 = vld [vmem:[#allocation2 + $0xf0] sm:$0x7]
      %v7240 = vrot.slane %v7208, 3
      %v7241 = vrot.slane %v7209, 3
      %v7242 = vsel %vm2788, %v7240, %v7241
      %v7243 = vrot.slane %v7210, 3
      %v7244 = vrot.slane %v7211, 3
      %v7245 = vsel %vm2788, %v7243, %v7244
      %v7246 = vrot.slane %v7212, 3
      %v7247 = vrot.slane %v7213, 3
      %v7248 = vsel %vm2788, %v7246, %v7247
      %v7249 = vrot.slane %v7214, 3
      %v7250 = vrot.slane %v7215, 3
      %v7251 = vsel %vm2788, %v7249, %v7250
      %v7252 = vrot.slane %v7216, 3
      %v7253 = vrot.slane %v7217, 3
      %v7254 = vsel %vm2788, %v7252, %v7253
      %v7255 = vrot.slane %v7218, 3
      %v7256 = vrot.slane %v7219, 3
      %v7257 = vsel %vm2788, %v7255, %v7256
      %v7258 = vrot.slane %v7220, 3
      %v7259 = vrot.slane %v7221, 3
      %v7260 = vsel %vm2788, %v7258, %v7259
      %v7261 = vrot.slane %v7222, 3
      %v7262 = vrot.slane %v7223, 3
      %v7263 = vsel %vm2788, %v7261, %v7262
      %s7264 = scalar_lea.vmem %s8, 24
      %v7265 = vld [vmem:[%s7264] sm:$0xff]
      %v7266 = vsel %vm2317, %v7242, 0
      %v7268 = vsel %vm2317, %v7245, 0
      %v7270 = vsel %vm2317, %v7248, 0
      %v7272 = vsel %vm2317, %v7251, 0
      %v7274 = vsel %vm2317, %v7254, 0
      %v7276 = vsel %vm2317, %v7257, 0
      %v7278 = vsel %vm2317, %v7260, 0
      %v7280 = vsel %vm2317, %v7263, 0
      %7282 = vmatprep.subr.mxu0 0.0
      %7283 = vmatpush1.msra.mxu0 0.0
      %7284 = vmatprep.subr.mxu0 0.0
      %7285 = vmatpush1.msra.mxu0 0.0
      %7286 = vmatprep.subr.mxu0 0.0
      %7287 = vmatpush1.msra.mxu0 0.0
      %7288 = vmatprep.subr.mxu0 0.0
      %7289 = vmatpush1.msra.mxu0 0.0
      %7290 = vmatprep.subr.mxu0 0.0
      %7291 = vmatpush1.msra.mxu0 0.0
      %7292 = vmatprep.subr.mxu0 0.0
      %7293 = vmatpush1.msra.mxu0 0.0
      %7294 = vmatprep.subr.mxu0 0.0
      %7295 = vmatpush1.msra.mxu0 0.0
      %7296 = vmatprep.subr.mxu0 0.0
      %7297 = vmatpush1.msra.mxu0 0.0
      %7298 = vmatprep.subr.mxu0 0.0
      %7299 = vmatpush1.msra.mxu0 0.0
      %7300 = vmatprep.subr.mxu0 0.0
      %7301 = vmatpush1.msra.mxu0 0.0
      %7302 = vmatprep.subr.mxu0 0.0
      %7303 = vmatpush1.msra.mxu0 0.0
      %7304 = vmatprep.subr.mxu0 0.0
      %7305 = vmatpush1.msra.mxu0 0.0
      %7306 = vmatprep.subr.mxu0 0.0
      %7307 = vmatpush1.msra.mxu0 0.0
      %7308 = vmatprep.subr.mxu0 0.0
      %7309 = vmatpush1.msra.mxu0 0.0
      %7310 = vmatprep.subr.mxu0 0.0
      %7311 = vmatpush1.msra.mxu0 0.0
      %7312 = vmatprep.subr.mxu0 0.0
      %7313 = vmatpush1.msra.mxu0 %v7265
      %7314 = vmatprep.subr.mxu0 0.0
      %7315 = vmatpush2.msra.mxu0 0.0
      %7316 = vmatprep.subr.mxu0 0.0
      %7317 = vmatpush2.msra.mxu0 0.0
      %7318 = vmatprep.subr.mxu0 0.0
      %7319 = vmatpush2.msra.mxu0 0.0
      %7320 = vmatprep.subr.mxu0 0.0
      %7321 = vmatpush2.msra.mxu0 0.0
      %7322 = vmatprep.subr.mxu0 0.0
      %7323 = vmatpush2.msra.mxu0 0.0
      %7324 = vmatprep.subr.mxu0 0.0
      %7325 = vmatpush2.msra.mxu0 0.0
      %7326 = vmatprep.subr.mxu0 0.0
      %7327 = vmatpush2.msra.mxu0 0.0
      %7328 = vmatprep.subr.mxu0 0.0
      %7329 = vmatpush2.msra.mxu0 0.0
      %7330 = vmatprep.subr.mxu0 0.0
      %7331 = vmatpush2.msra.mxu0 0.0
      %7332 = vmatprep.subr.mxu0 0.0
      %7333 = vmatpush2.msra.mxu0 0.0
      %7334 = vmatprep.subr.mxu0 0.0
      %7335 = vmatpush2.msra.mxu0 0.0
      %7336 = vmatprep.subr.mxu0 0.0
      %7337 = vmatpush2.msra.mxu0 0.0
      %7338 = vmatprep.subr.mxu0 0.0
      %7339 = vmatpush2.msra.mxu0 0.0
      %7340 = vmatprep.subr.mxu0 0.0
      %7341 = vmatpush2.msra.mxu0 0.0
      %7342 = vmatprep.subr.mxu0 0.0
      %7343 = vmatpush2.msra.mxu0 0.0
      %7344 = vmatprep.subr.mxu0 0.0
      %7345 = vmatpush2.msra.mxu0 0.0
      %7346 = vmatprep.mubr.f32.mxu0 0.0
      %7347 = vmatmul.mubr.f32.gmra.mxu0 %v7266
      %v7348 = vpop.f32.mrf.mxu0
      %v7349 = vadd.f32 0.0, %v7348
      %v7350 = vpop.f32.mrf.mxu0
      %7351 = vmatprep.mubr.f32.mxu0 0.0
      %7352 = vmatmul.mubr.f32.gmra.mxu0 %v7268
      %v7353 = vpop.f32.mrf.mxu0
      %v7354 = vadd.f32 0.0, %v7353
      %v7355 = vpop.f32.mrf.mxu0
      %7356 = vmatprep.mubr.f32.mxu0 0.0
      %7357 = vmatmul.mubr.f32.gmra.mxu0 %v7270
      %v7358 = vpop.f32.mrf.mxu0
      %v7359 = vadd.f32 0.0, %v7358
      %v7360 = vpop.f32.mrf.mxu0
      %7361 = vmatprep.mubr.f32.mxu0 0.0
      %7362 = vmatmul.mubr.f32.gmra.mxu0 %v7272
      %v7363 = vpop.f32.mrf.mxu0
      %v7364 = vadd.f32 0.0, %v7363
      %v7365 = vpop.f32.mrf.mxu0
      %7366 = vmatprep.mubr.f32.mxu0 0.0
      %7367 = vmatmul.mubr.f32.gmra.mxu0 %v7274
      %v7368 = vpop.f32.mrf.mxu0
      %v7369 = vadd.f32 0.0, %v7368
      %v7370 = vpop.f32.mrf.mxu0
      %7371 = vmatprep.mubr.f32.mxu0 0.0
      %7372 = vmatmul.mubr.f32.gmra.mxu0 %v7276
      %v7373 = vpop.f32.mrf.mxu0
      %v7374 = vadd.f32 0.0, %v7373
      %v7375 = vpop.f32.mrf.mxu0
      %7376 = vmatprep.mubr.f32.mxu0 0.0
      %7377 = vmatmul.mubr.f32.gmra.mxu0 %v7278
      %v7378 = vpop.f32.mrf.mxu0
      %v7379 = vadd.f32 0.0, %v7378
      %v7380 = vpop.f32.mrf.mxu0
      %7381 = vmatprep.mubr.f32.mxu0 0.0
      %7382 = vmatmul.mubr.f32.gmra.mxu0 %v7280
      %v7383 = vpop.f32.mrf.mxu0
      %v7384 = vadd.f32 0.0, %v7383
      %v7385 = vpop.f32.mrf.mxu0
      %7386 = vdwg.mxu0
      %v7387 = vadd.f32 %v7200, %v7349
      %v7388 = vadd.f32 %v7201, %v7354
      %v7389 = vadd.f32 %v7202, %v7359
      %v7390 = vadd.f32 %v7203, %v7364
      %v7391 = vadd.f32 %v7204, %v7369
      %v7392 = vadd.f32 %v7205, %v7374
      %v7393 = vadd.f32 %v7206, %v7379
      %v7394 = vadd.f32 %v7207, %v7384
      %v7395 = vld [vmem:[#allocation2] sm:$0xf0]
      %v7396 = vld [vmem:[#allocation2 + $0x10] sm:$0xf]
      %v7397 = vld [vmem:[#allocation2 + $0x20] sm:$0xf0]
      %v7398 = vld [vmem:[#allocation2 + $0x30] sm:$0xf]
      %v7399 = vld [vmem:[#allocation2 + $0x40] sm:$0xf0]
      %v7400 = vld [vmem:[#allocation2 + $0x50] sm:$0xf]
      %v7401 = vld [vmem:[#allocation2 + $0x60] sm:$0xf0]
      %v7402 = vld [vmem:[#allocation2 + $0x70] sm:$0xf]
      %v7403 = vld [vmem:[#allocation2 + $0x80] sm:$0xf0]
      %v7404 = vld [vmem:[#allocation2 + $0x90] sm:$0xf]
      %v7405 = vld [vmem:[#allocation2 + $0xa0] sm:$0xf0]
      %v7406 = vld [vmem:[#allocation2 + $0xb0] sm:$0xf]
      %v7407 = vld [vmem:[#allocation2 + $0xc0] sm:$0xf0]
      %v7408 = vld [vmem:[#allocation2 + $0xd0] sm:$0xf]
      %v7409 = vld [vmem:[#allocation2 + $0xe0] sm:$0xf0]
      %v7410 = vld [vmem:[#allocation2 + $0xf0] sm:$0xf]
      %v7427 = vrot.slane %v7395, 4
      %v7428 = vrot.slane %v7396, 4
      %v7429 = vsel %vm2976, %v7427, %v7428
      %v7430 = vrot.slane %v7397, 4
      %v7431 = vrot.slane %v7398, 4
      %v7432 = vsel %vm2976, %v7430, %v7431
      %v7433 = vrot.slane %v7399, 4
      %v7434 = vrot.slane %v7400, 4
      %v7435 = vsel %vm2976, %v7433, %v7434
      %v7436 = vrot.slane %v7401, 4
      %v7437 = vrot.slane %v7402, 4
      %v7438 = vsel %vm2976, %v7436, %v7437
      %v7439 = vrot.slane %v7403, 4
      %v7440 = vrot.slane %v7404, 4
      %v7441 = vsel %vm2976, %v7439, %v7440
      %v7442 = vrot.slane %v7405, 4
      %v7443 = vrot.slane %v7406, 4
      %v7444 = vsel %vm2976, %v7442, %v7443
      %v7445 = vrot.slane %v7407, 4
      %v7446 = vrot.slane %v7408, 4
      %v7447 = vsel %vm2976, %v7445, %v7446
      %v7448 = vrot.slane %v7409, 4
      %v7449 = vrot.slane %v7410, 4
      %v7450 = vsel %vm2976, %v7448, %v7449
      %s7451 = scalar_lea.vmem %s8, 32
      %v7452 = vld [vmem:[%s7451] sm:$0xff]
      %v7453 = vsel %vm2317, %v7429, 0
      %v7455 = vsel %vm2317, %v7432, 0
      %v7457 = vsel %vm2317, %v7435, 0
      %v7459 = vsel %vm2317, %v7438, 0
      %v7461 = vsel %vm2317, %v7441, 0
      %v7463 = vsel %vm2317, %v7444, 0
      %v7465 = vsel %vm2317, %v7447, 0
      %v7467 = vsel %vm2317, %v7450, 0
      %7469 = vmatprep.subr.mxu0 0.0
      %7470 = vmatpush1.msra.mxu0 0.0
      %7471 = vmatprep.subr.mxu0 0.0
      %7472 = vmatpush1.msra.mxu0 0.0
      %7473 = vmatprep.subr.mxu0 0.0
      %7474 = vmatpush1.msra.mxu0 0.0
      %7475 = vmatprep.subr.mxu0 0.0
      %7476 = vmatpush1.msra.mxu0 0.0
      %7477 = vmatprep.subr.mxu0 0.0
      %7478 = vmatpush1.msra.mxu0 0.0
      %7479 = vmatprep.subr.mxu0 0.0
      %7480 = vmatpush1.msra.mxu0 0.0
      %7481 = vmatprep.subr.mxu0 0.0
      %7482 = vmatpush1.msra.mxu0 0.0
      %7483 = vmatprep.subr.mxu0 0.0
      %7484 = vmatpush1.msra.mxu0 0.0
      %7485 = vmatprep.subr.mxu0 0.0
      %7486 = vmatpush1.msra.mxu0 0.0
      %7487 = vmatprep.subr.mxu0 0.0
      %7488 = vmatpush1.msra.mxu0 0.0
      %7489 = vmatprep.subr.mxu0 0.0
      %7490 = vmatpush1.msra.mxu0 0.0
      %7491 = vmatprep.subr.mxu0 0.0
      %7492 = vmatpush1.msra.mxu0 0.0
      %7493 = vmatprep.subr.mxu0 0.0
      %7494 = vmatpush1.msra.mxu0 0.0
      %7495 = vmatprep.subr.mxu0 0.0
      %7496 = vmatpush1.msra.mxu0 0.0
      %7497 = vmatprep.subr.mxu0 0.0
      %7498 = vmatpush1.msra.mxu0 0.0
      %7499 = vmatprep.subr.mxu0 0.0
      %7500 = vmatpush1.msra.mxu0 %v7452
      %7501 = vmatprep.subr.mxu0 0.0
      %7502 = vmatpush2.msra.mxu0 0.0
      %7503 = vmatprep.subr.mxu0 0.0
      %7504 = vmatpush2.msra.mxu0 0.0
      %7505 = vmatprep.subr.mxu0 0.0
      %7506 = vmatpush2.msra.mxu0 0.0
      %7507 = vmatprep.subr.mxu0 0.0
      %7508 = vmatpush2.msra.mxu0 0.0
      %7509 = vmatprep.subr.mxu0 0.0
      %7510 = vmatpush2.msra.mxu0 0.0
      %7511 = vmatprep.subr.mxu0 0.0
      %7512 = vmatpush2.msra.mxu0 0.0
      %7513 = vmatprep.subr.mxu0 0.0
      %7514 = vmatpush2.msra.mxu0 0.0
      %7515 = vmatprep.subr.mxu0 0.0
      %7516 = vmatpush2.msra.mxu0 0.0
      %7517 = vmatprep.subr.mxu0 0.0
      %7518 = vmatpush2.msra.mxu0 0.0
      %7519 = vmatprep.subr.mxu0 0.0
      %7520 = vmatpush2.msra.mxu0 0.0
      %7521 = vmatprep.subr.mxu0 0.0
      %7522 = vmatpush2.msra.mxu0 0.0
      %7523 = vmatprep.subr.mxu0 0.0
      %7524 = vmatpush2.msra.mxu0 0.0
      %7525 = vmatprep.subr.mxu0 0.0
      %7526 = vmatpush2.msra.mxu0 0.0
      %7527 = vmatprep.subr.mxu0 0.0
      %7528 = vmatpush2.msra.mxu0 0.0
      %7529 = vmatprep.subr.mxu0 0.0
      %7530 = vmatpush2.msra.mxu0 0.0
      %7531 = vmatprep.subr.mxu0 0.0
      %7532 = vmatpush2.msra.mxu0 0.0
      %7533 = vmatprep.mubr.f32.mxu0 0.0
      %7534 = vmatmul.mubr.f32.gmra.mxu0 %v7453
      %v7535 = vpop.f32.mrf.mxu0
      %v7536 = vadd.f32 0.0, %v7535
      %v7537 = vpop.f32.mrf.mxu0
      %7538 = vmatprep.mubr.f32.mxu0 0.0
      %7539 = vmatmul.mubr.f32.gmra.mxu0 %v7455
      %v7540 = vpop.f32.mrf.mxu0
      %v7541 = vadd.f32 0.0, %v7540
      %v7542 = vpop.f32.mrf.mxu0
      %7543 = vmatprep.mubr.f32.mxu0 0.0
      %7544 = vmatmul.mubr.f32.gmra.mxu0 %v7457
      %v7545 = vpop.f32.mrf.mxu0
      %v7546 = vadd.f32 0.0, %v7545
      %v7547 = vpop.f32.mrf.mxu0
      %7548 = vmatprep.mubr.f32.mxu0 0.0
      %7549 = vmatmul.mubr.f32.gmra.mxu0 %v7459
      %v7550 = vpop.f32.mrf.mxu0
      %v7551 = vadd.f32 0.0, %v7550
      %v7552 = vpop.f32.mrf.mxu0
      %7553 = vmatprep.mubr.f32.mxu0 0.0
      %7554 = vmatmul.mubr.f32.gmra.mxu0 %v7461
      %v7555 = vpop.f32.mrf.mxu0
      %v7556 = vadd.f32 0.0, %v7555
      %v7557 = vpop.f32.mrf.mxu0
      %7558 = vmatprep.mubr.f32.mxu0 0.0
      %7559 = vmatmul.mubr.f32.gmra.mxu0 %v7463
      %v7560 = vpop.f32.mrf.mxu0
      %v7561 = vadd.f32 0.0, %v7560
      %v7562 = vpop.f32.mrf.mxu0
      %7563 = vmatprep.mubr.f32.mxu0 0.0
      %7564 = vmatmul.mubr.f32.gmra.mxu0 %v7465
      %v7565 = vpop.f32.mrf.mxu0
      %v7566 = vadd.f32 0.0, %v7565
      %v7567 = vpop.f32.mrf.mxu0
      %7568 = vmatprep.mubr.f32.mxu0 0.0
      %7569 = vmatmul.mubr.f32.gmra.mxu0 %v7467
      %v7570 = vpop.f32.mrf.mxu0
      %v7571 = vadd.f32 0.0, %v7570
      %v7572 = vpop.f32.mrf.mxu0
      %7573 = vdwg.mxu0
      %v7574 = vadd.f32 %v7387, %v7536
      %v7575 = vadd.f32 %v7388, %v7541
      %v7576 = vadd.f32 %v7389, %v7546
      %v7577 = vadd.f32 %v7390, %v7551
      %v7578 = vadd.f32 %v7391, %v7556
      %v7579 = vadd.f32 %v7392, %v7561
      %v7580 = vadd.f32 %v7393, %v7566
      %v7581 = vadd.f32 %v7394, %v7571
      %v7582 = vld [vmem:[#allocation2] sm:$0xe0]
      %v7583 = vld [vmem:[#allocation2 + $0x10] sm:$0x1f]
      %v7584 = vld [vmem:[#allocation2 + $0x20] sm:$0xe0]
      %v7585 = vld [vmem:[#allocation2 + $0x30] sm:$0x1f]
      %v7586 = vld [vmem:[#allocation2 + $0x40] sm:$0xe0]
      %v7587 = vld [vmem:[#allocation2 + $0x50] sm:$0x1f]
      %v7588 = vld [vmem:[#allocation2 + $0x60] sm:$0xe0]
      %v7589 = vld [vmem:[#allocation2 + $0x70] sm:$0x1f]
      %v7590 = vld [vmem:[#allocation2 + $0x80] sm:$0xe0]
      %v7591 = vld [vmem:[#allocation2 + $0x90] sm:$0x1f]
      %v7592 = vld [vmem:[#allocation2 + $0xa0] sm:$0xe0]
      %v7593 = vld [vmem:[#allocation2 + $0xb0] sm:$0x1f]
      %v7594 = vld [vmem:[#allocation2 + $0xc0] sm:$0xe0]
      %v7595 = vld [vmem:[#allocation2 + $0xd0] sm:$0x1f]
      %v7596 = vld [vmem:[#allocation2 + $0xe0] sm:$0xe0]
      %v7597 = vld [vmem:[#allocation2 + $0xf0] sm:$0x1f]
      %v7614 = vrot.slane %v7582, 5
      %v7615 = vrot.slane %v7583, 5
      %v7616 = vsel %vm3164, %v7614, %v7615
      %v7617 = vrot.slane %v7584, 5
      %v7618 = vrot.slane %v7585, 5
      %v7619 = vsel %vm3164, %v7617, %v7618
      %v7620 = vrot.slane %v7586, 5
      %v7621 = vrot.slane %v7587, 5
      %v7622 = vsel %vm3164, %v7620, %v7621
      %v7623 = vrot.slane %v7588, 5
      %v7624 = vrot.slane %v7589, 5
      %v7625 = vsel %vm3164, %v7623, %v7624
      %v7626 = vrot.slane %v7590, 5
      %v7627 = vrot.slane %v7591, 5
      %v7628 = vsel %vm3164, %v7626, %v7627
      %v7629 = vrot.slane %v7592, 5
      %v7630 = vrot.slane %v7593, 5
      %v7631 = vsel %vm3164, %v7629, %v7630
      %v7632 = vrot.slane %v7594, 5
      %v7633 = vrot.slane %v7595, 5
      %v7634 = vsel %vm3164, %v7632, %v7633
      %v7635 = vrot.slane %v7596, 5
      %v7636 = vrot.slane %v7597, 5
      %v7637 = vsel %vm3164, %v7635, %v7636
      %s7638 = scalar_lea.vmem %s8, 40
      %v7639 = vld [vmem:[%s7638] sm:$0xff]
      %v7640 = vsel %vm2317, %v7616, 0
      %v7642 = vsel %vm2317, %v7619, 0
      %v7644 = vsel %vm2317, %v7622, 0
      %v7646 = vsel %vm2317, %v7625, 0
      %v7648 = vsel %vm2317, %v7628, 0
      %v7650 = vsel %vm2317, %v7631, 0
      %v7652 = vsel %vm2317, %v7634, 0
      %v7654 = vsel %vm2317, %v7637, 0
      %7656 = vmatprep.subr.mxu0 0.0
      %7657 = vmatpush1.msra.mxu0 0.0
      %7658 = vmatprep.subr.mxu0 0.0
      %7659 = vmatpush1.msra.mxu0 0.0
      %7660 = vmatprep.subr.mxu0 0.0
      %7661 = vmatpush1.msra.mxu0 0.0
      %7662 = vmatprep.subr.mxu0 0.0
      %7663 = vmatpush1.msra.mxu0 0.0
      %7664 = vmatprep.subr.mxu0 0.0
      %7665 = vmatpush1.msra.mxu0 0.0
      %7666 = vmatprep.subr.mxu0 0.0
      %7667 = vmatpush1.msra.mxu0 0.0
      %7668 = vmatprep.subr.mxu0 0.0
      %7669 = vmatpush1.msra.mxu0 0.0
      %7670 = vmatprep.subr.mxu0 0.0
      %7671 = vmatpush1.msra.mxu0 0.0
      %7672 = vmatprep.subr.mxu0 0.0
      %7673 = vmatpush1.msra.mxu0 0.0
      %7674 = vmatprep.subr.mxu0 0.0
      %7675 = vmatpush1.msra.mxu0 0.0
      %7676 = vmatprep.subr.mxu0 0.0
      %7677 = vmatpush1.msra.mxu0 0.0
      %7678 = vmatprep.subr.mxu0 0.0
      %7679 = vmatpush1.msra.mxu0 0.0
      %7680 = vmatprep.subr.mxu0 0.0
      %7681 = vmatpush1.msra.mxu0 0.0
      %7682 = vmatprep.subr.mxu0 0.0
      %7683 = vmatpush1.msra.mxu0 0.0
      %7684 = vmatprep.subr.mxu0 0.0
      %7685 = vmatpush1.msra.mxu0 0.0
      %7686 = vmatprep.subr.mxu0 0.0
      %7687 = vmatpush1.msra.mxu0 %v7639
      %7688 = vmatprep.subr.mxu0 0.0
      %7689 = vmatpush2.msra.mxu0 0.0
      %7690 = vmatprep.subr.mxu0 0.0
      %7691 = vmatpush2.msra.mxu0 0.0
      %7692 = vmatprep.subr.mxu0 0.0
      %7693 = vmatpush2.msra.mxu0 0.0
      %7694 = vmatprep.subr.mxu0 0.0
      %7695 = vmatpush2.msra.mxu0 0.0
      %7696 = vmatprep.subr.mxu0 0.0
      %7697 = vmatpush2.msra.mxu0 0.0
      %7698 = vmatprep.subr.mxu0 0.0
      %7699 = vmatpush2.msra.mxu0 0.0
      %7700 = vmatprep.subr.mxu0 0.0
      %7701 = vmatpush2.msra.mxu0 0.0
      %7702 = vmatprep.subr.mxu0 0.0
      %7703 = vmatpush2.msra.mxu0 0.0
      %7704 = vmatprep.subr.mxu0 0.0
      %7705 = vmatpush2.msra.mxu0 0.0
      %7706 = vmatprep.subr.mxu0 0.0
      %7707 = vmatpush2.msra.mxu0 0.0
      %7708 = vmatprep.subr.mxu0 0.0
      %7709 = vmatpush2.msra.mxu0 0.0
      %7710 = vmatprep.subr.mxu0 0.0
      %7711 = vmatpush2.msra.mxu0 0.0
      %7712 = vmatprep.subr.mxu0 0.0
      %7713 = vmatpush2.msra.mxu0 0.0
      %7714 = vmatprep.subr.mxu0 0.0
      %7715 = vmatpush2.msra.mxu0 0.0
      %7716 = vmatprep.subr.mxu0 0.0
      %7717 = vmatpush2.msra.mxu0 0.0
      %7718 = vmatprep.subr.mxu0 0.0
      %7719 = vmatpush2.msra.mxu0 0.0
      %7720 = vmatprep.mubr.f32.mxu0 0.0
      %7721 = vmatmul.mubr.f32.gmra.mxu0 %v7640
      %v7722 = vpop.f32.mrf.mxu0
      %v7723 = vadd.f32 0.0, %v7722
      %v7724 = vpop.f32.mrf.mxu0
      %7725 = vmatprep.mubr.f32.mxu0 0.0
      %7726 = vmatmul.mubr.f32.gmra.mxu0 %v7642
      %v7727 = vpop.f32.mrf.mxu0
      %v7728 = vadd.f32 0.0, %v7727
      %v7729 = vpop.f32.mrf.mxu0
      %7730 = vmatprep.mubr.f32.mxu0 0.0
      %7731 = vmatmul.mubr.f32.gmra.mxu0 %v7644
      %v7732 = vpop.f32.mrf.mxu0
      %v7733 = vadd.f32 0.0, %v7732
      %v7734 = vpop.f32.mrf.mxu0
      %7735 = vmatprep.mubr.f32.mxu0 0.0
      %7736 = vmatmul.mubr.f32.gmra.mxu0 %v7646
      %v7737 = vpop.f32.mrf.mxu0
      %v7738 = vadd.f32 0.0, %v7737
      %v7739 = vpop.f32.mrf.mxu0
      %7740 = vmatprep.mubr.f32.mxu0 0.0
      %7741 = vmatmul.mubr.f32.gmra.mxu0 %v7648
      %v7742 = vpop.f32.mrf.mxu0
      %v7743 = vadd.f32 0.0, %v7742
      %v7744 = vpop.f32.mrf.mxu0
      %7745 = vmatprep.mubr.f32.mxu0 0.0
      %7746 = vmatmul.mubr.f32.gmra.mxu0 %v7650
      %v7747 = vpop.f32.mrf.mxu0
      %v7748 = vadd.f32 0.0, %v7747
      %v7749 = vpop.f32.mrf.mxu0
      %7750 = vmatprep.mubr.f32.mxu0 0.0
      %7751 = vmatmul.mubr.f32.gmra.mxu0 %v7652
      %v7752 = vpop.f32.mrf.mxu0
      %v7753 = vadd.f32 0.0, %v7752
      %v7754 = vpop.f32.mrf.mxu0
      %7755 = vmatprep.mubr.f32.mxu0 0.0
      %7756 = vmatmul.mubr.f32.gmra.mxu0 %v7654
      %v7757 = vpop.f32.mrf.mxu0
      %v7758 = vadd.f32 0.0, %v7757
      %v7759 = vpop.f32.mrf.mxu0
      %7760 = vdwg.mxu0
      %v7761 = vadd.f32 %v7574, %v7723
      %v7762 = vadd.f32 %v7575, %v7728
      %v7763 = vadd.f32 %v7576, %v7733
      %v7764 = vadd.f32 %v7577, %v7738
      %v7765 = vadd.f32 %v7578, %v7743
      %v7766 = vadd.f32 %v7579, %v7748
      %v7767 = vadd.f32 %v7580, %v7753
      %v7768 = vadd.f32 %v7581, %v7758
      %v7769 = vld [vmem:[#allocation2] sm:$0xc0]
      %v7770 = vld [vmem:[#allocation2 + $0x10] sm:$0x3f]
      %v7771 = vld [vmem:[#allocation2 + $0x20] sm:$0xc0]
      %v7772 = vld [vmem:[#allocation2 + $0x30] sm:$0x3f]
      %v7773 = vld [vmem:[#allocation2 + $0x40] sm:$0xc0]
      %v7774 = vld [vmem:[#allocation2 + $0x50] sm:$0x3f]
      %v7775 = vld [vmem:[#allocation2 + $0x60] sm:$0xc0]
      %v7776 = vld [vmem:[#allocation2 + $0x70] sm:$0x3f]
      %v7777 = vld [vmem:[#allocation2 + $0x80] sm:$0xc0]
      %v7778 = vld [vmem:[#allocation2 + $0x90] sm:$0x3f]
      %v7779 = vld [vmem:[#allocation2 + $0xa0] sm:$0xc0]
      %v7780 = vld [vmem:[#allocation2 + $0xb0] sm:$0x3f]
      %v7781 = vld [vmem:[#allocation2 + $0xc0] sm:$0xc0]
      %v7782 = vld [vmem:[#allocation2 + $0xd0] sm:$0x3f]
      %v7783 = vld [vmem:[#allocation2 + $0xe0] sm:$0xc0]
      %v7784 = vld [vmem:[#allocation2 + $0xf0] sm:$0x3f]
      %v7801 = vrot.slane %v7769, 6
      %v7802 = vrot.slane %v7770, 6
      %v7803 = vsel %vm3352, %v7801, %v7802
      %v7804 = vrot.slane %v7771, 6
      %v7805 = vrot.slane %v7772, 6
      %v7806 = vsel %vm3352, %v7804, %v7805
      %v7807 = vrot.slane %v7773, 6
      %v7808 = vrot.slane %v7774, 6
      %v7809 = vsel %vm3352, %v7807, %v7808
      %v7810 = vrot.slane %v7775, 6
      %v7811 = vrot.slane %v7776, 6
      %v7812 = vsel %vm3352, %v7810, %v7811
      %v7813 = vrot.slane %v7777, 6
      %v7814 = vrot.slane %v7778, 6
      %v7815 = vsel %vm3352, %v7813, %v7814
      %v7816 = vrot.slane %v7779, 6
      %v7817 = vrot.slane %v7780, 6
      %v7818 = vsel %vm3352, %v7816, %v7817
      %v7819 = vrot.slane %v7781, 6
      %v7820 = vrot.slane %v7782, 6
      %v7821 = vsel %vm3352, %v7819, %v7820
      %v7822 = vrot.slane %v7783, 6
      %v7823 = vrot.slane %v7784, 6
      %v7824 = vsel %vm3352, %v7822, %v7823
      %s7825 = scalar_lea.vmem %s8, 48
      %v7826 = vld [vmem:[%s7825] sm:$0xff]
      %v7827 = vsel %vm2317, %v7803, 0
      %v7829 = vsel %vm2317, %v7806, 0
      %v7831 = vsel %vm2317, %v7809, 0
      %v7833 = vsel %vm2317, %v7812, 0
      %v7835 = vsel %vm2317, %v7815, 0
      %v7837 = vsel %vm2317, %v7818, 0
      %v7839 = vsel %vm2317, %v7821, 0
      %v7841 = vsel %vm2317, %v7824, 0
      %7843 = vmatprep.subr.mxu0 0.0
      %7844 = vmatpush1.msra.mxu0 0.0
      %7845 = vmatprep.subr.mxu0 0.0
      %7846 = vmatpush1.msra.mxu0 0.0
      %7847 = vmatprep.subr.mxu0 0.0
      %7848 = vmatpush1.msra.mxu0 0.0
      %7849 = vmatprep.subr.mxu0 0.0
      %7850 = vmatpush1.msra.mxu0 0.0
      %7851 = vmatprep.subr.mxu0 0.0
      %7852 = vmatpush1.msra.mxu0 0.0
      %7853 = vmatprep.subr.mxu0 0.0
      %7854 = vmatpush1.msra.mxu0 0.0
      %7855 = vmatprep.subr.mxu0 0.0
      %7856 = vmatpush1.msra.mxu0 0.0
      %7857 = vmatprep.subr.mxu0 0.0
      %7858 = vmatpush1.msra.mxu0 0.0
      %7859 = vmatprep.subr.mxu0 0.0
      %7860 = vmatpush1.msra.mxu0 0.0
      %7861 = vmatprep.subr.mxu0 0.0
      %7862 = vmatpush1.msra.mxu0 0.0
      %7863 = vmatprep.subr.mxu0 0.0
      %7864 = vmatpush1.msra.mxu0 0.0
      %7865 = vmatprep.subr.mxu0 0.0
      %7866 = vmatpush1.msra.mxu0 0.0
      %7867 = vmatprep.subr.mxu0 0.0
      %7868 = vmatpush1.msra.mxu0 0.0
      %7869 = vmatprep.subr.mxu0 0.0
      %7870 = vmatpush1.msra.mxu0 0.0
      %7871 = vmatprep.subr.mxu0 0.0
      %7872 = vmatpush1.msra.mxu0 0.0
      %7873 = vmatprep.subr.mxu0 0.0
      %7874 = vmatpush1.msra.mxu0 %v7826
      %7875 = vmatprep.subr.mxu0 0.0
      %7876 = vmatpush2.msra.mxu0 0.0
      %7877 = vmatprep.subr.mxu0 0.0
      %7878 = vmatpush2.msra.mxu0 0.0
      %7879 = vmatprep.subr.mxu0 0.0
      %7880 = vmatpush2.msra.mxu0 0.0
      %7881 = vmatprep.subr.mxu0 0.0
      %7882 = vmatpush2.msra.mxu0 0.0
      %7883 = vmatprep.subr.mxu0 0.0
      %7884 = vmatpush2.msra.mxu0 0.0
      %7885 = vmatprep.subr.mxu0 0.0
      %7886 = vmatpush2.msra.mxu0 0.0
      %7887 = vmatprep.subr.mxu0 0.0
      %7888 = vmatpush2.msra.mxu0 0.0
      %7889 = vmatprep.subr.mxu0 0.0
      %7890 = vmatpush2.msra.mxu0 0.0
      %7891 = vmatprep.subr.mxu0 0.0
      %7892 = vmatpush2.msra.mxu0 0.0
      %7893 = vmatprep.subr.mxu0 0.0
      %7894 = vmatpush2.msra.mxu0 0.0
      %7895 = vmatprep.subr.mxu0 0.0
      %7896 = vmatpush2.msra.mxu0 0.0
      %7897 = vmatprep.subr.mxu0 0.0
      %7898 = vmatpush2.msra.mxu0 0.0
      %7899 = vmatprep.subr.mxu0 0.0
      %7900 = vmatpush2.msra.mxu0 0.0
      %7901 = vmatprep.subr.mxu0 0.0
      %7902 = vmatpush2.msra.mxu0 0.0
      %7903 = vmatprep.subr.mxu0 0.0
      %7904 = vmatpush2.msra.mxu0 0.0
      %7905 = vmatprep.subr.mxu0 0.0
      %7906 = vmatpush2.msra.mxu0 0.0
      %7907 = vmatprep.mubr.f32.mxu0 0.0
      %7908 = vmatmul.mubr.f32.gmra.mxu0 %v7827
      %v7909 = vpop.f32.mrf.mxu0
      %v7910 = vadd.f32 0.0, %v7909
      %v7911 = vpop.f32.mrf.mxu0
      %7912 = vmatprep.mubr.f32.mxu0 0.0
      %7913 = vmatmul.mubr.f32.gmra.mxu0 %v7829
      %v7914 = vpop.f32.mrf.mxu0
      %v7915 = vadd.f32 0.0, %v7914
      %v7916 = vpop.f32.mrf.mxu0
      %7917 = vmatprep.mubr.f32.mxu0 0.0
      %7918 = vmatmul.mubr.f32.gmra.mxu0 %v7831
      %v7919 = vpop.f32.mrf.mxu0
      %v7920 = vadd.f32 0.0, %v7919
      %v7921 = vpop.f32.mrf.mxu0
      %7922 = vmatprep.mubr.f32.mxu0 0.0
      %7923 = vmatmul.mubr.f32.gmra.mxu0 %v7833
      %v7924 = vpop.f32.mrf.mxu0
      %v7925 = vadd.f32 0.0, %v7924
      %v7926 = vpop.f32.mrf.mxu0
      %7927 = vmatprep.mubr.f32.mxu0 0.0
      %7928 = vmatmul.mubr.f32.gmra.mxu0 %v7835
      %v7929 = vpop.f32.mrf.mxu0
      %v7930 = vadd.f32 0.0, %v7929
      %v7931 = vpop.f32.mrf.mxu0
      %7932 = vmatprep.mubr.f32.mxu0 0.0
      %7933 = vmatmul.mubr.f32.gmra.mxu0 %v7837
      %v7934 = vpop.f32.mrf.mxu0
      %v7935 = vadd.f32 0.0, %v7934
      %v7936 = vpop.f32.mrf.mxu0
      %7937 = vmatprep.mubr.f32.mxu0 0.0
      %7938 = vmatmul.mubr.f32.gmra.mxu0 %v7839
      %v7939 = vpop.f32.mrf.mxu0
      %v7940 = vadd.f32 0.0, %v7939
      %v7941 = vpop.f32.mrf.mxu0
      %7942 = vmatprep.mubr.f32.mxu0 0.0
      %7943 = vmatmul.mubr.f32.gmra.mxu0 %v7841
      %v7944 = vpop.f32.mrf.mxu0
      %v7945 = vadd.f32 0.0, %v7944
      %v7946 = vpop.f32.mrf.mxu0
      %7947 = vdwg.mxu0
      %v7948 = vadd.f32 %v7761, %v7910
      %v7949 = vadd.f32 %v7762, %v7915
      %v7950 = vadd.f32 %v7763, %v7920
      %v7951 = vadd.f32 %v7764, %v7925
      %v7952 = vadd.f32 %v7765, %v7930
      %v7953 = vadd.f32 %v7766, %v7935
      %v7954 = vadd.f32 %v7767, %v7940
      %v7955 = vadd.f32 %v7768, %v7945
      %v7956 = vmax.f32 %v7948, 0.0
      %v7957 = vmax.f32 %v7949, 0.0
      %v7958 = vmax.f32 %v7950, 0.0
      %v7959 = vmax.f32 %v7951, 0.0
      %v7960 = vmax.f32 %v7952, 0.0
      %v7961 = vmax.f32 %v7953, 0.0
      %v7962 = vmax.f32 %v7954, 0.0
      %v7963 = vmax.f32 %v7955, 0.0
      %7964 = vst.msk [vmem:[#allocation2] sm:$0xff] %vm2317, 0.0
      %7965 = vst.msk [vmem:[#allocation2 + $0x20] sm:$0xff] %vm2317, 0.0
      %7966 = vst.msk [vmem:[#allocation2 + $0x40] sm:$0xff] %vm2317, 0.0
      %7967 = vst.msk [vmem:[%s852] sm:$0xff] %vm2317, 0.0
      %7968 = vst.msk [vmem:[%s852 + $0x20] sm:$0xff] %vm2317, 0.0
      %7969 = vst.msk [vmem:[%s852 + $0x40] sm:$0xff] %vm2317, 0.0
      %7970 = vst.msk [vmem:[%s931] sm:$0xff] %vm2317, %v7956
      %7971 = vst.msk [vmem:[%s931 + $0x20] sm:$0xff] %vm2317, %v7957
      %7972 = vst.msk [vmem:[%s931 + $0x40] sm:$0xff] %vm2317, %v7958
      %7973 = vst.msk [vmem:[%s931 + $0x60] sm:$0xff] %vm2317, %v7959
      %7974 = vst.msk [vmem:[%s931 + $0x80] sm:$0xff] %vm2317, %v7960
      %7975 = vst.msk [vmem:[%s931 + $0xa0] sm:$0xff] %vm2317, %v7961
      %7976 = vst.msk [vmem:[%s931 + $0xc0] sm:$0xff] %vm2317, %v7962
      %7977 = vst.msk [vmem:[%s931 + $0xe0] sm:$0xff] %vm2317, %v7963
      %v7978 = vld [vmem:[#allocation2] sm:$0xff]
      %v7979 = vld [vmem:[#allocation2 + $0x20] sm:$0xff]
      %v7980 = vld [vmem:[#allocation2 + $0x40] sm:$0xff]
      %v7981 = vld [vmem:[#allocation2 + $0x60] sm:$0xff]
      %v7982 = vld [vmem:[#allocation2 + $0x80] sm:$0xff]
      %v7983 = vld [vmem:[#allocation2 + $0xa0] sm:$0xff]
      %v7984 = vld [vmem:[#allocation2 + $0xc0] sm:$0xff]
      %v7985 = vld [vmem:[#allocation2 + $0xe0] sm:$0xff]
      %v7986 = vld [vmem:[%s9] sm:$0xff]
      %v7987 = vld [vmem:[%s988] sm:$0xff]
      %v7988 = vld [vmem:[%s988 + $0x20] sm:$0xff]
      %v7989 = vld [vmem:[%s988 + $0x40] sm:$0xff]
      %v7990 = vld [vmem:[%s988 + $0x60] sm:$0xff]
      %v7991 = vld [vmem:[%s988 + $0x80] sm:$0xff]
      %v7992 = vld [vmem:[%s988 + $0xa0] sm:$0xff]
      %v7993 = vld [vmem:[%s988 + $0xc0] sm:$0xff]
      %v7994 = vld [vmem:[%s988 + $0xe0] sm:$0xff]
      %s7995 = scalar_lea.vmem %s9, 8
      %v7996 = vld [vmem:[%s7995] sm:$0xff]
      %v7998 = vsel %vm2317, %v7987, 0
      %v8001 = vsel %vm2317, %v7988, 0
      %v8004 = vsel %vm2317, %v7989, 0
      %v8007 = vsel %vm2317, %v7990, 0
      %v8010 = vsel %vm2317, %v7991, 0
      %v8013 = vsel %vm2317, %v7992, 0
      %v8016 = vsel %vm2317, %v7993, 0
      %v8019 = vsel %vm2317, %v7994, 0
      %8021 = vmatprep.subr.mxu0 0.0
      %8022 = vmatpush1.msra.mxu0 0.0
      %8023 = vmatprep.subr.mxu0 0.0
      %8024 = vmatpush1.msra.mxu0 0.0
      %8025 = vmatprep.subr.mxu0 0.0
      %8026 = vmatpush1.msra.mxu0 0.0
      %8027 = vmatprep.subr.mxu0 0.0
      %8028 = vmatpush1.msra.mxu0 0.0
      %8029 = vmatprep.subr.mxu0 0.0
      %8030 = vmatpush1.msra.mxu0 0.0
      %8031 = vmatprep.subr.mxu0 0.0
      %8032 = vmatpush1.msra.mxu0 0.0
      %8033 = vmatprep.subr.mxu0 0.0
      %8034 = vmatpush1.msra.mxu0 0.0
      %8035 = vmatprep.subr.mxu0 0.0
      %8036 = vmatpush1.msra.mxu0 0.0
      %8037 = vmatprep.subr.mxu0 0.0
      %8038 = vmatpush1.msra.mxu0 0.0
      %8039 = vmatprep.subr.mxu0 0.0
      %8040 = vmatpush1.msra.mxu0 0.0
      %8041 = vmatprep.subr.mxu0 0.0
      %8042 = vmatpush1.msra.mxu0 0.0
      %8043 = vmatprep.subr.mxu0 0.0
      %8044 = vmatpush1.msra.mxu0 0.0
      %8045 = vmatprep.subr.mxu0 0.0
      %8046 = vmatpush1.msra.mxu0 0.0
      %8047 = vmatprep.subr.mxu0 0.0
      %8048 = vmatpush1.msra.mxu0 0.0
      %8049 = vmatprep.subr.mxu0 0.0
      %8050 = vmatpush1.msra.mxu0 0.0
      %8051 = vmatprep.subr.mxu0 0.0
      %8052 = vmatpush1.msra.mxu0 %v7996
      %8053 = vmatprep.subr.mxu0 0.0
      %8054 = vmatpush2.msra.mxu0 0.0
      %8055 = vmatprep.subr.mxu0 0.0
      %8056 = vmatpush2.msra.mxu0 0.0
      %8057 = vmatprep.subr.mxu0 0.0
      %8058 = vmatpush2.msra.mxu0 0.0
      %8059 = vmatprep.subr.mxu0 0.0
      %8060 = vmatpush2.msra.mxu0 0.0
      %8061 = vmatprep.subr.mxu0 0.0
      %8062 = vmatpush2.msra.mxu0 0.0
      %8063 = vmatprep.subr.mxu0 0.0
      %8064 = vmatpush2.msra.mxu0 0.0
      %8065 = vmatprep.subr.mxu0 0.0
      %8066 = vmatpush2.msra.mxu0 0.0
      %8067 = vmatprep.subr.mxu0 0.0
      %8068 = vmatpush2.msra.mxu0 0.0
      %8069 = vmatprep.subr.mxu0 0.0
      %8070 = vmatpush2.msra.mxu0 0.0
      %8071 = vmatprep.subr.mxu0 0.0
      %8072 = vmatpush2.msra.mxu0 0.0
      %8073 = vmatprep.subr.mxu0 0.0
      %8074 = vmatpush2.msra.mxu0 0.0
      %8075 = vmatprep.subr.mxu0 0.0
      %8076 = vmatpush2.msra.mxu0 0.0
      %8077 = vmatprep.subr.mxu0 0.0
      %8078 = vmatpush2.msra.mxu0 0.0
      %8079 = vmatprep.subr.mxu0 0.0
      %8080 = vmatpush2.msra.mxu0 0.0
      %8081 = vmatprep.subr.mxu0 0.0
      %8082 = vmatpush2.msra.mxu0 0.0
      %8083 = vmatprep.subr.mxu0 0.0
      %8084 = vmatpush2.msra.mxu0 0.0
      %8085 = vmatprep.mubr.f32.mxu0 0.0
      %8086 = vmatmul.mubr.f32.gmra.mxu0 %v7998
      %v8087 = vpop.f32.mrf.mxu0
      %v8088 = vadd.f32 0.0, %v8087
      %v8089 = vpop.f32.mrf.mxu0
      %8090 = vmatprep.mubr.f32.mxu0 0.0
      %8091 = vmatmul.mubr.f32.gmra.mxu0 %v8001
      %v8092 = vpop.f32.mrf.mxu0
      %v8093 = vadd.f32 0.0, %v8092
      %v8094 = vpop.f32.mrf.mxu0
      %8095 = vmatprep.mubr.f32.mxu0 0.0
      %8096 = vmatmul.mubr.f32.gmra.mxu0 %v8004
      %v8097 = vpop.f32.mrf.mxu0
      %v8098 = vadd.f32 0.0, %v8097
      %v8099 = vpop.f32.mrf.mxu0
      %8100 = vmatprep.mubr.f32.mxu0 0.0
      %8101 = vmatmul.mubr.f32.gmra.mxu0 %v8007
      %v8102 = vpop.f32.mrf.mxu0
      %v8103 = vadd.f32 0.0, %v8102
      %v8104 = vpop.f32.mrf.mxu0
      %8105 = vmatprep.mubr.f32.mxu0 0.0
      %8106 = vmatmul.mubr.f32.gmra.mxu0 %v8010
      %v8107 = vpop.f32.mrf.mxu0
      %v8108 = vadd.f32 0.0, %v8107
      %v8109 = vpop.f32.mrf.mxu0
      %8110 = vmatprep.mubr.f32.mxu0 0.0
      %8111 = vmatmul.mubr.f32.gmra.mxu0 %v8013
      %v8112 = vpop.f32.mrf.mxu0
      %v8113 = vadd.f32 0.0, %v8112
      %v8114 = vpop.f32.mrf.mxu0
      %8115 = vmatprep.mubr.f32.mxu0 0.0
      %8116 = vmatmul.mubr.f32.gmra.mxu0 %v8016
      %v8117 = vpop.f32.mrf.mxu0
      %v8118 = vadd.f32 0.0, %v8117
      %v8119 = vpop.f32.mrf.mxu0
      %8120 = vmatprep.mubr.f32.mxu0 0.0
      %8121 = vmatmul.mubr.f32.gmra.mxu0 %v8019
      %v8122 = vpop.f32.mrf.mxu0
      %v8123 = vadd.f32 0.0, %v8122
      %v8124 = vpop.f32.mrf.mxu0
      %8125 = vdwg.mxu0
      %v8127 = vsel %vm2317, %v7978, 0
      %v8130 = vsel %vm2317, %v7979, 0
      %v8133 = vsel %vm2317, %v7980, 0
      %v8136 = vsel %vm2317, %v7981, 0
      %v8139 = vsel %vm2317, %v7982, 0
      %v8142 = vsel %vm2317, %v7983, 0
      %v8145 = vsel %vm2317, %v7984, 0
      %v8148 = vsel %vm2317, %v7985, 0
      %8150 = vmatprep.subr.mxu0 0.0
      %8151 = vmatpush1.msra.mxu0 0.0
      %8152 = vmatprep.subr.mxu0 0.0
      %8153 = vmatpush1.msra.mxu0 0.0
      %8154 = vmatprep.subr.mxu0 0.0
      %8155 = vmatpush1.msra.mxu0 0.0
      %8156 = vmatprep.subr.mxu0 0.0
      %8157 = vmatpush1.msra.mxu0 0.0
      %8158 = vmatprep.subr.mxu0 0.0
      %8159 = vmatpush1.msra.mxu0 0.0
      %8160 = vmatprep.subr.mxu0 0.0
      %8161 = vmatpush1.msra.mxu0 0.0
      %8162 = vmatprep.subr.mxu0 0.0
      %8163 = vmatpush1.msra.mxu0 0.0
      %8164 = vmatprep.subr.mxu0 0.0
      %8165 = vmatpush1.msra.mxu0 0.0
      %8166 = vmatprep.subr.mxu0 0.0
      %8167 = vmatpush1.msra.mxu0 0.0
      %8168 = vmatprep.subr.mxu0 0.0
      %8169 = vmatpush1.msra.mxu0 0.0
      %8170 = vmatprep.subr.mxu0 0.0
      %8171 = vmatpush1.msra.mxu0 0.0
      %8172 = vmatprep.subr.mxu0 0.0
      %8173 = vmatpush1.msra.mxu0 0.0
      %8174 = vmatprep.subr.mxu0 0.0
      %8175 = vmatpush1.msra.mxu0 0.0
      %8176 = vmatprep.subr.mxu0 0.0
      %8177 = vmatpush1.msra.mxu0 0.0
      %8178 = vmatprep.subr.mxu0 0.0
      %8179 = vmatpush1.msra.mxu0 0.0
      %8180 = vmatprep.subr.mxu0 0.0
      %8181 = vmatpush1.msra.mxu0 %v7986
      %8182 = vmatprep.subr.mxu0 0.0
      %8183 = vmatpush2.msra.mxu0 0.0
      %8184 = vmatprep.subr.mxu0 0.0
      %8185 = vmatpush2.msra.mxu0 0.0
      %8186 = vmatprep.subr.mxu0 0.0
      %8187 = vmatpush2.msra.mxu0 0.0
      %8188 = vmatprep.subr.mxu0 0.0
      %8189 = vmatpush2.msra.mxu0 0.0
      %8190 = vmatprep.subr.mxu0 0.0
      %8191 = vmatpush2.msra.mxu0 0.0
      %8192 = vmatprep.subr.mxu0 0.0
      %8193 = vmatpush2.msra.mxu0 0.0
      %8194 = vmatprep.subr.mxu0 0.0
      %8195 = vmatpush2.msra.mxu0 0.0
      %8196 = vmatprep.subr.mxu0 0.0
      %8197 = vmatpush2.msra.mxu0 0.0
      %8198 = vmatprep.subr.mxu0 0.0
      %8199 = vmatpush2.msra.mxu0 0.0
      %8200 = vmatprep.subr.mxu0 0.0
      %8201 = vmatpush2.msra.mxu0 0.0
      %8202 = vmatprep.subr.mxu0 0.0
      %8203 = vmatpush2.msra.mxu0 0.0
      %8204 = vmatprep.subr.mxu0 0.0
      %8205 = vmatpush2.msra.mxu0 0.0
      %8206 = vmatprep.subr.mxu0 0.0
      %8207 = vmatpush2.msra.mxu0 0.0
      %8208 = vmatprep.subr.mxu0 0.0
      %8209 = vmatpush2.msra.mxu0 0.0
      %8210 = vmatprep.subr.mxu0 0.0
      %8211 = vmatpush2.msra.mxu0 0.0
      %8212 = vmatprep.subr.mxu0 0.0
      %8213 = vmatpush2.msra.mxu0 0.0
      %8214 = vmatprep.mubr.f32.mxu0 0.0
      %8215 = vmatmul.mubr.f32.gmra.mxu0 %v8127
      %v8216 = vpop.f32.mrf.mxu0
      %v8217 = vadd.f32 %v8088, %v8216
      %v8218 = vpop.f32.mrf.mxu0
      %8219 = vmatprep.mubr.f32.mxu0 0.0
      %8220 = vmatmul.mubr.f32.gmra.mxu0 %v8130
      %v8221 = vpop.f32.mrf.mxu0
      %v8222 = vadd.f32 %v8093, %v8221
      %v8223 = vpop.f32.mrf.mxu0
      %8224 = vmatprep.mubr.f32.mxu0 0.0
      %8225 = vmatmul.mubr.f32.gmra.mxu0 %v8133
      %v8226 = vpop.f32.mrf.mxu0
      %v8227 = vadd.f32 %v8098, %v8226
      %v8228 = vpop.f32.mrf.mxu0
      %8229 = vmatprep.mubr.f32.mxu0 0.0
      %8230 = vmatmul.mubr.f32.gmra.mxu0 %v8136
      %v8231 = vpop.f32.mrf.mxu0
      %v8232 = vadd.f32 %v8103, %v8231
      %v8233 = vpop.f32.mrf.mxu0
      %8234 = vmatprep.mubr.f32.mxu0 0.0
      %8235 = vmatmul.mubr.f32.gmra.mxu0 %v8139
      %v8236 = vpop.f32.mrf.mxu0
      %v8237 = vadd.f32 %v8108, %v8236
      %v8238 = vpop.f32.mrf.mxu0
      %8239 = vmatprep.mubr.f32.mxu0 0.0
      %8240 = vmatmul.mubr.f32.gmra.mxu0 %v8142
      %v8241 = vpop.f32.mrf.mxu0
      %v8242 = vadd.f32 %v8113, %v8241
      %v8243 = vpop.f32.mrf.mxu0
      %8244 = vmatprep.mubr.f32.mxu0 0.0
      %8245 = vmatmul.mubr.f32.gmra.mxu0 %v8145
      %v8246 = vpop.f32.mrf.mxu0
      %v8247 = vadd.f32 %v8118, %v8246
      %v8248 = vpop.f32.mrf.mxu0
      %8249 = vmatprep.mubr.f32.mxu0 0.0
      %8250 = vmatmul.mubr.f32.gmra.mxu0 %v8148
      %v8251 = vpop.f32.mrf.mxu0
      %v8252 = vadd.f32 %v8123, %v8251
      %v8253 = vpop.f32.mrf.mxu0
      %8254 = vdwg.mxu0
      %v8255 = vld [vmem:[%s1288] sm:$0xff]
      %v8256 = vld [vmem:[%s1288 + $0x20] sm:$0xff]
      %v8257 = vld [vmem:[%s1288 + $0x40] sm:$0xff]
      %v8258 = vld [vmem:[%s1288 + $0x60] sm:$0xff]
      %v8259 = vld [vmem:[%s1288 + $0x80] sm:$0xff]
      %v8260 = vld [vmem:[%s1288 + $0xa0] sm:$0xff]
      %v8261 = vld [vmem:[%s1288 + $0xc0] sm:$0xff]
      %v8262 = vld [vmem:[%s1288 + $0xe0] sm:$0xff]
      %s8263 = scalar_lea.vmem %s9, 16
      %v8264 = vld [vmem:[%s8263] sm:$0xff]
      %v8266 = vsel %vm2317, %v8255, 0
      %v8269 = vsel %vm2317, %v8256, 0
      %v8272 = vsel %vm2317, %v8257, 0
      %v8275 = vsel %vm2317, %v8258, 0
      %v8278 = vsel %vm2317, %v8259, 0
      %v8281 = vsel %vm2317, %v8260, 0
      %v8284 = vsel %vm2317, %v8261, 0
      %v8287 = vsel %vm2317, %v8262, 0
      %8289 = vmatprep.subr.mxu0 0.0
      %8290 = vmatpush1.msra.mxu0 0.0
      %8291 = vmatprep.subr.mxu0 0.0
      %8292 = vmatpush1.msra.mxu0 0.0
      %8293 = vmatprep.subr.mxu0 0.0
      %8294 = vmatpush1.msra.mxu0 0.0
      %8295 = vmatprep.subr.mxu0 0.0
      %8296 = vmatpush1.msra.mxu0 0.0
      %8297 = vmatprep.subr.mxu0 0.0
      %8298 = vmatpush1.msra.mxu0 0.0
      %8299 = vmatprep.subr.mxu0 0.0
      %8300 = vmatpush1.msra.mxu0 0.0
      %8301 = vmatprep.subr.mxu0 0.0
      %8302 = vmatpush1.msra.mxu0 0.0
      %8303 = vmatprep.subr.mxu0 0.0
      %8304 = vmatpush1.msra.mxu0 0.0
      %8305 = vmatprep.subr.mxu0 0.0
      %8306 = vmatpush1.msra.mxu0 0.0
      %8307 = vmatprep.subr.mxu0 0.0
      %8308 = vmatpush1.msra.mxu0 0.0
      %8309 = vmatprep.subr.mxu0 0.0
      %8310 = vmatpush1.msra.mxu0 0.0
      %8311 = vmatprep.subr.mxu0 0.0
      %8312 = vmatpush1.msra.mxu0 0.0
      %8313 = vmatprep.subr.mxu0 0.0
      %8314 = vmatpush1.msra.mxu0 0.0
      %8315 = vmatprep.subr.mxu0 0.0
      %8316 = vmatpush1.msra.mxu0 0.0
      %8317 = vmatprep.subr.mxu0 0.0
      %8318 = vmatpush1.msra.mxu0 0.0
      %8319 = vmatprep.subr.mxu0 0.0
      %8320 = vmatpush1.msra.mxu0 %v8264
      %8321 = vmatprep.subr.mxu0 0.0
      %8322 = vmatpush2.msra.mxu0 0.0
      %8323 = vmatprep.subr.mxu0 0.0
      %8324 = vmatpush2.msra.mxu0 0.0
      %8325 = vmatprep.subr.mxu0 0.0
      %8326 = vmatpush2.msra.mxu0 0.0
      %8327 = vmatprep.subr.mxu0 0.0
      %8328 = vmatpush2.msra.mxu0 0.0
      %8329 = vmatprep.subr.mxu0 0.0
      %8330 = vmatpush2.msra.mxu0 0.0
      %8331 = vmatprep.subr.mxu0 0.0
      %8332 = vmatpush2.msra.mxu0 0.0
      %8333 = vmatprep.subr.mxu0 0.0
      %8334 = vmatpush2.msra.mxu0 0.0
      %8335 = vmatprep.subr.mxu0 0.0
      %8336 = vmatpush2.msra.mxu0 0.0
      %8337 = vmatprep.subr.mxu0 0.0
      %8338 = vmatpush2.msra.mxu0 0.0
      %8339 = vmatprep.subr.mxu0 0.0
      %8340 = vmatpush2.msra.mxu0 0.0
      %8341 = vmatprep.subr.mxu0 0.0
      %8342 = vmatpush2.msra.mxu0 0.0
      %8343 = vmatprep.subr.mxu0 0.0
      %8344 = vmatpush2.msra.mxu0 0.0
      %8345 = vmatprep.subr.mxu0 0.0
      %8346 = vmatpush2.msra.mxu0 0.0
      %8347 = vmatprep.subr.mxu0 0.0
      %8348 = vmatpush2.msra.mxu0 0.0
      %8349 = vmatprep.subr.mxu0 0.0
      %8350 = vmatpush2.msra.mxu0 0.0
      %8351 = vmatprep.subr.mxu0 0.0
      %8352 = vmatpush2.msra.mxu0 0.0
      %8353 = vmatprep.mubr.f32.mxu0 0.0
      %8354 = vmatmul.mubr.f32.gmra.mxu0 %v8266
      %v8355 = vpop.f32.mrf.mxu0
      %v8356 = vadd.f32 0.0, %v8355
      %v8357 = vpop.f32.mrf.mxu0
      %8358 = vmatprep.mubr.f32.mxu0 0.0
      %8359 = vmatmul.mubr.f32.gmra.mxu0 %v8269
      %v8360 = vpop.f32.mrf.mxu0
      %v8361 = vadd.f32 0.0, %v8360
      %v8362 = vpop.f32.mrf.mxu0
      %8363 = vmatprep.mubr.f32.mxu0 0.0
      %8364 = vmatmul.mubr.f32.gmra.mxu0 %v8272
      %v8365 = vpop.f32.mrf.mxu0
      %v8366 = vadd.f32 0.0, %v8365
      %v8367 = vpop.f32.mrf.mxu0
      %8368 = vmatprep.mubr.f32.mxu0 0.0
      %8369 = vmatmul.mubr.f32.gmra.mxu0 %v8275
      %v8370 = vpop.f32.mrf.mxu0
      %v8371 = vadd.f32 0.0, %v8370
      %v8372 = vpop.f32.mrf.mxu0
      %8373 = vmatprep.mubr.f32.mxu0 0.0
      %8374 = vmatmul.mubr.f32.gmra.mxu0 %v8278
      %v8375 = vpop.f32.mrf.mxu0
      %v8376 = vadd.f32 0.0, %v8375
      %v8377 = vpop.f32.mrf.mxu0
      %8378 = vmatprep.mubr.f32.mxu0 0.0
      %8379 = vmatmul.mubr.f32.gmra.mxu0 %v8281
      %v8380 = vpop.f32.mrf.mxu0
      %v8381 = vadd.f32 0.0, %v8380
      %v8382 = vpop.f32.mrf.mxu0
      %8383 = vmatprep.mubr.f32.mxu0 0.0
      %8384 = vmatmul.mubr.f32.gmra.mxu0 %v8284
      %v8385 = vpop.f32.mrf.mxu0
      %v8386 = vadd.f32 0.0, %v8385
      %v8387 = vpop.f32.mrf.mxu0
      %8388 = vmatprep.mubr.f32.mxu0 0.0
      %8389 = vmatmul.mubr.f32.gmra.mxu0 %v8287
      %v8390 = vpop.f32.mrf.mxu0
      %v8391 = vadd.f32 0.0, %v8390
      %v8392 = vpop.f32.mrf.mxu0
      %8393 = vdwg.mxu0
      %v8394 = vadd.f32 %v8217, %v8356
      %v8395 = vadd.f32 %v8222, %v8361
      %v8396 = vadd.f32 %v8227, %v8366
      %v8397 = vadd.f32 %v8232, %v8371
      %v8398 = vadd.f32 %v8237, %v8376
      %v8399 = vadd.f32 %v8242, %v8381
      %v8400 = vadd.f32 %v8247, %v8386
      %v8401 = vadd.f32 %v8252, %v8391
      %v8402 = vld [vmem:[%s931] sm:$0xff]
      %v8403 = vld [vmem:[%s931 + $0x20] sm:$0xff]
      %v8404 = vld [vmem:[%s931 + $0x40] sm:$0xff]
      %v8405 = vld [vmem:[%s931 + $0x60] sm:$0xff]
      %v8406 = vld [vmem:[%s931 + $0x80] sm:$0xff]
      %v8407 = vld [vmem:[%s931 + $0xa0] sm:$0xff]
      %v8408 = vld [vmem:[%s931 + $0xc0] sm:$0xff]
      %v8409 = vld [vmem:[%s931 + $0xe0] sm:$0xff]
      %s8410 = scalar_lea.vmem %s9, 24
      %v8411 = vld [vmem:[%s8410] sm:$0xff]
      %v8413 = vsel %vm2317, %v8402, 0
      %v8416 = vsel %vm2317, %v8403, 0
      %v8419 = vsel %vm2317, %v8404, 0
      %v8422 = vsel %vm2317, %v8405, 0
      %v8425 = vsel %vm2317, %v8406, 0
      %v8428 = vsel %vm2317, %v8407, 0
      %v8431 = vsel %vm2317, %v8408, 0
      %v8434 = vsel %vm2317, %v8409, 0
      %8436 = vmatprep.subr.mxu0 0.0
      %8437 = vmatpush1.msra.mxu0 0.0
      %8438 = vmatprep.subr.mxu0 0.0
      %8439 = vmatpush1.msra.mxu0 0.0
      %8440 = vmatprep.subr.mxu0 0.0
      %8441 = vmatpush1.msra.mxu0 0.0
      %8442 = vmatprep.subr.mxu0 0.0
      %8443 = vmatpush1.msra.mxu0 0.0
      %8444 = vmatprep.subr.mxu0 0.0
      %8445 = vmatpush1.msra.mxu0 0.0
      %8446 = vmatprep.subr.mxu0 0.0
      %8447 = vmatpush1.msra.mxu0 0.0
      %8448 = vmatprep.subr.mxu0 0.0
      %8449 = vmatpush1.msra.mxu0 0.0
      %8450 = vmatprep.subr.mxu0 0.0
      %8451 = vmatpush1.msra.mxu0 0.0
      %8452 = vmatprep.subr.mxu0 0.0
      %8453 = vmatpush1.msra.mxu0 0.0
      %8454 = vmatprep.subr.mxu0 0.0
      %8455 = vmatpush1.msra.mxu0 0.0
      %8456 = vmatprep.subr.mxu0 0.0
      %8457 = vmatpush1.msra.mxu0 0.0
      %8458 = vmatprep.subr.mxu0 0.0
      %8459 = vmatpush1.msra.mxu0 0.0
      %8460 = vmatprep.subr.mxu0 0.0
      %8461 = vmatpush1.msra.mxu0 0.0
      %8462 = vmatprep.subr.mxu0 0.0
      %8463 = vmatpush1.msra.mxu0 0.0
      %8464 = vmatprep.subr.mxu0 0.0
      %8465 = vmatpush1.msra.mxu0 0.0
      %8466 = vmatprep.subr.mxu0 0.0
      %8467 = vmatpush1.msra.mxu0 %v8411
      %8468 = vmatprep.subr.mxu0 0.0
      %8469 = vmatpush2.msra.mxu0 0.0
      %8470 = vmatprep.subr.mxu0 0.0
      %8471 = vmatpush2.msra.mxu0 0.0
      %8472 = vmatprep.subr.mxu0 0.0
      %8473 = vmatpush2.msra.mxu0 0.0
      %8474 = vmatprep.subr.mxu0 0.0
      %8475 = vmatpush2.msra.mxu0 0.0
      %8476 = vmatprep.subr.mxu0 0.0
      %8477 = vmatpush2.msra.mxu0 0.0
      %8478 = vmatprep.subr.mxu0 0.0
      %8479 = vmatpush2.msra.mxu0 0.0
      %8480 = vmatprep.subr.mxu0 0.0
      %8481 = vmatpush2.msra.mxu0 0.0
      %8482 = vmatprep.subr.mxu0 0.0
      %8483 = vmatpush2.msra.mxu0 0.0
      %8484 = vmatprep.subr.mxu0 0.0
      %8485 = vmatpush2.msra.mxu0 0.0
      %8486 = vmatprep.subr.mxu0 0.0
      %8487 = vmatpush2.msra.mxu0 0.0
      %8488 = vmatprep.subr.mxu0 0.0
      %8489 = vmatpush2.msra.mxu0 0.0
      %8490 = vmatprep.subr.mxu0 0.0
      %8491 = vmatpush2.msra.mxu0 0.0
      %8492 = vmatprep.subr.mxu0 0.0
      %8493 = vmatpush2.msra.mxu0 0.0
      %8494 = vmatprep.subr.mxu0 0.0
      %8495 = vmatpush2.msra.mxu0 0.0
      %8496 = vmatprep.subr.mxu0 0.0
      %8497 = vmatpush2.msra.mxu0 0.0
      %8498 = vmatprep.subr.mxu0 0.0
      %8499 = vmatpush2.msra.mxu0 0.0
      %8500 = vmatprep.mubr.f32.mxu0 0.0
      %8501 = vmatmul.mubr.f32.gmra.mxu0 %v8413
      %v8502 = vpop.f32.mrf.mxu0
      %v8503 = vadd.f32 0.0, %v8502
      %v8504 = vpop.f32.mrf.mxu0
      %8505 = vmatprep.mubr.f32.mxu0 0.0
      %8506 = vmatmul.mubr.f32.gmra.mxu0 %v8416
      %v8507 = vpop.f32.mrf.mxu0
      %v8508 = vadd.f32 0.0, %v8507
      %v8509 = vpop.f32.mrf.mxu0
      %8510 = vmatprep.mubr.f32.mxu0 0.0
      %8511 = vmatmul.mubr.f32.gmra.mxu0 %v8419
      %v8512 = vpop.f32.mrf.mxu0
      %v8513 = vadd.f32 0.0, %v8512
      %v8514 = vpop.f32.mrf.mxu0
      %8515 = vmatprep.mubr.f32.mxu0 0.0
      %8516 = vmatmul.mubr.f32.gmra.mxu0 %v8422
      %v8517 = vpop.f32.mrf.mxu0
      %v8518 = vadd.f32 0.0, %v8517
      %v8519 = vpop.f32.mrf.mxu0
      %8520 = vmatprep.mubr.f32.mxu0 0.0
      %8521 = vmatmul.mubr.f32.gmra.mxu0 %v8425
      %v8522 = vpop.f32.mrf.mxu0
      %v8523 = vadd.f32 0.0, %v8522
      %v8524 = vpop.f32.mrf.mxu0
      %8525 = vmatprep.mubr.f32.mxu0 0.0
      %8526 = vmatmul.mubr.f32.gmra.mxu0 %v8428
      %v8527 = vpop.f32.mrf.mxu0
      %v8528 = vadd.f32 0.0, %v8527
      %v8529 = vpop.f32.mrf.mxu0
      %8530 = vmatprep.mubr.f32.mxu0 0.0
      %8531 = vmatmul.mubr.f32.gmra.mxu0 %v8431
      %v8532 = vpop.f32.mrf.mxu0
      %v8533 = vadd.f32 0.0, %v8532
      %v8534 = vpop.f32.mrf.mxu0
      %8535 = vmatprep.mubr.f32.mxu0 0.0
      %8536 = vmatmul.mubr.f32.gmra.mxu0 %v8434
      %v8537 = vpop.f32.mrf.mxu0
      %v8538 = vadd.f32 0.0, %v8537
      %v8539 = vpop.f32.mrf.mxu0
      %8540 = vdwg.mxu0
      %v8541 = vadd.f32 %v8394, %v8503
      %v8542 = vadd.f32 %v8395, %v8508
      %v8543 = vadd.f32 %v8396, %v8513
      %v8544 = vadd.f32 %v8397, %v8518
      %v8545 = vadd.f32 %v8398, %v8523
      %v8546 = vadd.f32 %v8399, %v8528
      %v8547 = vadd.f32 %v8400, %v8533
      %v8548 = vadd.f32 %v8401, %v8538
      %v8549 = vld [vmem:[%s1645] sm:$0xff]
      %v8550 = vld [vmem:[%s1645 + $0x20] sm:$0xff]
      %v8551 = vld [vmem:[%s1645 + $0x40] sm:$0xff]
      %v8552 = vld [vmem:[%s1645 + $0x60] sm:$0xff]
      %v8553 = vld [vmem:[%s1645 + $0x80] sm:$0xff]
      %v8554 = vld [vmem:[%s1645 + $0xa0] sm:$0xff]
      %v8555 = vld [vmem:[%s1645 + $0xc0] sm:$0xff]
      %v8556 = vld [vmem:[%s1645 + $0xe0] sm:$0xff]
      %s8557 = scalar_lea.vmem %s9, 32
      %v8558 = vld [vmem:[%s8557] sm:$0xff]
      %v8560 = vsel %vm2317, %v8549, 0
      %v8563 = vsel %vm2317, %v8550, 0
      %v8566 = vsel %vm2317, %v8551, 0
      %v8569 = vsel %vm2317, %v8552, 0
      %v8572 = vsel %vm2317, %v8553, 0
      %v8575 = vsel %vm2317, %v8554, 0
      %v8578 = vsel %vm2317, %v8555, 0
      %v8581 = vsel %vm2317, %v8556, 0
      %8583 = vmatprep.subr.mxu0 0.0
      %8584 = vmatpush1.msra.mxu0 0.0
      %8585 = vmatprep.subr.mxu0 0.0
      %8586 = vmatpush1.msra.mxu0 0.0
      %8587 = vmatprep.subr.mxu0 0.0
      %8588 = vmatpush1.msra.mxu0 0.0
      %8589 = vmatprep.subr.mxu0 0.0
      %8590 = vmatpush1.msra.mxu0 0.0
      %8591 = vmatprep.subr.mxu0 0.0
      %8592 = vmatpush1.msra.mxu0 0.0
      %8593 = vmatprep.subr.mxu0 0.0
      %8594 = vmatpush1.msra.mxu0 0.0
      %8595 = vmatprep.subr.mxu0 0.0
      %8596 = vmatpush1.msra.mxu0 0.0
      %8597 = vmatprep.subr.mxu0 0.0
      %8598 = vmatpush1.msra.mxu0 0.0
      %8599 = vmatprep.subr.mxu0 0.0
      %8600 = vmatpush1.msra.mxu0 0.0
      %8601 = vmatprep.subr.mxu0 0.0
      %8602 = vmatpush1.msra.mxu0 0.0
      %8603 = vmatprep.subr.mxu0 0.0
      %8604 = vmatpush1.msra.mxu0 0.0
      %8605 = vmatprep.subr.mxu0 0.0
      %8606 = vmatpush1.msra.mxu0 0.0
      %8607 = vmatprep.subr.mxu0 0.0
      %8608 = vmatpush1.msra.mxu0 0.0
      %8609 = vmatprep.subr.mxu0 0.0
      %8610 = vmatpush1.msra.mxu0 0.0
      %8611 = vmatprep.subr.mxu0 0.0
      %8612 = vmatpush1.msra.mxu0 0.0
      %8613 = vmatprep.subr.mxu0 0.0
      %8614 = vmatpush1.msra.mxu0 %v8558
      %8615 = vmatprep.subr.mxu0 0.0
      %8616 = vmatpush2.msra.mxu0 0.0
      %8617 = vmatprep.subr.mxu0 0.0
      %8618 = vmatpush2.msra.mxu0 0.0
      %8619 = vmatprep.subr.mxu0 0.0
      %8620 = vmatpush2.msra.mxu0 0.0
      %8621 = vmatprep.subr.mxu0 0.0
      %8622 = vmatpush2.msra.mxu0 0.0
      %8623 = vmatprep.subr.mxu0 0.0
      %8624 = vmatpush2.msra.mxu0 0.0
      %8625 = vmatprep.subr.mxu0 0.0
      %8626 = vmatpush2.msra.mxu0 0.0
      %8627 = vmatprep.subr.mxu0 0.0
      %8628 = vmatpush2.msra.mxu0 0.0
      %8629 = vmatprep.subr.mxu0 0.0
      %8630 = vmatpush2.msra.mxu0 0.0
      %8631 = vmatprep.subr.mxu0 0.0
      %8632 = vmatpush2.msra.mxu0 0.0
      %8633 = vmatprep.subr.mxu0 0.0
      %8634 = vmatpush2.msra.mxu0 0.0
      %8635 = vmatprep.subr.mxu0 0.0
      %8636 = vmatpush2.msra.mxu0 0.0
      %8637 = vmatprep.subr.mxu0 0.0
      %8638 = vmatpush2.msra.mxu0 0.0
      %8639 = vmatprep.subr.mxu0 0.0
      %8640 = vmatpush2.msra.mxu0 0.0
      %8641 = vmatprep.subr.mxu0 0.0
      %8642 = vmatpush2.msra.mxu0 0.0
      %8643 = vmatprep.subr.mxu0 0.0
      %8644 = vmatpush2.msra.mxu0 0.0
      %8645 = vmatprep.subr.mxu0 0.0
      %8646 = vmatpush2.msra.mxu0 0.0
      %8647 = vmatprep.mubr.f32.mxu0 0.0
      %8648 = vmatmul.mubr.f32.gmra.mxu0 %v8560
      %v8649 = vpop.f32.mrf.mxu0
      %v8650 = vadd.f32 0.0, %v8649
      %v8651 = vpop.f32.mrf.mxu0
      %8652 = vmatprep.mubr.f32.mxu0 0.0
      %8653 = vmatmul.mubr.f32.gmra.mxu0 %v8563
      %v8654 = vpop.f32.mrf.mxu0
      %v8655 = vadd.f32 0.0, %v8654
      %v8656 = vpop.f32.mrf.mxu0
      %8657 = vmatprep.mubr.f32.mxu0 0.0
      %8658 = vmatmul.mubr.f32.gmra.mxu0 %v8566
      %v8659 = vpop.f32.mrf.mxu0
      %v8660 = vadd.f32 0.0, %v8659
      %v8661 = vpop.f32.mrf.mxu0
      %8662 = vmatprep.mubr.f32.mxu0 0.0
      %8663 = vmatmul.mubr.f32.gmra.mxu0 %v8569
      %v8664 = vpop.f32.mrf.mxu0
      %v8665 = vadd.f32 0.0, %v8664
      %v8666 = vpop.f32.mrf.mxu0
      %8667 = vmatprep.mubr.f32.mxu0 0.0
      %8668 = vmatmul.mubr.f32.gmra.mxu0 %v8572
      %v8669 = vpop.f32.mrf.mxu0
      %v8670 = vadd.f32 0.0, %v8669
      %v8671 = vpop.f32.mrf.mxu0
      %8672 = vmatprep.mubr.f32.mxu0 0.0
      %8673 = vmatmul.mubr.f32.gmra.mxu0 %v8575
      %v8674 = vpop.f32.mrf.mxu0
      %v8675 = vadd.f32 0.0, %v8674
      %v8676 = vpop.f32.mrf.mxu0
      %8677 = vmatprep.mubr.f32.mxu0 0.0
      %8678 = vmatmul.mubr.f32.gmra.mxu0 %v8578
      %v8679 = vpop.f32.mrf.mxu0
      %v8680 = vadd.f32 0.0, %v8679
      %v8681 = vpop.f32.mrf.mxu0
      %8682 = vmatprep.mubr.f32.mxu0 0.0
      %8683 = vmatmul.mubr.f32.gmra.mxu0 %v8581
      %v8684 = vpop.f32.mrf.mxu0
      %v8685 = vadd.f32 0.0, %v8684
      %v8686 = vpop.f32.mrf.mxu0
      %8687 = vdwg.mxu0
      %v8688 = vadd.f32 %v8541, %v8650
      %v8689 = vadd.f32 %v8542, %v8655
      %v8690 = vadd.f32 %v8543, %v8660
      %v8691 = vadd.f32 %v8544, %v8665
      %v8692 = vadd.f32 %v8545, %v8670
      %v8693 = vadd.f32 %v8546, %v8675
      %v8694 = vadd.f32 %v8547, %v8680
      %v8695 = vadd.f32 %v8548, %v8685
      %v8696 = vld [vmem:[%s1824] sm:$0xff]
      %v8697 = vld [vmem:[%s1824 + $0x20] sm:$0xff]
      %v8698 = vld [vmem:[%s1824 + $0x40] sm:$0xff]
      %v8699 = vld [vmem:[%s1824 + $0x60] sm:$0xff]
      %v8700 = vld [vmem:[%s1824 + $0x80] sm:$0xff]
      %v8701 = vld [vmem:[%s1824 + $0xa0] sm:$0xff]
      %v8702 = vld [vmem:[%s1824 + $0xc0] sm:$0xff]
      %v8703 = vld [vmem:[%s1824 + $0xe0] sm:$0xff]
      %s8704 = scalar_lea.vmem %s9, 40
      %v8705 = vld [vmem:[%s8704] sm:$0xff]
      %v8707 = vsel %vm2317, %v8696, 0
      %v8710 = vsel %vm2317, %v8697, 0
      %v8713 = vsel %vm2317, %v8698, 0
      %v8716 = vsel %vm2317, %v8699, 0
      %v8719 = vsel %vm2317, %v8700, 0
      %v8722 = vsel %vm2317, %v8701, 0
      %v8725 = vsel %vm2317, %v8702, 0
      %v8728 = vsel %vm2317, %v8703, 0
      %8730 = vmatprep.subr.mxu0 0.0
      %8731 = vmatpush1.msra.mxu0 0.0
      %8732 = vmatprep.subr.mxu0 0.0
      %8733 = vmatpush1.msra.mxu0 0.0
      %8734 = vmatprep.subr.mxu0 0.0
      %8735 = vmatpush1.msra.mxu0 0.0
      %8736 = vmatprep.subr.mxu0 0.0
      %8737 = vmatpush1.msra.mxu0 0.0
      %8738 = vmatprep.subr.mxu0 0.0
      %8739 = vmatpush1.msra.mxu0 0.0
      %8740 = vmatprep.subr.mxu0 0.0
      %8741 = vmatpush1.msra.mxu0 0.0
      %8742 = vmatprep.subr.mxu0 0.0
      %8743 = vmatpush1.msra.mxu0 0.0
      %8744 = vmatprep.subr.mxu0 0.0
      %8745 = vmatpush1.msra.mxu0 0.0
      %8746 = vmatprep.subr.mxu0 0.0
      %8747 = vmatpush1.msra.mxu0 0.0
      %8748 = vmatprep.subr.mxu0 0.0
      %8749 = vmatpush1.msra.mxu0 0.0
      %8750 = vmatprep.subr.mxu0 0.0
      %8751 = vmatpush1.msra.mxu0 0.0
      %8752 = vmatprep.subr.mxu0 0.0
      %8753 = vmatpush1.msra.mxu0 0.0
      %8754 = vmatprep.subr.mxu0 0.0
      %8755 = vmatpush1.msra.mxu0 0.0
      %8756 = vmatprep.subr.mxu0 0.0
      %8757 = vmatpush1.msra.mxu0 0.0
      %8758 = vmatprep.subr.mxu0 0.0
      %8759 = vmatpush1.msra.mxu0 0.0
      %8760 = vmatprep.subr.mxu0 0.0
      %8761 = vmatpush1.msra.mxu0 %v8705
      %8762 = vmatprep.subr.mxu0 0.0
      %8763 = vmatpush2.msra.mxu0 0.0
      %8764 = vmatprep.subr.mxu0 0.0
      %8765 = vmatpush2.msra.mxu0 0.0
      %8766 = vmatprep.subr.mxu0 0.0
      %8767 = vmatpush2.msra.mxu0 0.0
      %8768 = vmatprep.subr.mxu0 0.0
      %8769 = vmatpush2.msra.mxu0 0.0
      %8770 = vmatprep.subr.mxu0 0.0
      %8771 = vmatpush2.msra.mxu0 0.0
      %8772 = vmatprep.subr.mxu0 0.0
      %8773 = vmatpush2.msra.mxu0 0.0
      %8774 = vmatprep.subr.mxu0 0.0
      %8775 = vmatpush2.msra.mxu0 0.0
      %8776 = vmatprep.subr.mxu0 0.0
      %8777 = vmatpush2.msra.mxu0 0.0
      %8778 = vmatprep.subr.mxu0 0.0
      %8779 = vmatpush2.msra.mxu0 0.0
      %8780 = vmatprep.subr.mxu0 0.0
      %8781 = vmatpush2.msra.mxu0 0.0
      %8782 = vmatprep.subr.mxu0 0.0
      %8783 = vmatpush2.msra.mxu0 0.0
      %8784 = vmatprep.subr.mxu0 0.0
      %8785 = vmatpush2.msra.mxu0 0.0
      %8786 = vmatprep.subr.mxu0 0.0
      %8787 = vmatpush2.msra.mxu0 0.0
      %8788 = vmatprep.subr.mxu0 0.0
      %8789 = vmatpush2.msra.mxu0 0.0
      %8790 = vmatprep.subr.mxu0 0.0
      %8791 = vmatpush2.msra.mxu0 0.0
      %8792 = vmatprep.subr.mxu0 0.0
      %8793 = vmatpush2.msra.mxu0 0.0
      %8794 = vmatprep.mubr.f32.mxu0 0.0
      %8795 = vmatmul.mubr.f32.gmra.mxu0 %v8707
      %v8796 = vpop.f32.mrf.mxu0
      %v8797 = vadd.f32 0.0, %v8796
      %v8798 = vpop.f32.mrf.mxu0
      %8799 = vmatprep.mubr.f32.mxu0 0.0
      %8800 = vmatmul.mubr.f32.gmra.mxu0 %v8710
      %v8801 = vpop.f32.mrf.mxu0
      %v8802 = vadd.f32 0.0, %v8801
      %v8803 = vpop.f32.mrf.mxu0
      %8804 = vmatprep.mubr.f32.mxu0 0.0
      %8805 = vmatmul.mubr.f32.gmra.mxu0 %v8713
      %v8806 = vpop.f32.mrf.mxu0
      %v8807 = vadd.f32 0.0, %v8806
      %v8808 = vpop.f32.mrf.mxu0
      %8809 = vmatprep.mubr.f32.mxu0 0.0
      %8810 = vmatmul.mubr.f32.gmra.mxu0 %v8716
      %v8811 = vpop.f32.mrf.mxu0
      %v8812 = vadd.f32 0.0, %v8811
      %v8813 = vpop.f32.mrf.mxu0
      %8814 = vmatprep.mubr.f32.mxu0 0.0
      %8815 = vmatmul.mubr.f32.gmra.mxu0 %v8719
      %v8816 = vpop.f32.mrf.mxu0
      %v8817 = vadd.f32 0.0, %v8816
      %v8818 = vpop.f32.mrf.mxu0
      %8819 = vmatprep.mubr.f32.mxu0 0.0
      %8820 = vmatmul.mubr.f32.gmra.mxu0 %v8722
      %v8821 = vpop.f32.mrf.mxu0
      %v8822 = vadd.f32 0.0, %v8821
      %v8823 = vpop.f32.mrf.mxu0
      %8824 = vmatprep.mubr.f32.mxu0 0.0
      %8825 = vmatmul.mubr.f32.gmra.mxu0 %v8725
      %v8826 = vpop.f32.mrf.mxu0
      %v8827 = vadd.f32 0.0, %v8826
      %v8828 = vpop.f32.mrf.mxu0
      %8829 = vmatprep.mubr.f32.mxu0 0.0
      %8830 = vmatmul.mubr.f32.gmra.mxu0 %v8728
      %v8831 = vpop.f32.mrf.mxu0
      %v8832 = vadd.f32 0.0, %v8831
      %v8833 = vpop.f32.mrf.mxu0
      %8834 = vdwg.mxu0
      %v8835 = vadd.f32 %v8688, %v8797
      %v8836 = vadd.f32 %v8689, %v8802
      %v8837 = vadd.f32 %v8690, %v8807
      %v8838 = vadd.f32 %v8691, %v8812
      %v8839 = vadd.f32 %v8692, %v8817
      %v8840 = vadd.f32 %v8693, %v8822
      %v8841 = vadd.f32 %v8694, %v8827
      %v8842 = vadd.f32 %v8695, %v8832
      %v8843 = vld [vmem:[%s2003] sm:$0xff]
      %v8844 = vld [vmem:[%s2003 + $0x20] sm:$0xff]
      %v8845 = vld [vmem:[%s2003 + $0x40] sm:$0xff]
      %v8846 = vld [vmem:[%s2003 + $0x60] sm:$0xff]
      %v8847 = vld [vmem:[%s2003 + $0x80] sm:$0xff]
      %v8848 = vld [vmem:[%s2003 + $0xa0] sm:$0xff]
      %v8849 = vld [vmem:[%s2003 + $0xc0] sm:$0xff]
      %v8850 = vld [vmem:[%s2003 + $0xe0] sm:$0xff]
      %s8851 = scalar_lea.vmem %s9, 48
      %v8852 = vld [vmem:[%s8851] sm:$0xff]
      %v8854 = vsel %vm2317, %v8843, 0
      %v8857 = vsel %vm2317, %v8844, 0
      %v8860 = vsel %vm2317, %v8845, 0
      %v8863 = vsel %vm2317, %v8846, 0
      %v8866 = vsel %vm2317, %v8847, 0
      %v8869 = vsel %vm2317, %v8848, 0
      %v8872 = vsel %vm2317, %v8849, 0
      %v8875 = vsel %vm2317, %v8850, 0
      %8877 = vmatprep.subr.mxu0 0.0
      %8878 = vmatpush1.msra.mxu0 0.0
      %8879 = vmatprep.subr.mxu0 0.0
      %8880 = vmatpush1.msra.mxu0 0.0
      %8881 = vmatprep.subr.mxu0 0.0
      %8882 = vmatpush1.msra.mxu0 0.0
      %8883 = vmatprep.subr.mxu0 0.0
      %8884 = vmatpush1.msra.mxu0 0.0
      %8885 = vmatprep.subr.mxu0 0.0
      %8886 = vmatpush1.msra.mxu0 0.0
      %8887 = vmatprep.subr.mxu0 0.0
      %8888 = vmatpush1.msra.mxu0 0.0
      %8889 = vmatprep.subr.mxu0 0.0
      %8890 = vmatpush1.msra.mxu0 0.0
      %8891 = vmatprep.subr.mxu0 0.0
      %8892 = vmatpush1.msra.mxu0 0.0
      %8893 = vmatprep.subr.mxu0 0.0
      %8894 = vmatpush1.msra.mxu0 0.0
      %8895 = vmatprep.subr.mxu0 0.0
      %8896 = vmatpush1.msra.mxu0 0.0
      %8897 = vmatprep.subr.mxu0 0.0
      %8898 = vmatpush1.msra.mxu0 0.0
      %8899 = vmatprep.subr.mxu0 0.0
      %8900 = vmatpush1.msra.mxu0 0.0
      %8901 = vmatprep.subr.mxu0 0.0
      %8902 = vmatpush1.msra.mxu0 0.0
      %8903 = vmatprep.subr.mxu0 0.0
      %8904 = vmatpush1.msra.mxu0 0.0
      %8905 = vmatprep.subr.mxu0 0.0
      %8906 = vmatpush1.msra.mxu0 0.0
      %8907 = vmatprep.subr.mxu0 0.0
      %8908 = vmatpush1.msra.mxu0 %v8852
      %8909 = vmatprep.subr.mxu0 0.0
      %8910 = vmatpush2.msra.mxu0 0.0
      %8911 = vmatprep.subr.mxu0 0.0
      %8912 = vmatpush2.msra.mxu0 0.0
      %8913 = vmatprep.subr.mxu0 0.0
      %8914 = vmatpush2.msra.mxu0 0.0
      %8915 = vmatprep.subr.mxu0 0.0
      %8916 = vmatpush2.msra.mxu0 0.0
      %8917 = vmatprep.subr.mxu0 0.0
      %8918 = vmatpush2.msra.mxu0 0.0
      %8919 = vmatprep.subr.mxu0 0.0
      %8920 = vmatpush2.msra.mxu0 0.0
      %8921 = vmatprep.subr.mxu0 0.0
      %8922 = vmatpush2.msra.mxu0 0.0
      %8923 = vmatprep.subr.mxu0 0.0
      %8924 = vmatpush2.msra.mxu0 0.0
      %8925 = vmatprep.subr.mxu0 0.0
      %8926 = vmatpush2.msra.mxu0 0.0
      %8927 = vmatprep.subr.mxu0 0.0
      %8928 = vmatpush2.msra.mxu0 0.0
      %8929 = vmatprep.subr.mxu0 0.0
      %8930 = vmatpush2.msra.mxu0 0.0
      %8931 = vmatprep.subr.mxu0 0.0
      %8932 = vmatpush2.msra.mxu0 0.0
      %8933 = vmatprep.subr.mxu0 0.0
      %8934 = vmatpush2.msra.mxu0 0.0
      %8935 = vmatprep.subr.mxu0 0.0
      %8936 = vmatpush2.msra.mxu0 0.0
      %8937 = vmatprep.subr.mxu0 0.0
      %8938 = vmatpush2.msra.mxu0 0.0
      %8939 = vmatprep.subr.mxu0 0.0
      %8940 = vmatpush2.msra.mxu0 0.0
      %8941 = vmatprep.mubr.f32.mxu0 0.0
      %8942 = vmatmul.mubr.f32.gmra.mxu0 %v8854
      %v8943 = vpop.f32.mrf.mxu0
      %v8944 = vadd.f32 0.0, %v8943
      %v8945 = vpop.f32.mrf.mxu0
      %8946 = vmatprep.mubr.f32.mxu0 0.0
      %8947 = vmatmul.mubr.f32.gmra.mxu0 %v8857
      %v8948 = vpop.f32.mrf.mxu0
      %v8949 = vadd.f32 0.0, %v8948
      %v8950 = vpop.f32.mrf.mxu0
      %8951 = vmatprep.mubr.f32.mxu0 0.0
      %8952 = vmatmul.mubr.f32.gmra.mxu0 %v8860
      %v8953 = vpop.f32.mrf.mxu0
      %v8954 = vadd.f32 0.0, %v8953
      %v8955 = vpop.f32.mrf.mxu0
      %8956 = vmatprep.mubr.f32.mxu0 0.0
      %8957 = vmatmul.mubr.f32.gmra.mxu0 %v8863
      %v8958 = vpop.f32.mrf.mxu0
      %v8959 = vadd.f32 0.0, %v8958
      %v8960 = vpop.f32.mrf.mxu0
      %8961 = vmatprep.mubr.f32.mxu0 0.0
      %8962 = vmatmul.mubr.f32.gmra.mxu0 %v8866
      %v8963 = vpop.f32.mrf.mxu0
      %v8964 = vadd.f32 0.0, %v8963
      %v8965 = vpop.f32.mrf.mxu0
      %8966 = vmatprep.mubr.f32.mxu0 0.0
      %8967 = vmatmul.mubr.f32.gmra.mxu0 %v8869
      %v8968 = vpop.f32.mrf.mxu0
      %v8969 = vadd.f32 0.0, %v8968
      %v8970 = vpop.f32.mrf.mxu0
      %8971 = vmatprep.mubr.f32.mxu0 0.0
      %8972 = vmatmul.mubr.f32.gmra.mxu0 %v8872
      %v8973 = vpop.f32.mrf.mxu0
      %v8974 = vadd.f32 0.0, %v8973
      %v8975 = vpop.f32.mrf.mxu0
      %8976 = vmatprep.mubr.f32.mxu0 0.0
      %8977 = vmatmul.mubr.f32.gmra.mxu0 %v8875
      %v8978 = vpop.f32.mrf.mxu0
      %v8979 = vadd.f32 0.0, %v8978
      %v8980 = vpop.f32.mrf.mxu0
      %8981 = vdwg.mxu0
      %v8982 = vadd.f32 %v8835, %v8944
      %v8983 = vadd.f32 %v8836, %v8949
      %v8984 = vadd.f32 %v8837, %v8954
      %v8985 = vadd.f32 %v8838, %v8959
      %v8986 = vadd.f32 %v8839, %v8964
      %v8987 = vadd.f32 %v8840, %v8969
      %v8988 = vadd.f32 %v8841, %v8974
      %v8989 = vadd.f32 %v8842, %v8979
      %v8990 = vmax.f32 %v8982, 0.0
      %v8991 = vmax.f32 %v8983, 0.0
      %v8992 = vmax.f32 %v8984, 0.0
      %v8993 = vmax.f32 %v8985, 0.0
      %v8994 = vmax.f32 %v8986, 0.0
      %v8995 = vmax.f32 %v8987, 0.0
      %v8996 = vmax.f32 %v8988, 0.0
      %v8997 = vmax.f32 %v8989, 0.0
      %v8998 = vld [vmem:[%s10] sm:$0xff]
      %v9000 = vsel %vm2317, %v8990, 0
      %v9003 = vsel %vm2317, %v8991, 0
      %v9006 = vsel %vm2317, %v8992, 0
      %v9009 = vsel %vm2317, %v8993, 0
      %v9012 = vsel %vm2317, %v8994, 0
      %v9015 = vsel %vm2317, %v8995, 0
      %v9018 = vsel %vm2317, %v8996, 0
      %v9021 = vsel %vm2317, %v8997, 0
      %9023 = vmatprep.subr.mxu0 0.0
      %9024 = vmatpush1.msra.mxu0 0.0
      %9025 = vmatprep.subr.mxu0 0.0
      %9026 = vmatpush1.msra.mxu0 0.0
      %9027 = vmatprep.subr.mxu0 0.0
      %9028 = vmatpush1.msra.mxu0 0.0
      %9029 = vmatprep.subr.mxu0 0.0
      %9030 = vmatpush1.msra.mxu0 0.0
      %9031 = vmatprep.subr.mxu0 0.0
      %9032 = vmatpush1.msra.mxu0 0.0
      %9033 = vmatprep.subr.mxu0 0.0
      %9034 = vmatpush1.msra.mxu0 0.0
      %9035 = vmatprep.subr.mxu0 0.0
      %9036 = vmatpush1.msra.mxu0 0.0
      %9037 = vmatprep.subr.mxu0 0.0
      %9038 = vmatpush1.msra.mxu0 0.0
      %9039 = vmatprep.subr.mxu0 0.0
      %9040 = vmatpush1.msra.mxu0 0.0
      %9041 = vmatprep.subr.mxu0 0.0
      %9042 = vmatpush1.msra.mxu0 0.0
      %9043 = vmatprep.subr.mxu0 0.0
      %9044 = vmatpush1.msra.mxu0 0.0
      %9045 = vmatprep.subr.mxu0 0.0
      %9046 = vmatpush1.msra.mxu0 0.0
      %9047 = vmatprep.subr.mxu0 0.0
      %9048 = vmatpush1.msra.mxu0 0.0
      %9049 = vmatprep.subr.mxu0 0.0
      %9050 = vmatpush1.msra.mxu0 0.0
      %9051 = vmatprep.subr.mxu0 0.0
      %9052 = vmatpush1.msra.mxu0 0.0
      %9053 = vmatprep.subr.mxu0 0.0
      %9054 = vmatpush1.msra.mxu0 %v8998
      %9055 = vmatprep.subr.mxu0 0.0
      %9056 = vmatpush2.msra.mxu0 0.0
      %9057 = vmatprep.subr.mxu0 0.0
      %9058 = vmatpush2.msra.mxu0 0.0
      %9059 = vmatprep.subr.mxu0 0.0
      %9060 = vmatpush2.msra.mxu0 0.0
      %9061 = vmatprep.subr.mxu0 0.0
      %9062 = vmatpush2.msra.mxu0 0.0
      %9063 = vmatprep.subr.mxu0 0.0
      %9064 = vmatpush2.msra.mxu0 0.0
      %9065 = vmatprep.subr.mxu0 0.0
      %9066 = vmatpush2.msra.mxu0 0.0
      %9067 = vmatprep.subr.mxu0 0.0
      %9068 = vmatpush2.msra.mxu0 0.0
      %9069 = vmatprep.subr.mxu0 0.0
      %9070 = vmatpush2.msra.mxu0 0.0
      %9071 = vmatprep.subr.mxu0 0.0
      %9072 = vmatpush2.msra.mxu0 0.0
      %9073 = vmatprep.subr.mxu0 0.0
      %9074 = vmatpush2.msra.mxu0 0.0
      %9075 = vmatprep.subr.mxu0 0.0
      %9076 = vmatpush2.msra.mxu0 0.0
      %9077 = vmatprep.subr.mxu0 0.0
      %9078 = vmatpush2.msra.mxu0 0.0
      %9079 = vmatprep.subr.mxu0 0.0
      %9080 = vmatpush2.msra.mxu0 0.0
      %9081 = vmatprep.subr.mxu0 0.0
      %9082 = vmatpush2.msra.mxu0 0.0
      %9083 = vmatprep.subr.mxu0 0.0
      %9084 = vmatpush2.msra.mxu0 0.0
      %9085 = vmatprep.subr.mxu0 0.0
      %9086 = vmatpush2.msra.mxu0 0.0
      %9087 = vmatprep.mubr.f32.mxu0 0.0
      %9088 = vmatmul.mubr.f32.gmra.mxu0 %v9000
      %v9089 = vpop.f32.mrf.mxu0
      %v9090 = vadd.f32 0.0, %v9089
      %v9091 = vpop.f32.mrf.mxu0
      %9092 = vmatprep.mubr.f32.mxu0 0.0
      %9093 = vmatmul.mubr.f32.gmra.mxu0 %v9003
      %v9094 = vpop.f32.mrf.mxu0
      %v9095 = vadd.f32 0.0, %v9094
      %v9096 = vpop.f32.mrf.mxu0
      %9097 = vmatprep.mubr.f32.mxu0 0.0
      %9098 = vmatmul.mubr.f32.gmra.mxu0 %v9006
      %v9099 = vpop.f32.mrf.mxu0
      %v9100 = vadd.f32 0.0, %v9099
      %v9101 = vpop.f32.mrf.mxu0
      %9102 = vmatprep.mubr.f32.mxu0 0.0
      %9103 = vmatmul.mubr.f32.gmra.mxu0 %v9009
      %v9104 = vpop.f32.mrf.mxu0
      %v9105 = vadd.f32 0.0, %v9104
      %v9106 = vpop.f32.mrf.mxu0
      %9107 = vmatprep.mubr.f32.mxu0 0.0
      %9108 = vmatmul.mubr.f32.gmra.mxu0 %v9012
      %v9109 = vpop.f32.mrf.mxu0
      %v9110 = vadd.f32 0.0, %v9109
      %v9111 = vpop.f32.mrf.mxu0
      %9112 = vmatprep.mubr.f32.mxu0 0.0
      %9113 = vmatmul.mubr.f32.gmra.mxu0 %v9015
      %v9114 = vpop.f32.mrf.mxu0
      %v9115 = vadd.f32 0.0, %v9114
      %v9116 = vpop.f32.mrf.mxu0
      %9117 = vmatprep.mubr.f32.mxu0 0.0
      %9118 = vmatmul.mubr.f32.gmra.mxu0 %v9018
      %v9119 = vpop.f32.mrf.mxu0
      %v9120 = vadd.f32 0.0, %v9119
      %v9121 = vpop.f32.mrf.mxu0
      %9122 = vmatprep.mubr.f32.mxu0 0.0
      %9123 = vmatmul.mubr.f32.gmra.mxu0 %v9021
      %v9124 = vpop.f32.mrf.mxu0
      %v9125 = vadd.f32 0.0, %v9124
      %v9126 = vpop.f32.mrf.mxu0
      %9127 = vdwg.mxu0
      %v9128 = vadd.f32 %v3646, %v9090
      %v9129 = vadd.f32 %v3647, %v9095
      %v9130 = vadd.f32 %v3648, %v9100
      %v9131 = vadd.f32 %v3649, %v9105
      %v9132 = vadd.f32 %v3650, %v9110
      %v9133 = vadd.f32 %v3651, %v9115
      %v9134 = vadd.f32 %v3652, %v9120
      %v9135 = vadd.f32 %v3653, %v9125
      %9136 = vst.msk [vmem:[%s386] sm:$0xff] %vm2317, %v9128
      %9137 = vst.msk [vmem:[%s386 + $0x8] sm:$0xff] %vm2317, %v9129
      %9138 = vst.msk [vmem:[%s386 + $0x10] sm:$0xff] %vm2317, %v9130
      %9139 = vst.msk [vmem:[%s386 + $0x18] sm:$0xff] %vm2317, %v9131
      %9140 = vst.msk [vmem:[%s386 + $0x20] sm:$0xff] %vm2317, %v9132
      %9141 = vst.msk [vmem:[%s386 + $0x28] sm:$0xff] %vm2317, %v9133
      %9142 = vst.msk [vmem:[%s386 + $0x30] sm:$0xff] %vm2317, %v9134
      %9143 = vst.msk [vmem:[%s386 + $0x38] sm:$0xff] %vm2317, %v9135
      %p9144 = scmp.lt.s32.totalorder %s22, 1
      %s9145 = scalar_select %p9144, %s22, 1
      %s9146 = smul.addr %s9145, 8
      %s9147 = smul.addr %s9146, 8
      %s9148 = scalar_lea.vmem %s11, %s9147
      // Predicated region
      $region65: #{inception_c_dec_forward.1} parent=63 // pred_check
        %p9149 = pneg %p276
      $region66: #{inception_c_dec_forward.1} parent=63 // pred_check_branch
        %9151 = sbr.rel (%p9149) target = $region68
      $region67: #{inception_c_dec_forward.1} parent=63 // pred_region
        _
      $region68: #{inception_c_dec_forward.1} parent=63 // pred_fallthru
        _
    $region64: #{inception_c_dec_forward.1} parent=5 // pred_fallthru
      _
    %p9152 = scmp.le.s32.totalorder 2, %s17
    // Predicated region
    $region69: #{inception_c_dec_forward.1} parent=5 // pred_check
      %p9153 = pneg %p9152
    $region70: #{inception_c_dec_forward.1} parent=5 // pred_check_branch
      %9155 = sbr.rel (%p9153) target = $region72
    $region71: #{inception_c_dec_forward.1} parent=5 // pred_region
      %s9156 = ssub.s32 %s17, 2
      // Predicated region
      $region73: #{inception_c_dec_forward.1} parent=71 // pred_check
        %p9157 = pneg %p282
      $region74: #{inception_c_dec_forward.1} parent=71 // pred_check_branch
        %9159 = sbr.rel (%p9157) target = $region76
      $region75: #{inception_c_dec_forward.1} parent=71 // pred_region
        %p9160 = scmp.lt.s32.totalorder %s23, 1
        %s9161 = scalar_select %p9160, %s23, 1
        %s9162 = smul.addr %s9161, 8
        %s9163 = smul.addr %s9162, 8
        %s9164 = scalar_lea.vmem %s11, %s9163
      $region76: #{inception_c_dec_forward.1} parent=71 // pred_fallthru
        _
    $region72: #{inception_c_dec_forward.1} parent=5 // pred_fallthru
      _
  $region6: #{inception_c_dec_forward.1} parent=0 // loop_footer
    %s21 = sadd.s32 1, %s17
  $region7: #{inception_c_dec_forward.1} parent=0 // loop_footer_branch
    %16 = sbr.rel target = $region3
  $region8: #{inception_c_dec_forward.1} parent=0 // loop_exit
    _

</llo_original>
